<compile_context>
chip_gen: v6e
topology: v6e:2x2x1
jax: 0.10.0
libtpu: 0.0.40
codegen_flags: <defaults>
</compile_context>

<pallas_src>
import functools

import numpy as np
import jax
import jax.numpy as jnp
from jax.experimental import pallas as pl
from jax.experimental.pallas import tpu as pltpu


# ---------------------------------------------------------------------------
# The single fused Pallas kernel
# ---------------------------------------------------------------------------
def _widar_fused_kernel(col1_ref, w1_ref, b1_ref, w2_ref, b2_ref,
                        w3_ref, b3_ref, fw1_ref, fb1_ref, fw2_ref, fb2_ref,
                        o_ref, *, bsz, h1, w1):
    c1 = w1_ref.shape[1]

    # ---- conv1 (stride-2 im2col done in XLA): one MXU matmul, bias + ReLU ----
    y = jnp.dot(col1_ref[...], w1_ref[...], preferred_element_type=jnp.float32)
    y = jnp.maximum(y + b1_ref[...], 0.0).astype(jnp.bfloat16)
    y = y.reshape(bsz, h1, w1, c1)                      # lane dim unchanged

    # ---- 3x3 valid conv as a sum of 9 tap matmuls (compact K per tap) ----
    def conv3x3_relu(v4, w_ref, b_ref):
        bs, hh, ww, cin = v4.shape
        w = w_ref[...]                                  # (3, 3, cin, cout)
        cout = w.shape[-1]
        ho, wo = hh - 2, ww - 2
        m = bs * ho * wo
        acc = jnp.zeros((m, cout), jnp.float32)
        for i in range(3):
            for j in range(3):
                tap = v4[:, i:i + ho, j:j + wo, :].reshape(m, cin)
                acc = acc + jnp.dot(tap, w[i, j],
                                    preferred_element_type=jnp.float32)
        out2 = jnp.maximum(acc + b_ref[...], 0.0).astype(jnp.bfloat16)
        return out2, ho, wo                             # rows ordered (b, h, w)

    y, h2, w2o = conv3x3_relu(y, w2_ref, b2_ref)        # (bsz*6*6, 64)
    y = y.reshape(bsz, h2, w2o, w2_ref.shape[-1])
    y, h3, w3o = conv3x3_relu(y, w3_ref, b3_ref)        # (bsz*4*4, 96)

    # ---- fc1: contract over the 16 spatial positions with per-position
    #      (96,128) weight blocks (rows pre-permuted from PyTorch's CHW
    #      flatten order) -> no lane-merging flatten needed in-kernel. ----
    npos = h3 * w3o
    c3 = w3_ref.shape[-1]
    feat = y.reshape(bsz, npos, c3)                     # (bsz, 16, 96)
    fw1 = fw1_ref[...]                                  # (16, 96, 128)
    acc1 = jnp.zeros((bsz, fw1.shape[-1]), jnp.float32)
    for p in range(npos):
        acc1 = acc1 + jnp.dot(feat[:, p, :], fw1[p],
                              preferred_element_type=jnp.float32)
    hfc = jnp.maximum(acc1 + fb1_ref[...], 0.0).astype(jnp.bfloat16)

    # ---- fc2 ----
    out = jnp.dot(hfc, fw2_ref[...], preferred_element_type=jnp.float32)
    o_ref[...] = (out + fb2_ref[...]).astype(o_ref.dtype)


# ---------------------------------------------------------------------------
# XLA glue: stride-2 im2col for conv1 only (operates on the raw HBM input)
# ---------------------------------------------------------------------------
def _im2col(x, kh, kw, stride):
    """x: (B, H, W, C) -> (B*Ho*Wo, kh*kw*C), tap-major / channel-minor."""
    bsz, h, w, c = x.shape
    ho = (h - kh) // stride + 1
    wo = (w - kw) // stride + 1
    taps = []
    for i in range(kh):
        for j in range(kw):
            taps.append(x[:, i:i + (ho - 1) * stride + 1:stride,
                             j:j + (wo - 1) * stride + 1:stride, :])
    col = jnp.concatenate(taps, axis=-1)                # (B, Ho, Wo, kh*kw*C)
    return col.reshape(bsz * ho * wo, kh * kw * c), ho, wo


# ---------------------------------------------------------------------------
# Parameter init (PyTorch-default-style uniform), pre-layouted at init time
# ---------------------------------------------------------------------------
def _uniform(key, shape, fan_in):
    bound = 1.0 / np.sqrt(fan_in)
    return jax.random.uniform(key, shape, jnp.float32, -bound, bound)


def init_widar_lenet(key, num_classes):
    ks = jax.random.split(key, 10)
    # encoder: Conv2d(22,32,6,s=2), Conv2d(32,64,3), Conv2d(64,96,3) (with bias)
    w1 = _uniform(ks[0], (6, 6, 22, 32), 22 * 36)
    b1 = _uniform(ks[1], (32,), 22 * 36)
    w2 = _uniform(ks[2], (3, 3, 32, 64), 32 * 9)
    b2 = _uniform(ks[3], (64,), 32 * 9)
    w3 = _uniform(ks[4], (3, 3, 64, 96), 64 * 9)
    b3 = _uniform(ks[5], (96,), 64 * 9)
    # fc: Linear(96*4*4, 128), Linear(128, num_classes)
    fw1 = _uniform(ks[6], (96 * 4 * 4, 128), 96 * 4 * 4)   # rows in torch CHW order
    fb1 = _uniform(ks[7], (128,), 96 * 4 * 4)
    fw2 = _uniform(ks[8], (128, num_classes), 128)
    fb2 = _uniform(ks[9], (num_classes,), 128)

    # fc1 rows: torch feature index f = c*16 + p  ->  per-position blocks (p, c).
    fw1_pos = jnp.transpose(fw1.reshape(96, 16, 128), (1, 0, 2))   # (16, 96, 128)

    # Pad only the final (tiny) classifier lane dim to 128 for a lane-dense store.
    ncp = -(-num_classes // 128) * 128

    return dict(
        w1=w1.reshape(6 * 6 * 22, 32).astype(jnp.bfloat16),   # compact K = 792
        b1=b1.reshape(1, 32),
        w2=w2.astype(jnp.bfloat16), b2=b2.reshape(1, 64),
        w3=w3.astype(jnp.bfloat16), b3=b3.reshape(1, 96),
        fw1=fw1_pos.astype(jnp.bfloat16), fb1=fb1.reshape(1, 128),
        fw2=jnp.pad(fw2, ((0, 0), (0, ncp - num_classes))).astype(jnp.bfloat16),
        fb2=jnp.pad(fb2, (0, ncp - num_classes)).reshape(1, ncp),
    )


# ---------------------------------------------------------------------------
# Forward pass (matches Widar_LeNet.forward) — single pallas_call
# ---------------------------------------------------------------------------
def widar_lenet_forward(params, x, num_classes):
    bsz = x.shape[0]
    xn = jnp.transpose(x, (0, 2, 3, 1)).astype(jnp.bfloat16)   # NCHW -> NHWC
    col1, h1, w1 = _im2col(xn, 6, 6, 2)                        # (bsz*8*8, 792)

    assert col1.shape[1] == params["w1"].shape[0]
    npos = (h1 - 4) * (w1 - 4)                                 # after two 3x3 convs
    assert npos == params["fw1"].shape[0], "input spatial size inconsistent with fc1"

    ncp = params["fw2"].shape[1]
    args = (col1, params["w1"], params["b1"], params["w2"], params["b2"],
            params["w3"], params["b3"], params["fw1"], params["fb1"],
            params["fw2"], params["fb2"])

    def _full(a):
        shp = tuple(a.shape)
        return pl.BlockSpec(shp, lambda i: (0,) * len(shp))

    out = pl.pallas_call(
        functools.partial(_widar_fused_kernel, bsz=bsz, h1=h1, w1=w1),
        out_shape=jax.ShapeDtypeStruct((bsz, ncp), jnp.float32),
        grid_spec=pltpu.PrefetchScalarGridSpec(
            num_scalar_prefetch=0,
            grid=(1,),                                   # one step, no M splitting
            in_specs=[_full(a) for a in args],
            out_specs=pl.BlockSpec((bsz, ncp), lambda i: (0, 0)),
        ),
        compiler_params=pltpu.CompilerParams(
            dimension_semantics=("arbitrary",)),
    )(*args)
    return out[:, :num_classes]


# ---------------------------------------------------------------------------
if __name__ == "__main__":
    num_classes = 6
    key = jax.random.PRNGKey(0)
    pkey, xkey = jax.random.split(key)
    params = init_widar_lenet(pkey, num_classes)

    # Widar_LeNet input: (B, 22, 20, 20); batch = 2
    x = jax.random.normal(xkey, (2, 22, 20, 20), jnp.float32)

    fwd = jax.jit(functools.partial(widar_lenet_forward, num_classes=num_classes))
    out = jax.block_until_ready(fwd(params, x))

    assert out.shape == (2, num_classes), out.shape
    assert bool(jnp.all(jnp.isfinite(out)))
    print("KERNEL_OK")
</pallas_src>

<mosaic_0001>
module attributes {stable_mosaic.version = 11 : i64} {
  func.func @_widar_fused_kernel(%arg0: i32, %arg1: memref<128x792xbf16, #tpu.memory_space<vmem>>, %arg2: memref<792x32xbf16, #tpu.memory_space<vmem>>, %arg3: memref<1x32xf32, #tpu.memory_space<vmem>>, %arg4: memref<3x3x32x64xbf16, #tpu.memory_space<vmem>>, %arg5: memref<1x64xf32, #tpu.memory_space<vmem>>, %arg6: memref<3x3x64x96xbf16, #tpu.memory_space<vmem>>, %arg7: memref<1x96xf32, #tpu.memory_space<vmem>>, %arg8: memref<16x96x128xbf16, #tpu.memory_space<vmem>>, %arg9: memref<1x128xf32, #tpu.memory_space<vmem>>, %arg10: memref<128x128xbf16, #tpu.memory_space<vmem>>, %arg11: memref<1x128xf32, #tpu.memory_space<vmem>>, %arg12: memref<2x128xf32, #tpu.memory_space<vmem>>) attributes {dimension_semantics = [#tpu.dimension_semantics<arbitrary>], iteration_bounds = array<i64: 1>, scalar_prefetch = 0 : i64, scratch_operands = 0 : i64, tpu.core_type = #tpu.core_type<tc>, window_params = [{pipeline_mode = #tpu.pipeline_mode<synchronous>, transform_indices = @transform_0, window_bounds = array<i64: 128, 792>}, {pipeline_mode = #tpu.pipeline_mode<synchronous>, transform_indices = @transform_1, window_bounds = array<i64: 792, 32>}, {pipeline_mode = #tpu.pipeline_mode<synchronous>, transform_indices = @transform_2, window_bounds = array<i64: 1, 32>}, {pipeline_mode = #tpu.pipeline_mode<synchronous>, transform_indices = @transform_3, window_bounds = array<i64: 3, 3, 32, 64>}, {pipeline_mode = #tpu.pipeline_mode<synchronous>, transform_indices = @transform_4, window_bounds = array<i64: 1, 64>}, {pipeline_mode = #tpu.pipeline_mode<synchronous>, transform_indices = @transform_5, window_bounds = array<i64: 3, 3, 64, 96>}, {pipeline_mode = #tpu.pipeline_mode<synchronous>, transform_indices = @transform_6, window_bounds = array<i64: 1, 96>}, {pipeline_mode = #tpu.pipeline_mode<synchronous>, transform_indices = @transform_7, window_bounds = array<i64: 16, 96, 128>}, {pipeline_mode = #tpu.pipeline_mode<synchronous>, transform_indices = @transform_8, window_bounds = array<i64: 1, 128>}, {pipeline_mode = #tpu.pipeline_mode<synchronous>, transform_indices = @transform_9, window_bounds = array<i64: 128, 128>}, {pipeline_mode = #tpu.pipeline_mode<synchronous>, transform_indices = @transform_10, window_bounds = array<i64: 1, 128>}, {pipeline_mode = #tpu.pipeline_mode<synchronous>, transform_indices = @transform_11, window_bounds = array<i64: 2, 128>}]} {
    %c0 = arith.constant 0 : index
    %c0_0 = arith.constant 0 : index
    %0 = vector.load %arg1[%c0, %c0_0] : memref<128x792xbf16, #tpu.memory_space<vmem>>, vector<128x792xbf16>
    %c0_1 = arith.constant 0 : index
    %c0_2 = arith.constant 0 : index
    %1 = vector.load %arg2[%c0_1, %c0_2] : memref<792x32xbf16, #tpu.memory_space<vmem>>, vector<792x32xbf16>
    %cst = arith.constant dense<0.000000e+00> : vector<128x32xf32>
    %2 = tpu.matmul %0, %1, %cst {dimension_numbers = #tpu.dot_dimension_numbers<[1], [0], [0], [1], [0, 0, 1, 1], [], []>} : vector<128x792xbf16>, vector<792x32xbf16>, vector<128x32xf32> -> vector<128x32xf32>
    %c0_3 = arith.constant 0 : index
    %c0_4 = arith.constant 0 : index
    %3 = vector.load %arg3[%c0_3, %c0_4] : memref<1x32xf32, #tpu.memory_space<vmem>>, vector<1x32xf32>
    %4 = vector.broadcast %3 : vector<1x32xf32> to vector<128x32xf32>
    %5 = arith.addf %2, %4 : vector<128x32xf32>
    %cst_5 = arith.constant 0.000000e+00 : f32
    %6 = vector.broadcast %cst_5 : f32 to vector<128x32xf32>
    %7 = arith.maximumf %5, %6 : vector<128x32xf32>
    %8 = arith.truncf %7 : vector<128x32xf32> to vector<128x32xbf16>
    %9 = vector.shape_cast %8 : vector<128x32xbf16> to vector<2x8x8x32xbf16>
    %c0_6 = arith.constant 0 : index
    %c0_7 = arith.constant 0 : index
    %c0_8 = arith.constant 0 : index
    %c0_9 = arith.constant 0 : index
    %10 = vector.load %arg4[%c0_6, %c0_7, %c0_8, %c0_9] : memref<3x3x32x64xbf16, #tpu.memory_space<vmem>>, vector<3x3x32x64xbf16>
    %cst_10 = arith.constant 0.000000e+00 : f32
    %11 = vector.broadcast %cst_10 : f32 to vector<72x64xf32>
    %12 = vector.extract_strided_slice %9 {offsets = [0, 0, 0, 0], sizes = [2, 6, 6, 32], strides = [1, 1, 1, 1]} : vector<2x8x8x32xbf16> to vector<2x6x6x32xbf16>
    %13 = vector.shape_cast %12 : vector<2x6x6x32xbf16> to vector<72x32xbf16>
    %14 = vector.extract_strided_slice %10 {offsets = [0, 0, 0, 0], sizes = [1, 1, 32, 64], strides = [1, 1, 1, 1]} : vector<3x3x32x64xbf16> to vector<1x1x32x64xbf16>
    %15 = vector.shape_cast %14 : vector<1x1x32x64xbf16> to vector<32x64xbf16>
    %cst_11 = arith.constant dense<0.000000e+00> : vector<72x64xf32>
    %16 = tpu.matmul %13, %15, %cst_11 {dimension_numbers = #tpu.dot_dimension_numbers<[1], [0], [0], [1], [0, 0, 1, 1], [], []>} : vector<72x32xbf16>, vector<32x64xbf16>, vector<72x64xf32> -> vector<72x64xf32>
    %17 = arith.addf %11, %16 : vector<72x64xf32>
    %18 = vector.extract_strided_slice %9 {offsets = [0, 0, 1, 0], sizes = [2, 6, 6, 32], strides = [1, 1, 1, 1]} : vector<2x8x8x32xbf16> to vector<2x6x6x32xbf16>
    %19 = vector.shape_cast %18 : vector<2x6x6x32xbf16> to vector<72x32xbf16>
    %20 = vector.extract_strided_slice %10 {offsets = [0, 1, 0, 0], sizes = [1, 1, 32, 64], strides = [1, 1, 1, 1]} : vector<3x3x32x64xbf16> to vector<1x1x32x64xbf16>
    %21 = vector.shape_cast %20 : vector<1x1x32x64xbf16> to vector<32x64xbf16>
    %cst_12 = arith.constant dense<0.000000e+00> : vector<72x64xf32>
    %22 = tpu.matmul %19, %21, %cst_12 {dimension_numbers = #tpu.dot_dimension_numbers<[1], [0], [0], [1], [0, 0, 1, 1], [], []>} : vector<72x32xbf16>, vector<32x64xbf16>, vector<72x64xf32> -> vector<72x64xf32>
    %23 = arith.addf %17, %22 : vector<72x64xf32>
    %24 = vector.extract_strided_slice %9 {offsets = [0, 0, 2, 0], sizes = [2, 6, 6, 32], strides = [1, 1, 1, 1]} : vector<2x8x8x32xbf16> to vector<2x6x6x32xbf16>
    %25 = vector.shape_cast %24 : vector<2x6x6x32xbf16> to vector<72x32xbf16>
    %26 = vector.extract_strided_slice %10 {offsets = [0, 2, 0, 0], sizes = [1, 1, 32, 64], strides = [1, 1, 1, 1]} : vector<3x3x32x64xbf16> to vector<1x1x32x64xbf16>
    %27 = vector.shape_cast %26 : vector<1x1x32x64xbf16> to vector<32x64xbf16>
    %cst_13 = arith.constant dense<0.000000e+00> : vector<72x64xf32>
    %28 = tpu.matmul %25, %27, %cst_13 {dimension_numbers = #tpu.dot_dimension_numbers<[1], [0], [0], [1], [0, 0, 1, 1], [], []>} : vector<72x32xbf16>, vector<32x64xbf16>, vector<72x64xf32> -> vector<72x64xf32>
    %29 = arith.addf %23, %28 : vector<72x64xf32>
    %30 = vector.extract_strided_slice %9 {offsets = [0, 1, 0, 0], sizes = [2, 6, 6, 32], strides = [1, 1, 1, 1]} : vector<2x8x8x32xbf16> to vector<2x6x6x32xbf16>
    %31 = vector.shape_cast %30 : vector<2x6x6x32xbf16> to vector<72x32xbf16>
    %32 = vector.extract_strided_slice %10 {offsets = [1, 0, 0, 0], sizes = [1, 1, 32, 64], strides = [1, 1, 1, 1]} : vector<3x3x32x64xbf16> to vector<1x1x32x64xbf16>
    %33 = vector.shape_cast %32 : vector<1x1x32x64xbf16> to vector<32x64xbf16>
    %cst_14 = arith.constant dense<0.000000e+00> : vector<72x64xf32>
    %34 = tpu.matmul %31, %33, %cst_14 {dimension_numbers = #tpu.dot_dimension_numbers<[1], [0], [0], [1], [0, 0, 1, 1], [], []>} : vector<72x32xbf16>, vector<32x64xbf16>, vector<72x64xf32> -> vector<72x64xf32>
    %35 = arith.addf %29, %34 : vector<72x64xf32>
    %36 = vector.extract_strided_slice %9 {offsets = [0, 1, 1, 0], sizes = [2, 6, 6, 32], strides = [1, 1, 1, 1]} : vector<2x8x8x32xbf16> to vector<2x6x6x32xbf16>
    %37 = vector.shape_cast %36 : vector<2x6x6x32xbf16> to vector<72x32xbf16>
    %38 = vector.extract_strided_slice %10 {offsets = [1, 1, 0, 0], sizes = [1, 1, 32, 64], strides = [1, 1, 1, 1]} : vector<3x3x32x64xbf16> to vector<1x1x32x64xbf16>
    %39 = vector.shape_cast %38 : vector<1x1x32x64xbf16> to vector<32x64xbf16>
    %cst_15 = arith.constant dense<0.000000e+00> : vector<72x64xf32>
    %40 = tpu.matmul %37, %39, %cst_15 {dimension_numbers = #tpu.dot_dimension_numbers<[1], [0], [0], [1], [0, 0, 1, 1], [], []>} : vector<72x32xbf16>, vector<32x64xbf16>, vector<72x64xf32> -> vector<72x64xf32>
    %41 = arith.addf %35, %40 : vector<72x64xf32>
    %42 = vector.extract_strided_slice %9 {offsets = [0, 1, 2, 0], sizes = [2, 6, 6, 32], strides = [1, 1, 1, 1]} : vector<2x8x8x32xbf16> to vector<2x6x6x32xbf16>
    %43 = vector.shape_cast %42 : vector<2x6x6x32xbf16> to vector<72x32xbf16>
    %44 = vector.extract_strided_slice %10 {offsets = [1, 2, 0, 0], sizes = [1, 1, 32, 64], strides = [1, 1, 1, 1]} : vector<3x3x32x64xbf16> to vector<1x1x32x64xbf16>
    %45 = vector.shape_cast %44 : vector<1x1x32x64xbf16> to vector<32x64xbf16>
    %cst_16 = arith.constant dense<0.000000e+00> : vector<72x64xf32>
    %46 = tpu.matmul %43, %45, %cst_16 {dimension_numbers = #tpu.dot_dimension_numbers<[1], [0], [0], [1], [0, 0, 1, 1], [], []>} : vector<72x32xbf16>, vector<32x64xbf16>, vector<72x64xf32> -> vector<72x64xf32>
    %47 = arith.addf %41, %46 : vector<72x64xf32>
    %48 = vector.extract_strided_slice %9 {offsets = [0, 2, 0, 0], sizes = [2, 6, 6, 32], strides = [1, 1, 1, 1]} : vector<2x8x8x32xbf16> to vector<2x6x6x32xbf16>
    %49 = vector.shape_cast %48 : vector<2x6x6x32xbf16> to vector<72x32xbf16>
    %50 = vector.extract_strided_slice %10 {offsets = [2, 0, 0, 0], sizes = [1, 1, 32, 64], strides = [1, 1, 1, 1]} : vector<3x3x32x64xbf16> to vector<1x1x32x64xbf16>
    %51 = vector.shape_cast %50 : vector<1x1x32x64xbf16> to vector<32x64xbf16>
    %cst_17 = arith.constant dense<0.000000e+00> : vector<72x64xf32>
    %52 = tpu.matmul %49, %51, %cst_17 {dimension_numbers = #tpu.dot_dimension_numbers<[1], [0], [0], [1], [0, 0, 1, 1], [], []>} : vector<72x32xbf16>, vector<32x64xbf16>, vector<72x64xf32> -> vector<72x64xf32>
    %53 = arith.addf %47, %52 : vector<72x64xf32>
    %54 = vector.extract_strided_slice %9 {offsets = [0, 2, 1, 0], sizes = [2, 6, 6, 32], strides = [1, 1, 1, 1]} : vector<2x8x8x32xbf16> to vector<2x6x6x32xbf16>
    %55 = vector.shape_cast %54 : vector<2x6x6x32xbf16> to vector<72x32xbf16>
    %56 = vector.extract_strided_slice %10 {offsets = [2, 1, 0, 0], sizes = [1, 1, 32, 64], strides = [1, 1, 1, 1]} : vector<3x3x32x64xbf16> to vector<1x1x32x64xbf16>
    %57 = vector.shape_cast %56 : vector<1x1x32x64xbf16> to vector<32x64xbf16>
    %cst_18 = arith.constant dense<0.000000e+00> : vector<72x64xf32>
    %58 = tpu.matmul %55, %57, %cst_18 {dimension_numbers = #tpu.dot_dimension_numbers<[1], [0], [0], [1], [0, 0, 1, 1], [], []>} : vector<72x32xbf16>, vector<32x64xbf16>, vector<72x64xf32> -> vector<72x64xf32>
    %59 = arith.addf %53, %58 : vector<72x64xf32>
    %60 = vector.extract_strided_slice %9 {offsets = [0, 2, 2, 0], sizes = [2, 6, 6, 32], strides = [1, 1, 1, 1]} : vector<2x8x8x32xbf16> to vector<2x6x6x32xbf16>
    %61 = vector.shape_cast %60 : vector<2x6x6x32xbf16> to vector<72x32xbf16>
    %62 = vector.extract_strided_slice %10 {offsets = [2, 2, 0, 0], sizes = [1, 1, 32, 64], strides = [1, 1, 1, 1]} : vector<3x3x32x64xbf16> to vector<1x1x32x64xbf16>
    %63 = vector.shape_cast %62 : vector<1x1x32x64xbf16> to vector<32x64xbf16>
    %cst_19 = arith.constant dense<0.000000e+00> : vector<72x64xf32>
    %64 = tpu.matmul %61, %63, %cst_19 {dimension_numbers = #tpu.dot_dimension_numbers<[1], [0], [0], [1], [0, 0, 1, 1], [], []>} : vector<72x32xbf16>, vector<32x64xbf16>, vector<72x64xf32> -> vector<72x64xf32>
    %65 = arith.addf %59, %64 : vector<72x64xf32>
    %c0_20 = arith.constant 0 : index
    %c0_21 = arith.constant 0 : index
    %66 = vector.load %arg5[%c0_20, %c0_21] : memref<1x64xf32, #tpu.memory_space<vmem>>, vector<1x64xf32>
    %67 = vector.broadcast %66 : vector<1x64xf32> to vector<72x64xf32>
    %68 = arith.addf %65, %67 : vector<72x64xf32>
    %cst_22 = arith.constant 0.000000e+00 : f32
    %69 = vector.broadcast %cst_22 : f32 to vector<72x64xf32>
    %70 = arith.maximumf %68, %69 : vector<72x64xf32>
    %71 = arith.truncf %70 : vector<72x64xf32> to vector<72x64xbf16>
    %72 = vector.shape_cast %71 : vector<72x64xbf16> to vector<2x6x6x64xbf16>
    %c0_23 = arith.constant 0 : index
    %c0_24 = arith.constant 0 : index
    %c0_25 = arith.constant 0 : index
    %c0_26 = arith.constant 0 : index
    %73 = vector.load %arg6[%c0_23, %c0_24, %c0_25, %c0_26] : memref<3x3x64x96xbf16, #tpu.memory_space<vmem>>, vector<3x3x64x96xbf16>
    %cst_27 = arith.constant 0.000000e+00 : f32
    %74 = vector.broadcast %cst_27 : f32 to vector<32x96xf32>
    %75 = vector.extract_strided_slice %72 {offsets = [0, 0, 0, 0], sizes = [2, 4, 4, 64], strides = [1, 1, 1, 1]} : vector<2x6x6x64xbf16> to vector<2x4x4x64xbf16>
    %76 = vector.shape_cast %75 : vector<2x4x4x64xbf16> to vector<32x64xbf16>
    %77 = vector.extract_strided_slice %73 {offsets = [0, 0, 0, 0], sizes = [1, 1, 64, 96], strides = [1, 1, 1, 1]} : vector<3x3x64x96xbf16> to vector<1x1x64x96xbf16>
    %78 = vector.shape_cast %77 : vector<1x1x64x96xbf16> to vector<64x96xbf16>
    %cst_28 = arith.constant dense<0.000000e+00> : vector<32x96xf32>
    %79 = tpu.matmul %76, %78, %cst_28 {dimension_numbers = #tpu.dot_dimension_numbers<[1], [0], [0], [1], [0, 0, 1, 1], [], []>} : vector<32x64xbf16>, vector<64x96xbf16>, vector<32x96xf32> -> vector<32x96xf32>
    %80 = arith.addf %74, %79 : vector<32x96xf32>
    %81 = vector.extract_strided_slice %72 {offsets = [0, 0, 1, 0], sizes = [2, 4, 4, 64], strides = [1, 1, 1, 1]} : vector<2x6x6x64xbf16> to vector<2x4x4x64xbf16>
    %82 = vector.shape_cast %81 : vector<2x4x4x64xbf16> to vector<32x64xbf16>
    %83 = vector.extract_strided_slice %73 {offsets = [0, 1, 0, 0], sizes = [1, 1, 64, 96], strides = [1, 1, 1, 1]} : vector<3x3x64x96xbf16> to vector<1x1x64x96xbf16>
    %84 = vector.shape_cast %83 : vector<1x1x64x96xbf16> to vector<64x96xbf16>
    %cst_29 = arith.constant dense<0.000000e+00> : vector<32x96xf32>
    %85 = tpu.matmul %82, %84, %cst_29 {dimension_numbers = #tpu.dot_dimension_numbers<[1], [0], [0], [1], [0, 0, 1, 1], [], []>} : vector<32x64xbf16>, vector<64x96xbf16>, vector<32x96xf32> -> vector<32x96xf32>
    %86 = arith.addf %80, %85 : vector<32x96xf32>
    %87 = vector.extract_strided_slice %72 {offsets = [0, 0, 2, 0], sizes = [2, 4, 4, 64], strides = [1, 1, 1, 1]} : vector<2x6x6x64xbf16> to vector<2x4x4x64xbf16>
    %88 = vector.shape_cast %87 : vector<2x4x4x64xbf16> to vector<32x64xbf16>
    %89 = vector.extract_strided_slice %73 {offsets = [0, 2, 0, 0], sizes = [1, 1, 64, 96], strides = [1, 1, 1, 1]} : vector<3x3x64x96xbf16> to vector<1x1x64x96xbf16>
    %90 = vector.shape_cast %89 : vector<1x1x64x96xbf16> to vector<64x96xbf16>
    %cst_30 = arith.constant dense<0.000000e+00> : vector<32x96xf32>
    %91 = tpu.matmul %88, %90, %cst_30 {dimension_numbers = #tpu.dot_dimension_numbers<[1], [0], [0], [1], [0, 0, 1, 1], [], []>} : vector<32x64xbf16>, vector<64x96xbf16>, vector<32x96xf32> -> vector<32x96xf32>
    %92 = arith.addf %86, %91 : vector<32x96xf32>
    %93 = vector.extract_strided_slice %72 {offsets = [0, 1, 0, 0], sizes = [2, 4, 4, 64], strides = [1, 1, 1, 1]} : vector<2x6x6x64xbf16> to vector<2x4x4x64xbf16>
    %94 = vector.shape_cast %93 : vector<2x4x4x64xbf16> to vector<32x64xbf16>
    %95 = vector.extract_strided_slice %73 {offsets = [1, 0, 0, 0], sizes = [1, 1, 64, 96], strides = [1, 1, 1, 1]} : vector<3x3x64x96xbf16> to vector<1x1x64x96xbf16>
    %96 = vector.shape_cast %95 : vector<1x1x64x96xbf16> to vector<64x96xbf16>
    %cst_31 = arith.constant dense<0.000000e+00> : vector<32x96xf32>
    %97 = tpu.matmul %94, %96, %cst_31 {dimension_numbers = #tpu.dot_dimension_numbers<[1], [0], [0], [1], [0, 0, 1, 1], [], []>} : vector<32x64xbf16>, vector<64x96xbf16>, vector<32x96xf32> -> vector<32x96xf32>
    %98 = arith.addf %92, %97 : vector<32x96xf32>
    %99 = vector.extract_strided_slice %72 {offsets = [0, 1, 1, 0], sizes = [2, 4, 4, 64], strides = [1, 1, 1, 1]} : vector<2x6x6x64xbf16> to vector<2x4x4x64xbf16>
    %100 = vector.shape_cast %99 : vector<2x4x4x64xbf16> to vector<32x64xbf16>
    %101 = vector.extract_strided_slice %73 {offsets = [1, 1, 0, 0], sizes = [1, 1, 64, 96], strides = [1, 1, 1, 1]} : vector<3x3x64x96xbf16> to vector<1x1x64x96xbf16>
    %102 = vector.shape_cast %101 : vector<1x1x64x96xbf16> to vector<64x96xbf16>
    %cst_32 = arith.constant dense<0.000000e+00> : vector<32x96xf32>
    %103 = tpu.matmul %100, %102, %cst_32 {dimension_numbers = #tpu.dot_dimension_numbers<[1], [0], [0], [1], [0, 0, 1, 1], [], []>} : vector<32x64xbf16>, vector<64x96xbf16>, vector<32x96xf32> -> vector<32x96xf32>
    %104 = arith.addf %98, %103 : vector<32x96xf32>
    %105 = vector.extract_strided_slice %72 {offsets = [0, 1, 2, 0], sizes = [2, 4, 4, 64], strides = [1, 1, 1, 1]} : vector<2x6x6x64xbf16> to vector<2x4x4x64xbf16>
    %106 = vector.shape_cast %105 : vector<2x4x4x64xbf16> to vector<32x64xbf16>
    %107 = vector.extract_strided_slice %73 {offsets = [1, 2, 0, 0], sizes = [1, 1, 64, 96], strides = [1, 1, 1, 1]} : vector<3x3x64x96xbf16> to vector<1x1x64x96xbf16>
    %108 = vector.shape_cast %107 : vector<1x1x64x96xbf16> to vector<64x96xbf16>
    %cst_33 = arith.constant dense<0.000000e+00> : vector<32x96xf32>
    %109 = tpu.matmul %106, %108, %cst_33 {dimension_numbers = #tpu.dot_dimension_numbers<[1], [0], [0], [1], [0, 0, 1, 1], [], []>} : vector<32x64xbf16>, vector<64x96xbf16>, vector<32x96xf32> -> vector<32x96xf32>
    %110 = arith.addf %104, %109 : vector<32x96xf32>
    %111 = vector.extract_strided_slice %72 {offsets = [0, 2, 0, 0], sizes = [2, 4, 4, 64], strides = [1, 1, 1, 1]} : vector<2x6x6x64xbf16> to vector<2x4x4x64xbf16>
    %112 = vector.shape_cast %111 : vector<2x4x4x64xbf16> to vector<32x64xbf16>
    %113 = vector.extract_strided_slice %73 {offsets = [2, 0, 0, 0], sizes = [1, 1, 64, 96], strides = [1, 1, 1, 1]} : vector<3x3x64x96xbf16> to vector<1x1x64x96xbf16>
    %114 = vector.shape_cast %113 : vector<1x1x64x96xbf16> to vector<64x96xbf16>
    %cst_34 = arith.constant dense<0.000000e+00> : vector<32x96xf32>
    %115 = tpu.matmul %112, %114, %cst_34 {dimension_numbers = #tpu.dot_dimension_numbers<[1], [0], [0], [1], [0, 0, 1, 1], [], []>} : vector<32x64xbf16>, vector<64x96xbf16>, vector<32x96xf32> -> vector<32x96xf32>
    %116 = arith.addf %110, %115 : vector<32x96xf32>
    %117 = vector.extract_strided_slice %72 {offsets = [0, 2, 1, 0], sizes = [2, 4, 4, 64], strides = [1, 1, 1, 1]} : vector<2x6x6x64xbf16> to vector<2x4x4x64xbf16>
    %118 = vector.shape_cast %117 : vector<2x4x4x64xbf16> to vector<32x64xbf16>
    %119 = vector.extract_strided_slice %73 {offsets = [2, 1, 0, 0], sizes = [1, 1, 64, 96], strides = [1, 1, 1, 1]} : vector<3x3x64x96xbf16> to vector<1x1x64x96xbf16>
    %120 = vector.shape_cast %119 : vector<1x1x64x96xbf16> to vector<64x96xbf16>
    %cst_35 = arith.constant dense<0.000000e+00> : vector<32x96xf32>
    %121 = tpu.matmul %118, %120, %cst_35 {dimension_numbers = #tpu.dot_dimension_numbers<[1], [0], [0], [1], [0, 0, 1, 1], [], []>} : vector<32x64xbf16>, vector<64x96xbf16>, vector<32x96xf32> -> vector<32x96xf32>
    %122 = arith.addf %116, %121 : vector<32x96xf32>
    %123 = vector.extract_strided_slice %72 {offsets = [0, 2, 2, 0], sizes = [2, 4, 4, 64], strides = [1, 1, 1, 1]} : vector<2x6x6x64xbf16> to vector<2x4x4x64xbf16>
    %124 = vector.shape_cast %123 : vector<2x4x4x64xbf16> to vector<32x64xbf16>
    %125 = vector.extract_strided_slice %73 {offsets = [2, 2, 0, 0], sizes = [1, 1, 64, 96], strides = [1, 1, 1, 1]} : vector<3x3x64x96xbf16> to vector<1x1x64x96xbf16>
    %126 = vector.shape_cast %125 : vector<1x1x64x96xbf16> to vector<64x96xbf16>
    %cst_36 = arith.constant dense<0.000000e+00> : vector<32x96xf32>
    %127 = tpu.matmul %124, %126, %cst_36 {dimension_numbers = #tpu.dot_dimension_numbers<[1], [0], [0], [1], [0, 0, 1, 1], [], []>} : vector<32x64xbf16>, vector<64x96xbf16>, vector<32x96xf32> -> vector<32x96xf32>
    %128 = arith.addf %122, %127 : vector<32x96xf32>
    %c0_37 = arith.constant 0 : index
    %c0_38 = arith.constant 0 : index
    %129 = vector.load %arg7[%c0_37, %c0_38] : memref<1x96xf32, #tpu.memory_space<vmem>>, vector<1x96xf32>
    %130 = vector.broadcast %129 : vector<1x96xf32> to vector<32x96xf32>
    %131 = arith.addf %128, %130 : vector<32x96xf32>
    %cst_39 = arith.constant 0.000000e+00 : f32
    %132 = vector.broadcast %cst_39 : f32 to vector<32x96xf32>
    %133 = arith.maximumf %131, %132 : vector<32x96xf32>
    %134 = arith.truncf %133 : vector<32x96xf32> to vector<32x96xbf16>
    %135 = vector.shape_cast %134 : vector<32x96xbf16> to vector<2x16x96xbf16>
    %c0_40 = arith.constant 0 : index
    %c0_41 = arith.constant 0 : index
    %c0_42 = arith.constant 0 : index
    %136 = vector.load %arg8[%c0_40, %c0_41, %c0_42] : memref<16x96x128xbf16, #tpu.memory_space<vmem>>, vector<16x96x128xbf16>
    %cst_43 = arith.constant 0.000000e+00 : f32
    %137 = vector.broadcast %cst_43 : f32 to vector<2x128xf32>
    %138 = vector.extract_strided_slice %135 {offsets = [0, 0, 0], sizes = [2, 1, 96], strides = [1, 1, 1]} : vector<2x16x96xbf16> to vector<2x1x96xbf16>
    %139 = vector.shape_cast %138 : vector<2x1x96xbf16> to vector<2x96xbf16>
    %140 = vector.extract_strided_slice %136 {offsets = [0, 0, 0], sizes = [1, 96, 128], strides = [1, 1, 1]} : vector<16x96x128xbf16> to vector<1x96x128xbf16>
    %141 = vector.shape_cast %140 : vector<1x96x128xbf16> to vector<96x128xbf16>
    %cst_44 = arith.constant dense<0.000000e+00> : vector<2x128xf32>
    %142 = tpu.matmul %139, %141, %cst_44 {dimension_numbers = #tpu.dot_dimension_numbers<[1], [0], [0], [1], [0, 0, 1, 1], [], []>} : vector<2x96xbf16>, vector<96x128xbf16>, vector<2x128xf32> -> vector<2x128xf32>
    %143 = arith.addf %137, %142 : vector<2x128xf32>
    %144 = vector.extract_strided_slice %135 {offsets = [0, 1, 0], sizes = [2, 1, 96], strides = [1, 1, 1]} : vector<2x16x96xbf16> to vector<2x1x96xbf16>
    %145 = vector.shape_cast %144 : vector<2x1x96xbf16> to vector<2x96xbf16>
    %146 = vector.extract_strided_slice %136 {offsets = [1, 0, 0], sizes = [1, 96, 128], strides = [1, 1, 1]} : vector<16x96x128xbf16> to vector<1x96x128xbf16>
    %147 = vector.shape_cast %146 : vector<1x96x128xbf16> to vector<96x128xbf16>
    %cst_45 = arith.constant dense<0.000000e+00> : vector<2x128xf32>
    %148 = tpu.matmul %145, %147, %cst_45 {dimension_numbers = #tpu.dot_dimension_numbers<[1], [0], [0], [1], [0, 0, 1, 1], [], []>} : vector<2x96xbf16>, vector<96x128xbf16>, vector<2x128xf32> -> vector<2x128xf32>
    %149 = arith.addf %143, %148 : vector<2x128xf32>
    %150 = vector.extract_strided_slice %135 {offsets = [0, 2, 0], sizes = [2, 1, 96], strides = [1, 1, 1]} : vector<2x16x96xbf16> to vector<2x1x96xbf16>
    %151 = vector.shape_cast %150 : vector<2x1x96xbf16> to vector<2x96xbf16>
    %152 = vector.extract_strided_slice %136 {offsets = [2, 0, 0], sizes = [1, 96, 128], strides = [1, 1, 1]} : vector<16x96x128xbf16> to vector<1x96x128xbf16>
    %153 = vector.shape_cast %152 : vector<1x96x128xbf16> to vector<96x128xbf16>
    %cst_46 = arith.constant dense<0.000000e+00> : vector<2x128xf32>
    %154 = tpu.matmul %151, %153, %cst_46 {dimension_numbers = #tpu.dot_dimension_numbers<[1], [0], [0], [1], [0, 0, 1, 1], [], []>} : vector<2x96xbf16>, vector<96x128xbf16>, vector<2x128xf32> -> vector<2x128xf32>
    %155 = arith.addf %149, %154 : vector<2x128xf32>
    %156 = vector.extract_strided_slice %135 {offsets = [0, 3, 0], sizes = [2, 1, 96], strides = [1, 1, 1]} : vector<2x16x96xbf16> to vector<2x1x96xbf16>
    %157 = vector.shape_cast %156 : vector<2x1x96xbf16> to vector<2x96xbf16>
    %158 = vector.extract_strided_slice %136 {offsets = [3, 0, 0], sizes = [1, 96, 128], strides = [1, 1, 1]} : vector<16x96x128xbf16> to vector<1x96x128xbf16>
    %159 = vector.shape_cast %158 : vector<1x96x128xbf16> to vector<96x128xbf16>
    %cst_47 = arith.constant dense<0.000000e+00> : vector<2x128xf32>
    %160 = tpu.matmul %157, %159, %cst_47 {dimension_numbers = #tpu.dot_dimension_numbers<[1], [0], [0], [1], [0, 0, 1, 1], [], []>} : vector<2x96xbf16>, vector<96x128xbf16>, vector<2x128xf32> -> vector<2x128xf32>
    %161 = arith.addf %155, %160 : vector<2x128xf32>
    %162 = vector.extract_strided_slice %135 {offsets = [0, 4, 0], sizes = [2, 1, 96], strides = [1, 1, 1]} : vector<2x16x96xbf16> to vector<2x1x96xbf16>
    %163 = vector.shape_cast %162 : vector<2x1x96xbf16> to vector<2x96xbf16>
    %164 = vector.extract_strided_slice %136 {offsets = [4, 0, 0], sizes = [1, 96, 128], strides = [1, 1, 1]} : vector<16x96x128xbf16> to vector<1x96x128xbf16>
    %165 = vector.shape_cast %164 : vector<1x96x128xbf16> to vector<96x128xbf16>
    %cst_48 = arith.constant dense<0.000000e+00> : vector<2x128xf32>
    %166 = tpu.matmul %163, %165, %cst_48 {dimension_numbers = #tpu.dot_dimension_numbers<[1], [0], [0], [1], [0, 0, 1, 1], [], []>} : vector<2x96xbf16>, vector<96x128xbf16>, vector<2x128xf32> -> vector<2x128xf32>
    %167 = arith.addf %161, %166 : vector<2x128xf32>
    %168 = vector.extract_strided_slice %135 {offsets = [0, 5, 0], sizes = [2, 1, 96], strides = [1, 1, 1]} : vector<2x16x96xbf16> to vector<2x1x96xbf16>
    %169 = vector.shape_cast %168 : vector<2x1x96xbf16> to vector<2x96xbf16>
    %170 = vector.extract_strided_slice %136 {offsets = [5, 0, 0], sizes = [1, 96, 128], strides = [1, 1, 1]} : vector<16x96x128xbf16> to vector<1x96x128xbf16>
    %171 = vector.shape_cast %170 : vector<1x96x128xbf16> to vector<96x128xbf16>
    %cst_49 = arith.constant dense<0.000000e+00> : vector<2x128xf32>
    %172 = tpu.matmul %169, %171, %cst_49 {dimension_numbers = #tpu.dot_dimension_numbers<[1], [0], [0], [1], [0, 0, 1, 1], [], []>} : vector<2x96xbf16>, vector<96x128xbf16>, vector<2x128xf32> -> vector<2x128xf32>
    %173 = arith.addf %167, %172 : vector<2x128xf32>
    %174 = vector.extract_strided_slice %135 {offsets = [0, 6, 0], sizes = [2, 1, 96], strides = [1, 1, 1]} : vector<2x16x96xbf16> to vector<2x1x96xbf16>
    %175 = vector.shape_cast %174 : vector<2x1x96xbf16> to vector<2x96xbf16>
    %176 = vector.extract_strided_slice %136 {offsets = [6, 0, 0], sizes = [1, 96, 128], strides = [1, 1, 1]} : vector<16x96x128xbf16> to vector<1x96x128xbf16>
    %177 = vector.shape_cast %176 : vector<1x96x128xbf16> to vector<96x128xbf16>
    %cst_50 = arith.constant dense<0.000000e+00> : vector<2x128xf32>
    %178 = tpu.matmul %175, %177, %cst_50 {dimension_numbers = #tpu.dot_dimension_numbers<[1], [0], [0], [1], [0, 0, 1, 1], [], []>} : vector<2x96xbf16>, vector<96x128xbf16>, vector<2x128xf32> -> vector<2x128xf32>
    %179 = arith.addf %173, %178 : vector<2x128xf32>
    %180 = vector.extract_strided_slice %135 {offsets = [0, 7, 0], sizes = [2, 1, 96], strides = [1, 1, 1]} : vector<2x16x96xbf16> to vector<2x1x96xbf16>
    %181 = vector.shape_cast %180 : vector<2x1x96xbf16> to vector<2x96xbf16>
    %182 = vector.extract_strided_slice %136 {offsets = [7, 0, 0], sizes = [1, 96, 128], strides = [1, 1, 1]} : vector<16x96x128xbf16> to vector<1x96x128xbf16>
    %183 = vector.shape_cast %182 : vector<1x96x128xbf16> to vector<96x128xbf16>
    %cst_51 = arith.constant dense<0.000000e+00> : vector<2x128xf32>
    %184 = tpu.matmul %181, %183, %cst_51 {dimension_numbers = #tpu.dot_dimension_numbers<[1], [0], [0], [1], [0, 0, 1, 1], [], []>} : vector<2x96xbf16>, vector<96x128xbf16>, vector<2x128xf32> -> vector<2x128xf32>
    %185 = arith.addf %179, %184 : vector<2x128xf32>
    %186 = vector.extract_strided_slice %135 {offsets = [0, 8, 0], sizes = [2, 1, 96], strides = [1, 1, 1]} : vector<2x16x96xbf16> to vector<2x1x96xbf16>
    %187 = vector.shape_cast %186 : vector<2x1x96xbf16> to vector<2x96xbf16>
    %188 = vector.extract_strided_slice %136 {offsets = [8, 0, 0], sizes = [1, 96, 128], strides = [1, 1, 1]} : vector<16x96x128xbf16> to vector<1x96x128xbf16>
    %189 = vector.shape_cast %188 : vector<1x96x128xbf16> to vector<96x128xbf16>
    %cst_52 = arith.constant dense<0.000000e+00> : vector<2x128xf32>
    %190 = tpu.matmul %187, %189, %cst_52 {dimension_numbers = #tpu.dot_dimension_numbers<[1], [0], [0], [1], [0, 0, 1, 1], [], []>} : vector<2x96xbf16>, vector<96x128xbf16>, vector<2x128xf32> -> vector<2x128xf32>
    %191 = arith.addf %185, %190 : vector<2x128xf32>
    %192 = vector.extract_strided_slice %135 {offsets = [0, 9, 0], sizes = [2, 1, 96], strides = [1, 1, 1]} : vector<2x16x96xbf16> to vector<2x1x96xbf16>
    %193 = vector.shape_cast %192 : vector<2x1x96xbf16> to vector<2x96xbf16>
    %194 = vector.extract_strided_slice %136 {offsets = [9, 0, 0], sizes = [1, 96, 128], strides = [1, 1, 1]} : vector<16x96x128xbf16> to vector<1x96x128xbf16>
    %195 = vector.shape_cast %194 : vector<1x96x128xbf16> to vector<96x128xbf16>
    %cst_53 = arith.constant dense<0.000000e+00> : vector<2x128xf32>
    %196 = tpu.matmul %193, %195, %cst_53 {dimension_numbers = #tpu.dot_dimension_numbers<[1], [0], [0], [1], [0, 0, 1, 1], [], []>} : vector<2x96xbf16>, vector<96x128xbf16>, vector<2x128xf32> -> vector<2x128xf32>
    %197 = arith.addf %191, %196 : vector<2x128xf32>
    %198 = vector.extract_strided_slice %135 {offsets = [0, 10, 0], sizes = [2, 1, 96], strides = [1, 1, 1]} : vector<2x16x96xbf16> to vector<2x1x96xbf16>
    %199 = vector.shape_cast %198 : vector<2x1x96xbf16> to vector<2x96xbf16>
    %200 = vector.extract_strided_slice %136 {offsets = [10, 0, 0], sizes = [1, 96, 128], strides = [1, 1, 1]} : vector<16x96x128xbf16> to vector<1x96x128xbf16>
    %201 = vector.shape_cast %200 : vector<1x96x128xbf16> to vector<96x128xbf16>
    %cst_54 = arith.constant dense<0.000000e+00> : vector<2x128xf32>
    %202 = tpu.matmul %199, %201, %cst_54 {dimension_numbers = #tpu.dot_dimension_numbers<[1], [0], [0], [1], [0, 0, 1, 1], [], []>} : vector<2x96xbf16>, vector<96x128xbf16>, vector<2x128xf32> -> vector<2x128xf32>
    %203 = arith.addf %197, %202 : vector<2x128xf32>
    %204 = vector.extract_strided_slice %135 {offsets = [0, 11, 0], sizes = [2, 1, 96], strides = [1, 1, 1]} : vector<2x16x96xbf16> to vector<2x1x96xbf16>
    %205 = vector.shape_cast %204 : vector<2x1x96xbf16> to vector<2x96xbf16>
    %206 = vector.extract_strided_slice %136 {offsets = [11, 0, 0], sizes = [1, 96, 128], strides = [1, 1, 1]} : vector<16x96x128xbf16> to vector<1x96x128xbf16>
    %207 = vector.shape_cast %206 : vector<1x96x128xbf16> to vector<96x128xbf16>
    %cst_55 = arith.constant dense<0.000000e+00> : vector<2x128xf32>
    %208 = tpu.matmul %205, %207, %cst_55 {dimension_numbers = #tpu.dot_dimension_numbers<[1], [0], [0], [1], [0, 0, 1, 1], [], []>} : vector<2x96xbf16>, vector<96x128xbf16>, vector<2x128xf32> -> vector<2x128xf32>
    %209 = arith.addf %203, %208 : vector<2x128xf32>
    %210 = vector.extract_strided_slice %135 {offsets = [0, 12, 0], sizes = [2, 1, 96], strides = [1, 1, 1]} : vector<2x16x96xbf16> to vector<2x1x96xbf16>
    %211 = vector.shape_cast %210 : vector<2x1x96xbf16> to vector<2x96xbf16>
    %212 = vector.extract_strided_slice %136 {offsets = [12, 0, 0], sizes = [1, 96, 128], strides = [1, 1, 1]} : vector<16x96x128xbf16> to vector<1x96x128xbf16>
    %213 = vector.shape_cast %212 : vector<1x96x128xbf16> to vector<96x128xbf16>
    %cst_56 = arith.constant dense<0.000000e+00> : vector<2x128xf32>
    %214 = tpu.matmul %211, %213, %cst_56 {dimension_numbers = #tpu.dot_dimension_numbers<[1], [0], [0], [1], [0, 0, 1, 1], [], []>} : vector<2x96xbf16>, vector<96x128xbf16>, vector<2x128xf32> -> vector<2x128xf32>
    %215 = arith.addf %209, %214 : vector<2x128xf32>
    %216 = vector.extract_strided_slice %135 {offsets = [0, 13, 0], sizes = [2, 1, 96], strides = [1, 1, 1]} : vector<2x16x96xbf16> to vector<2x1x96xbf16>
    %217 = vector.shape_cast %216 : vector<2x1x96xbf16> to vector<2x96xbf16>
    %218 = vector.extract_strided_slice %136 {offsets = [13, 0, 0], sizes = [1, 96, 128], strides = [1, 1, 1]} : vector<16x96x128xbf16> to vector<1x96x128xbf16>
    %219 = vector.shape_cast %218 : vector<1x96x128xbf16> to vector<96x128xbf16>
    %cst_57 = arith.constant dense<0.000000e+00> : vector<2x128xf32>
    %220 = tpu.matmul %217, %219, %cst_57 {dimension_numbers = #tpu.dot_dimension_numbers<[1], [0], [0], [1], [0, 0, 1, 1], [], []>} : vector<2x96xbf16>, vector<96x128xbf16>, vector<2x128xf32> -> vector<2x128xf32>
    %221 = arith.addf %215, %220 : vector<2x128xf32>
    %222 = vector.extract_strided_slice %135 {offsets = [0, 14, 0], sizes = [2, 1, 96], strides = [1, 1, 1]} : vector<2x16x96xbf16> to vector<2x1x96xbf16>
    %223 = vector.shape_cast %222 : vector<2x1x96xbf16> to vector<2x96xbf16>
    %224 = vector.extract_strided_slice %136 {offsets = [14, 0, 0], sizes = [1, 96, 128], strides = [1, 1, 1]} : vector<16x96x128xbf16> to vector<1x96x128xbf16>
    %225 = vector.shape_cast %224 : vector<1x96x128xbf16> to vector<96x128xbf16>
    %cst_58 = arith.constant dense<0.000000e+00> : vector<2x128xf32>
    %226 = tpu.matmul %223, %225, %cst_58 {dimension_numbers = #tpu.dot_dimension_numbers<[1], [0], [0], [1], [0, 0, 1, 1], [], []>} : vector<2x96xbf16>, vector<96x128xbf16>, vector<2x128xf32> -> vector<2x128xf32>
    %227 = arith.addf %221, %226 : vector<2x128xf32>
    %228 = vector.extract_strided_slice %135 {offsets = [0, 15, 0], sizes = [2, 1, 96], strides = [1, 1, 1]} : vector<2x16x96xbf16> to vector<2x1x96xbf16>
    %229 = vector.shape_cast %228 : vector<2x1x96xbf16> to vector<2x96xbf16>
    %230 = vector.extract_strided_slice %136 {offsets = [15, 0, 0], sizes = [1, 96, 128], strides = [1, 1, 1]} : vector<16x96x128xbf16> to vector<1x96x128xbf16>
    %231 = vector.shape_cast %230 : vector<1x96x128xbf16> to vector<96x128xbf16>
    %cst_59 = arith.constant dense<0.000000e+00> : vector<2x128xf32>
    %232 = tpu.matmul %229, %231, %cst_59 {dimension_numbers = #tpu.dot_dimension_numbers<[1], [0], [0], [1], [0, 0, 1, 1], [], []>} : vector<2x96xbf16>, vector<96x128xbf16>, vector<2x128xf32> -> vector<2x128xf32>
    %233 = arith.addf %227, %232 : vector<2x128xf32>
    %c0_60 = arith.constant 0 : index
    %c0_61 = arith.constant 0 : index
    %234 = vector.load %arg9[%c0_60, %c0_61] : memref<1x128xf32, #tpu.memory_space<vmem>>, vector<1x128xf32>
    %235 = vector.broadcast %234 : vector<1x128xf32> to vector<2x128xf32>
    %236 = arith.addf %233, %235 : vector<2x128xf32>
    %cst_62 = arith.constant 0.000000e+00 : f32
    %237 = vector.broadcast %cst_62 : f32 to vector<2x128xf32>
    %238 = arith.maximumf %236, %237 : vector<2x128xf32>
    %239 = arith.truncf %238 : vector<2x128xf32> to vector<2x128xbf16>
    %c0_63 = arith.constant 0 : index
    %c0_64 = arith.constant 0 : index
    %240 = vector.load %arg10[%c0_63, %c0_64] : memref<128x128xbf16, #tpu.memory_space<vmem>>, vector<128x128xbf16>
    %cst_65 = arith.constant dense<0.000000e+00> : vector<2x128xf32>
    %241 = tpu.matmul %239, %240, %cst_65 {dimension_numbers = #tpu.dot_dimension_numbers<[1], [0], [0], [1], [0, 0, 1, 1], [], []>} : vector<2x128xbf16>, vector<128x128xbf16>, vector<2x128xf32> -> vector<2x128xf32>
    %c0_66 = arith.constant 0 : index
    %c0_67 = arith.constant 0 : index
    %242 = vector.load %arg11[%c0_66, %c0_67] : memref<1x128xf32, #tpu.memory_space<vmem>>, vector<1x128xf32>
    %243 = vector.broadcast %242 : vector<1x128xf32> to vector<2x128xf32>
    %244 = arith.addf %241, %243 : vector<2x128xf32>
    %c0_68 = arith.constant 0 : index
    %c0_69 = arith.constant 0 : index
    %245 = vector.load %arg12[%c0_68, %c0_69] : memref<2x128xf32, #tpu.memory_space<vmem>>, vector<2x128xf32>
    tpu.vector_store %arg12[%c0_68, %c0_69], %244 {strides = array<i32>} : memref<2x128xf32, #tpu.memory_space<vmem>>, vector<2x128xf32>,
    return
  }
  func.func @transform_0(%arg0: i32) -> (i32, i32) {
    %c0_i32 = arith.constant 0 : i32
    %c0_i32_0 = arith.constant 0 : i32
    %c0_i32_1 = arith.constant 0 : i32
    return %c0_i32, %c0_i32_0 : i32, i32
  }
  func.func @transform_1(%arg0: i32) -> (i32, i32) {
    %c0_i32 = arith.constant 0 : i32
    %c0_i32_0 = arith.constant 0 : i32
    %c0_i32_1 = arith.constant 0 : i32
    return %c0_i32, %c0_i32_0 : i32, i32
  }
  func.func @transform_2(%arg0: i32) -> (i32, i32) {
    %c0_i32 = arith.constant 0 : i32
    %c0_i32_0 = arith.constant 0 : i32
    %c0_i32_1 = arith.constant 0 : i32
    return %c0_i32, %c0_i32_0 : i32, i32
  }
  func.func @transform_3(%arg0: i32) -> (i32, i32, i32, i32) {
    %c0_i32 = arith.constant 0 : i32
    %c0_i32_0 = arith.constant 0 : i32
    %c0_i32_1 = arith.constant 0 : i32
    %c0_i32_2 = arith.constant 0 : i32
    %c0_i32_3 = arith.constant 0 : i32
    return %c0_i32, %c0_i32_0, %c0_i32_1, %c0_i32_2 : i32, i32, i32, i32
  }
  func.func @transform_4(%arg0: i32) -> (i32, i32) {
    %c0_i32 = arith.constant 0 : i32
    %c0_i32_0 = arith.constant 0 : i32
    %c0_i32_1 = arith.constant 0 : i32
    return %c0_i32, %c0_i32_0 : i32, i32
  }
  func.func @transform_5(%arg0: i32) -> (i32, i32, i32, i32) {
    %c0_i32 = arith.constant 0 : i32
    %c0_i32_0 = arith.constant 0 : i32
    %c0_i32_1 = arith.constant 0 : i32
    %c0_i32_2 = arith.constant 0 : i32
    %c0_i32_3 = arith.constant 0 : i32
    return %c0_i32, %c0_i32_0, %c0_i32_1, %c0_i32_2 : i32, i32, i32, i32
  }
  func.func @transform_6(%arg0: i32) -> (i32, i32) {
    %c0_i32 = arith.constant 0 : i32
    %c0_i32_0 = arith.constant 0 : i32
    %c0_i32_1 = arith.constant 0 : i32
    return %c0_i32, %c0_i32_0 : i32, i32
  }
  func.func @transform_7(%arg0: i32) -> (i32, i32, i32) {
    %c0_i32 = arith.constant 0 : i32
    %c0_i32_0 = arith.constant 0 : i32
    %c0_i32_1 = arith.constant 0 : i32
    %c0_i32_2 = arith.constant 0 : i32
    return %c0_i32, %c0_i32_0, %c0_i32_1 : i32, i32, i32
  }
  func.func @transform_8(%arg0: i32) -> (i32, i32) {
    %c0_i32 = arith.constant 0 : i32
    %c0_i32_0 = arith.constant 0 : i32
    %c0_i32_1 = arith.constant 0 : i32
    return %c0_i32, %c0_i32_0 : i32, i32
  }
  func.func @transform_9(%arg0: i32) -> (i32, i32) {
    %c0_i32 = arith.constant 0 : i32
    %c0_i32_0 = arith.constant 0 : i32
    %c0_i32_1 = arith.constant 0 : i32
    return %c0_i32, %c0_i32_0 : i32, i32
  }
  func.func @transform_10(%arg0: i32) -> (i32, i32) {
    %c0_i32 = arith.constant 0 : i32
    %c0_i32_0 = arith.constant 0 : i32
    %c0_i32_1 = arith.constant 0 : i32
    return %c0_i32, %c0_i32_0 : i32, i32
  }
  func.func @transform_11(%arg0: i32) -> (i32, i32) {
    %c0_i32 = arith.constant 0 : i32
    %c0_i32_0 = arith.constant 0 : i32
    %c0_i32_1 = arith.constant 0 : i32
    return %c0_i32, %c0_i32_0 : i32, i32
  }
}

</mosaic_0001>

<llo_original>
// kernel: widar_lenet_forward.1
$region0: #{widar_lenet_forward.1}
  #allocation0 [shape = 'u32[]', space=smem, size = 0x4, offset = 0x4, fixed_abs, tag = 'smem constant byte address 0x4 - core index']
  #allocation1 [shape = 'u32[144,128]{1,0:T(1,128)}', space=vmem, size = 0x12000, scoped, tag = 'internal scratch']
  %s0 = inlined_call_operand.vmem [shape: bf16[128,792], index: 0, kind: input, shape index: {}]
  %s1 = inlined_call_operand.vmem [shape: bf16[792,32], index: 1, kind: input, shape index: {}]
  %s2 = inlined_call_operand.vmem [shape: f32[1,32], index: 2, kind: input, shape index: {}]
  %s3 = inlined_call_operand.vmem [shape: bf16[3,3,32,64], index: 3, kind: input, shape index: {}]
  %s4 = inlined_call_operand.vmem [shape: f32[1,64], index: 4, kind: input, shape index: {}]
  %s5 = inlined_call_operand.vmem [shape: bf16[3,3,64,96], index: 5, kind: input, shape index: {}]
  %s6 = inlined_call_operand.vmem [shape: f32[1,96], index: 6, kind: input, shape index: {}]
  %s7 = inlined_call_operand.vmem [shape: bf16[16,96,128], index: 7, kind: input, shape index: {}]
  %s8 = inlined_call_operand.vmem [shape: f32[1,128], index: 8, kind: input, shape index: {}]
  %s9 = inlined_call_operand.vmem [shape: bf16[128,128], index: 9, kind: input, shape index: {}]
  %s10 = inlined_call_operand.vmem [shape: f32[1,128], index: 10, kind: input, shape index: {}]
  %s11 = inlined_call_operand.hbm [shape: f32[2,128], index: 11, kind: output, shape index: {}]
  %s12 = sld [smem:[#allocation0]]
  $region54: #{widar_lenet_forward.1} parent=0
    _
  %s14 = ssub.s32 1, %s12
  %s15 = scalar_select 0, %s14, %s12
  $region1: #{widar_lenet_forward.1} parent=0
    #allocation2 [shape = 'u8[1024]{0}', space=vmem, size = 0x400, scoped, tag = 'output window, operand 0, single buffered']
    #allocation3 [shape = 's32[1]{0}', space=sflag, size = 0x4, scoped, tag = 'scoped memory for widar_lenet_forward.1']
    %16 = vsyncpa [#allocation3], 0
    // Predicated region
    $region2: #{widar_lenet_forward.1} parent=1 // pred_check
      _
    $region3: #{widar_lenet_forward.1} parent=1 // pred_check_branch
      %18 = sbr.rel (0) target = $region5
    $region4: #{widar_lenet_forward.1} parent=1 // pred_region
      _
    $region5: #{widar_lenet_forward.1} parent=1 // pred_fallthru
      _
    // Predicated region
    $region6: #{widar_lenet_forward.1} parent=1 // pred_check
      _
    $region7: #{widar_lenet_forward.1} parent=1 // pred_check_branch
      %20 = sbr.rel (0) target = $region9
    $region8: #{widar_lenet_forward.1} parent=1 // pred_region
      _
    $region9: #{widar_lenet_forward.1} parent=1 // pred_fallthru
      _
    // Predicated region
    $region10: #{widar_lenet_forward.1} parent=1 // pred_check
      _
    $region11: #{widar_lenet_forward.1} parent=1 // pred_check_branch
      %22 = sbr.rel (0) target = $region13
    $region12: #{widar_lenet_forward.1} parent=1 // pred_region
      _
    $region13: #{widar_lenet_forward.1} parent=1 // pred_fallthru
      _
    // Predicated region
    $region14: #{widar_lenet_forward.1} parent=1 // pred_check
      _
    $region15: #{widar_lenet_forward.1} parent=1 // pred_check_branch
      %24 = sbr.rel (0) target = $region17
    $region16: #{widar_lenet_forward.1} parent=1 // pred_region
      _
    $region17: #{widar_lenet_forward.1} parent=1 // pred_fallthru
      _
    // Predicated region
    $region18: #{widar_lenet_forward.1} parent=1 // pred_check
      _
    $region19: #{widar_lenet_forward.1} parent=1 // pred_check_branch
      %26 = sbr.rel (0) target = $region21
    $region20: #{widar_lenet_forward.1} parent=1 // pred_region
      _
    $region21: #{widar_lenet_forward.1} parent=1 // pred_fallthru
      _
    // Predicated region
    $region22: #{widar_lenet_forward.1} parent=1 // pred_check
      _
    $region23: #{widar_lenet_forward.1} parent=1 // pred_check_branch
      %28 = sbr.rel (0) target = $region25
    $region24: #{widar_lenet_forward.1} parent=1 // pred_region
      _
    $region25: #{widar_lenet_forward.1} parent=1 // pred_fallthru
      _
    // Predicated region
    $region26: #{widar_lenet_forward.1} parent=1 // pred_check
      _
    $region27: #{widar_lenet_forward.1} parent=1 // pred_check_branch
      %30 = sbr.rel (0) target = $region29
    $region28: #{widar_lenet_forward.1} parent=1 // pred_region
      _
    $region29: #{widar_lenet_forward.1} parent=1 // pred_fallthru
      _
    // Predicated region
    $region30: #{widar_lenet_forward.1} parent=1 // pred_check
      _
    $region31: #{widar_lenet_forward.1} parent=1 // pred_check_branch
      %32 = sbr.rel (0) target = $region33
    $region32: #{widar_lenet_forward.1} parent=1 // pred_region
      _
    $region33: #{widar_lenet_forward.1} parent=1 // pred_fallthru
      _
    // Predicated region
    $region34: #{widar_lenet_forward.1} parent=1 // pred_check
      _
    $region35: #{widar_lenet_forward.1} parent=1 // pred_check_branch
      %34 = sbr.rel (0) target = $region37
    $region36: #{widar_lenet_forward.1} parent=1 // pred_region
      _
    $region37: #{widar_lenet_forward.1} parent=1 // pred_fallthru
      _
    // Predicated region
    $region38: #{widar_lenet_forward.1} parent=1 // pred_check
      _
    $region39: #{widar_lenet_forward.1} parent=1 // pred_check_branch
      %36 = sbr.rel (0) target = $region41
    $region40: #{widar_lenet_forward.1} parent=1 // pred_region
      _
    $region41: #{widar_lenet_forward.1} parent=1 // pred_fallthru
      _
    // Predicated region
    $region42: #{widar_lenet_forward.1} parent=1 // pred_check
      _
    $region43: #{widar_lenet_forward.1} parent=1 // pred_check_branch
      %38 = sbr.rel (0) target = $region45
    $region44: #{widar_lenet_forward.1} parent=1 // pred_region
      _
    $region45: #{widar_lenet_forward.1} parent=1 // pred_fallthru
      _
    %v40 = vld [vmem:[%s0] sm:$0xff]
    %v41 = vld [vmem:[%s0 + $0x8] sm:$0xff]
    %v42 = vld [vmem:[%s0 + $0x10] sm:$0xff]
    %v43 = vld [vmem:[%s0 + $0x18] sm:$0xf]
    %v44 = vld [vmem:[%s0 + $0x1c] sm:$0xff]
    %v45 = vld [vmem:[%s0 + $0x24] sm:$0xff]
    %v46 = vld [vmem:[%s0 + $0x2c] sm:$0xff]
    %v47 = vld [vmem:[%s0 + $0x34] sm:$0xf]
    %v48 = vld [vmem:[%s0 + $0x38] sm:$0xff]
    %v49 = vld [vmem:[%s0 + $0x40] sm:$0xff]
    %v50 = vld [vmem:[%s0 + $0x48] sm:$0xff]
    %v51 = vld [vmem:[%s0 + $0x50] sm:$0xf]
    %v52 = vld [vmem:[%s0 + $0x54] sm:$0xff]
    %v53 = vld [vmem:[%s0 + $0x5c] sm:$0xff]
    %v54 = vld [vmem:[%s0 + $0x64] sm:$0xff]
    %v55 = vld [vmem:[%s0 + $0x6c] sm:$0xf]
    %v56 = vld [vmem:[%s0 + $0x70] sm:$0xff]
    %v57 = vld [vmem:[%s0 + $0x78] sm:$0xff]
    %v58 = vld [vmem:[%s0 + $0x80] sm:$0xff]
    %v59 = vld [vmem:[%s0 + $0x88] sm:$0xf]
    %v60 = vld [vmem:[%s0 + $0x8c] sm:$0xff]
    %v61 = vld [vmem:[%s0 + $0x94] sm:$0xff]
    %v62 = vld [vmem:[%s0 + $0x9c] sm:$0xff]
    %v63 = vld [vmem:[%s0 + $0xa4] sm:$0xf]
    %v64 = vld [vmem:[%s0 + $0xa8] sm:$0xff]
    %v65 = vld [vmem:[%s0 + $0xb0] sm:$0xff]
    %v66 = vld [vmem:[%s0 + $0xb8] sm:$0xff]
    %v67 = vld [vmem:[%s0 + $0xc0] sm:$0xf]
    %v68 = vld [vmem:[%s0 + $0xc4] sm:$0xff]
    %v69 = vld [vmem:[%s0 + $0xcc] sm:$0xff]
    %v70 = vld [vmem:[%s0 + $0xd4] sm:$0xff]
    %v71 = vld [vmem:[%s0 + $0xdc] sm:$0xf]
    %v72 = vld [vmem:[%s0 + $0xe0] sm:$0xff]
    %v73 = vld [vmem:[%s0 + $0xe8] sm:$0xff]
    %v74 = vld [vmem:[%s0 + $0xf0] sm:$0xff]
    %v75 = vld [vmem:[%s0 + $0xf8] sm:$0xf]
    %v76 = vld [vmem:[%s0 + $0xfc] sm:$0xff]
    %v77 = vld [vmem:[%s0 + $0x104] sm:$0xff]
    %v78 = vld [vmem:[%s0 + $0x10c] sm:$0xff]
    %v79 = vld [vmem:[%s0 + $0x114] sm:$0xf]
    %v80 = vld [vmem:[%s0 + $0x118] sm:$0xff]
    %v81 = vld [vmem:[%s0 + $0x120] sm:$0xff]
    %v82 = vld [vmem:[%s0 + $0x128] sm:$0xff]
    %v83 = vld [vmem:[%s0 + $0x130] sm:$0xf]
    %v84 = vld [vmem:[%s0 + $0x134] sm:$0xff]
    %v85 = vld [vmem:[%s0 + $0x13c] sm:$0xff]
    %v86 = vld [vmem:[%s0 + $0x144] sm:$0xff]
    %v87 = vld [vmem:[%s0 + $0x14c] sm:$0xf]
    %v88 = vld [vmem:[%s0 + $0x150] sm:$0xff]
    %v89 = vld [vmem:[%s0 + $0x158] sm:$0xff]
    %v90 = vld [vmem:[%s0 + $0x160] sm:$0xff]
    %v91 = vld [vmem:[%s0 + $0x168] sm:$0xf]
    %v92 = vld [vmem:[%s0 + $0x16c] sm:$0xff]
    %v93 = vld [vmem:[%s0 + $0x174] sm:$0xff]
    %v94 = vld [vmem:[%s0 + $0x17c] sm:$0xff]
    %v95 = vld [vmem:[%s0 + $0x184] sm:$0xf]
    %v96 = vld [vmem:[%s0 + $0x188] sm:$0xff]
    %v97 = vld [vmem:[%s0 + $0x190] sm:$0xff]
    %v98 = vld [vmem:[%s0 + $0x198] sm:$0xff]
    %v99 = vld [vmem:[%s0 + $0x1a0] sm:$0xf]
    %v100 = vld [vmem:[%s0 + $0x1a4] sm:$0xff]
    %v101 = vld [vmem:[%s0 + $0x1ac] sm:$0xff]
    %v102 = vld [vmem:[%s0 + $0x1b4] sm:$0xff]
    %v103 = vld [vmem:[%s0 + $0x1bc] sm:$0xf]
    %v104 = vld [vmem:[%s1] sm:$0xf]
    %v105 = vld [vmem:[%s1 + $0x4] sm:$0xf]
    %v106 = vld [vmem:[%s1 + $0x8] sm:$0xf]
    %v107 = vld [vmem:[%s1 + $0xc] sm:$0xf]
    %v108 = vld [vmem:[%s1 + $0x10] sm:$0xf]
    %v109 = vld [vmem:[%s1 + $0x14] sm:$0xf]
    %v110 = vld [vmem:[%s1 + $0x18] sm:$0xf]
    %v111 = vld [vmem:[%s1 + $0x1c] sm:$0xf]
    %v112 = vld [vmem:[%s1 + $0x20] sm:$0xf]
    %v113 = vld [vmem:[%s1 + $0x24] sm:$0xf]
    %v114 = vld [vmem:[%s1 + $0x28] sm:$0xf]
    %v115 = vld [vmem:[%s1 + $0x2c] sm:$0xf]
    %v116 = vld [vmem:[%s1 + $0x30] sm:$0xf]
    %v117 = vld [vmem:[%s1 + $0x34] sm:$0xf]
    %v118 = vld [vmem:[%s1 + $0x38] sm:$0xf]
    %v119 = vld [vmem:[%s1 + $0x3c] sm:$0xf]
    %v120 = vld [vmem:[%s1 + $0x40] sm:$0xf]
    %v121 = vld [vmem:[%s1 + $0x44] sm:$0xf]
    %v122 = vld [vmem:[%s1 + $0x48] sm:$0xf]
    %v123 = vld [vmem:[%s1 + $0x4c] sm:$0xf]
    %v124 = vld [vmem:[%s1 + $0x50] sm:$0xf]
    %v125 = vld [vmem:[%s1 + $0x54] sm:$0xf]
    %v126 = vld [vmem:[%s1 + $0x58] sm:$0xf]
    %v127 = vld [vmem:[%s1 + $0x5c] sm:$0xf]
    %v128 = vld [vmem:[%s1 + $0x60] sm:$0xf]
    %v129 = vld [vmem:[%s1 + $0x64] sm:$0xf]
    %v130 = vld [vmem:[%s1 + $0x68] sm:$0xf]
    %v131 = vld [vmem:[%s1 + $0x6c] sm:$0xf]
    %v132 = vld [vmem:[%s1 + $0x70] sm:$0xf]
    %v133 = vld [vmem:[%s1 + $0x74] sm:$0xf]
    %v134 = vld [vmem:[%s1 + $0x78] sm:$0xf]
    %v135 = vld [vmem:[%s1 + $0x7c] sm:$0xf]
    %v136 = vld [vmem:[%s1 + $0x80] sm:$0xf]
    %v137 = vld [vmem:[%s1 + $0x84] sm:$0xf]
    %v138 = vld [vmem:[%s1 + $0x88] sm:$0xf]
    %v139 = vld [vmem:[%s1 + $0x8c] sm:$0xf]
    %v140 = vld [vmem:[%s1 + $0x90] sm:$0xf]
    %v141 = vld [vmem:[%s1 + $0x94] sm:$0xf]
    %v142 = vld [vmem:[%s1 + $0x98] sm:$0xf]
    %v143 = vld [vmem:[%s1 + $0x9c] sm:$0xf]
    %v144 = vld [vmem:[%s1 + $0xa0] sm:$0xf]
    %v145 = vld [vmem:[%s1 + $0xa4] sm:$0xf]
    %v146 = vld [vmem:[%s1 + $0xa8] sm:$0xf]
    %v147 = vld [vmem:[%s1 + $0xac] sm:$0xf]
    %v148 = vld [vmem:[%s1 + $0xb0] sm:$0xf]
    %v149 = vld [vmem:[%s1 + $0xb4] sm:$0xf]
    %v150 = vld [vmem:[%s1 + $0xb8] sm:$0xf]
    %v151 = vld [vmem:[%s1 + $0xbc] sm:$0xf]
    %v152 = vld [vmem:[%s1 + $0xc0] sm:$0xf]
    %v153 = vld [vmem:[%s1 + $0xc4] sm:$0xf]
    %v154 = vld [vmem:[%s1 + $0xc8] sm:$0xf]
    %v155 = vld [vmem:[%s1 + $0xcc] sm:$0xf]
    %v156 = vld [vmem:[%s1 + $0xd0] sm:$0xf]
    %v157 = vld [vmem:[%s1 + $0xd4] sm:$0xf]
    %v158 = vld [vmem:[%s1 + $0xd8] sm:$0xf]
    %v159 = vld [vmem:[%s1 + $0xdc] sm:$0xf]
    %v160 = vld [vmem:[%s1 + $0xe0] sm:$0xf]
    %v161 = vld [vmem:[%s1 + $0xe4] sm:$0xf]
    %v162 = vld [vmem:[%s1 + $0xe8] sm:$0xf]
    %v163 = vld [vmem:[%s1 + $0xec] sm:$0xf]
    %v164 = vld [vmem:[%s1 + $0xf0] sm:$0xf]
    %v165 = vld [vmem:[%s1 + $0xf4] sm:$0xf]
    %v166 = vld [vmem:[%s1 + $0xf8] sm:$0xf]
    %v167 = vld [vmem:[%s1 + $0xfc] sm:$0xf]
    %v168 = vld [vmem:[%s1 + $0x100] sm:$0xf]
    %v169 = vld [vmem:[%s1 + $0x104] sm:$0xf]
    %v170 = vld [vmem:[%s1 + $0x108] sm:$0xf]
    %v171 = vld [vmem:[%s1 + $0x10c] sm:$0xf]
    %v172 = vld [vmem:[%s1 + $0x110] sm:$0xf]
    %v173 = vld [vmem:[%s1 + $0x114] sm:$0xf]
    %v174 = vld [vmem:[%s1 + $0x118] sm:$0xf]
    %v175 = vld [vmem:[%s1 + $0x11c] sm:$0xf]
    %v176 = vld [vmem:[%s1 + $0x120] sm:$0xf]
    %v177 = vld [vmem:[%s1 + $0x124] sm:$0xf]
    %v178 = vld [vmem:[%s1 + $0x128] sm:$0xf]
    %v179 = vld [vmem:[%s1 + $0x12c] sm:$0xf]
    %v180 = vld [vmem:[%s1 + $0x130] sm:$0xf]
    %v181 = vld [vmem:[%s1 + $0x134] sm:$0xf]
    %v182 = vld [vmem:[%s1 + $0x138] sm:$0xf]
    %v183 = vld [vmem:[%s1 + $0x13c] sm:$0xf]
    %v184 = vld [vmem:[%s1 + $0x140] sm:$0xf]
    %v185 = vld [vmem:[%s1 + $0x144] sm:$0xf]
    %v186 = vld [vmem:[%s1 + $0x148] sm:$0xf]
    %v187 = vld [vmem:[%s1 + $0x14c] sm:$0xf]
    %v188 = vld [vmem:[%s1 + $0x150] sm:$0xf]
    %v189 = vld [vmem:[%s1 + $0x154] sm:$0xf]
    %v190 = vld [vmem:[%s1 + $0x158] sm:$0xf]
    %v191 = vld [vmem:[%s1 + $0x15c] sm:$0xf]
    %v192 = vld [vmem:[%s1 + $0x160] sm:$0xf]
    %v193 = vld [vmem:[%s1 + $0x164] sm:$0xf]
    %v194 = vld [vmem:[%s1 + $0x168] sm:$0xf]
    %v195 = vld [vmem:[%s1 + $0x16c] sm:$0xf]
    %v196 = vld [vmem:[%s1 + $0x170] sm:$0xf]
    %v197 = vld [vmem:[%s1 + $0x174] sm:$0xf]
    %v198 = vld [vmem:[%s1 + $0x178] sm:$0xf]
    %v199 = vld [vmem:[%s1 + $0x17c] sm:$0xf]
    %v200 = vld [vmem:[%s1 + $0x180] sm:$0xf]
    %v201 = vld [vmem:[%s1 + $0x184] sm:$0xf]
    %v202 = vld [vmem:[%s1 + $0x188] sm:$0xf]
    %v203 = vld [vmem:[%s2] sm:$0x1]
    %v205 = vlaneseq
    %v206 = vshrl.u32 %v205, 7
    %v207 = vsub.s32 0, %v206
    %v208 = vrot.slane %v203, %v207
    %v274 = vunpack.c.l.b16 %v40
    %v275 = vunpack.c.h.b16 %v40
    %v276 = vunpack.c.l.b16 %v41
    %v277 = vunpack.c.h.b16 %v41
    %v278 = vunpack.c.l.b16 %v42
    %v279 = vunpack.c.h.b16 %v42
    %v280 = vunpack.c.l.b16 %v43
    %v281 = vunpack.c.l.b16 %v44
    %v282 = vunpack.c.h.b16 %v44
    %v283 = vunpack.c.l.b16 %v45
    %v284 = vunpack.c.h.b16 %v45
    %v285 = vunpack.c.l.b16 %v46
    %v286 = vunpack.c.h.b16 %v46
    %v287 = vunpack.c.l.b16 %v47
    %v288 = vunpack.c.l.b16 %v48
    %v289 = vunpack.c.h.b16 %v48
    %v290 = vunpack.c.l.b16 %v49
    %v291 = vunpack.c.h.b16 %v49
    %v292 = vunpack.c.l.b16 %v50
    %v293 = vunpack.c.h.b16 %v50
    %v294 = vunpack.c.l.b16 %v51
    %v295 = vunpack.c.l.b16 %v52
    %v296 = vunpack.c.h.b16 %v52
    %v297 = vunpack.c.l.b16 %v53
    %v298 = vunpack.c.h.b16 %v53
    %v299 = vunpack.c.l.b16 %v54
    %v300 = vunpack.c.h.b16 %v54
    %v301 = vunpack.c.l.b16 %v55
    %v302 = vunpack.c.l.b16 %v56
    %v303 = vunpack.c.h.b16 %v56
    %v304 = vunpack.c.l.b16 %v57
    %v305 = vunpack.c.h.b16 %v57
    %v306 = vunpack.c.l.b16 %v58
    %v307 = vunpack.c.h.b16 %v58
    %v308 = vunpack.c.l.b16 %v59
    %v309 = vunpack.c.l.b16 %v60
    %v310 = vunpack.c.h.b16 %v60
    %v311 = vunpack.c.l.b16 %v61
    %v312 = vunpack.c.h.b16 %v61
    %v313 = vunpack.c.l.b16 %v62
    %v314 = vunpack.c.h.b16 %v62
    %v315 = vunpack.c.l.b16 %v63
    %v316 = vunpack.c.l.b16 %v64
    %v317 = vunpack.c.h.b16 %v64
    %v318 = vunpack.c.l.b16 %v65
    %v319 = vunpack.c.h.b16 %v65
    %v320 = vunpack.c.l.b16 %v66
    %v321 = vunpack.c.h.b16 %v66
    %v322 = vunpack.c.l.b16 %v67
    %v323 = vunpack.c.l.b16 %v68
    %v324 = vunpack.c.h.b16 %v68
    %v325 = vunpack.c.l.b16 %v69
    %v326 = vunpack.c.h.b16 %v69
    %v327 = vunpack.c.l.b16 %v70
    %v328 = vunpack.c.h.b16 %v70
    %v329 = vunpack.c.l.b16 %v71
    %v330 = vunpack.c.l.b16 %v72
    %v331 = vunpack.c.h.b16 %v72
    %v332 = vunpack.c.l.b16 %v73
    %v333 = vunpack.c.h.b16 %v73
    %v334 = vunpack.c.l.b16 %v74
    %v335 = vunpack.c.h.b16 %v74
    %v336 = vunpack.c.l.b16 %v75
    %v337 = vunpack.c.l.b16 %v76
    %v338 = vunpack.c.h.b16 %v76
    %v339 = vunpack.c.l.b16 %v77
    %v340 = vunpack.c.h.b16 %v77
    %v341 = vunpack.c.l.b16 %v78
    %v342 = vunpack.c.h.b16 %v78
    %v343 = vunpack.c.l.b16 %v79
    %v344 = vunpack.c.l.b16 %v80
    %v345 = vunpack.c.h.b16 %v80
    %v346 = vunpack.c.l.b16 %v81
    %v347 = vunpack.c.h.b16 %v81
    %v348 = vunpack.c.l.b16 %v82
    %v349 = vunpack.c.h.b16 %v82
    %v350 = vunpack.c.l.b16 %v83
    %v351 = vunpack.c.l.b16 %v84
    %v352 = vunpack.c.h.b16 %v84
    %v353 = vunpack.c.l.b16 %v85
    %v354 = vunpack.c.h.b16 %v85
    %v355 = vunpack.c.l.b16 %v86
    %v356 = vunpack.c.h.b16 %v86
    %v357 = vunpack.c.l.b16 %v87
    %v358 = vunpack.c.l.b16 %v88
    %v359 = vunpack.c.h.b16 %v88
    %v360 = vunpack.c.l.b16 %v89
    %v361 = vunpack.c.h.b16 %v89
    %v362 = vunpack.c.l.b16 %v90
    %v363 = vunpack.c.h.b16 %v90
    %v364 = vunpack.c.l.b16 %v91
    %v365 = vunpack.c.l.b16 %v92
    %v366 = vunpack.c.h.b16 %v92
    %v367 = vunpack.c.l.b16 %v93
    %v368 = vunpack.c.h.b16 %v93
    %v369 = vunpack.c.l.b16 %v94
    %v370 = vunpack.c.h.b16 %v94
    %v371 = vunpack.c.l.b16 %v95
    %v372 = vunpack.c.l.b16 %v96
    %v373 = vunpack.c.h.b16 %v96
    %v374 = vunpack.c.l.b16 %v97
    %v375 = vunpack.c.h.b16 %v97
    %v376 = vunpack.c.l.b16 %v98
    %v377 = vunpack.c.h.b16 %v98
    %v378 = vunpack.c.l.b16 %v99
    %v379 = vunpack.c.l.b16 %v100
    %v380 = vunpack.c.h.b16 %v100
    %v381 = vunpack.c.l.b16 %v101
    %v382 = vunpack.c.h.b16 %v101
    %v383 = vunpack.c.l.b16 %v102
    %v384 = vunpack.c.h.b16 %v102
    %v385 = vunpack.c.l.b16 %v103
    %v386 = vpack.c.b16 %v281, %v274
    %v387 = vpack.c.b16 %v282, %v275
    %v388 = vpack.c.b16 %v283, %v276
    %v389 = vpack.c.b16 %v284, %v277
    %v390 = vpack.c.b16 %v285, %v278
    %v391 = vpack.c.b16 %v286, %v279
    %v392 = vpack.c.b16 %v287, %v280
    %v393 = vpack.c.b16 %v295, %v288
    %v394 = vpack.c.b16 %v296, %v289
    %v395 = vpack.c.b16 %v297, %v290
    %v396 = vpack.c.b16 %v298, %v291
    %v397 = vpack.c.b16 %v299, %v292
    %v398 = vpack.c.b16 %v300, %v293
    %v399 = vpack.c.b16 %v301, %v294
    %v400 = vpack.c.b16 %v309, %v302
    %v401 = vpack.c.b16 %v310, %v303
    %v402 = vpack.c.b16 %v311, %v304
    %v403 = vpack.c.b16 %v312, %v305
    %v404 = vpack.c.b16 %v313, %v306
    %v405 = vpack.c.b16 %v314, %v307
    %v406 = vpack.c.b16 %v315, %v308
    %v407 = vpack.c.b16 %v323, %v316
    %v408 = vpack.c.b16 %v324, %v317
    %v409 = vpack.c.b16 %v325, %v318
    %v410 = vpack.c.b16 %v326, %v319
    %v411 = vpack.c.b16 %v327, %v320
    %v412 = vpack.c.b16 %v328, %v321
    %v413 = vpack.c.b16 %v329, %v322
    %v414 = vpack.c.b16 %v337, %v330
    %v415 = vpack.c.b16 %v338, %v331
    %v416 = vpack.c.b16 %v339, %v332
    %v417 = vpack.c.b16 %v340, %v333
    %v418 = vpack.c.b16 %v341, %v334
    %v419 = vpack.c.b16 %v342, %v335
    %v420 = vpack.c.b16 %v343, %v336
    %v421 = vpack.c.b16 %v351, %v344
    %v422 = vpack.c.b16 %v352, %v345
    %v423 = vpack.c.b16 %v353, %v346
    %v424 = vpack.c.b16 %v354, %v347
    %v425 = vpack.c.b16 %v355, %v348
    %v426 = vpack.c.b16 %v356, %v349
    %v427 = vpack.c.b16 %v357, %v350
    %v428 = vpack.c.b16 %v365, %v358
    %v429 = vpack.c.b16 %v366, %v359
    %v430 = vpack.c.b16 %v367, %v360
    %v431 = vpack.c.b16 %v368, %v361
    %v432 = vpack.c.b16 %v369, %v362
    %v433 = vpack.c.b16 %v370, %v363
    %v434 = vpack.c.b16 %v371, %v364
    %v435 = vpack.c.b16 %v379, %v372
    %v436 = vpack.c.b16 %v380, %v373
    %v437 = vpack.c.b16 %v381, %v374
    %v438 = vpack.c.b16 %v382, %v375
    %v439 = vpack.c.b16 %v383, %v376
    %v440 = vpack.c.b16 %v384, %v377
    %v441 = vpack.c.b16 %v385, %v378
    %v589 = vunpack.c.l.b16 %v104
    %v590 = vunpack.c.l.b16 %v105
    %v591 = vunpack.c.l.b16 %v106
    %v592 = vunpack.c.l.b16 %v107
    %v593 = vunpack.c.l.b16 %v108
    %v594 = vunpack.c.l.b16 %v109
    %v595 = vunpack.c.l.b16 %v110
    %v596 = vunpack.c.l.b16 %v111
    %v597 = vunpack.c.l.b16 %v112
    %v598 = vunpack.c.l.b16 %v113
    %v599 = vunpack.c.l.b16 %v114
    %v600 = vunpack.c.l.b16 %v115
    %v601 = vunpack.c.l.b16 %v116
    %v602 = vunpack.c.l.b16 %v117
    %v603 = vunpack.c.l.b16 %v118
    %v604 = vunpack.c.l.b16 %v119
    %v605 = vunpack.c.l.b16 %v120
    %v606 = vunpack.c.l.b16 %v121
    %v607 = vunpack.c.l.b16 %v122
    %v608 = vunpack.c.l.b16 %v123
    %v609 = vunpack.c.l.b16 %v124
    %v610 = vunpack.c.l.b16 %v125
    %v611 = vunpack.c.l.b16 %v126
    %v612 = vunpack.c.l.b16 %v127
    %v613 = vunpack.c.l.b16 %v128
    %v614 = vunpack.c.l.b16 %v129
    %v615 = vunpack.c.l.b16 %v130
    %v616 = vunpack.c.l.b16 %v131
    %v617 = vunpack.c.l.b16 %v132
    %v618 = vunpack.c.l.b16 %v133
    %v619 = vunpack.c.l.b16 %v134
    %v620 = vunpack.c.l.b16 %v135
    %v621 = vunpack.c.l.b16 %v136
    %v622 = vunpack.c.l.b16 %v137
    %v623 = vunpack.c.l.b16 %v138
    %v624 = vunpack.c.l.b16 %v139
    %v625 = vunpack.c.l.b16 %v140
    %v626 = vunpack.c.l.b16 %v141
    %v627 = vunpack.c.l.b16 %v142
    %v628 = vunpack.c.l.b16 %v143
    %v629 = vunpack.c.l.b16 %v144
    %v630 = vunpack.c.l.b16 %v145
    %v631 = vunpack.c.l.b16 %v146
    %v632 = vunpack.c.l.b16 %v147
    %v633 = vunpack.c.l.b16 %v148
    %v634 = vunpack.c.l.b16 %v149
    %v635 = vunpack.c.l.b16 %v150
    %v636 = vunpack.c.l.b16 %v151
    %v637 = vunpack.c.l.b16 %v152
    %v638 = vunpack.c.l.b16 %v153
    %v639 = vunpack.c.l.b16 %v154
    %v640 = vunpack.c.l.b16 %v155
    %v641 = vunpack.c.l.b16 %v156
    %v642 = vunpack.c.l.b16 %v157
    %v643 = vunpack.c.l.b16 %v158
    %v644 = vunpack.c.l.b16 %v159
    %v645 = vunpack.c.l.b16 %v160
    %v646 = vunpack.c.l.b16 %v161
    %v647 = vunpack.c.l.b16 %v162
    %v648 = vunpack.c.l.b16 %v163
    %v649 = vunpack.c.l.b16 %v164
    %v650 = vunpack.c.l.b16 %v165
    %v651 = vunpack.c.l.b16 %v166
    %v652 = vunpack.c.l.b16 %v167
    %v653 = vunpack.c.l.b16 %v168
    %v654 = vunpack.c.l.b16 %v169
    %v655 = vunpack.c.l.b16 %v170
    %v656 = vunpack.c.l.b16 %v171
    %v657 = vunpack.c.l.b16 %v172
    %v658 = vunpack.c.l.b16 %v173
    %v659 = vunpack.c.l.b16 %v174
    %v660 = vunpack.c.l.b16 %v175
    %v661 = vunpack.c.l.b16 %v176
    %v662 = vunpack.c.l.b16 %v177
    %v663 = vunpack.c.l.b16 %v178
    %v664 = vunpack.c.l.b16 %v179
    %v665 = vunpack.c.l.b16 %v180
    %v666 = vunpack.c.l.b16 %v181
    %v667 = vunpack.c.l.b16 %v182
    %v668 = vunpack.c.l.b16 %v183
    %v669 = vunpack.c.l.b16 %v184
    %v670 = vunpack.c.l.b16 %v185
    %v671 = vunpack.c.l.b16 %v186
    %v672 = vunpack.c.l.b16 %v187
    %v673 = vunpack.c.l.b16 %v188
    %v674 = vunpack.c.l.b16 %v189
    %v675 = vunpack.c.l.b16 %v190
    %v676 = vunpack.c.l.b16 %v191
    %v677 = vunpack.c.l.b16 %v192
    %v678 = vunpack.c.l.b16 %v193
    %v679 = vunpack.c.l.b16 %v194
    %v680 = vunpack.c.l.b16 %v195
    %v681 = vunpack.c.l.b16 %v196
    %v682 = vunpack.c.l.b16 %v197
    %v683 = vunpack.c.l.b16 %v198
    %v684 = vunpack.c.l.b16 %v199
    %v685 = vunpack.c.l.b16 %v200
    %v686 = vunpack.c.l.b16 %v201
    %v687 = vunpack.c.l.b16 %v202
    %v688 = vpack.c.b16 %v590, %v589
    %v689 = vpack.c.b16 %v592, %v591
    %v690 = vpack.c.b16 %v594, %v593
    %v691 = vpack.c.b16 %v596, %v595
    %v692 = vpack.c.b16 %v598, %v597
    %v693 = vpack.c.b16 %v600, %v599
    %v694 = vpack.c.b16 %v602, %v601
    %v695 = vpack.c.b16 %v604, %v603
    %v696 = vpack.c.b16 %v606, %v605
    %v697 = vpack.c.b16 %v608, %v607
    %v698 = vpack.c.b16 %v610, %v609
    %v699 = vpack.c.b16 %v612, %v611
    %v700 = vpack.c.b16 %v614, %v613
    %v701 = vpack.c.b16 %v616, %v615
    %v702 = vpack.c.b16 %v618, %v617
    %v703 = vpack.c.b16 %v620, %v619
    %v704 = vpack.c.b16 %v622, %v621
    %v705 = vpack.c.b16 %v624, %v623
    %v706 = vpack.c.b16 %v626, %v625
    %v707 = vpack.c.b16 %v628, %v627
    %v708 = vpack.c.b16 %v630, %v629
    %v709 = vpack.c.b16 %v632, %v631
    %v710 = vpack.c.b16 %v634, %v633
    %v711 = vpack.c.b16 %v636, %v635
    %v712 = vpack.c.b16 %v638, %v637
    %v713 = vpack.c.b16 %v640, %v639
    %v714 = vpack.c.b16 %v642, %v641
    %v715 = vpack.c.b16 %v644, %v643
    %v716 = vpack.c.b16 %v646, %v645
    %v717 = vpack.c.b16 %v648, %v647
    %v718 = vpack.c.b16 %v650, %v649
    %v719 = vpack.c.b16 %v652, %v651
    %v720 = vpack.c.b16 %v654, %v653
    %v721 = vpack.c.b16 %v656, %v655
    %v722 = vpack.c.b16 %v658, %v657
    %v723 = vpack.c.b16 %v660, %v659
    %v724 = vpack.c.b16 %v662, %v661
    %v725 = vpack.c.b16 %v664, %v663
    %v726 = vpack.c.b16 %v666, %v665
    %v727 = vpack.c.b16 %v668, %v667
    %v728 = vpack.c.b16 %v670, %v669
    %v729 = vpack.c.b16 %v672, %v671
    %v730 = vpack.c.b16 %v674, %v673
    %v731 = vpack.c.b16 %v676, %v675
    %v732 = vpack.c.b16 %v678, %v677
    %v733 = vpack.c.b16 %v680, %v679
    %v734 = vpack.c.b16 %v682, %v681
    %v735 = vpack.c.b16 %v684, %v683
    %v736 = vpack.c.b16 %v686, %v685
    %v737 = vpack.c.b16 %v687, %v687
    %vm787 = vcmask 195584
    %v789 = vsel %vm787, %v392, 0
    %v792 = vsel %vm787, %v399, 0
    %v795 = vsel %vm787, %v406, 0
    %v798 = vsel %vm787, %v413, 0
    %v801 = vsel %vm787, %v420, 0
    %v804 = vsel %vm787, %v427, 0
    %v807 = vsel %vm787, %v434, 0
    %v810 = vsel %vm787, %v441, 0
    %vm812 = vcmask 1043456
    %v814 = vsel %vm812, %v737, 0
    %816 = vmatprep.subr.bf16.mxu0 0
    %817 = vmatpush1.bf16.msra.mxu0 %v695
    %818 = vmatprep.subr.bf16.mxu0 0
    %819 = vmatpush1.bf16.msra.mxu0 %v694
    %820 = vmatprep.subr.bf16.mxu0 0
    %821 = vmatpush1.bf16.msra.mxu0 %v693
    %822 = vmatprep.subr.bf16.mxu0 0
    %823 = vmatpush1.bf16.msra.mxu0 %v692
    %824 = vmatprep.subr.bf16.mxu0 0
    %825 = vmatpush1.bf16.msra.mxu0 %v691
    %826 = vmatprep.subr.bf16.mxu0 0
    %827 = vmatpush1.bf16.msra.mxu0 %v690
    %828 = vmatprep.subr.bf16.mxu0 0
    %829 = vmatpush1.bf16.msra.mxu0 %v689
    %830 = vmatprep.subr.bf16.mxu0 0
    %831 = vmatpush1.bf16.msra.mxu0 %v688
    %832 = vmatprep.subr.bf16.mxu0 0
    %833 = vmatpush2.bf16.msra.mxu0 %v703
    %834 = vmatprep.subr.bf16.mxu0 0
    %835 = vmatpush2.bf16.msra.mxu0 %v702
    %836 = vmatprep.subr.bf16.mxu0 0
    %837 = vmatpush2.bf16.msra.mxu0 %v701
    %838 = vmatprep.subr.bf16.mxu0 0
    %839 = vmatpush2.bf16.msra.mxu0 %v700
    %840 = vmatprep.subr.bf16.mxu0 0
    %841 = vmatpush2.bf16.msra.mxu0 %v699
    %842 = vmatprep.subr.bf16.mxu0 0
    %843 = vmatpush2.bf16.msra.mxu0 %v698
    %844 = vmatprep.subr.bf16.mxu0 0
    %845 = vmatpush2.bf16.msra.mxu0 %v697
    %846 = vmatprep.subr.bf16.mxu0 0
    %847 = vmatpush2.bf16.msra.mxu0 %v696
    %848 = vmatprep.mubr.bf16.mxu0 %v387
    %849 = vmatmul.mubr.bf16.gmra.mxu0 %v386
    %v850 = vpop.f32.mrf.mxu0
    %v851 = vadd.f32 %v208, %v850
    %v852 = vpop.f32.mrf.mxu0
    %v853 = vpop.f32.mrf.mxu0
    %v854 = vadd.f32 %v208, %v853
    %v855 = vpop.f32.mrf.mxu0
    %856 = vmatprep.mubr.bf16.mxu0 %v394
    %857 = vmatmul.mubr.bf16.gmra.mxu0 %v393
    %v858 = vpop.f32.mrf.mxu0
    %v859 = vadd.f32 %v208, %v858
    %v860 = vpop.f32.mrf.mxu0
    %v861 = vpop.f32.mrf.mxu0
    %v862 = vadd.f32 %v208, %v861
    %v863 = vpop.f32.mrf.mxu0
    %864 = vmatprep.mubr.bf16.mxu0 %v401
    %865 = vmatmul.mubr.bf16.gmra.mxu0 %v400
    %v866 = vpop.f32.mrf.mxu0
    %v867 = vadd.f32 %v208, %v866
    %v868 = vpop.f32.mrf.mxu0
    %v869 = vpop.f32.mrf.mxu0
    %v870 = vadd.f32 %v208, %v869
    %v871 = vpop.f32.mrf.mxu0
    %872 = vmatprep.mubr.bf16.mxu0 %v408
    %873 = vmatmul.mubr.bf16.gmra.mxu0 %v407
    %v874 = vpop.f32.mrf.mxu0
    %v875 = vadd.f32 %v208, %v874
    %v876 = vpop.f32.mrf.mxu0
    %v877 = vpop.f32.mrf.mxu0
    %v878 = vadd.f32 %v208, %v877
    %v879 = vpop.f32.mrf.mxu0
    %880 = vmatprep.mubr.bf16.mxu0 %v415
    %881 = vmatmul.mubr.bf16.gmra.mxu0 %v414
    %v882 = vpop.f32.mrf.mxu0
    %v883 = vadd.f32 %v208, %v882
    %v884 = vpop.f32.mrf.mxu0
    %v885 = vpop.f32.mrf.mxu0
    %v886 = vadd.f32 %v208, %v885
    %v887 = vpop.f32.mrf.mxu0
    %888 = vmatprep.mubr.bf16.mxu0 %v422
    %889 = vmatmul.mubr.bf16.gmra.mxu0 %v421
    %v890 = vpop.f32.mrf.mxu0
    %v891 = vadd.f32 %v208, %v890
    %v892 = vpop.f32.mrf.mxu0
    %v893 = vpop.f32.mrf.mxu0
    %v894 = vadd.f32 %v208, %v893
    %v895 = vpop.f32.mrf.mxu0
    %896 = vmatprep.mubr.bf16.mxu0 %v429
    %897 = vmatmul.mubr.bf16.gmra.mxu0 %v428
    %v898 = vpop.f32.mrf.mxu0
    %v899 = vadd.f32 %v208, %v898
    %v900 = vpop.f32.mrf.mxu0
    %v901 = vpop.f32.mrf.mxu0
    %v902 = vadd.f32 %v208, %v901
    %v903 = vpop.f32.mrf.mxu0
    %904 = vmatprep.mubr.bf16.mxu0 %v436
    %905 = vmatmul.mubr.bf16.gmra.mxu0 %v435
    %v906 = vpop.f32.mrf.mxu0
    %v907 = vadd.f32 %v208, %v906
    %v908 = vpop.f32.mrf.mxu0
    %v909 = vpop.f32.mrf.mxu0
    %v910 = vadd.f32 %v208, %v909
    %v911 = vpop.f32.mrf.mxu0
    %912 = vdwg.mxu0
    %913 = vmatprep.subr.bf16.mxu0 0
    %914 = vmatpush1.bf16.msra.mxu0 %v711
    %915 = vmatprep.subr.bf16.mxu0 0
    %916 = vmatpush1.bf16.msra.mxu0 %v710
    %917 = vmatprep.subr.bf16.mxu0 0
    %918 = vmatpush1.bf16.msra.mxu0 %v709
    %919 = vmatprep.subr.bf16.mxu0 0
    %920 = vmatpush1.bf16.msra.mxu0 %v708
    %921 = vmatprep.subr.bf16.mxu0 0
    %922 = vmatpush1.bf16.msra.mxu0 %v707
    %923 = vmatprep.subr.bf16.mxu0 0
    %924 = vmatpush1.bf16.msra.mxu0 %v706
    %925 = vmatprep.subr.bf16.mxu0 0
    %926 = vmatpush1.bf16.msra.mxu0 %v705
    %927 = vmatprep.subr.bf16.mxu0 0
    %928 = vmatpush1.bf16.msra.mxu0 %v704
    %929 = vmatprep.subr.bf16.mxu0 0
    %930 = vmatpush2.bf16.msra.mxu0 %v719
    %931 = vmatprep.subr.bf16.mxu0 0
    %932 = vmatpush2.bf16.msra.mxu0 %v718
    %933 = vmatprep.subr.bf16.mxu0 0
    %934 = vmatpush2.bf16.msra.mxu0 %v717
    %935 = vmatprep.subr.bf16.mxu0 0
    %936 = vmatpush2.bf16.msra.mxu0 %v716
    %937 = vmatprep.subr.bf16.mxu0 0
    %938 = vmatpush2.bf16.msra.mxu0 %v715
    %939 = vmatprep.subr.bf16.mxu0 0
    %940 = vmatpush2.bf16.msra.mxu0 %v714
    %941 = vmatprep.subr.bf16.mxu0 0
    %942 = vmatpush2.bf16.msra.mxu0 %v713
    %943 = vmatprep.subr.bf16.mxu0 0
    %944 = vmatpush2.bf16.msra.mxu0 %v712
    %945 = vmatprep.mubr.bf16.mxu0 %v389
    %946 = vmatmul.mubr.bf16.gmra.mxu0 %v388
    %v947 = vpop.f32.mrf.mxu0
    %v948 = vadd.f32 %v851, %v947
    %v949 = vpop.f32.mrf.mxu0
    %v950 = vpop.f32.mrf.mxu0
    %v951 = vadd.f32 %v854, %v950
    %v952 = vpop.f32.mrf.mxu0
    %953 = vmatprep.mubr.bf16.mxu0 %v396
    %954 = vmatmul.mubr.bf16.gmra.mxu0 %v395
    %v955 = vpop.f32.mrf.mxu0
    %v956 = vadd.f32 %v859, %v955
    %v957 = vpop.f32.mrf.mxu0
    %v958 = vpop.f32.mrf.mxu0
    %v959 = vadd.f32 %v862, %v958
    %v960 = vpop.f32.mrf.mxu0
    %961 = vmatprep.mubr.bf16.mxu0 %v403
    %962 = vmatmul.mubr.bf16.gmra.mxu0 %v402
    %v963 = vpop.f32.mrf.mxu0
    %v964 = vadd.f32 %v867, %v963
    %v965 = vpop.f32.mrf.mxu0
    %v966 = vpop.f32.mrf.mxu0
    %v967 = vadd.f32 %v870, %v966
    %v968 = vpop.f32.mrf.mxu0
    %969 = vmatprep.mubr.bf16.mxu0 %v410
    %970 = vmatmul.mubr.bf16.gmra.mxu0 %v409
    %v971 = vpop.f32.mrf.mxu0
    %v972 = vadd.f32 %v875, %v971
    %v973 = vpop.f32.mrf.mxu0
    %v974 = vpop.f32.mrf.mxu0
    %v975 = vadd.f32 %v878, %v974
    %v976 = vpop.f32.mrf.mxu0
    %977 = vmatprep.mubr.bf16.mxu0 %v417
    %978 = vmatmul.mubr.bf16.gmra.mxu0 %v416
    %v979 = vpop.f32.mrf.mxu0
    %v980 = vadd.f32 %v883, %v979
    %v981 = vpop.f32.mrf.mxu0
    %v982 = vpop.f32.mrf.mxu0
    %v983 = vadd.f32 %v886, %v982
    %v984 = vpop.f32.mrf.mxu0
    %985 = vmatprep.mubr.bf16.mxu0 %v424
    %986 = vmatmul.mubr.bf16.gmra.mxu0 %v423
    %v987 = vpop.f32.mrf.mxu0
    %v988 = vadd.f32 %v891, %v987
    %v989 = vpop.f32.mrf.mxu0
    %v990 = vpop.f32.mrf.mxu0
    %v991 = vadd.f32 %v894, %v990
    %v992 = vpop.f32.mrf.mxu0
    %993 = vmatprep.mubr.bf16.mxu0 %v431
    %994 = vmatmul.mubr.bf16.gmra.mxu0 %v430
    %v995 = vpop.f32.mrf.mxu0
    %v996 = vadd.f32 %v899, %v995
    %v997 = vpop.f32.mrf.mxu0
    %v998 = vpop.f32.mrf.mxu0
    %v999 = vadd.f32 %v902, %v998
    %v1000 = vpop.f32.mrf.mxu0
    %1001 = vmatprep.mubr.bf16.mxu0 %v438
    %1002 = vmatmul.mubr.bf16.gmra.mxu0 %v437
    %v1003 = vpop.f32.mrf.mxu0
    %v1004 = vadd.f32 %v907, %v1003
    %v1005 = vpop.f32.mrf.mxu0
    %v1006 = vpop.f32.mrf.mxu0
    %v1007 = vadd.f32 %v910, %v1006
    %v1008 = vpop.f32.mrf.mxu0
    %1009 = vdwg.mxu0
    %1010 = vmatprep.subr.bf16.mxu0 0
    %1011 = vmatpush1.bf16.msra.mxu0 %v727
    %1012 = vmatprep.subr.bf16.mxu0 0
    %1013 = vmatpush1.bf16.msra.mxu0 %v726
    %1014 = vmatprep.subr.bf16.mxu0 0
    %1015 = vmatpush1.bf16.msra.mxu0 %v725
    %1016 = vmatprep.subr.bf16.mxu0 0
    %1017 = vmatpush1.bf16.msra.mxu0 %v724
    %1018 = vmatprep.subr.bf16.mxu0 0
    %1019 = vmatpush1.bf16.msra.mxu0 %v723
    %1020 = vmatprep.subr.bf16.mxu0 0
    %1021 = vmatpush1.bf16.msra.mxu0 %v722
    %1022 = vmatprep.subr.bf16.mxu0 0
    %1023 = vmatpush1.bf16.msra.mxu0 %v721
    %1024 = vmatprep.subr.bf16.mxu0 0
    %1025 = vmatpush1.bf16.msra.mxu0 %v720
    %1026 = vmatprep.subr.bf16.mxu0 0
    %1027 = vmatpush2.bf16.msra.mxu0 %v735
    %1028 = vmatprep.subr.bf16.mxu0 0
    %1029 = vmatpush2.bf16.msra.mxu0 %v734
    %1030 = vmatprep.subr.bf16.mxu0 0
    %1031 = vmatpush2.bf16.msra.mxu0 %v733
    %1032 = vmatprep.subr.bf16.mxu0 0
    %1033 = vmatpush2.bf16.msra.mxu0 %v732
    %1034 = vmatprep.subr.bf16.mxu0 0
    %1035 = vmatpush2.bf16.msra.mxu0 %v731
    %1036 = vmatprep.subr.bf16.mxu0 0
    %1037 = vmatpush2.bf16.msra.mxu0 %v730
    %1038 = vmatprep.subr.bf16.mxu0 0
    %1039 = vmatpush2.bf16.msra.mxu0 %v729
    %1040 = vmatprep.subr.bf16.mxu0 0
    %1041 = vmatpush2.bf16.msra.mxu0 %v728
    %1042 = vmatprep.mubr.bf16.mxu0 %v391
    %1043 = vmatmul.mubr.bf16.gmra.mxu0 %v390
    %v1044 = vpop.f32.mrf.mxu0
    %v1045 = vadd.f32 %v948, %v1044
    %v1046 = vpop.f32.mrf.mxu0
    %v1047 = vpop.f32.mrf.mxu0
    %v1048 = vadd.f32 %v951, %v1047
    %v1049 = vpop.f32.mrf.mxu0
    %1050 = vmatprep.mubr.bf16.mxu0 %v398
    %1051 = vmatmul.mubr.bf16.gmra.mxu0 %v397
    %v1052 = vpop.f32.mrf.mxu0
    %v1053 = vadd.f32 %v956, %v1052
    %v1054 = vpop.f32.mrf.mxu0
    %v1055 = vpop.f32.mrf.mxu0
    %v1056 = vadd.f32 %v959, %v1055
    %v1057 = vpop.f32.mrf.mxu0
    %1058 = vmatprep.mubr.bf16.mxu0 %v405
    %1059 = vmatmul.mubr.bf16.gmra.mxu0 %v404
    %v1060 = vpop.f32.mrf.mxu0
    %v1061 = vadd.f32 %v964, %v1060
    %v1062 = vpop.f32.mrf.mxu0
    %v1063 = vpop.f32.mrf.mxu0
    %v1064 = vadd.f32 %v967, %v1063
    %v1065 = vpop.f32.mrf.mxu0
    %1066 = vmatprep.mubr.bf16.mxu0 %v412
    %1067 = vmatmul.mubr.bf16.gmra.mxu0 %v411
    %v1068 = vpop.f32.mrf.mxu0
    %v1069 = vadd.f32 %v972, %v1068
    %v1070 = vpop.f32.mrf.mxu0
    %v1071 = vpop.f32.mrf.mxu0
    %v1072 = vadd.f32 %v975, %v1071
    %v1073 = vpop.f32.mrf.mxu0
    %1074 = vmatprep.mubr.bf16.mxu0 %v419
    %1075 = vmatmul.mubr.bf16.gmra.mxu0 %v418
    %v1076 = vpop.f32.mrf.mxu0
    %v1077 = vadd.f32 %v980, %v1076
    %v1078 = vpop.f32.mrf.mxu0
    %v1079 = vpop.f32.mrf.mxu0
    %v1080 = vadd.f32 %v983, %v1079
    %v1081 = vpop.f32.mrf.mxu0
    %1082 = vmatprep.mubr.bf16.mxu0 %v426
    %1083 = vmatmul.mubr.bf16.gmra.mxu0 %v425
    %v1084 = vpop.f32.mrf.mxu0
    %v1085 = vadd.f32 %v988, %v1084
    %v1086 = vpop.f32.mrf.mxu0
    %v1087 = vpop.f32.mrf.mxu0
    %v1088 = vadd.f32 %v991, %v1087
    %v1089 = vpop.f32.mrf.mxu0
    %1090 = vmatprep.mubr.bf16.mxu0 %v433
    %1091 = vmatmul.mubr.bf16.gmra.mxu0 %v432
    %v1092 = vpop.f32.mrf.mxu0
    %v1093 = vadd.f32 %v996, %v1092
    %v1094 = vpop.f32.mrf.mxu0
    %v1095 = vpop.f32.mrf.mxu0
    %v1096 = vadd.f32 %v999, %v1095
    %v1097 = vpop.f32.mrf.mxu0
    %1098 = vmatprep.mubr.bf16.mxu0 %v440
    %1099 = vmatmul.mubr.bf16.gmra.mxu0 %v439
    %v1100 = vpop.f32.mrf.mxu0
    %v1101 = vadd.f32 %v1004, %v1100
    %v1102 = vpop.f32.mrf.mxu0
    %v1103 = vpop.f32.mrf.mxu0
    %v1104 = vadd.f32 %v1007, %v1103
    %v1105 = vpop.f32.mrf.mxu0
    %1106 = vdwg.mxu0
    %1107 = vmatprep.subr.bf16.mxu0 0
    %1108 = vmatpush1.bf16.msra.mxu0 0
    %1109 = vmatprep.subr.bf16.mxu0 0
    %1110 = vmatpush1.bf16.msra.mxu0 0
    %1111 = vmatprep.subr.bf16.mxu0 0
    %1112 = vmatpush1.bf16.msra.mxu0 0
    %1113 = vmatprep.subr.bf16.mxu0 0
    %1114 = vmatpush1.bf16.msra.mxu0 0
    %1115 = vmatprep.subr.bf16.mxu0 0
    %1116 = vmatpush1.bf16.msra.mxu0 0
    %1117 = vmatprep.subr.bf16.mxu0 0
    %1118 = vmatpush1.bf16.msra.mxu0 0
    %1119 = vmatprep.subr.bf16.mxu0 0
    %1120 = vmatpush1.bf16.msra.mxu0 %v814
    %1121 = vmatprep.subr.bf16.mxu0 0
    %1122 = vmatpush1.bf16.msra.mxu0 %v736
    %1123 = vmatprep.subr.bf16.mxu0 0
    %1124 = vmatpush2.bf16.msra.mxu0 0
    %1125 = vmatprep.subr.bf16.mxu0 0
    %1126 = vmatpush2.bf16.msra.mxu0 0
    %1127 = vmatprep.subr.bf16.mxu0 0
    %1128 = vmatpush2.bf16.msra.mxu0 0
    %1129 = vmatprep.subr.bf16.mxu0 0
    %1130 = vmatpush2.bf16.msra.mxu0 0
    %1131 = vmatprep.subr.bf16.mxu0 0
    %1132 = vmatpush2.bf16.msra.mxu0 0
    %1133 = vmatprep.subr.bf16.mxu0 0
    %1134 = vmatpush2.bf16.msra.mxu0 0
    %1135 = vmatprep.subr.bf16.mxu0 0
    %1136 = vmatpush2.bf16.msra.mxu0 0
    %1137 = vmatprep.subr.bf16.mxu0 0
    %1138 = vmatpush2.bf16.msra.mxu0 0
    %1139 = vmatprep.mubr.bf16.mxu0 0
    %1140 = vmatmul.mubr.bf16.gmra.mxu0 %v789
    %v1141 = vpop.f32.mrf.mxu0
    %v1142 = vadd.f32 %v1045, %v1141
    %v1143 = vpop.f32.mrf.mxu0
    %v1144 = vpop.f32.mrf.mxu0
    %v1145 = vadd.f32 %v1048, %v1144
    %v1146 = vpop.f32.mrf.mxu0
    %1147 = vmatprep.mubr.bf16.mxu0 0
    %1148 = vmatmul.mubr.bf16.gmra.mxu0 %v792
    %v1149 = vpop.f32.mrf.mxu0
    %v1150 = vadd.f32 %v1053, %v1149
    %v1151 = vpop.f32.mrf.mxu0
    %v1152 = vpop.f32.mrf.mxu0
    %v1153 = vadd.f32 %v1056, %v1152
    %v1154 = vpop.f32.mrf.mxu0
    %1155 = vmatprep.mubr.bf16.mxu0 0
    %1156 = vmatmul.mubr.bf16.gmra.mxu0 %v795
    %v1157 = vpop.f32.mrf.mxu0
    %v1158 = vadd.f32 %v1061, %v1157
    %v1159 = vpop.f32.mrf.mxu0
    %v1160 = vpop.f32.mrf.mxu0
    %v1161 = vadd.f32 %v1064, %v1160
    %v1162 = vpop.f32.mrf.mxu0
    %1163 = vmatprep.mubr.bf16.mxu0 0
    %1164 = vmatmul.mubr.bf16.gmra.mxu0 %v798
    %v1165 = vpop.f32.mrf.mxu0
    %v1166 = vadd.f32 %v1069, %v1165
    %v1167 = vpop.f32.mrf.mxu0
    %v1168 = vpop.f32.mrf.mxu0
    %v1169 = vadd.f32 %v1072, %v1168
    %v1170 = vpop.f32.mrf.mxu0
    %1171 = vmatprep.mubr.bf16.mxu0 0
    %1172 = vmatmul.mubr.bf16.gmra.mxu0 %v801
    %v1173 = vpop.f32.mrf.mxu0
    %v1174 = vadd.f32 %v1077, %v1173
    %v1175 = vpop.f32.mrf.mxu0
    %v1176 = vpop.f32.mrf.mxu0
    %v1177 = vadd.f32 %v1080, %v1176
    %v1178 = vpop.f32.mrf.mxu0
    %1179 = vmatprep.mubr.bf16.mxu0 0
    %1180 = vmatmul.mubr.bf16.gmra.mxu0 %v804
    %v1181 = vpop.f32.mrf.mxu0
    %v1182 = vadd.f32 %v1085, %v1181
    %v1183 = vpop.f32.mrf.mxu0
    %v1184 = vpop.f32.mrf.mxu0
    %v1185 = vadd.f32 %v1088, %v1184
    %v1186 = vpop.f32.mrf.mxu0
    %1187 = vmatprep.mubr.bf16.mxu0 0
    %1188 = vmatmul.mubr.bf16.gmra.mxu0 %v807
    %v1189 = vpop.f32.mrf.mxu0
    %v1190 = vadd.f32 %v1093, %v1189
    %v1191 = vpop.f32.mrf.mxu0
    %v1192 = vpop.f32.mrf.mxu0
    %v1193 = vadd.f32 %v1096, %v1192
    %v1194 = vpop.f32.mrf.mxu0
    %1195 = vmatprep.mubr.bf16.mxu0 0
    %1196 = vmatmul.mubr.bf16.gmra.mxu0 %v810
    %v1197 = vpop.f32.mrf.mxu0
    %v1198 = vadd.f32 %v1101, %v1197
    %v1199 = vpop.f32.mrf.mxu0
    %v1200 = vpop.f32.mrf.mxu0
    %v1201 = vadd.f32 %v1104, %v1200
    %v1202 = vpop.f32.mrf.mxu0
    %1203 = vdwg.mxu0
    %v1204 = vmax.f32 %v1142, 0.0
    %v1205 = vmax.f32 %v1145, 0.0
    %v1206 = vmax.f32 %v1150, 0.0
    %v1207 = vmax.f32 %v1153, 0.0
    %v1208 = vmax.f32 %v1158, 0.0
    %v1209 = vmax.f32 %v1161, 0.0
    %v1210 = vmax.f32 %v1166, 0.0
    %v1211 = vmax.f32 %v1169, 0.0
    %v1212 = vmax.f32 %v1174, 0.0
    %v1213 = vmax.f32 %v1177, 0.0
    %v1214 = vmax.f32 %v1182, 0.0
    %v1215 = vmax.f32 %v1185, 0.0
    %v1216 = vmax.f32 %v1190, 0.0
    %v1217 = vmax.f32 %v1193, 0.0
    %v1218 = vmax.f32 %v1198, 0.0
    %v1219 = vmax.f32 %v1201, 0.0
    %v1220 = vpack.c.bf16 %v1205, %v1204
    %v1221 = vpack.c.bf16 %v1207, %v1206
    %v1222 = vpack.c.bf16 %v1209, %v1208
    %v1223 = vpack.c.bf16 %v1211, %v1210
    %v1224 = vpack.c.bf16 %v1213, %v1212
    %v1225 = vpack.c.bf16 %v1215, %v1214
    %v1226 = vpack.c.bf16 %v1217, %v1216
    %v1227 = vpack.c.bf16 %v1219, %v1218
    %v1236 = vunpack.c.l.b16 %v1220
    %v1237 = vunpack.c.h.b16 %v1220
    %v1238 = vunpack.c.l.b16 %v1221
    %v1239 = vunpack.c.h.b16 %v1221
    %v1240 = vunpack.c.l.b16 %v1222
    %v1241 = vunpack.c.h.b16 %v1222
    %v1242 = vunpack.c.l.b16 %v1223
    %v1243 = vunpack.c.h.b16 %v1223
    %v1244 = vunpack.c.l.b16 %v1224
    %v1245 = vunpack.c.h.b16 %v1224
    %v1246 = vunpack.c.l.b16 %v1225
    %v1247 = vunpack.c.h.b16 %v1225
    %v1248 = vunpack.c.l.b16 %v1226
    %v1249 = vunpack.c.h.b16 %v1226
    %v1250 = vunpack.c.l.b16 %v1227
    %v1251 = vunpack.c.h.b16 %v1227
    %v1252 = vpack.c.b16 %v1236, %v1236
    %v1253 = vpack.c.b16 %v1237, %v1237
    %v1254 = vpack.c.b16 %v1238, %v1238
    %v1255 = vpack.c.b16 %v1239, %v1239
    %v1256 = vpack.c.b16 %v1240, %v1240
    %v1257 = vpack.c.b16 %v1241, %v1241
    %v1258 = vpack.c.b16 %v1242, %v1242
    %v1259 = vpack.c.b16 %v1243, %v1243
    %v1260 = vpack.c.b16 %v1244, %v1244
    %v1261 = vpack.c.b16 %v1245, %v1245
    %v1262 = vpack.c.b16 %v1246, %v1246
    %v1263 = vpack.c.b16 %v1247, %v1247
    %v1264 = vpack.c.b16 %v1248, %v1248
    %v1265 = vpack.c.b16 %v1249, %v1249
    %v1266 = vpack.c.b16 %v1250, %v1250
    %v1267 = vpack.c.b16 %v1251, %v1251
    %v1268 = vld [vmem:[%s3] sm:$0xf]
    %v1269 = vld [vmem:[%s3 + $0x4] sm:$0xf]
    %v1270 = vld [vmem:[%s3 + $0x8] sm:$0xf]
    %v1271 = vld [vmem:[%s3 + $0xc] sm:$0xf]
    %v1272 = vld [vmem:[%s3 + $0x10] sm:$0xf]
    %v1273 = vld [vmem:[%s3 + $0x14] sm:$0xf]
    %v1274 = vld [vmem:[%s3 + $0x18] sm:$0xf]
    %v1275 = vld [vmem:[%s3 + $0x1c] sm:$0xf]
    %v1276 = vld [vmem:[%s3 + $0x20] sm:$0xf]
    %v1277 = vld [vmem:[%s3 + $0x24] sm:$0xf]
    %v1278 = vld [vmem:[%s3 + $0x28] sm:$0xf]
    %v1279 = vld [vmem:[%s3 + $0x2c] sm:$0xf]
    %v1280 = vld [vmem:[%s3 + $0x30] sm:$0xf]
    %v1281 = vld [vmem:[%s3 + $0x34] sm:$0xf]
    %v1282 = vld [vmem:[%s3 + $0x38] sm:$0xf]
    %v1283 = vld [vmem:[%s3 + $0x3c] sm:$0xf]
    %v1284 = vld [vmem:[%s3 + $0x40] sm:$0xf]
    %v1285 = vld [vmem:[%s3 + $0x44] sm:$0xf]
    %v1286 = vld [vmem:[%s3 + $0x48] sm:$0xf]
    %v1287 = vld [vmem:[%s3 + $0x4c] sm:$0xf]
    %v1288 = vld [vmem:[%s3 + $0x50] sm:$0xf]
    %v1289 = vld [vmem:[%s3 + $0x54] sm:$0xf]
    %v1290 = vld [vmem:[%s3 + $0x58] sm:$0xf]
    %v1291 = vld [vmem:[%s3 + $0x5c] sm:$0xf]
    %v1292 = vld [vmem:[%s3 + $0x60] sm:$0xf]
    %v1293 = vld [vmem:[%s3 + $0x64] sm:$0xf]
    %v1294 = vld [vmem:[%s3 + $0x68] sm:$0xf]
    %v1295 = vld [vmem:[%s3 + $0x6c] sm:$0xf]
    %v1296 = vld [vmem:[%s3 + $0x70] sm:$0xf]
    %v1297 = vld [vmem:[%s3 + $0x74] sm:$0xf]
    %v1298 = vld [vmem:[%s3 + $0x78] sm:$0xf]
    %v1299 = vld [vmem:[%s3 + $0x7c] sm:$0xf]
    %v1300 = vld [vmem:[%s3 + $0x80] sm:$0xf]
    %v1301 = vld [vmem:[%s3 + $0x84] sm:$0xf]
    %v1302 = vld [vmem:[%s3 + $0x88] sm:$0xf]
    %v1303 = vld [vmem:[%s3 + $0x8c] sm:$0xf]
    %v1305 = vunpack.c.l.s4 1966171168
    %v1306 = vunpack.c.0.s8 %v1305
    %v1307 = vlaneseq
    %v1308 = vshrl.u32 %v1307, 7
    %v1309 = vsub.s32 %v1306, %v1308
    %v1310 = vrot.slane %v1252, %v1309
    %v1311 = vcombine.high %v1310, %v1310
    %v1313 = vunpack.c.l.s4 1966171168
    %v1314 = vunpack.c.0.s8 %v1313
    %v1315 = vlaneseq
    %v1316 = vshrl.u32 %v1315, 7
    %v1317 = vsub.s32 %v1314, %v1316
    %v1318 = vrot.slane %v1310, %v1317
    %v1320 = vunpack.c.l.s4 1966171168
    %v1321 = vunpack.c.0.s8 %v1320
    %v1322 = vlaneseq
    %v1323 = vshrl.u32 %v1322, 7
    %v1324 = vsub.s32 %v1321, %v1323
    %v1325 = vrot.slane %v1311, %v1324
    %v1326 = vcombine.high %v1318, %v1318
    %v1328 = vunpack.c.l.s4 1966171168
    %v1329 = vunpack.c.0.s8 %v1328
    %v1330 = vlaneseq
    %v1331 = vshrl.u32 %v1330, 7
    %v1332 = vsub.s32 %v1329, %v1331
    %v1333 = vrot.slane %v1253, %v1332
    %v1334 = vcombine.high %v1333, %v1333
    %v1336 = vunpack.c.l.s4 1966171168
    %v1337 = vunpack.c.0.s8 %v1336
    %v1338 = vlaneseq
    %v1339 = vshrl.u32 %v1338, 7
    %v1340 = vsub.s32 %v1337, %v1339
    %v1341 = vrot.slane %v1333, %v1340
    %v1343 = vunpack.c.l.s4 1966171168
    %v1344 = vunpack.c.0.s8 %v1343
    %v1345 = vlaneseq
    %v1346 = vshrl.u32 %v1345, 7
    %v1347 = vsub.s32 %v1344, %v1346
    %v1348 = vrot.slane %v1334, %v1347
    %v1349 = vcombine.high %v1341, %v1341
    %v1351 = vunpack.c.l.s4 1966171168
    %v1352 = vunpack.c.0.s8 %v1351
    %v1353 = vlaneseq
    %v1354 = vshrl.u32 %v1353, 7
    %v1355 = vsub.s32 %v1352, %v1354
    %v1356 = vrot.slane %v1254, %v1355
    %v1357 = vcombine.high %v1356, %v1356
    %v1359 = vunpack.c.l.s4 1966171168
    %v1360 = vunpack.c.0.s8 %v1359
    %v1361 = vlaneseq
    %v1362 = vshrl.u32 %v1361, 7
    %v1363 = vsub.s32 %v1360, %v1362
    %v1364 = vrot.slane %v1356, %v1363
    %v1366 = vunpack.c.l.s4 1966171168
    %v1367 = vunpack.c.0.s8 %v1366
    %v1368 = vlaneseq
    %v1369 = vshrl.u32 %v1368, 7
    %v1370 = vsub.s32 %v1367, %v1369
    %v1371 = vrot.slane %v1357, %v1370
    %v1372 = vcombine.high %v1364, %v1364
    %v1374 = vunpack.c.l.s4 1966171168
    %v1375 = vunpack.c.0.s8 %v1374
    %v1376 = vlaneseq
    %v1377 = vshrl.u32 %v1376, 7
    %v1378 = vsub.s32 %v1375, %v1377
    %v1379 = vrot.slane %v1255, %v1378
    %v1380 = vcombine.high %v1379, %v1379
    %v1382 = vunpack.c.l.s4 1966171168
    %v1383 = vunpack.c.0.s8 %v1382
    %v1384 = vlaneseq
    %v1385 = vshrl.u32 %v1384, 7
    %v1386 = vsub.s32 %v1383, %v1385
    %v1387 = vrot.slane %v1379, %v1386
    %v1389 = vunpack.c.l.s4 1966171168
    %v1390 = vunpack.c.0.s8 %v1389
    %v1391 = vlaneseq
    %v1392 = vshrl.u32 %v1391, 7
    %v1393 = vsub.s32 %v1390, %v1392
    %v1394 = vrot.slane %v1380, %v1393
    %v1395 = vcombine.high %v1387, %v1387
    %v1397 = vunpack.c.l.s4 1966171168
    %v1398 = vunpack.c.0.s8 %v1397
    %v1399 = vlaneseq
    %v1400 = vshrl.u32 %v1399, 7
    %v1401 = vsub.s32 %v1398, %v1400
    %v1402 = vrot.slane %v1256, %v1401
    %v1403 = vcombine.high %v1402, %v1402
    %v1405 = vunpack.c.l.s4 1966171168
    %v1406 = vunpack.c.0.s8 %v1405
    %v1407 = vlaneseq
    %v1408 = vshrl.u32 %v1407, 7
    %v1409 = vsub.s32 %v1406, %v1408
    %v1410 = vrot.slane %v1402, %v1409
    %v1412 = vunpack.c.l.s4 1966171168
    %v1413 = vunpack.c.0.s8 %v1412
    %v1414 = vlaneseq
    %v1415 = vshrl.u32 %v1414, 7
    %v1416 = vsub.s32 %v1413, %v1415
    %v1417 = vrot.slane %v1403, %v1416
    %v1418 = vcombine.high %v1410, %v1410
    %v1420 = vunpack.c.l.s4 1966171168
    %v1421 = vunpack.c.0.s8 %v1420
    %v1422 = vlaneseq
    %v1423 = vshrl.u32 %v1422, 7
    %v1424 = vsub.s32 %v1421, %v1423
    %v1425 = vrot.slane %v1257, %v1424
    %v1426 = vcombine.high %v1425, %v1425
    %v1428 = vunpack.c.l.s4 1966171168
    %v1429 = vunpack.c.0.s8 %v1428
    %v1430 = vlaneseq
    %v1431 = vshrl.u32 %v1430, 7
    %v1432 = vsub.s32 %v1429, %v1431
    %v1433 = vrot.slane %v1425, %v1432
    %v1435 = vunpack.c.l.s4 1966171168
    %v1436 = vunpack.c.0.s8 %v1435
    %v1437 = vlaneseq
    %v1438 = vshrl.u32 %v1437, 7
    %v1439 = vsub.s32 %v1436, %v1438
    %v1440 = vrot.slane %v1426, %v1439
    %v1441 = vcombine.high %v1433, %v1433
    %v1443 = vunpack.c.l.s4 1966171168
    %v1444 = vunpack.c.0.s8 %v1443
    %v1445 = vlaneseq
    %v1446 = vshrl.u32 %v1445, 7
    %v1447 = vsub.s32 %v1444, %v1446
    %v1448 = vrot.slane %v1260, %v1447
    %v1449 = vcombine.high %v1448, %v1448
    %v1451 = vunpack.c.l.s4 1966171168
    %v1452 = vunpack.c.0.s8 %v1451
    %v1453 = vlaneseq
    %v1454 = vshrl.u32 %v1453, 7
    %v1455 = vsub.s32 %v1452, %v1454
    %v1456 = vrot.slane %v1448, %v1455
    %v1458 = vunpack.c.l.s4 1966171168
    %v1459 = vunpack.c.0.s8 %v1458
    %v1460 = vlaneseq
    %v1461 = vshrl.u32 %v1460, 7
    %v1462 = vsub.s32 %v1459, %v1461
    %v1463 = vrot.slane %v1449, %v1462
    %v1464 = vcombine.high %v1456, %v1456
    %v1466 = vunpack.c.l.s4 1966171168
    %v1467 = vunpack.c.0.s8 %v1466
    %v1468 = vlaneseq
    %v1469 = vshrl.u32 %v1468, 7
    %v1470 = vsub.s32 %v1467, %v1469
    %v1471 = vrot.slane %v1261, %v1470
    %v1472 = vcombine.high %v1471, %v1471
    %v1474 = vunpack.c.l.s4 1966171168
    %v1475 = vunpack.c.0.s8 %v1474
    %v1476 = vlaneseq
    %v1477 = vshrl.u32 %v1476, 7
    %v1478 = vsub.s32 %v1475, %v1477
    %v1479 = vrot.slane %v1471, %v1478
    %v1481 = vunpack.c.l.s4 1966171168
    %v1482 = vunpack.c.0.s8 %v1481
    %v1483 = vlaneseq
    %v1484 = vshrl.u32 %v1483, 7
    %v1485 = vsub.s32 %v1482, %v1484
    %v1486 = vrot.slane %v1472, %v1485
    %v1487 = vcombine.high %v1479, %v1479
    %v1489 = vunpack.c.l.s4 1966171168
    %v1490 = vunpack.c.0.s8 %v1489
    %v1491 = vlaneseq
    %v1492 = vshrl.u32 %v1491, 7
    %v1493 = vsub.s32 %v1490, %v1492
    %v1494 = vrot.slane %v1262, %v1493
    %v1495 = vcombine.high %v1494, %v1494
    %v1497 = vunpack.c.l.s4 1966171168
    %v1498 = vunpack.c.0.s8 %v1497
    %v1499 = vlaneseq
    %v1500 = vshrl.u32 %v1499, 7
    %v1501 = vsub.s32 %v1498, %v1500
    %v1502 = vrot.slane %v1494, %v1501
    %v1504 = vunpack.c.l.s4 1966171168
    %v1505 = vunpack.c.0.s8 %v1504
    %v1506 = vlaneseq
    %v1507 = vshrl.u32 %v1506, 7
    %v1508 = vsub.s32 %v1505, %v1507
    %v1509 = vrot.slane %v1495, %v1508
    %v1510 = vcombine.high %v1502, %v1502
    %v1512 = vunpack.c.l.s4 1966171168
    %v1513 = vunpack.c.0.s8 %v1512
    %v1514 = vlaneseq
    %v1515 = vshrl.u32 %v1514, 7
    %v1516 = vsub.s32 %v1513, %v1515
    %v1517 = vrot.slane %v1263, %v1516
    %v1518 = vcombine.high %v1517, %v1517
    %v1520 = vunpack.c.l.s4 1966171168
    %v1521 = vunpack.c.0.s8 %v1520
    %v1522 = vlaneseq
    %v1523 = vshrl.u32 %v1522, 7
    %v1524 = vsub.s32 %v1521, %v1523
    %v1525 = vrot.slane %v1517, %v1524
    %v1527 = vunpack.c.l.s4 1966171168
    %v1528 = vunpack.c.0.s8 %v1527
    %v1529 = vlaneseq
    %v1530 = vshrl.u32 %v1529, 7
    %v1531 = vsub.s32 %v1528, %v1530
    %v1532 = vrot.slane %v1518, %v1531
    %v1533 = vcombine.high %v1525, %v1525
    %v1535 = vunpack.c.l.s4 1966171168
    %v1536 = vunpack.c.0.s8 %v1535
    %v1537 = vlaneseq
    %v1538 = vshrl.u32 %v1537, 7
    %v1539 = vsub.s32 %v1536, %v1538
    %v1540 = vrot.slane %v1264, %v1539
    %v1541 = vcombine.high %v1540, %v1540
    %v1543 = vunpack.c.l.s4 1966171168
    %v1544 = vunpack.c.0.s8 %v1543
    %v1545 = vlaneseq
    %v1546 = vshrl.u32 %v1545, 7
    %v1547 = vsub.s32 %v1544, %v1546
    %v1548 = vrot.slane %v1540, %v1547
    %v1550 = vunpack.c.l.s4 1966171168
    %v1551 = vunpack.c.0.s8 %v1550
    %v1552 = vlaneseq
    %v1553 = vshrl.u32 %v1552, 7
    %v1554 = vsub.s32 %v1551, %v1553
    %v1555 = vrot.slane %v1541, %v1554
    %v1556 = vcombine.high %v1548, %v1548
    %v1558 = vunpack.c.l.s4 1966171168
    %v1559 = vunpack.c.0.s8 %v1558
    %v1560 = vlaneseq
    %v1561 = vshrl.u32 %v1560, 7
    %v1562 = vsub.s32 %v1559, %v1561
    %v1563 = vrot.slane %v1265, %v1562
    %v1564 = vcombine.high %v1563, %v1563
    %v1566 = vunpack.c.l.s4 1966171168
    %v1567 = vunpack.c.0.s8 %v1566
    %v1568 = vlaneseq
    %v1569 = vshrl.u32 %v1568, 7
    %v1570 = vsub.s32 %v1567, %v1569
    %v1571 = vrot.slane %v1563, %v1570
    %v1573 = vunpack.c.l.s4 1966171168
    %v1574 = vunpack.c.0.s8 %v1573
    %v1575 = vlaneseq
    %v1576 = vshrl.u32 %v1575, 7
    %v1577 = vsub.s32 %v1574, %v1576
    %v1578 = vrot.slane %v1564, %v1577
    %v1579 = vcombine.high %v1571, %v1571
    %v1580 = vcombine.high %v1325, %v1325
    %v1581 = vcombine.high %v1348, %v1348
    %v1582 = vcombine.high %v1371, %v1371
    %v1583 = vcombine.high %v1394, %v1394
    %v1584 = vcombine.high %v1417, %v1417
    %v1585 = vcombine.high %v1440, %v1440
    %v1586 = vcombine.high %v1463, %v1463
    %v1587 = vcombine.high %v1486, %v1486
    %v1588 = vcombine.high %v1509, %v1509
    %v1589 = vcombine.high %v1532, %v1532
    %v1590 = vcombine.high %v1555, %v1555
    %v1591 = vcombine.high %v1578, %v1578
    %vm1592 = vsmask.f32 256
    %vm1593 = vsmask.f32 1284
    %vm1594 = vmor %vm1592, %vm1593
    %vm1595 = vsmask.f32 2312
    %vm1596 = vmor %vm1594, %vm1595
    %vm1597 = vsmask.f32 3340
    %vm1598 = vmor %vm1596, %vm1597
    %vm1599 = vsmask.f32 4368
    %vm1600 = vmor %vm1598, %vm1599
    %vm1601 = vsmask.f32 5396
    %vm1602 = vmor %vm1600, %vm1601
    %vm1603 = vsmask.f32 6424
    %vm1604 = vmor %vm1602, %vm1603
    %vm1605 = vsmask.f32 7452
    %vm1606 = vmor %vm1604, %vm1605
    %v1608 = vshrl.u32 %v1318, 16
    %v1610 = vrot.slane %v1608, 7
    %v1611 = vrot.slane %v1610, 1
    %v1613 = vshll.u32 %v1325, 16
    %v1615 = vsel %vm1606, %v1611, %v1613
    %v1616 = vshrl.u32 %v1325, 16
    %v1618 = vrot.slane %v1616, 7
    %v1619 = vrot.slane %v1618, 1
    %v1621 = vshll.u32 %v1326, 16
    %v1623 = vsel %vm1606, %v1619, %v1621
    %v1624 = vshrl.u32 %v1326, 16
    %v1626 = vrot.slane %v1624, 7
    %v1627 = vrot.slane %v1626, 1
    %v1629 = vshll.u32 %v1580, 16
    %v1631 = vsel %vm1606, %v1627, %v1629
    %v1633 = vshrl.u32 %v1341, 16
    %v1635 = vrot.slane %v1633, 7
    %v1636 = vrot.slane %v1635, 1
    %v1638 = vshll.u32 %v1348, 16
    %v1640 = vsel %vm1606, %v1636, %v1638
    %v1641 = vshrl.u32 %v1348, 16
    %v1643 = vrot.slane %v1641, 7
    %v1644 = vrot.slane %v1643, 1
    %v1646 = vshll.u32 %v1349, 16
    %v1648 = vsel %vm1606, %v1644, %v1646
    %v1649 = vshrl.u32 %v1349, 16
    %v1651 = vrot.slane %v1649, 7
    %v1652 = vrot.slane %v1651, 1
    %v1654 = vshll.u32 %v1581, 16
    %v1656 = vsel %vm1606, %v1652, %v1654
    %v1658 = vshrl.u32 %v1364, 16
    %v1660 = vrot.slane %v1658, 7
    %v1661 = vrot.slane %v1660, 1
    %v1663 = vshll.u32 %v1371, 16
    %v1665 = vsel %vm1606, %v1661, %v1663
    %v1666 = vshrl.u32 %v1371, 16
    %v1668 = vrot.slane %v1666, 7
    %v1669 = vrot.slane %v1668, 1
    %v1671 = vshll.u32 %v1372, 16
    %v1673 = vsel %vm1606, %v1669, %v1671
    %v1674 = vshrl.u32 %v1372, 16
    %v1676 = vrot.slane %v1674, 7
    %v1677 = vrot.slane %v1676, 1
    %v1679 = vshll.u32 %v1582, 16
    %v1681 = vsel %vm1606, %v1677, %v1679
    %v1683 = vshrl.u32 %v1387, 16
    %v1685 = vrot.slane %v1683, 7
    %v1686 = vrot.slane %v1685, 1
    %v1688 = vshll.u32 %v1394, 16
    %v1690 = vsel %vm1606, %v1686, %v1688
    %v1691 = vshrl.u32 %v1394, 16
    %v1693 = vrot.slane %v1691, 7
    %v1694 = vrot.slane %v1693, 1
    %v1696 = vshll.u32 %v1395, 16
    %v1698 = vsel %vm1606, %v1694, %v1696
    %v1699 = vshrl.u32 %v1395, 16
    %v1701 = vrot.slane %v1699, 7
    %v1702 = vrot.slane %v1701, 1
    %v1704 = vshll.u32 %v1583, 16
    %v1706 = vsel %vm1606, %v1702, %v1704
    %v1708 = vshrl.u32 %v1410, 16
    %v1710 = vrot.slane %v1708, 7
    %v1711 = vrot.slane %v1710, 1
    %v1713 = vshll.u32 %v1417, 16
    %v1715 = vsel %vm1606, %v1711, %v1713
    %v1716 = vshrl.u32 %v1417, 16
    %v1718 = vrot.slane %v1716, 7
    %v1719 = vrot.slane %v1718, 1
    %v1721 = vshll.u32 %v1418, 16
    %v1723 = vsel %vm1606, %v1719, %v1721
    %v1724 = vshrl.u32 %v1418, 16
    %v1726 = vrot.slane %v1724, 7
    %v1727 = vrot.slane %v1726, 1
    %v1729 = vshll.u32 %v1584, 16
    %v1731 = vsel %vm1606, %v1727, %v1729
    %v1733 = vshrl.u32 %v1433, 16
    %v1735 = vrot.slane %v1733, 7
    %v1736 = vrot.slane %v1735, 1
    %v1738 = vshll.u32 %v1440, 16
    %v1740 = vsel %vm1606, %v1736, %v1738
    %v1741 = vshrl.u32 %v1440, 16
    %v1743 = vrot.slane %v1741, 7
    %v1744 = vrot.slane %v1743, 1
    %v1746 = vshll.u32 %v1441, 16
    %v1748 = vsel %vm1606, %v1744, %v1746
    %v1749 = vshrl.u32 %v1441, 16
    %v1751 = vrot.slane %v1749, 7
    %v1752 = vrot.slane %v1751, 1
    %v1754 = vshll.u32 %v1585, 16
    %v1756 = vsel %vm1606, %v1752, %v1754
    %v1758 = vshrl.u32 %v1456, 16
    %v1760 = vrot.slane %v1758, 7
    %v1761 = vrot.slane %v1760, 1
    %v1763 = vshll.u32 %v1463, 16
    %v1765 = vsel %vm1606, %v1761, %v1763
    %v1766 = vshrl.u32 %v1463, 16
    %v1768 = vrot.slane %v1766, 7
    %v1769 = vrot.slane %v1768, 1
    %v1771 = vshll.u32 %v1464, 16
    %v1773 = vsel %vm1606, %v1769, %v1771
    %v1774 = vshrl.u32 %v1464, 16
    %v1776 = vrot.slane %v1774, 7
    %v1777 = vrot.slane %v1776, 1
    %v1779 = vshll.u32 %v1586, 16
    %v1781 = vsel %vm1606, %v1777, %v1779
    %v1783 = vshrl.u32 %v1479, 16
    %v1785 = vrot.slane %v1783, 7
    %v1786 = vrot.slane %v1785, 1
    %v1788 = vshll.u32 %v1486, 16
    %v1790 = vsel %vm1606, %v1786, %v1788
    %v1791 = vshrl.u32 %v1486, 16
    %v1793 = vrot.slane %v1791, 7
    %v1794 = vrot.slane %v1793, 1
    %v1796 = vshll.u32 %v1487, 16
    %v1798 = vsel %vm1606, %v1794, %v1796
    %v1799 = vshrl.u32 %v1487, 16
    %v1801 = vrot.slane %v1799, 7
    %v1802 = vrot.slane %v1801, 1
    %v1804 = vshll.u32 %v1587, 16
    %v1806 = vsel %vm1606, %v1802, %v1804
    %v1808 = vshrl.u32 %v1502, 16
    %v1810 = vrot.slane %v1808, 7
    %v1811 = vrot.slane %v1810, 1
    %v1813 = vshll.u32 %v1509, 16
    %v1815 = vsel %vm1606, %v1811, %v1813
    %v1816 = vshrl.u32 %v1509, 16
    %v1818 = vrot.slane %v1816, 7
    %v1819 = vrot.slane %v1818, 1
    %v1821 = vshll.u32 %v1510, 16
    %v1823 = vsel %vm1606, %v1819, %v1821
    %v1824 = vshrl.u32 %v1510, 16
    %v1826 = vrot.slane %v1824, 7
    %v1827 = vrot.slane %v1826, 1
    %v1829 = vshll.u32 %v1588, 16
    %v1831 = vsel %vm1606, %v1827, %v1829
    %v1833 = vshrl.u32 %v1525, 16
    %v1835 = vrot.slane %v1833, 7
    %v1836 = vrot.slane %v1835, 1
    %v1838 = vshll.u32 %v1532, 16
    %v1840 = vsel %vm1606, %v1836, %v1838
    %v1841 = vshrl.u32 %v1532, 16
    %v1843 = vrot.slane %v1841, 7
    %v1844 = vrot.slane %v1843, 1
    %v1846 = vshll.u32 %v1533, 16
    %v1848 = vsel %vm1606, %v1844, %v1846
    %v1849 = vshrl.u32 %v1533, 16
    %v1851 = vrot.slane %v1849, 7
    %v1852 = vrot.slane %v1851, 1
    %v1854 = vshll.u32 %v1589, 16
    %v1856 = vsel %vm1606, %v1852, %v1854
    %v1858 = vshrl.u32 %v1548, 16
    %v1860 = vrot.slane %v1858, 7
    %v1861 = vrot.slane %v1860, 1
    %v1863 = vshll.u32 %v1555, 16
    %v1865 = vsel %vm1606, %v1861, %v1863
    %v1866 = vshrl.u32 %v1555, 16
    %v1868 = vrot.slane %v1866, 7
    %v1869 = vrot.slane %v1868, 1
    %v1871 = vshll.u32 %v1556, 16
    %v1873 = vsel %vm1606, %v1869, %v1871
    %v1874 = vshrl.u32 %v1556, 16
    %v1876 = vrot.slane %v1874, 7
    %v1877 = vrot.slane %v1876, 1
    %v1879 = vshll.u32 %v1590, 16
    %v1881 = vsel %vm1606, %v1877, %v1879
    %v1883 = vshrl.u32 %v1571, 16
    %v1885 = vrot.slane %v1883, 7
    %v1886 = vrot.slane %v1885, 1
    %v1888 = vshll.u32 %v1578, 16
    %v1890 = vsel %vm1606, %v1886, %v1888
    %v1891 = vshrl.u32 %v1578, 16
    %v1893 = vrot.slane %v1891, 7
    %v1894 = vrot.slane %v1893, 1
    %v1896 = vshll.u32 %v1579, 16
    %v1898 = vsel %vm1606, %v1894, %v1896
    %v1899 = vshrl.u32 %v1579, 16
    %v1901 = vrot.slane %v1899, 7
    %v1902 = vrot.slane %v1901, 1
    %v1904 = vshll.u32 %v1591, 16
    %v1906 = vsel %vm1606, %v1902, %v1904
    %v1907 = vcombine.low %v1615, %v1623
    %v1908 = vcombine.low %v1631, %v1640
    %v1909 = vcombine.low %v1648, %v1656
    %v1910 = vcombine.low %v1665, %v1673
    %v1912 = vunpack.c.l.s4 1966171168
    %v1913 = vunpack.c.0.s8 %v1912
    %v1914 = vlaneseq
    %v1915 = vshrl.u32 %v1914, 7
    %v1916 = vsub.s32 %v1913, %v1915
    %v1917 = vrot.slane %v1907, %v1916
    %v1919 = vunpack.c.l.s4 1966171168
    %v1920 = vunpack.c.0.s8 %v1919
    %v1921 = vlaneseq
    %v1922 = vshrl.u32 %v1921, 7
    %v1923 = vsub.s32 %v1920, %v1922
    %v1924 = vrot.slane %v1908, %v1923
    %v1926 = vunpack.c.l.s4 1966171168
    %v1927 = vunpack.c.0.s8 %v1926
    %v1928 = vlaneseq
    %v1929 = vshrl.u32 %v1928, 7
    %v1930 = vsub.s32 %v1927, %v1929
    %v1931 = vrot.slane %v1909, %v1930
    %v1933 = vunpack.c.l.s4 1966171168
    %v1934 = vunpack.c.0.s8 %v1933
    %v1935 = vlaneseq
    %v1936 = vshrl.u32 %v1935, 7
    %v1937 = vsub.s32 %v1934, %v1936
    %v1938 = vrot.slane %v1910, %v1937
    %v1939 = vcombine.low %v1917, %v1924
    %v1940 = vcombine.low %v1931, %v1938
    %v1942 = vunpack.c.l.s4 1966171168
    %v1943 = vunpack.c.0.s8 %v1942
    %v1944 = vlaneseq
    %v1945 = vshrl.u32 %v1944, 7
    %v1946 = vsub.s32 %v1943, %v1945
    %v1947 = vrot.slane %v1939, %v1946
    %v1949 = vunpack.c.l.s4 1966171168
    %v1950 = vunpack.c.0.s8 %v1949
    %v1951 = vlaneseq
    %v1952 = vshrl.u32 %v1951, 7
    %v1953 = vsub.s32 %v1950, %v1952
    %v1954 = vrot.slane %v1940, %v1953
    %v1955 = vcombine.low %v1947, %v1954
    %v1956 = vcombine.low %v1681, %v1690
    %v1957 = vcombine.low %v1698, %v1706
    %v1958 = vcombine.low %v1715, %v1723
    %v1959 = vcombine.low %v1731, %v1740
    %v1961 = vunpack.c.l.s4 1966171168
    %v1962 = vunpack.c.0.s8 %v1961
    %v1963 = vlaneseq
    %v1964 = vshrl.u32 %v1963, 7
    %v1965 = vsub.s32 %v1962, %v1964
    %v1966 = vrot.slane %v1956, %v1965
    %v1968 = vunpack.c.l.s4 1966171168
    %v1969 = vunpack.c.0.s8 %v1968
    %v1970 = vlaneseq
    %v1971 = vshrl.u32 %v1970, 7
    %v1972 = vsub.s32 %v1969, %v1971
    %v1973 = vrot.slane %v1957, %v1972
    %v1975 = vunpack.c.l.s4 1966171168
    %v1976 = vunpack.c.0.s8 %v1975
    %v1977 = vlaneseq
    %v1978 = vshrl.u32 %v1977, 7
    %v1979 = vsub.s32 %v1976, %v1978
    %v1980 = vrot.slane %v1958, %v1979
    %v1982 = vunpack.c.l.s4 1966171168
    %v1983 = vunpack.c.0.s8 %v1982
    %v1984 = vlaneseq
    %v1985 = vshrl.u32 %v1984, 7
    %v1986 = vsub.s32 %v1983, %v1985
    %v1987 = vrot.slane %v1959, %v1986
    %v1988 = vcombine.low %v1966, %v1973
    %v1989 = vcombine.low %v1980, %v1987
    %v1991 = vunpack.c.l.s4 1966171168
    %v1992 = vunpack.c.0.s8 %v1991
    %v1993 = vlaneseq
    %v1994 = vshrl.u32 %v1993, 7
    %v1995 = vsub.s32 %v1992, %v1994
    %v1996 = vrot.slane %v1988, %v1995
    %v1998 = vunpack.c.l.s4 1966171168
    %v1999 = vunpack.c.0.s8 %v1998
    %v2000 = vlaneseq
    %v2001 = vshrl.u32 %v2000, 7
    %v2002 = vsub.s32 %v1999, %v2001
    %v2003 = vrot.slane %v1989, %v2002
    %v2004 = vcombine.low %v1996, %v2003
    %v2005 = vcombine.low %v1748, %v1756
    %v2006 = vcombine.low %v1765, %v1773
    %v2007 = vcombine.low %v1781, %v1790
    %v2008 = vcombine.low %v1798, %v1806
    %v2010 = vunpack.c.l.s4 1966171168
    %v2011 = vunpack.c.0.s8 %v2010
    %v2012 = vlaneseq
    %v2013 = vshrl.u32 %v2012, 7
    %v2014 = vsub.s32 %v2011, %v2013
    %v2015 = vrot.slane %v2005, %v2014
    %v2017 = vunpack.c.l.s4 1966171168
    %v2018 = vunpack.c.0.s8 %v2017
    %v2019 = vlaneseq
    %v2020 = vshrl.u32 %v2019, 7
    %v2021 = vsub.s32 %v2018, %v2020
    %v2022 = vrot.slane %v2006, %v2021
    %v2024 = vunpack.c.l.s4 1966171168
    %v2025 = vunpack.c.0.s8 %v2024
    %v2026 = vlaneseq
    %v2027 = vshrl.u32 %v2026, 7
    %v2028 = vsub.s32 %v2025, %v2027
    %v2029 = vrot.slane %v2007, %v2028
    %v2031 = vunpack.c.l.s4 1966171168
    %v2032 = vunpack.c.0.s8 %v2031
    %v2033 = vlaneseq
    %v2034 = vshrl.u32 %v2033, 7
    %v2035 = vsub.s32 %v2032, %v2034
    %v2036 = vrot.slane %v2008, %v2035
    %v2037 = vcombine.low %v2015, %v2022
    %v2038 = vcombine.low %v2029, %v2036
    %v2040 = vunpack.c.l.s4 1966171168
    %v2041 = vunpack.c.0.s8 %v2040
    %v2042 = vlaneseq
    %v2043 = vshrl.u32 %v2042, 7
    %v2044 = vsub.s32 %v2041, %v2043
    %v2045 = vrot.slane %v2037, %v2044
    %v2047 = vunpack.c.l.s4 1966171168
    %v2048 = vunpack.c.0.s8 %v2047
    %v2049 = vlaneseq
    %v2050 = vshrl.u32 %v2049, 7
    %v2051 = vsub.s32 %v2048, %v2050
    %v2052 = vrot.slane %v2038, %v2051
    %v2053 = vcombine.low %v2045, %v2052
    %v2054 = vcombine.low %v1815, %v1823
    %v2055 = vcombine.low %v1831, %v1840
    %v2056 = vcombine.low %v1848, %v1856
    %v2057 = vcombine.low %v1865, %v1873
    %v2059 = vunpack.c.l.s4 1966171168
    %v2060 = vunpack.c.0.s8 %v2059
    %v2061 = vlaneseq
    %v2062 = vshrl.u32 %v2061, 7
    %v2063 = vsub.s32 %v2060, %v2062
    %v2064 = vrot.slane %v2054, %v2063
    %v2066 = vunpack.c.l.s4 1966171168
    %v2067 = vunpack.c.0.s8 %v2066
    %v2068 = vlaneseq
    %v2069 = vshrl.u32 %v2068, 7
    %v2070 = vsub.s32 %v2067, %v2069
    %v2071 = vrot.slane %v2055, %v2070
    %v2073 = vunpack.c.l.s4 1966171168
    %v2074 = vunpack.c.0.s8 %v2073
    %v2075 = vlaneseq
    %v2076 = vshrl.u32 %v2075, 7
    %v2077 = vsub.s32 %v2074, %v2076
    %v2078 = vrot.slane %v2056, %v2077
    %v2080 = vunpack.c.l.s4 1966171168
    %v2081 = vunpack.c.0.s8 %v2080
    %v2082 = vlaneseq
    %v2083 = vshrl.u32 %v2082, 7
    %v2084 = vsub.s32 %v2081, %v2083
    %v2085 = vrot.slane %v2057, %v2084
    %v2086 = vcombine.low %v2064, %v2071
    %v2087 = vcombine.low %v2078, %v2085
    %v2089 = vunpack.c.l.s4 1966171168
    %v2090 = vunpack.c.0.s8 %v2089
    %v2091 = vlaneseq
    %v2092 = vshrl.u32 %v2091, 7
    %v2093 = vsub.s32 %v2090, %v2092
    %v2094 = vrot.slane %v2086, %v2093
    %v2096 = vunpack.c.l.s4 1966171168
    %v2097 = vunpack.c.0.s8 %v2096
    %v2098 = vlaneseq
    %v2099 = vshrl.u32 %v2098, 7
    %v2100 = vsub.s32 %v2097, %v2099
    %v2101 = vrot.slane %v2087, %v2100
    %v2102 = vcombine.low %v2094, %v2101
    %v2103 = vcombine.low %v1881, %v1890
    %v2104 = vcombine.low %v1898, %v1906
    %v2106 = vunpack.c.l.s4 1966171168
    %v2107 = vunpack.c.0.s8 %v2106
    %v2108 = vlaneseq
    %v2109 = vshrl.u32 %v2108, 7
    %v2110 = vsub.s32 %v2107, %v2109
    %v2111 = vrot.slane %v2103, %v2110
    %v2113 = vunpack.c.l.s4 1966171168
    %v2114 = vunpack.c.0.s8 %v2113
    %v2115 = vlaneseq
    %v2116 = vshrl.u32 %v2115, 7
    %v2117 = vsub.s32 %v2114, %v2116
    %v2118 = vrot.slane %v2104, %v2117
    %v2119 = vcombine.low %v2111, %v2118
    %v2121 = vunpack.c.l.s4 1966171168
    %v2122 = vunpack.c.0.s8 %v2121
    %v2123 = vlaneseq
    %v2124 = vshrl.u32 %v2123, 7
    %v2125 = vsub.s32 %v2122, %v2124
    %v2126 = vrot.slane %v2119, %v2125
    %v2131 = vunpack.c.l.b16 %v1272
    %v2132 = vunpack.c.l.b16 %v1273
    %v2133 = vunpack.c.l.b16 %v1274
    %v2134 = vunpack.c.l.b16 %v1275
    %v2135 = vpack.c.b16 %v2132, %v2131
    %v2136 = vpack.c.b16 %v2134, %v2133
    %vm2139 = vcmask 261120
    %v2141 = vsel %vm2139, %v1955, 0
    %v2144 = vsel %vm2139, %v2004, 0
    %v2147 = vsel %vm2139, %v2053, 0
    %v2150 = vsel %vm2139, %v2102, 0
    %v2153 = vsel %vm2139, %v2126, 0
    %2155 = vmatprep.subr.bf16.mxu0 0
    %2156 = vmatpush1.bf16.msra.mxu0 0
    %2157 = vmatprep.subr.bf16.mxu0 0
    %2158 = vmatpush1.bf16.msra.mxu0 0
    %2159 = vmatprep.subr.bf16.mxu0 0
    %2160 = vmatpush1.bf16.msra.mxu0 0
    %2161 = vmatprep.subr.bf16.mxu0 0
    %2162 = vmatpush1.bf16.msra.mxu0 0
    %2163 = vmatprep.subr.bf16.mxu0 0
    %2164 = vmatpush1.bf16.msra.mxu0 0
    %2165 = vmatprep.subr.bf16.mxu0 0
    %2166 = vmatpush1.bf16.msra.mxu0 0
    %2167 = vmatprep.subr.bf16.mxu0 0
    %2168 = vmatpush1.bf16.msra.mxu0 %v2136
    %2169 = vmatprep.subr.bf16.mxu0 0
    %2170 = vmatpush1.bf16.msra.mxu0 %v2135
    %2171 = vmatprep.subr.bf16.mxu0 0
    %2172 = vmatpush2.bf16.msra.mxu0 0
    %2173 = vmatprep.subr.bf16.mxu0 0
    %2174 = vmatpush2.bf16.msra.mxu0 0
    %2175 = vmatprep.subr.bf16.mxu0 0
    %2176 = vmatpush2.bf16.msra.mxu0 0
    %2177 = vmatprep.subr.bf16.mxu0 0
    %2178 = vmatpush2.bf16.msra.mxu0 0
    %2179 = vmatprep.subr.bf16.mxu0 0
    %2180 = vmatpush2.bf16.msra.mxu0 0
    %2181 = vmatprep.subr.bf16.mxu0 0
    %2182 = vmatpush2.bf16.msra.mxu0 0
    %2183 = vmatprep.subr.bf16.mxu0 0
    %2184 = vmatpush2.bf16.msra.mxu0 0
    %2185 = vmatprep.subr.bf16.mxu0 0
    %2186 = vmatpush2.bf16.msra.mxu0 0
    %2187 = vmatprep.mubr.bf16.mxu0 0
    %2188 = vmatmul.mubr.bf16.gmra.mxu0 %v2141
    %v2189 = vpop.f32.mrf.mxu0
    %v2190 = vadd.f32 0.0, %v2189
    %v2191 = vpop.f32.mrf.mxu0
    %v2192 = vpop.f32.mrf.mxu0
    %v2193 = vadd.f32 0.0, %v2192
    %v2194 = vpop.f32.mrf.mxu0
    %2195 = vmatprep.mubr.bf16.mxu0 0
    %2196 = vmatmul.mubr.bf16.gmra.mxu0 %v2144
    %v2197 = vpop.f32.mrf.mxu0
    %v2198 = vadd.f32 0.0, %v2197
    %v2199 = vpop.f32.mrf.mxu0
    %v2200 = vpop.f32.mrf.mxu0
    %v2201 = vadd.f32 0.0, %v2200
    %v2202 = vpop.f32.mrf.mxu0
    %2203 = vmatprep.mubr.bf16.mxu0 0
    %2204 = vmatmul.mubr.bf16.gmra.mxu0 %v2147
    %v2205 = vpop.f32.mrf.mxu0
    %v2206 = vadd.f32 0.0, %v2205
    %v2207 = vpop.f32.mrf.mxu0
    %v2208 = vpop.f32.mrf.mxu0
    %v2209 = vadd.f32 0.0, %v2208
    %v2210 = vpop.f32.mrf.mxu0
    %2211 = vmatprep.mubr.bf16.mxu0 0
    %2212 = vmatmul.mubr.bf16.gmra.mxu0 %v2150
    %v2213 = vpop.f32.mrf.mxu0
    %v2214 = vadd.f32 0.0, %v2213
    %v2215 = vpop.f32.mrf.mxu0
    %v2216 = vpop.f32.mrf.mxu0
    %v2217 = vadd.f32 0.0, %v2216
    %v2218 = vpop.f32.mrf.mxu0
    %2219 = vmatprep.mubr.bf16.mxu0 0
    %2220 = vmatmul.mubr.bf16.gmra.mxu0 %v2153
    %v2221 = vpop.f32.mrf.mxu0
    %v2222 = vadd.f32 0.0, %v2221
    %v2223 = vpop.f32.mrf.mxu0
    %v2224 = vpop.f32.mrf.mxu0
    %v2225 = vpop.f32.mrf.mxu0
    %2226 = vdwg.mxu0
    %v2227 = vcombine.low %v1318, %v1325
    %v2228 = vcombine.low %v1326, %v1341
    %v2229 = vcombine.low %v1348, %v1349
    %v2230 = vcombine.low %v1364, %v1371
    %v2232 = vunpack.c.l.s4 1966171168
    %v2233 = vunpack.c.0.s8 %v2232
    %v2234 = vlaneseq
    %v2235 = vshrl.u32 %v2234, 7
    %v2236 = vsub.s32 %v2233, %v2235
    %v2237 = vrot.slane %v2227, %v2236
    %v2239 = vunpack.c.l.s4 1966171168
    %v2240 = vunpack.c.0.s8 %v2239
    %v2241 = vlaneseq
    %v2242 = vshrl.u32 %v2241, 7
    %v2243 = vsub.s32 %v2240, %v2242
    %v2244 = vrot.slane %v2228, %v2243
    %v2246 = vunpack.c.l.s4 1966171168
    %v2247 = vunpack.c.0.s8 %v2246
    %v2248 = vlaneseq
    %v2249 = vshrl.u32 %v2248, 7
    %v2250 = vsub.s32 %v2247, %v2249
    %v2251 = vrot.slane %v2229, %v2250
    %v2253 = vunpack.c.l.s4 1966171168
    %v2254 = vunpack.c.0.s8 %v2253
    %v2255 = vlaneseq
    %v2256 = vshrl.u32 %v2255, 7
    %v2257 = vsub.s32 %v2254, %v2256
    %v2258 = vrot.slane %v2230, %v2257
    %v2259 = vcombine.low %v2237, %v2244
    %v2260 = vcombine.low %v2251, %v2258
    %v2262 = vunpack.c.l.s4 1966171168
    %v2263 = vunpack.c.0.s8 %v2262
    %v2264 = vlaneseq
    %v2265 = vshrl.u32 %v2264, 7
    %v2266 = vsub.s32 %v2263, %v2265
    %v2267 = vrot.slane %v2259, %v2266
    %v2269 = vunpack.c.l.s4 1966171168
    %v2270 = vunpack.c.0.s8 %v2269
    %v2271 = vlaneseq
    %v2272 = vshrl.u32 %v2271, 7
    %v2273 = vsub.s32 %v2270, %v2272
    %v2274 = vrot.slane %v2260, %v2273
    %v2275 = vcombine.low %v2267, %v2274
    %v2276 = vcombine.low %v1372, %v1387
    %v2277 = vcombine.low %v1394, %v1395
    %v2278 = vcombine.low %v1410, %v1417
    %v2279 = vcombine.low %v1418, %v1433
    %v2281 = vunpack.c.l.s4 1966171168
    %v2282 = vunpack.c.0.s8 %v2281
    %v2283 = vlaneseq
    %v2284 = vshrl.u32 %v2283, 7
    %v2285 = vsub.s32 %v2282, %v2284
    %v2286 = vrot.slane %v2276, %v2285
    %v2288 = vunpack.c.l.s4 1966171168
    %v2289 = vunpack.c.0.s8 %v2288
    %v2290 = vlaneseq
    %v2291 = vshrl.u32 %v2290, 7
    %v2292 = vsub.s32 %v2289, %v2291
    %v2293 = vrot.slane %v2277, %v2292
    %v2295 = vunpack.c.l.s4 1966171168
    %v2296 = vunpack.c.0.s8 %v2295
    %v2297 = vlaneseq
    %v2298 = vshrl.u32 %v2297, 7
    %v2299 = vsub.s32 %v2296, %v2298
    %v2300 = vrot.slane %v2278, %v2299
    %v2302 = vunpack.c.l.s4 1966171168
    %v2303 = vunpack.c.0.s8 %v2302
    %v2304 = vlaneseq
    %v2305 = vshrl.u32 %v2304, 7
    %v2306 = vsub.s32 %v2303, %v2305
    %v2307 = vrot.slane %v2279, %v2306
    %v2308 = vcombine.low %v2286, %v2293
    %v2309 = vcombine.low %v2300, %v2307
    %v2311 = vunpack.c.l.s4 1966171168
    %v2312 = vunpack.c.0.s8 %v2311
    %v2313 = vlaneseq
    %v2314 = vshrl.u32 %v2313, 7
    %v2315 = vsub.s32 %v2312, %v2314
    %v2316 = vrot.slane %v2308, %v2315
    %v2318 = vunpack.c.l.s4 1966171168
    %v2319 = vunpack.c.0.s8 %v2318
    %v2320 = vlaneseq
    %v2321 = vshrl.u32 %v2320, 7
    %v2322 = vsub.s32 %v2319, %v2321
    %v2323 = vrot.slane %v2309, %v2322
    %v2324 = vcombine.low %v2316, %v2323
    %v2325 = vcombine.low %v1440, %v1441
    %v2326 = vcombine.low %v1456, %v1463
    %v2327 = vcombine.low %v1464, %v1479
    %v2328 = vcombine.low %v1486, %v1487
    %v2330 = vunpack.c.l.s4 1966171168
    %v2331 = vunpack.c.0.s8 %v2330
    %v2332 = vlaneseq
    %v2333 = vshrl.u32 %v2332, 7
    %v2334 = vsub.s32 %v2331, %v2333
    %v2335 = vrot.slane %v2325, %v2334
    %v2337 = vunpack.c.l.s4 1966171168
    %v2338 = vunpack.c.0.s8 %v2337
    %v2339 = vlaneseq
    %v2340 = vshrl.u32 %v2339, 7
    %v2341 = vsub.s32 %v2338, %v2340
    %v2342 = vrot.slane %v2326, %v2341
    %v2344 = vunpack.c.l.s4 1966171168
    %v2345 = vunpack.c.0.s8 %v2344
    %v2346 = vlaneseq
    %v2347 = vshrl.u32 %v2346, 7
    %v2348 = vsub.s32 %v2345, %v2347
    %v2349 = vrot.slane %v2327, %v2348
    %v2351 = vunpack.c.l.s4 1966171168
    %v2352 = vunpack.c.0.s8 %v2351
    %v2353 = vlaneseq
    %v2354 = vshrl.u32 %v2353, 7
    %v2355 = vsub.s32 %v2352, %v2354
    %v2356 = vrot.slane %v2328, %v2355
    %v2357 = vcombine.low %v2335, %v2342
    %v2358 = vcombine.low %v2349, %v2356
    %v2360 = vunpack.c.l.s4 1966171168
    %v2361 = vunpack.c.0.s8 %v2360
    %v2362 = vlaneseq
    %v2363 = vshrl.u32 %v2362, 7
    %v2364 = vsub.s32 %v2361, %v2363
    %v2365 = vrot.slane %v2357, %v2364
    %v2367 = vunpack.c.l.s4 1966171168
    %v2368 = vunpack.c.0.s8 %v2367
    %v2369 = vlaneseq
    %v2370 = vshrl.u32 %v2369, 7
    %v2371 = vsub.s32 %v2368, %v2370
    %v2372 = vrot.slane %v2358, %v2371
    %v2373 = vcombine.low %v2365, %v2372
    %v2374 = vcombine.low %v1502, %v1509
    %v2375 = vcombine.low %v1510, %v1525
    %v2376 = vcombine.low %v1532, %v1533
    %v2377 = vcombine.low %v1548, %v1555
    %v2379 = vunpack.c.l.s4 1966171168
    %v2380 = vunpack.c.0.s8 %v2379
    %v2381 = vlaneseq
    %v2382 = vshrl.u32 %v2381, 7
    %v2383 = vsub.s32 %v2380, %v2382
    %v2384 = vrot.slane %v2374, %v2383
    %v2386 = vunpack.c.l.s4 1966171168
    %v2387 = vunpack.c.0.s8 %v2386
    %v2388 = vlaneseq
    %v2389 = vshrl.u32 %v2388, 7
    %v2390 = vsub.s32 %v2387, %v2389
    %v2391 = vrot.slane %v2375, %v2390
    %v2393 = vunpack.c.l.s4 1966171168
    %v2394 = vunpack.c.0.s8 %v2393
    %v2395 = vlaneseq
    %v2396 = vshrl.u32 %v2395, 7
    %v2397 = vsub.s32 %v2394, %v2396
    %v2398 = vrot.slane %v2376, %v2397
    %v2400 = vunpack.c.l.s4 1966171168
    %v2401 = vunpack.c.0.s8 %v2400
    %v2402 = vlaneseq
    %v2403 = vshrl.u32 %v2402, 7
    %v2404 = vsub.s32 %v2401, %v2403
    %v2405 = vrot.slane %v2377, %v2404
    %v2406 = vcombine.low %v2384, %v2391
    %v2407 = vcombine.low %v2398, %v2405
    %v2409 = vunpack.c.l.s4 1966171168
    %v2410 = vunpack.c.0.s8 %v2409
    %v2411 = vlaneseq
    %v2412 = vshrl.u32 %v2411, 7
    %v2413 = vsub.s32 %v2410, %v2412
    %v2414 = vrot.slane %v2406, %v2413
    %v2416 = vunpack.c.l.s4 1966171168
    %v2417 = vunpack.c.0.s8 %v2416
    %v2418 = vlaneseq
    %v2419 = vshrl.u32 %v2418, 7
    %v2420 = vsub.s32 %v2417, %v2419
    %v2421 = vrot.slane %v2407, %v2420
    %v2422 = vcombine.low %v2414, %v2421
    %v2423 = vcombine.low %v1556, %v1571
    %v2424 = vcombine.low %v1578, %v1579
    %v2426 = vunpack.c.l.s4 1966171168
    %v2427 = vunpack.c.0.s8 %v2426
    %v2428 = vlaneseq
    %v2429 = vshrl.u32 %v2428, 7
    %v2430 = vsub.s32 %v2427, %v2429
    %v2431 = vrot.slane %v2423, %v2430
    %v2433 = vunpack.c.l.s4 1966171168
    %v2434 = vunpack.c.0.s8 %v2433
    %v2435 = vlaneseq
    %v2436 = vshrl.u32 %v2435, 7
    %v2437 = vsub.s32 %v2434, %v2436
    %v2438 = vrot.slane %v2424, %v2437
    %v2439 = vcombine.low %v2431, %v2438
    %v2441 = vunpack.c.l.s4 1966171168
    %v2442 = vunpack.c.0.s8 %v2441
    %v2443 = vlaneseq
    %v2444 = vshrl.u32 %v2443, 7
    %v2445 = vsub.s32 %v2442, %v2444
    %v2446 = vrot.slane %v2439, %v2445
    %v2451 = vunpack.c.l.b16 %v1268
    %v2452 = vunpack.c.l.b16 %v1269
    %v2453 = vunpack.c.l.b16 %v1270
    %v2454 = vunpack.c.l.b16 %v1271
    %v2455 = vpack.c.b16 %v2452, %v2451
    %v2456 = vpack.c.b16 %v2454, %v2453
    %v2460 = vsel %vm2139, %v2275, 0
    %v2463 = vsel %vm2139, %v2324, 0
    %v2466 = vsel %vm2139, %v2373, 0
    %v2469 = vsel %vm2139, %v2422, 0
    %v2472 = vsel %vm2139, %v2446, 0
    %2474 = vmatprep.subr.bf16.mxu0 0
    %2475 = vmatpush1.bf16.msra.mxu0 0
    %2476 = vmatprep.subr.bf16.mxu0 0
    %2477 = vmatpush1.bf16.msra.mxu0 0
    %2478 = vmatprep.subr.bf16.mxu0 0
    %2479 = vmatpush1.bf16.msra.mxu0 0
    %2480 = vmatprep.subr.bf16.mxu0 0
    %2481 = vmatpush1.bf16.msra.mxu0 0
    %2482 = vmatprep.subr.bf16.mxu0 0
    %2483 = vmatpush1.bf16.msra.mxu0 0
    %2484 = vmatprep.subr.bf16.mxu0 0
    %2485 = vmatpush1.bf16.msra.mxu0 0
    %2486 = vmatprep.subr.bf16.mxu0 0
    %2487 = vmatpush1.bf16.msra.mxu0 %v2456
    %2488 = vmatprep.subr.bf16.mxu0 0
    %2489 = vmatpush1.bf16.msra.mxu0 %v2455
    %2490 = vmatprep.subr.bf16.mxu0 0
    %2491 = vmatpush2.bf16.msra.mxu0 0
    %2492 = vmatprep.subr.bf16.mxu0 0
    %2493 = vmatpush2.bf16.msra.mxu0 0
    %2494 = vmatprep.subr.bf16.mxu0 0
    %2495 = vmatpush2.bf16.msra.mxu0 0
    %2496 = vmatprep.subr.bf16.mxu0 0
    %2497 = vmatpush2.bf16.msra.mxu0 0
    %2498 = vmatprep.subr.bf16.mxu0 0
    %2499 = vmatpush2.bf16.msra.mxu0 0
    %2500 = vmatprep.subr.bf16.mxu0 0
    %2501 = vmatpush2.bf16.msra.mxu0 0
    %2502 = vmatprep.subr.bf16.mxu0 0
    %2503 = vmatpush2.bf16.msra.mxu0 0
    %2504 = vmatprep.subr.bf16.mxu0 0
    %2505 = vmatpush2.bf16.msra.mxu0 0
    %2506 = vmatprep.mubr.bf16.mxu0 0
    %2507 = vmatmul.mubr.bf16.gmra.mxu0 %v2460
    %v2508 = vpop.f32.mrf.mxu0
    %v2509 = vadd.f32 %v2190, %v2508
    %v2510 = vpop.f32.mrf.mxu0
    %v2511 = vpop.f32.mrf.mxu0
    %v2512 = vadd.f32 %v2193, %v2511
    %v2513 = vpop.f32.mrf.mxu0
    %2514 = vmatprep.mubr.bf16.mxu0 0
    %2515 = vmatmul.mubr.bf16.gmra.mxu0 %v2463
    %v2516 = vpop.f32.mrf.mxu0
    %v2517 = vadd.f32 %v2198, %v2516
    %v2518 = vpop.f32.mrf.mxu0
    %v2519 = vpop.f32.mrf.mxu0
    %v2520 = vadd.f32 %v2201, %v2519
    %v2521 = vpop.f32.mrf.mxu0
    %2522 = vmatprep.mubr.bf16.mxu0 0
    %2523 = vmatmul.mubr.bf16.gmra.mxu0 %v2466
    %v2524 = vpop.f32.mrf.mxu0
    %v2525 = vadd.f32 %v2206, %v2524
    %v2526 = vpop.f32.mrf.mxu0
    %v2527 = vpop.f32.mrf.mxu0
    %v2528 = vadd.f32 %v2209, %v2527
    %v2529 = vpop.f32.mrf.mxu0
    %2530 = vmatprep.mubr.bf16.mxu0 0
    %2531 = vmatmul.mubr.bf16.gmra.mxu0 %v2469
    %v2532 = vpop.f32.mrf.mxu0
    %v2533 = vadd.f32 %v2214, %v2532
    %v2534 = vpop.f32.mrf.mxu0
    %v2535 = vpop.f32.mrf.mxu0
    %v2536 = vadd.f32 %v2217, %v2535
    %v2537 = vpop.f32.mrf.mxu0
    %2538 = vmatprep.mubr.bf16.mxu0 0
    %2539 = vmatmul.mubr.bf16.gmra.mxu0 %v2472
    %v2540 = vpop.f32.mrf.mxu0
    %v2541 = vadd.f32 %v2222, %v2540
    %v2542 = vpop.f32.mrf.mxu0
    %v2543 = vpop.f32.mrf.mxu0
    %v2544 = vpop.f32.mrf.mxu0
    %2545 = vdwg.mxu0
    %v2546 = vcombine.low %v1325, %v1326
    %v2547 = vcombine.low %v1580, %v1348
    %v2548 = vcombine.low %v1349, %v1581
    %v2549 = vcombine.low %v1371, %v1372
    %v2551 = vunpack.c.l.s4 1966171168
    %v2552 = vunpack.c.0.s8 %v2551
    %v2553 = vlaneseq
    %v2554 = vshrl.u32 %v2553, 7
    %v2555 = vsub.s32 %v2552, %v2554
    %v2556 = vrot.slane %v2546, %v2555
    %v2558 = vunpack.c.l.s4 1966171168
    %v2559 = vunpack.c.0.s8 %v2558
    %v2560 = vlaneseq
    %v2561 = vshrl.u32 %v2560, 7
    %v2562 = vsub.s32 %v2559, %v2561
    %v2563 = vrot.slane %v2547, %v2562
    %v2565 = vunpack.c.l.s4 1966171168
    %v2566 = vunpack.c.0.s8 %v2565
    %v2567 = vlaneseq
    %v2568 = vshrl.u32 %v2567, 7
    %v2569 = vsub.s32 %v2566, %v2568
    %v2570 = vrot.slane %v2548, %v2569
    %v2572 = vunpack.c.l.s4 1966171168
    %v2573 = vunpack.c.0.s8 %v2572
    %v2574 = vlaneseq
    %v2575 = vshrl.u32 %v2574, 7
    %v2576 = vsub.s32 %v2573, %v2575
    %v2577 = vrot.slane %v2549, %v2576
    %v2578 = vcombine.low %v2556, %v2563
    %v2579 = vcombine.low %v2570, %v2577
    %v2581 = vunpack.c.l.s4 1966171168
    %v2582 = vunpack.c.0.s8 %v2581
    %v2583 = vlaneseq
    %v2584 = vshrl.u32 %v2583, 7
    %v2585 = vsub.s32 %v2582, %v2584
    %v2586 = vrot.slane %v2578, %v2585
    %v2588 = vunpack.c.l.s4 1966171168
    %v2589 = vunpack.c.0.s8 %v2588
    %v2590 = vlaneseq
    %v2591 = vshrl.u32 %v2590, 7
    %v2592 = vsub.s32 %v2589, %v2591
    %v2593 = vrot.slane %v2579, %v2592
    %v2594 = vcombine.low %v2586, %v2593
    %v2595 = vcombine.low %v1582, %v1394
    %v2596 = vcombine.low %v1395, %v1583
    %v2597 = vcombine.low %v1417, %v1418
    %v2598 = vcombine.low %v1584, %v1440
    %v2600 = vunpack.c.l.s4 1966171168
    %v2601 = vunpack.c.0.s8 %v2600
    %v2602 = vlaneseq
    %v2603 = vshrl.u32 %v2602, 7
    %v2604 = vsub.s32 %v2601, %v2603
    %v2605 = vrot.slane %v2595, %v2604
    %v2607 = vunpack.c.l.s4 1966171168
    %v2608 = vunpack.c.0.s8 %v2607
    %v2609 = vlaneseq
    %v2610 = vshrl.u32 %v2609, 7
    %v2611 = vsub.s32 %v2608, %v2610
    %v2612 = vrot.slane %v2596, %v2611
    %v2614 = vunpack.c.l.s4 1966171168
    %v2615 = vunpack.c.0.s8 %v2614
    %v2616 = vlaneseq
    %v2617 = vshrl.u32 %v2616, 7
    %v2618 = vsub.s32 %v2615, %v2617
    %v2619 = vrot.slane %v2597, %v2618
    %v2621 = vunpack.c.l.s4 1966171168
    %v2622 = vunpack.c.0.s8 %v2621
    %v2623 = vlaneseq
    %v2624 = vshrl.u32 %v2623, 7
    %v2625 = vsub.s32 %v2622, %v2624
    %v2626 = vrot.slane %v2598, %v2625
    %v2627 = vcombine.low %v2605, %v2612
    %v2628 = vcombine.low %v2619, %v2626
    %v2630 = vunpack.c.l.s4 1966171168
    %v2631 = vunpack.c.0.s8 %v2630
    %v2632 = vlaneseq
    %v2633 = vshrl.u32 %v2632, 7
    %v2634 = vsub.s32 %v2631, %v2633
    %v2635 = vrot.slane %v2627, %v2634
    %v2637 = vunpack.c.l.s4 1966171168
    %v2638 = vunpack.c.0.s8 %v2637
    %v2639 = vlaneseq
    %v2640 = vshrl.u32 %v2639, 7
    %v2641 = vsub.s32 %v2638, %v2640
    %v2642 = vrot.slane %v2628, %v2641
    %v2643 = vcombine.low %v2635, %v2642
    %v2644 = vcombine.low %v1441, %v1585
    %v2645 = vcombine.low %v1463, %v1464
    %v2646 = vcombine.low %v1586, %v1486
    %v2647 = vcombine.low %v1487, %v1587
    %v2649 = vunpack.c.l.s4 1966171168
    %v2650 = vunpack.c.0.s8 %v2649
    %v2651 = vlaneseq
    %v2652 = vshrl.u32 %v2651, 7
    %v2653 = vsub.s32 %v2650, %v2652
    %v2654 = vrot.slane %v2644, %v2653
    %v2656 = vunpack.c.l.s4 1966171168
    %v2657 = vunpack.c.0.s8 %v2656
    %v2658 = vlaneseq
    %v2659 = vshrl.u32 %v2658, 7
    %v2660 = vsub.s32 %v2657, %v2659
    %v2661 = vrot.slane %v2645, %v2660
    %v2663 = vunpack.c.l.s4 1966171168
    %v2664 = vunpack.c.0.s8 %v2663
    %v2665 = vlaneseq
    %v2666 = vshrl.u32 %v2665, 7
    %v2667 = vsub.s32 %v2664, %v2666
    %v2668 = vrot.slane %v2646, %v2667
    %v2670 = vunpack.c.l.s4 1966171168
    %v2671 = vunpack.c.0.s8 %v2670
    %v2672 = vlaneseq
    %v2673 = vshrl.u32 %v2672, 7
    %v2674 = vsub.s32 %v2671, %v2673
    %v2675 = vrot.slane %v2647, %v2674
    %v2676 = vcombine.low %v2654, %v2661
    %v2677 = vcombine.low %v2668, %v2675
    %v2679 = vunpack.c.l.s4 1966171168
    %v2680 = vunpack.c.0.s8 %v2679
    %v2681 = vlaneseq
    %v2682 = vshrl.u32 %v2681, 7
    %v2683 = vsub.s32 %v2680, %v2682
    %v2684 = vrot.slane %v2676, %v2683
    %v2686 = vunpack.c.l.s4 1966171168
    %v2687 = vunpack.c.0.s8 %v2686
    %v2688 = vlaneseq
    %v2689 = vshrl.u32 %v2688, 7
    %v2690 = vsub.s32 %v2687, %v2689
    %v2691 = vrot.slane %v2677, %v2690
    %v2692 = vcombine.low %v2684, %v2691
    %v2693 = vcombine.low %v1509, %v1510
    %v2694 = vcombine.low %v1588, %v1532
    %v2695 = vcombine.low %v1533, %v1589
    %v2696 = vcombine.low %v1555, %v1556
    %v2698 = vunpack.c.l.s4 1966171168
    %v2699 = vunpack.c.0.s8 %v2698
    %v2700 = vlaneseq
    %v2701 = vshrl.u32 %v2700, 7
    %v2702 = vsub.s32 %v2699, %v2701
    %v2703 = vrot.slane %v2693, %v2702
    %v2705 = vunpack.c.l.s4 1966171168
    %v2706 = vunpack.c.0.s8 %v2705
    %v2707 = vlaneseq
    %v2708 = vshrl.u32 %v2707, 7
    %v2709 = vsub.s32 %v2706, %v2708
    %v2710 = vrot.slane %v2694, %v2709
    %v2712 = vunpack.c.l.s4 1966171168
    %v2713 = vunpack.c.0.s8 %v2712
    %v2714 = vlaneseq
    %v2715 = vshrl.u32 %v2714, 7
    %v2716 = vsub.s32 %v2713, %v2715
    %v2717 = vrot.slane %v2695, %v2716
    %v2719 = vunpack.c.l.s4 1966171168
    %v2720 = vunpack.c.0.s8 %v2719
    %v2721 = vlaneseq
    %v2722 = vshrl.u32 %v2721, 7
    %v2723 = vsub.s32 %v2720, %v2722
    %v2724 = vrot.slane %v2696, %v2723
    %v2725 = vcombine.low %v2703, %v2710
    %v2726 = vcombine.low %v2717, %v2724
    %v2728 = vunpack.c.l.s4 1966171168
    %v2729 = vunpack.c.0.s8 %v2728
    %v2730 = vlaneseq
    %v2731 = vshrl.u32 %v2730, 7
    %v2732 = vsub.s32 %v2729, %v2731
    %v2733 = vrot.slane %v2725, %v2732
    %v2735 = vunpack.c.l.s4 1966171168
    %v2736 = vunpack.c.0.s8 %v2735
    %v2737 = vlaneseq
    %v2738 = vshrl.u32 %v2737, 7
    %v2739 = vsub.s32 %v2736, %v2738
    %v2740 = vrot.slane %v2726, %v2739
    %v2741 = vcombine.low %v2733, %v2740
    %v2742 = vcombine.low %v1590, %v1578
    %v2743 = vcombine.low %v1579, %v1591
    %v2745 = vunpack.c.l.s4 1966171168
    %v2746 = vunpack.c.0.s8 %v2745
    %v2747 = vlaneseq
    %v2748 = vshrl.u32 %v2747, 7
    %v2749 = vsub.s32 %v2746, %v2748
    %v2750 = vrot.slane %v2742, %v2749
    %v2752 = vunpack.c.l.s4 1966171168
    %v2753 = vunpack.c.0.s8 %v2752
    %v2754 = vlaneseq
    %v2755 = vshrl.u32 %v2754, 7
    %v2756 = vsub.s32 %v2753, %v2755
    %v2757 = vrot.slane %v2743, %v2756
    %v2758 = vcombine.low %v2750, %v2757
    %v2760 = vunpack.c.l.s4 1966171168
    %v2761 = vunpack.c.0.s8 %v2760
    %v2762 = vlaneseq
    %v2763 = vshrl.u32 %v2762, 7
    %v2764 = vsub.s32 %v2761, %v2763
    %v2765 = vrot.slane %v2758, %v2764
    %v2770 = vunpack.c.l.b16 %v1276
    %v2771 = vunpack.c.l.b16 %v1277
    %v2772 = vunpack.c.l.b16 %v1278
    %v2773 = vunpack.c.l.b16 %v1279
    %v2774 = vpack.c.b16 %v2771, %v2770
    %v2775 = vpack.c.b16 %v2773, %v2772
    %v2779 = vsel %vm2139, %v2594, 0
    %v2782 = vsel %vm2139, %v2643, 0
    %v2785 = vsel %vm2139, %v2692, 0
    %v2788 = vsel %vm2139, %v2741, 0
    %v2791 = vsel %vm2139, %v2765, 0
    %2793 = vmatprep.subr.bf16.mxu0 0
    %2794 = vmatpush1.bf16.msra.mxu0 0
    %2795 = vmatprep.subr.bf16.mxu0 0
    %2796 = vmatpush1.bf16.msra.mxu0 0
    %2797 = vmatprep.subr.bf16.mxu0 0
    %2798 = vmatpush1.bf16.msra.mxu0 0
    %2799 = vmatprep.subr.bf16.mxu0 0
    %2800 = vmatpush1.bf16.msra.mxu0 0
    %2801 = vmatprep.subr.bf16.mxu0 0
    %2802 = vmatpush1.bf16.msra.mxu0 0
    %2803 = vmatprep.subr.bf16.mxu0 0
    %2804 = vmatpush1.bf16.msra.mxu0 0
    %2805 = vmatprep.subr.bf16.mxu0 0
    %2806 = vmatpush1.bf16.msra.mxu0 %v2775
    %2807 = vmatprep.subr.bf16.mxu0 0
    %2808 = vmatpush1.bf16.msra.mxu0 %v2774
    %2809 = vmatprep.subr.bf16.mxu0 0
    %2810 = vmatpush2.bf16.msra.mxu0 0
    %2811 = vmatprep.subr.bf16.mxu0 0
    %2812 = vmatpush2.bf16.msra.mxu0 0
    %2813 = vmatprep.subr.bf16.mxu0 0
    %2814 = vmatpush2.bf16.msra.mxu0 0
    %2815 = vmatprep.subr.bf16.mxu0 0
    %2816 = vmatpush2.bf16.msra.mxu0 0
    %2817 = vmatprep.subr.bf16.mxu0 0
    %2818 = vmatpush2.bf16.msra.mxu0 0
    %2819 = vmatprep.subr.bf16.mxu0 0
    %2820 = vmatpush2.bf16.msra.mxu0 0
    %2821 = vmatprep.subr.bf16.mxu0 0
    %2822 = vmatpush2.bf16.msra.mxu0 0
    %2823 = vmatprep.subr.bf16.mxu0 0
    %2824 = vmatpush2.bf16.msra.mxu0 0
    %2825 = vmatprep.mubr.bf16.mxu0 0
    %2826 = vmatmul.mubr.bf16.gmra.mxu0 %v2779
    %v2827 = vpop.f32.mrf.mxu0
    %v2828 = vadd.f32 0.0, %v2827
    %v2829 = vpop.f32.mrf.mxu0
    %v2830 = vpop.f32.mrf.mxu0
    %v2831 = vadd.f32 0.0, %v2830
    %v2832 = vpop.f32.mrf.mxu0
    %2833 = vmatprep.mubr.bf16.mxu0 0
    %2834 = vmatmul.mubr.bf16.gmra.mxu0 %v2782
    %v2835 = vpop.f32.mrf.mxu0
    %v2836 = vadd.f32 0.0, %v2835
    %v2837 = vpop.f32.mrf.mxu0
    %v2838 = vpop.f32.mrf.mxu0
    %v2839 = vadd.f32 0.0, %v2838
    %v2840 = vpop.f32.mrf.mxu0
    %2841 = vmatprep.mubr.bf16.mxu0 0
    %2842 = vmatmul.mubr.bf16.gmra.mxu0 %v2785
    %v2843 = vpop.f32.mrf.mxu0
    %v2844 = vadd.f32 0.0, %v2843
    %v2845 = vpop.f32.mrf.mxu0
    %v2846 = vpop.f32.mrf.mxu0
    %v2847 = vadd.f32 0.0, %v2846
    %v2848 = vpop.f32.mrf.mxu0
    %2849 = vmatprep.mubr.bf16.mxu0 0
    %2850 = vmatmul.mubr.bf16.gmra.mxu0 %v2788
    %v2851 = vpop.f32.mrf.mxu0
    %v2852 = vadd.f32 0.0, %v2851
    %v2853 = vpop.f32.mrf.mxu0
    %v2854 = vpop.f32.mrf.mxu0
    %v2855 = vadd.f32 0.0, %v2854
    %v2856 = vpop.f32.mrf.mxu0
    %2857 = vmatprep.mubr.bf16.mxu0 0
    %2858 = vmatmul.mubr.bf16.gmra.mxu0 %v2791
    %v2859 = vpop.f32.mrf.mxu0
    %v2860 = vadd.f32 0.0, %v2859
    %v2861 = vpop.f32.mrf.mxu0
    %v2862 = vpop.f32.mrf.mxu0
    %v2863 = vpop.f32.mrf.mxu0
    %2864 = vdwg.mxu0
    %v2865 = vadd.f32 %v2509, %v2828
    %v2866 = vadd.f32 %v2512, %v2831
    %v2867 = vadd.f32 %v2517, %v2836
    %v2868 = vadd.f32 %v2520, %v2839
    %v2869 = vadd.f32 %v2525, %v2844
    %v2870 = vadd.f32 %v2528, %v2847
    %v2871 = vadd.f32 %v2533, %v2852
    %v2872 = vadd.f32 %v2536, %v2855
    %v2873 = vadd.f32 %v2541, %v2860
    %v2875 = vunpack.c.l.s4 1966171168
    %v2876 = vunpack.c.0.s8 %v2875
    %v2877 = vlaneseq
    %v2878 = vshrl.u32 %v2877, 7
    %v2879 = vsub.s32 %v2876, %v2878
    %v2880 = vrot.slane %v1258, %v2879
    %v2881 = vcombine.high %v2880, %v2880
    %v2883 = vunpack.c.l.s4 1966171168
    %v2884 = vunpack.c.0.s8 %v2883
    %v2885 = vlaneseq
    %v2886 = vshrl.u32 %v2885, 7
    %v2887 = vsub.s32 %v2884, %v2886
    %v2888 = vrot.slane %v2880, %v2887
    %v2890 = vunpack.c.l.s4 1966171168
    %v2891 = vunpack.c.0.s8 %v2890
    %v2892 = vlaneseq
    %v2893 = vshrl.u32 %v2892, 7
    %v2894 = vsub.s32 %v2891, %v2893
    %v2895 = vrot.slane %v2881, %v2894
    %v2896 = vcombine.high %v2888, %v2888
    %v2898 = vunpack.c.l.s4 1966171168
    %v2899 = vunpack.c.0.s8 %v2898
    %v2900 = vlaneseq
    %v2901 = vshrl.u32 %v2900, 7
    %v2902 = vsub.s32 %v2899, %v2901
    %v2903 = vrot.slane %v1266, %v2902
    %v2904 = vcombine.high %v2903, %v2903
    %v2906 = vunpack.c.l.s4 1966171168
    %v2907 = vunpack.c.0.s8 %v2906
    %v2908 = vlaneseq
    %v2909 = vshrl.u32 %v2908, 7
    %v2910 = vsub.s32 %v2907, %v2909
    %v2911 = vrot.slane %v2903, %v2910
    %v2913 = vunpack.c.l.s4 1966171168
    %v2914 = vunpack.c.0.s8 %v2913
    %v2915 = vlaneseq
    %v2916 = vshrl.u32 %v2915, 7
    %v2917 = vsub.s32 %v2914, %v2916
    %v2918 = vrot.slane %v2904, %v2917
    %v2919 = vcombine.high %v2911, %v2911
    %v2920 = vcombine.low %v1341, %v1348
    %v2921 = vcombine.low %v1349, %v1364
    %v2922 = vcombine.low %v1387, %v1394
    %v2924 = vunpack.c.l.s4 1966171168
    %v2925 = vunpack.c.0.s8 %v2924
    %v2926 = vlaneseq
    %v2927 = vshrl.u32 %v2926, 7
    %v2928 = vsub.s32 %v2925, %v2927
    %v2929 = vrot.slane %v2920, %v2928
    %v2931 = vunpack.c.l.s4 1966171168
    %v2932 = vunpack.c.0.s8 %v2931
    %v2933 = vlaneseq
    %v2934 = vshrl.u32 %v2933, 7
    %v2935 = vsub.s32 %v2932, %v2934
    %v2936 = vrot.slane %v2921, %v2935
    %v2938 = vunpack.c.l.s4 1966171168
    %v2939 = vunpack.c.0.s8 %v2938
    %v2940 = vlaneseq
    %v2941 = vshrl.u32 %v2940, 7
    %v2942 = vsub.s32 %v2939, %v2941
    %v2943 = vrot.slane %v2922, %v2942
    %v2944 = vcombine.low %v2929, %v2936
    %v2945 = vcombine.low %v2577, %v2943
    %v2947 = vunpack.c.l.s4 1966171168
    %v2948 = vunpack.c.0.s8 %v2947
    %v2949 = vlaneseq
    %v2950 = vshrl.u32 %v2949, 7
    %v2951 = vsub.s32 %v2948, %v2950
    %v2952 = vrot.slane %v2944, %v2951
    %v2954 = vunpack.c.l.s4 1966171168
    %v2955 = vunpack.c.0.s8 %v2954
    %v2956 = vlaneseq
    %v2957 = vshrl.u32 %v2956, 7
    %v2958 = vsub.s32 %v2955, %v2957
    %v2959 = vrot.slane %v2945, %v2958
    %v2960 = vcombine.low %v2952, %v2959
    %v2961 = vcombine.low %v1395, %v1410
    %v2962 = vcombine.low %v1433, %v1440
    %v2963 = vcombine.low %v1441, %v2888
    %v2965 = vunpack.c.l.s4 1966171168
    %v2966 = vunpack.c.0.s8 %v2965
    %v2967 = vlaneseq
    %v2968 = vshrl.u32 %v2967, 7
    %v2969 = vsub.s32 %v2966, %v2968
    %v2970 = vrot.slane %v2961, %v2969
    %v2972 = vunpack.c.l.s4 1966171168
    %v2973 = vunpack.c.0.s8 %v2972
    %v2974 = vlaneseq
    %v2975 = vshrl.u32 %v2974, 7
    %v2976 = vsub.s32 %v2973, %v2975
    %v2977 = vrot.slane %v2962, %v2976
    %v2979 = vunpack.c.l.s4 1966171168
    %v2980 = vunpack.c.0.s8 %v2979
    %v2981 = vlaneseq
    %v2982 = vshrl.u32 %v2981, 7
    %v2983 = vsub.s32 %v2980, %v2982
    %v2984 = vrot.slane %v2963, %v2983
    %v2985 = vcombine.low %v2970, %v2619
    %v2986 = vcombine.low %v2977, %v2984
    %v2988 = vunpack.c.l.s4 1966171168
    %v2989 = vunpack.c.0.s8 %v2988
    %v2990 = vlaneseq
    %v2991 = vshrl.u32 %v2990, 7
    %v2992 = vsub.s32 %v2989, %v2991
    %v2993 = vrot.slane %v2985, %v2992
    %v2995 = vunpack.c.l.s4 1966171168
    %v2996 = vunpack.c.0.s8 %v2995
    %v2997 = vlaneseq
    %v2998 = vshrl.u32 %v2997, 7
    %v2999 = vsub.s32 %v2996, %v2998
    %v3000 = vrot.slane %v2986, %v2999
    %v3001 = vcombine.low %v2993, %v3000
    %v3002 = vcombine.low %v2895, %v2896
    %v3003 = vcombine.low %v1479, %v1486
    %v3004 = vcombine.low %v1487, %v1502
    %v3006 = vunpack.c.l.s4 1966171168
    %v3007 = vunpack.c.0.s8 %v3006
    %v3008 = vlaneseq
    %v3009 = vshrl.u32 %v3008, 7
    %v3010 = vsub.s32 %v3007, %v3009
    %v3011 = vrot.slane %v3002, %v3010
    %v3013 = vunpack.c.l.s4 1966171168
    %v3014 = vunpack.c.0.s8 %v3013
    %v3015 = vlaneseq
    %v3016 = vshrl.u32 %v3015, 7
    %v3017 = vsub.s32 %v3014, %v3016
    %v3018 = vrot.slane %v3003, %v3017
    %v3020 = vunpack.c.l.s4 1966171168
    %v3021 = vunpack.c.0.s8 %v3020
    %v3022 = vlaneseq
    %v3023 = vshrl.u32 %v3022, 7
    %v3024 = vsub.s32 %v3021, %v3023
    %v3025 = vrot.slane %v3004, %v3024
    %v3026 = vcombine.low %v3011, %v3018
    %v3027 = vcombine.low %v3025, %v2703
    %v3029 = vunpack.c.l.s4 1966171168
    %v3030 = vunpack.c.0.s8 %v3029
    %v3031 = vlaneseq
    %v3032 = vshrl.u32 %v3031, 7
    %v3033 = vsub.s32 %v3030, %v3032
    %v3034 = vrot.slane %v3026, %v3033
    %v3036 = vunpack.c.l.s4 1966171168
    %v3037 = vunpack.c.0.s8 %v3036
    %v3038 = vlaneseq
    %v3039 = vshrl.u32 %v3038, 7
    %v3040 = vsub.s32 %v3037, %v3039
    %v3041 = vrot.slane %v3027, %v3040
    %v3042 = vcombine.low %v3034, %v3041
    %v3043 = vcombine.low %v1525, %v1532
    %v3044 = vcombine.low %v1533, %v1548
    %v3045 = vcombine.low %v1571, %v1578
    %v3047 = vunpack.c.l.s4 1966171168
    %v3048 = vunpack.c.0.s8 %v3047
    %v3049 = vlaneseq
    %v3050 = vshrl.u32 %v3049, 7
    %v3051 = vsub.s32 %v3048, %v3050
    %v3052 = vrot.slane %v3043, %v3051
    %v3054 = vunpack.c.l.s4 1966171168
    %v3055 = vunpack.c.0.s8 %v3054
    %v3056 = vlaneseq
    %v3057 = vshrl.u32 %v3056, 7
    %v3058 = vsub.s32 %v3055, %v3057
    %v3059 = vrot.slane %v3044, %v3058
    %v3061 = vunpack.c.l.s4 1966171168
    %v3062 = vunpack.c.0.s8 %v3061
    %v3063 = vlaneseq
    %v3064 = vshrl.u32 %v3063, 7
    %v3065 = vsub.s32 %v3062, %v3064
    %v3066 = vrot.slane %v3045, %v3065
    %v3067 = vcombine.low %v3052, %v3059
    %v3068 = vcombine.low %v2724, %v3066
    %v3070 = vunpack.c.l.s4 1966171168
    %v3071 = vunpack.c.0.s8 %v3070
    %v3072 = vlaneseq
    %v3073 = vshrl.u32 %v3072, 7
    %v3074 = vsub.s32 %v3071, %v3073
    %v3075 = vrot.slane %v3067, %v3074
    %v3077 = vunpack.c.l.s4 1966171168
    %v3078 = vunpack.c.0.s8 %v3077
    %v3079 = vlaneseq
    %v3080 = vshrl.u32 %v3079, 7
    %v3081 = vsub.s32 %v3078, %v3080
    %v3082 = vrot.slane %v3068, %v3081
    %v3083 = vcombine.low %v3075, %v3082
    %v3084 = vcombine.low %v1579, %v2911
    %v3085 = vcombine.low %v2918, %v2919
    %v3087 = vunpack.c.l.s4 1966171168
    %v3088 = vunpack.c.0.s8 %v3087
    %v3089 = vlaneseq
    %v3090 = vshrl.u32 %v3089, 7
    %v3091 = vsub.s32 %v3088, %v3090
    %v3092 = vrot.slane %v3084, %v3091
    %v3094 = vunpack.c.l.s4 1966171168
    %v3095 = vunpack.c.0.s8 %v3094
    %v3096 = vlaneseq
    %v3097 = vshrl.u32 %v3096, 7
    %v3098 = vsub.s32 %v3095, %v3097
    %v3099 = vrot.slane %v3085, %v3098
    %v3100 = vcombine.low %v3092, %v3099
    %v3102 = vunpack.c.l.s4 1966171168
    %v3103 = vunpack.c.0.s8 %v3102
    %v3104 = vlaneseq
    %v3105 = vshrl.u32 %v3104, 7
    %v3106 = vsub.s32 %v3103, %v3105
    %v3107 = vrot.slane %v3100, %v3106
    %v3112 = vunpack.c.l.b16 %v1280
    %v3113 = vunpack.c.l.b16 %v1281
    %v3114 = vunpack.c.l.b16 %v1282
    %v3115 = vunpack.c.l.b16 %v1283
    %v3116 = vpack.c.b16 %v3113, %v3112
    %v3117 = vpack.c.b16 %v3115, %v3114
    %v3121 = vsel %vm2139, %v2960, 0
    %v3124 = vsel %vm2139, %v3001, 0
    %v3127 = vsel %vm2139, %v3042, 0
    %v3130 = vsel %vm2139, %v3083, 0
    %v3133 = vsel %vm2139, %v3107, 0
    %3135 = vmatprep.subr.bf16.mxu0 0
    %3136 = vmatpush1.bf16.msra.mxu0 0
    %3137 = vmatprep.subr.bf16.mxu0 0
    %3138 = vmatpush1.bf16.msra.mxu0 0
    %3139 = vmatprep.subr.bf16.mxu0 0
    %3140 = vmatpush1.bf16.msra.mxu0 0
    %3141 = vmatprep.subr.bf16.mxu0 0
    %3142 = vmatpush1.bf16.msra.mxu0 0
    %3143 = vmatprep.subr.bf16.mxu0 0
    %3144 = vmatpush1.bf16.msra.mxu0 0
    %3145 = vmatprep.subr.bf16.mxu0 0
    %3146 = vmatpush1.bf16.msra.mxu0 0
    %3147 = vmatprep.subr.bf16.mxu0 0
    %3148 = vmatpush1.bf16.msra.mxu0 %v3117
    %3149 = vmatprep.subr.bf16.mxu0 0
    %3150 = vmatpush1.bf16.msra.mxu0 %v3116
    %3151 = vmatprep.subr.bf16.mxu0 0
    %3152 = vmatpush2.bf16.msra.mxu0 0
    %3153 = vmatprep.subr.bf16.mxu0 0
    %3154 = vmatpush2.bf16.msra.mxu0 0
    %3155 = vmatprep.subr.bf16.mxu0 0
    %3156 = vmatpush2.bf16.msra.mxu0 0
    %3157 = vmatprep.subr.bf16.mxu0 0
    %3158 = vmatpush2.bf16.msra.mxu0 0
    %3159 = vmatprep.subr.bf16.mxu0 0
    %3160 = vmatpush2.bf16.msra.mxu0 0
    %3161 = vmatprep.subr.bf16.mxu0 0
    %3162 = vmatpush2.bf16.msra.mxu0 0
    %3163 = vmatprep.subr.bf16.mxu0 0
    %3164 = vmatpush2.bf16.msra.mxu0 0
    %3165 = vmatprep.subr.bf16.mxu0 0
    %3166 = vmatpush2.bf16.msra.mxu0 0
    %3167 = vmatprep.mubr.bf16.mxu0 0
    %3168 = vmatmul.mubr.bf16.gmra.mxu0 %v3121
    %v3169 = vpop.f32.mrf.mxu0
    %v3170 = vadd.f32 0.0, %v3169
    %v3171 = vpop.f32.mrf.mxu0
    %v3172 = vpop.f32.mrf.mxu0
    %v3173 = vadd.f32 0.0, %v3172
    %v3174 = vpop.f32.mrf.mxu0
    %3175 = vmatprep.mubr.bf16.mxu0 0
    %3176 = vmatmul.mubr.bf16.gmra.mxu0 %v3124
    %v3177 = vpop.f32.mrf.mxu0
    %v3178 = vadd.f32 0.0, %v3177
    %v3179 = vpop.f32.mrf.mxu0
    %v3180 = vpop.f32.mrf.mxu0
    %v3181 = vadd.f32 0.0, %v3180
    %v3182 = vpop.f32.mrf.mxu0
    %3183 = vmatprep.mubr.bf16.mxu0 0
    %3184 = vmatmul.mubr.bf16.gmra.mxu0 %v3127
    %v3185 = vpop.f32.mrf.mxu0
    %v3186 = vadd.f32 0.0, %v3185
    %v3187 = vpop.f32.mrf.mxu0
    %v3188 = vpop.f32.mrf.mxu0
    %v3189 = vadd.f32 0.0, %v3188
    %v3190 = vpop.f32.mrf.mxu0
    %3191 = vmatprep.mubr.bf16.mxu0 0
    %3192 = vmatmul.mubr.bf16.gmra.mxu0 %v3130
    %v3193 = vpop.f32.mrf.mxu0
    %v3194 = vadd.f32 0.0, %v3193
    %v3195 = vpop.f32.mrf.mxu0
    %v3196 = vpop.f32.mrf.mxu0
    %v3197 = vadd.f32 0.0, %v3196
    %v3198 = vpop.f32.mrf.mxu0
    %3199 = vmatprep.mubr.bf16.mxu0 0
    %3200 = vmatmul.mubr.bf16.gmra.mxu0 %v3133
    %v3201 = vpop.f32.mrf.mxu0
    %v3202 = vadd.f32 0.0, %v3201
    %v3203 = vpop.f32.mrf.mxu0
    %v3204 = vpop.f32.mrf.mxu0
    %v3205 = vpop.f32.mrf.mxu0
    %3206 = vdwg.mxu0
    %v3207 = vadd.f32 %v2865, %v3170
    %v3208 = vadd.f32 %v2866, %v3173
    %v3209 = vadd.f32 %v2867, %v3178
    %v3210 = vadd.f32 %v2868, %v3181
    %v3211 = vadd.f32 %v2869, %v3186
    %v3212 = vadd.f32 %v2870, %v3189
    %v3213 = vadd.f32 %v2871, %v3194
    %v3214 = vadd.f32 %v2872, %v3197
    %v3215 = vadd.f32 %v2873, %v3202
    %v3216 = vcombine.high %v2895, %v2895
    %v3217 = vcombine.high %v2918, %v2918
    %v3219 = vshrl.u32 %v2888, 16
    %v3221 = vrot.slane %v3219, 7
    %v3222 = vrot.slane %v3221, 1
    %v3224 = vshll.u32 %v2895, 16
    %v3226 = vsel %vm1606, %v3222, %v3224
    %v3227 = vshrl.u32 %v2895, 16
    %v3229 = vrot.slane %v3227, 7
    %v3230 = vrot.slane %v3229, 1
    %v3232 = vshll.u32 %v2896, 16
    %v3234 = vsel %vm1606, %v3230, %v3232
    %v3235 = vshrl.u32 %v2896, 16
    %v3237 = vrot.slane %v3235, 7
    %v3238 = vrot.slane %v3237, 1
    %v3240 = vshll.u32 %v3216, 16
    %v3242 = vsel %vm1606, %v3238, %v3240
    %v3244 = vshrl.u32 %v2911, 16
    %v3246 = vrot.slane %v3244, 7
    %v3247 = vrot.slane %v3246, 1
    %v3249 = vshll.u32 %v2918, 16
    %v3251 = vsel %vm1606, %v3247, %v3249
    %v3252 = vshrl.u32 %v2918, 16
    %v3254 = vrot.slane %v3252, 7
    %v3255 = vrot.slane %v3254, 1
    %v3257 = vshll.u32 %v2919, 16
    %v3259 = vsel %vm1606, %v3255, %v3257
    %v3260 = vshrl.u32 %v2919, 16
    %v3262 = vrot.slane %v3260, 7
    %v3263 = vrot.slane %v3262, 1
    %v3265 = vshll.u32 %v3217, 16
    %v3267 = vsel %vm1606, %v3263, %v3265
    %v3268 = vcombine.low %v1640, %v1648
    %v3269 = vcombine.low %v1656, %v1665
    %v3270 = vcombine.low %v1673, %v1681
    %v3271 = vcombine.low %v1690, %v1698
    %v3273 = vunpack.c.l.s4 1966171168
    %v3274 = vunpack.c.0.s8 %v3273
    %v3275 = vlaneseq
    %v3276 = vshrl.u32 %v3275, 7
    %v3277 = vsub.s32 %v3274, %v3276
    %v3278 = vrot.slane %v3268, %v3277
    %v3280 = vunpack.c.l.s4 1966171168
    %v3281 = vunpack.c.0.s8 %v3280
    %v3282 = vlaneseq
    %v3283 = vshrl.u32 %v3282, 7
    %v3284 = vsub.s32 %v3281, %v3283
    %v3285 = vrot.slane %v3269, %v3284
    %v3287 = vunpack.c.l.s4 1966171168
    %v3288 = vunpack.c.0.s8 %v3287
    %v3289 = vlaneseq
    %v3290 = vshrl.u32 %v3289, 7
    %v3291 = vsub.s32 %v3288, %v3290
    %v3292 = vrot.slane %v3270, %v3291
    %v3294 = vunpack.c.l.s4 1966171168
    %v3295 = vunpack.c.0.s8 %v3294
    %v3296 = vlaneseq
    %v3297 = vshrl.u32 %v3296, 7
    %v3298 = vsub.s32 %v3295, %v3297
    %v3299 = vrot.slane %v3271, %v3298
    %v3300 = vcombine.low %v3278, %v3285
    %v3301 = vcombine.low %v3292, %v3299
    %v3303 = vunpack.c.l.s4 1966171168
    %v3304 = vunpack.c.0.s8 %v3303
    %v3305 = vlaneseq
    %v3306 = vshrl.u32 %v3305, 7
    %v3307 = vsub.s32 %v3304, %v3306
    %v3308 = vrot.slane %v3300, %v3307
    %v3310 = vunpack.c.l.s4 1966171168
    %v3311 = vunpack.c.0.s8 %v3310
    %v3312 = vlaneseq
    %v3313 = vshrl.u32 %v3312, 7
    %v3314 = vsub.s32 %v3311, %v3313
    %v3315 = vrot.slane %v3301, %v3314
    %v3316 = vcombine.low %v3308, %v3315
    %v3317 = vcombine.low %v1706, %v1715
    %v3318 = vcombine.low %v1723, %v1731
    %v3319 = vcombine.low %v1740, %v1748
    %v3320 = vcombine.low %v1756, %v3226
    %v3322 = vunpack.c.l.s4 1966171168
    %v3323 = vunpack.c.0.s8 %v3322
    %v3324 = vlaneseq
    %v3325 = vshrl.u32 %v3324, 7
    %v3326 = vsub.s32 %v3323, %v3325
    %v3327 = vrot.slane %v3317, %v3326
    %v3329 = vunpack.c.l.s4 1966171168
    %v3330 = vunpack.c.0.s8 %v3329
    %v3331 = vlaneseq
    %v3332 = vshrl.u32 %v3331, 7
    %v3333 = vsub.s32 %v3330, %v3332
    %v3334 = vrot.slane %v3318, %v3333
    %v3336 = vunpack.c.l.s4 1966171168
    %v3337 = vunpack.c.0.s8 %v3336
    %v3338 = vlaneseq
    %v3339 = vshrl.u32 %v3338, 7
    %v3340 = vsub.s32 %v3337, %v3339
    %v3341 = vrot.slane %v3319, %v3340
    %v3343 = vunpack.c.l.s4 1966171168
    %v3344 = vunpack.c.0.s8 %v3343
    %v3345 = vlaneseq
    %v3346 = vshrl.u32 %v3345, 7
    %v3347 = vsub.s32 %v3344, %v3346
    %v3348 = vrot.slane %v3320, %v3347
    %v3349 = vcombine.low %v3327, %v3334
    %v3350 = vcombine.low %v3341, %v3348
    %v3352 = vunpack.c.l.s4 1966171168
    %v3353 = vunpack.c.0.s8 %v3352
    %v3354 = vlaneseq
    %v3355 = vshrl.u32 %v3354, 7
    %v3356 = vsub.s32 %v3353, %v3355
    %v3357 = vrot.slane %v3349, %v3356
    %v3359 = vunpack.c.l.s4 1966171168
    %v3360 = vunpack.c.0.s8 %v3359
    %v3361 = vlaneseq
    %v3362 = vshrl.u32 %v3361, 7
    %v3363 = vsub.s32 %v3360, %v3362
    %v3364 = vrot.slane %v3350, %v3363
    %v3365 = vcombine.low %v3357, %v3364
    %v3366 = vcombine.low %v3234, %v3242
    %v3367 = vcombine.low %v1790, %v1798
    %v3368 = vcombine.low %v1806, %v1815
    %v3369 = vcombine.low %v1823, %v1831
    %v3371 = vunpack.c.l.s4 1966171168
    %v3372 = vunpack.c.0.s8 %v3371
    %v3373 = vlaneseq
    %v3374 = vshrl.u32 %v3373, 7
    %v3375 = vsub.s32 %v3372, %v3374
    %v3376 = vrot.slane %v3366, %v3375
    %v3378 = vunpack.c.l.s4 1966171168
    %v3379 = vunpack.c.0.s8 %v3378
    %v3380 = vlaneseq
    %v3381 = vshrl.u32 %v3380, 7
    %v3382 = vsub.s32 %v3379, %v3381
    %v3383 = vrot.slane %v3367, %v3382
    %v3385 = vunpack.c.l.s4 1966171168
    %v3386 = vunpack.c.0.s8 %v3385
    %v3387 = vlaneseq
    %v3388 = vshrl.u32 %v3387, 7
    %v3389 = vsub.s32 %v3386, %v3388
    %v3390 = vrot.slane %v3368, %v3389
    %v3392 = vunpack.c.l.s4 1966171168
    %v3393 = vunpack.c.0.s8 %v3392
    %v3394 = vlaneseq
    %v3395 = vshrl.u32 %v3394, 7
    %v3396 = vsub.s32 %v3393, %v3395
    %v3397 = vrot.slane %v3369, %v3396
    %v3398 = vcombine.low %v3376, %v3383
    %v3399 = vcombine.low %v3390, %v3397
    %v3401 = vunpack.c.l.s4 1966171168
    %v3402 = vunpack.c.0.s8 %v3401
    %v3403 = vlaneseq
    %v3404 = vshrl.u32 %v3403, 7
    %v3405 = vsub.s32 %v3402, %v3404
    %v3406 = vrot.slane %v3398, %v3405
    %v3408 = vunpack.c.l.s4 1966171168
    %v3409 = vunpack.c.0.s8 %v3408
    %v3410 = vlaneseq
    %v3411 = vshrl.u32 %v3410, 7
    %v3412 = vsub.s32 %v3409, %v3411
    %v3413 = vrot.slane %v3399, %v3412
    %v3414 = vcombine.low %v3406, %v3413
    %v3415 = vcombine.low %v1840, %v1848
    %v3416 = vcombine.low %v1856, %v1865
    %v3417 = vcombine.low %v1873, %v1881
    %v3418 = vcombine.low %v1890, %v1898
    %v3420 = vunpack.c.l.s4 1966171168
    %v3421 = vunpack.c.0.s8 %v3420
    %v3422 = vlaneseq
    %v3423 = vshrl.u32 %v3422, 7
    %v3424 = vsub.s32 %v3421, %v3423
    %v3425 = vrot.slane %v3415, %v3424
    %v3427 = vunpack.c.l.s4 1966171168
    %v3428 = vunpack.c.0.s8 %v3427
    %v3429 = vlaneseq
    %v3430 = vshrl.u32 %v3429, 7
    %v3431 = vsub.s32 %v3428, %v3430
    %v3432 = vrot.slane %v3416, %v3431
    %v3434 = vunpack.c.l.s4 1966171168
    %v3435 = vunpack.c.0.s8 %v3434
    %v3436 = vlaneseq
    %v3437 = vshrl.u32 %v3436, 7
    %v3438 = vsub.s32 %v3435, %v3437
    %v3439 = vrot.slane %v3417, %v3438
    %v3441 = vunpack.c.l.s4 1966171168
    %v3442 = vunpack.c.0.s8 %v3441
    %v3443 = vlaneseq
    %v3444 = vshrl.u32 %v3443, 7
    %v3445 = vsub.s32 %v3442, %v3444
    %v3446 = vrot.slane %v3418, %v3445
    %v3447 = vcombine.low %v3425, %v3432
    %v3448 = vcombine.low %v3439, %v3446
    %v3450 = vunpack.c.l.s4 1966171168
    %v3451 = vunpack.c.0.s8 %v3450
    %v3452 = vlaneseq
    %v3453 = vshrl.u32 %v3452, 7
    %v3454 = vsub.s32 %v3451, %v3453
    %v3455 = vrot.slane %v3447, %v3454
    %v3457 = vunpack.c.l.s4 1966171168
    %v3458 = vunpack.c.0.s8 %v3457
    %v3459 = vlaneseq
    %v3460 = vshrl.u32 %v3459, 7
    %v3461 = vsub.s32 %v3458, %v3460
    %v3462 = vrot.slane %v3448, %v3461
    %v3463 = vcombine.low %v3455, %v3462
    %v3464 = vcombine.low %v1906, %v3251
    %v3465 = vcombine.low %v3259, %v3267
    %v3467 = vunpack.c.l.s4 1966171168
    %v3468 = vunpack.c.0.s8 %v3467
    %v3469 = vlaneseq
    %v3470 = vshrl.u32 %v3469, 7
    %v3471 = vsub.s32 %v3468, %v3470
    %v3472 = vrot.slane %v3464, %v3471
    %v3474 = vunpack.c.l.s4 1966171168
    %v3475 = vunpack.c.0.s8 %v3474
    %v3476 = vlaneseq
    %v3477 = vshrl.u32 %v3476, 7
    %v3478 = vsub.s32 %v3475, %v3477
    %v3479 = vrot.slane %v3465, %v3478
    %v3480 = vcombine.low %v3472, %v3479
    %v3482 = vunpack.c.l.s4 1966171168
    %v3483 = vunpack.c.0.s8 %v3482
    %v3484 = vlaneseq
    %v3485 = vshrl.u32 %v3484, 7
    %v3486 = vsub.s32 %v3483, %v3485
    %v3487 = vrot.slane %v3480, %v3486
    %v3492 = vunpack.c.l.b16 %v1284
    %v3493 = vunpack.c.l.b16 %v1285
    %v3494 = vunpack.c.l.b16 %v1286
    %v3495 = vunpack.c.l.b16 %v1287
    %v3496 = vpack.c.b16 %v3493, %v3492
    %v3497 = vpack.c.b16 %v3495, %v3494
    %v3501 = vsel %vm2139, %v3316, 0
    %v3504 = vsel %vm2139, %v3365, 0
    %v3507 = vsel %vm2139, %v3414, 0
    %v3510 = vsel %vm2139, %v3463, 0
    %v3513 = vsel %vm2139, %v3487, 0
    %3515 = vmatprep.subr.bf16.mxu0 0
    %3516 = vmatpush1.bf16.msra.mxu0 0
    %3517 = vmatprep.subr.bf16.mxu0 0
    %3518 = vmatpush1.bf16.msra.mxu0 0
    %3519 = vmatprep.subr.bf16.mxu0 0
    %3520 = vmatpush1.bf16.msra.mxu0 0
    %3521 = vmatprep.subr.bf16.mxu0 0
    %3522 = vmatpush1.bf16.msra.mxu0 0
    %3523 = vmatprep.subr.bf16.mxu0 0
    %3524 = vmatpush1.bf16.msra.mxu0 0
    %3525 = vmatprep.subr.bf16.mxu0 0
    %3526 = vmatpush1.bf16.msra.mxu0 0
    %3527 = vmatprep.subr.bf16.mxu0 0
    %3528 = vmatpush1.bf16.msra.mxu0 %v3497
    %3529 = vmatprep.subr.bf16.mxu0 0
    %3530 = vmatpush1.bf16.msra.mxu0 %v3496
    %3531 = vmatprep.subr.bf16.mxu0 0
    %3532 = vmatpush2.bf16.msra.mxu0 0
    %3533 = vmatprep.subr.bf16.mxu0 0
    %3534 = vmatpush2.bf16.msra.mxu0 0
    %3535 = vmatprep.subr.bf16.mxu0 0
    %3536 = vmatpush2.bf16.msra.mxu0 0
    %3537 = vmatprep.subr.bf16.mxu0 0
    %3538 = vmatpush2.bf16.msra.mxu0 0
    %3539 = vmatprep.subr.bf16.mxu0 0
    %3540 = vmatpush2.bf16.msra.mxu0 0
    %3541 = vmatprep.subr.bf16.mxu0 0
    %3542 = vmatpush2.bf16.msra.mxu0 0
    %3543 = vmatprep.subr.bf16.mxu0 0
    %3544 = vmatpush2.bf16.msra.mxu0 0
    %3545 = vmatprep.subr.bf16.mxu0 0
    %3546 = vmatpush2.bf16.msra.mxu0 0
    %3547 = vmatprep.mubr.bf16.mxu0 0
    %3548 = vmatmul.mubr.bf16.gmra.mxu0 %v3501
    %v3549 = vpop.f32.mrf.mxu0
    %v3550 = vadd.f32 0.0, %v3549
    %v3551 = vpop.f32.mrf.mxu0
    %v3552 = vpop.f32.mrf.mxu0
    %v3553 = vadd.f32 0.0, %v3552
    %v3554 = vpop.f32.mrf.mxu0
    %3555 = vmatprep.mubr.bf16.mxu0 0
    %3556 = vmatmul.mubr.bf16.gmra.mxu0 %v3504
    %v3557 = vpop.f32.mrf.mxu0
    %v3558 = vadd.f32 0.0, %v3557
    %v3559 = vpop.f32.mrf.mxu0
    %v3560 = vpop.f32.mrf.mxu0
    %v3561 = vadd.f32 0.0, %v3560
    %v3562 = vpop.f32.mrf.mxu0
    %3563 = vmatprep.mubr.bf16.mxu0 0
    %3564 = vmatmul.mubr.bf16.gmra.mxu0 %v3507
    %v3565 = vpop.f32.mrf.mxu0
    %v3566 = vadd.f32 0.0, %v3565
    %v3567 = vpop.f32.mrf.mxu0
    %v3568 = vpop.f32.mrf.mxu0
    %v3569 = vadd.f32 0.0, %v3568
    %v3570 = vpop.f32.mrf.mxu0
    %3571 = vmatprep.mubr.bf16.mxu0 0
    %3572 = vmatmul.mubr.bf16.gmra.mxu0 %v3510
    %v3573 = vpop.f32.mrf.mxu0
    %v3574 = vadd.f32 0.0, %v3573
    %v3575 = vpop.f32.mrf.mxu0
    %v3576 = vpop.f32.mrf.mxu0
    %v3577 = vadd.f32 0.0, %v3576
    %v3578 = vpop.f32.mrf.mxu0
    %3579 = vmatprep.mubr.bf16.mxu0 0
    %3580 = vmatmul.mubr.bf16.gmra.mxu0 %v3513
    %v3581 = vpop.f32.mrf.mxu0
    %v3582 = vadd.f32 0.0, %v3581
    %v3583 = vpop.f32.mrf.mxu0
    %v3584 = vpop.f32.mrf.mxu0
    %v3585 = vpop.f32.mrf.mxu0
    %3586 = vdwg.mxu0
    %v3587 = vadd.f32 %v3207, %v3550
    %v3588 = vadd.f32 %v3208, %v3553
    %v3589 = vadd.f32 %v3209, %v3558
    %v3590 = vadd.f32 %v3210, %v3561
    %v3591 = vadd.f32 %v3211, %v3566
    %v3592 = vadd.f32 %v3212, %v3569
    %v3593 = vadd.f32 %v3213, %v3574
    %v3594 = vadd.f32 %v3214, %v3577
    %v3595 = vadd.f32 %v3215, %v3582
    %v3596 = vcombine.low %v1581, %v1371
    %v3597 = vcombine.low %v1372, %v1582
    %v3599 = vunpack.c.l.s4 1966171168
    %v3600 = vunpack.c.0.s8 %v3599
    %v3601 = vlaneseq
    %v3602 = vshrl.u32 %v3601, 7
    %v3603 = vsub.s32 %v3600, %v3602
    %v3604 = vrot.slane %v3596, %v3603
    %v3606 = vunpack.c.l.s4 1966171168
    %v3607 = vunpack.c.0.s8 %v3606
    %v3608 = vlaneseq
    %v3609 = vshrl.u32 %v3608, 7
    %v3610 = vsub.s32 %v3607, %v3609
    %v3611 = vrot.slane %v3597, %v3610
    %v3612 = vcombine.low %v2251, %v3604
    %v3613 = vcombine.low %v3611, %v2293
    %v3615 = vunpack.c.l.s4 1966171168
    %v3616 = vunpack.c.0.s8 %v3615
    %v3617 = vlaneseq
    %v3618 = vshrl.u32 %v3617, 7
    %v3619 = vsub.s32 %v3616, %v3618
    %v3620 = vrot.slane %v3612, %v3619
    %v3622 = vunpack.c.l.s4 1966171168
    %v3623 = vunpack.c.0.s8 %v3622
    %v3624 = vlaneseq
    %v3625 = vshrl.u32 %v3624, 7
    %v3626 = vsub.s32 %v3623, %v3625
    %v3627 = vrot.slane %v3613, %v3626
    %v3628 = vcombine.low %v3620, %v3627
    %v3629 = vcombine.low %v1583, %v1417
    %v3630 = vcombine.low %v1418, %v1584
    %v3631 = vcombine.low %v1585, %v2895
    %v3633 = vunpack.c.l.s4 1966171168
    %v3634 = vunpack.c.0.s8 %v3633
    %v3635 = vlaneseq
    %v3636 = vshrl.u32 %v3635, 7
    %v3637 = vsub.s32 %v3634, %v3636
    %v3638 = vrot.slane %v3629, %v3637
    %v3640 = vunpack.c.l.s4 1966171168
    %v3641 = vunpack.c.0.s8 %v3640
    %v3642 = vlaneseq
    %v3643 = vshrl.u32 %v3642, 7
    %v3644 = vsub.s32 %v3641, %v3643
    %v3645 = vrot.slane %v3630, %v3644
    %v3647 = vunpack.c.l.s4 1966171168
    %v3648 = vunpack.c.0.s8 %v3647
    %v3649 = vlaneseq
    %v3650 = vshrl.u32 %v3649, 7
    %v3651 = vsub.s32 %v3648, %v3650
    %v3652 = vrot.slane %v3631, %v3651
    %v3653 = vcombine.low %v3638, %v3645
    %v3654 = vcombine.low %v2335, %v3652
    %v3656 = vunpack.c.l.s4 1966171168
    %v3657 = vunpack.c.0.s8 %v3656
    %v3658 = vlaneseq
    %v3659 = vshrl.u32 %v3658, 7
    %v3660 = vsub.s32 %v3657, %v3659
    %v3661 = vrot.slane %v3653, %v3660
    %v3663 = vunpack.c.l.s4 1966171168
    %v3664 = vunpack.c.0.s8 %v3663
    %v3665 = vlaneseq
    %v3666 = vshrl.u32 %v3665, 7
    %v3667 = vsub.s32 %v3664, %v3666
    %v3668 = vrot.slane %v3654, %v3667
    %v3669 = vcombine.low %v3661, %v3668
    %v3670 = vcombine.low %v2896, %v3216
    %v3671 = vcombine.low %v1587, %v1509
    %v3672 = vcombine.low %v1510, %v1588
    %v3674 = vunpack.c.l.s4 1966171168
    %v3675 = vunpack.c.0.s8 %v3674
    %v3676 = vlaneseq
    %v3677 = vshrl.u32 %v3676, 7
    %v3678 = vsub.s32 %v3675, %v3677
    %v3679 = vrot.slane %v3670, %v3678
    %v3681 = vunpack.c.l.s4 1966171168
    %v3682 = vunpack.c.0.s8 %v3681
    %v3683 = vlaneseq
    %v3684 = vshrl.u32 %v3683, 7
    %v3685 = vsub.s32 %v3682, %v3684
    %v3686 = vrot.slane %v3671, %v3685
    %v3688 = vunpack.c.l.s4 1966171168
    %v3689 = vunpack.c.0.s8 %v3688
    %v3690 = vlaneseq
    %v3691 = vshrl.u32 %v3690, 7
    %v3692 = vsub.s32 %v3689, %v3691
    %v3693 = vrot.slane %v3672, %v3692
    %v3694 = vcombine.low %v3679, %v2356
    %v3695 = vcombine.low %v3686, %v3693
    %v3697 = vunpack.c.l.s4 1966171168
    %v3698 = vunpack.c.0.s8 %v3697
    %v3699 = vlaneseq
    %v3700 = vshrl.u32 %v3699, 7
    %v3701 = vsub.s32 %v3698, %v3700
    %v3702 = vrot.slane %v3694, %v3701
    %v3704 = vunpack.c.l.s4 1966171168
    %v3705 = vunpack.c.0.s8 %v3704
    %v3706 = vlaneseq
    %v3707 = vshrl.u32 %v3706, 7
    %v3708 = vsub.s32 %v3705, %v3707
    %v3709 = vrot.slane %v3695, %v3708
    %v3710 = vcombine.low %v3702, %v3709
    %v3711 = vcombine.low %v1589, %v1555
    %v3712 = vcombine.low %v1556, %v1590
    %v3714 = vunpack.c.l.s4 1966171168
    %v3715 = vunpack.c.0.s8 %v3714
    %v3716 = vlaneseq
    %v3717 = vshrl.u32 %v3716, 7
    %v3718 = vsub.s32 %v3715, %v3717
    %v3719 = vrot.slane %v3711, %v3718
    %v3721 = vunpack.c.l.s4 1966171168
    %v3722 = vunpack.c.0.s8 %v3721
    %v3723 = vlaneseq
    %v3724 = vshrl.u32 %v3723, 7
    %v3725 = vsub.s32 %v3722, %v3724
    %v3726 = vrot.slane %v3712, %v3725
    %v3727 = vcombine.low %v2398, %v3719
    %v3728 = vcombine.low %v3726, %v2438
    %v3730 = vunpack.c.l.s4 1966171168
    %v3731 = vunpack.c.0.s8 %v3730
    %v3732 = vlaneseq
    %v3733 = vshrl.u32 %v3732, 7
    %v3734 = vsub.s32 %v3731, %v3733
    %v3735 = vrot.slane %v3727, %v3734
    %v3737 = vunpack.c.l.s4 1966171168
    %v3738 = vunpack.c.0.s8 %v3737
    %v3739 = vlaneseq
    %v3740 = vshrl.u32 %v3739, 7
    %v3741 = vsub.s32 %v3738, %v3740
    %v3742 = vrot.slane %v3728, %v3741
    %v3743 = vcombine.low %v3735, %v3742
    %v3744 = vcombine.low %v1591, %v2918
    %v3745 = vcombine.low %v2919, %v3217
    %v3747 = vunpack.c.l.s4 1966171168
    %v3748 = vunpack.c.0.s8 %v3747
    %v3749 = vlaneseq
    %v3750 = vshrl.u32 %v3749, 7
    %v3751 = vsub.s32 %v3748, %v3750
    %v3752 = vrot.slane %v3744, %v3751
    %v3754 = vunpack.c.l.s4 1966171168
    %v3755 = vunpack.c.0.s8 %v3754
    %v3756 = vlaneseq
    %v3757 = vshrl.u32 %v3756, 7
    %v3758 = vsub.s32 %v3755, %v3757
    %v3759 = vrot.slane %v3745, %v3758
    %v3760 = vcombine.low %v3752, %v3759
    %v3762 = vunpack.c.l.s4 1966171168
    %v3763 = vunpack.c.0.s8 %v3762
    %v3764 = vlaneseq
    %v3765 = vshrl.u32 %v3764, 7
    %v3766 = vsub.s32 %v3763, %v3765
    %v3767 = vrot.slane %v3760, %v3766
    %v3772 = vunpack.c.l.b16 %v1288
    %v3773 = vunpack.c.l.b16 %v1289
    %v3774 = vunpack.c.l.b16 %v1290
    %v3775 = vunpack.c.l.b16 %v1291
    %v3776 = vpack.c.b16 %v3773, %v3772
    %v3777 = vpack.c.b16 %v3775, %v3774
    %v3781 = vsel %vm2139, %v3628, 0
    %v3784 = vsel %vm2139, %v3669, 0
    %v3787 = vsel %vm2139, %v3710, 0
    %v3790 = vsel %vm2139, %v3743, 0
    %v3793 = vsel %vm2139, %v3767, 0
    %3795 = vmatprep.subr.bf16.mxu0 0
    %3796 = vmatpush1.bf16.msra.mxu0 0
    %3797 = vmatprep.subr.bf16.mxu0 0
    %3798 = vmatpush1.bf16.msra.mxu0 0
    %3799 = vmatprep.subr.bf16.mxu0 0
    %3800 = vmatpush1.bf16.msra.mxu0 0
    %3801 = vmatprep.subr.bf16.mxu0 0
    %3802 = vmatpush1.bf16.msra.mxu0 0
    %3803 = vmatprep.subr.bf16.mxu0 0
    %3804 = vmatpush1.bf16.msra.mxu0 0
    %3805 = vmatprep.subr.bf16.mxu0 0
    %3806 = vmatpush1.bf16.msra.mxu0 0
    %3807 = vmatprep.subr.bf16.mxu0 0
    %3808 = vmatpush1.bf16.msra.mxu0 %v3777
    %3809 = vmatprep.subr.bf16.mxu0 0
    %3810 = vmatpush1.bf16.msra.mxu0 %v3776
    %3811 = vmatprep.subr.bf16.mxu0 0
    %3812 = vmatpush2.bf16.msra.mxu0 0
    %3813 = vmatprep.subr.bf16.mxu0 0
    %3814 = vmatpush2.bf16.msra.mxu0 0
    %3815 = vmatprep.subr.bf16.mxu0 0
    %3816 = vmatpush2.bf16.msra.mxu0 0
    %3817 = vmatprep.subr.bf16.mxu0 0
    %3818 = vmatpush2.bf16.msra.mxu0 0
    %3819 = vmatprep.subr.bf16.mxu0 0
    %3820 = vmatpush2.bf16.msra.mxu0 0
    %3821 = vmatprep.subr.bf16.mxu0 0
    %3822 = vmatpush2.bf16.msra.mxu0 0
    %3823 = vmatprep.subr.bf16.mxu0 0
    %3824 = vmatpush2.bf16.msra.mxu0 0
    %3825 = vmatprep.subr.bf16.mxu0 0
    %3826 = vmatpush2.bf16.msra.mxu0 0
    %3827 = vmatprep.mubr.bf16.mxu0 0
    %3828 = vmatmul.mubr.bf16.gmra.mxu0 %v3781
    %v3829 = vpop.f32.mrf.mxu0
    %v3830 = vadd.f32 0.0, %v3829
    %v3831 = vpop.f32.mrf.mxu0
    %v3832 = vpop.f32.mrf.mxu0
    %v3833 = vadd.f32 0.0, %v3832
    %v3834 = vpop.f32.mrf.mxu0
    %3835 = vmatprep.mubr.bf16.mxu0 0
    %3836 = vmatmul.mubr.bf16.gmra.mxu0 %v3784
    %v3837 = vpop.f32.mrf.mxu0
    %v3838 = vadd.f32 0.0, %v3837
    %v3839 = vpop.f32.mrf.mxu0
    %v3840 = vpop.f32.mrf.mxu0
    %v3841 = vadd.f32 0.0, %v3840
    %v3842 = vpop.f32.mrf.mxu0
    %3843 = vmatprep.mubr.bf16.mxu0 0
    %3844 = vmatmul.mubr.bf16.gmra.mxu0 %v3787
    %v3845 = vpop.f32.mrf.mxu0
    %v3846 = vadd.f32 0.0, %v3845
    %v3847 = vpop.f32.mrf.mxu0
    %v3848 = vpop.f32.mrf.mxu0
    %v3849 = vadd.f32 0.0, %v3848
    %v3850 = vpop.f32.mrf.mxu0
    %3851 = vmatprep.mubr.bf16.mxu0 0
    %3852 = vmatmul.mubr.bf16.gmra.mxu0 %v3790
    %v3853 = vpop.f32.mrf.mxu0
    %v3854 = vadd.f32 0.0, %v3853
    %v3855 = vpop.f32.mrf.mxu0
    %v3856 = vpop.f32.mrf.mxu0
    %v3857 = vadd.f32 0.0, %v3856
    %v3858 = vpop.f32.mrf.mxu0
    %3859 = vmatprep.mubr.bf16.mxu0 0
    %3860 = vmatmul.mubr.bf16.gmra.mxu0 %v3793
    %v3861 = vpop.f32.mrf.mxu0
    %v3862 = vadd.f32 0.0, %v3861
    %v3863 = vpop.f32.mrf.mxu0
    %v3864 = vpop.f32.mrf.mxu0
    %v3865 = vpop.f32.mrf.mxu0
    %3866 = vdwg.mxu0
    %v3867 = vadd.f32 %v3587, %v3830
    %v3868 = vadd.f32 %v3588, %v3833
    %v3869 = vadd.f32 %v3589, %v3838
    %v3870 = vadd.f32 %v3590, %v3841
    %v3871 = vadd.f32 %v3591, %v3846
    %v3872 = vadd.f32 %v3592, %v3849
    %v3873 = vadd.f32 %v3593, %v3854
    %v3874 = vadd.f32 %v3594, %v3857
    %v3875 = vadd.f32 %v3595, %v3862
    %v3877 = vunpack.c.l.s4 1966171168
    %v3878 = vunpack.c.0.s8 %v3877
    %v3879 = vlaneseq
    %v3880 = vshrl.u32 %v3879, 7
    %v3881 = vsub.s32 %v3878, %v3880
    %v3882 = vrot.slane %v1259, %v3881
    %v3883 = vcombine.high %v3882, %v3882
    %v3885 = vunpack.c.l.s4 1966171168
    %v3886 = vunpack.c.0.s8 %v3885
    %v3887 = vlaneseq
    %v3888 = vshrl.u32 %v3887, 7
    %v3889 = vsub.s32 %v3886, %v3888
    %v3890 = vrot.slane %v3882, %v3889
    %v3892 = vunpack.c.l.s4 1966171168
    %v3893 = vunpack.c.0.s8 %v3892
    %v3894 = vlaneseq
    %v3895 = vshrl.u32 %v3894, 7
    %v3896 = vsub.s32 %v3893, %v3895
    %v3897 = vrot.slane %v3883, %v3896
    %v3898 = vcombine.high %v3890, %v3890
    %v3900 = vunpack.c.l.s4 1966171168
    %v3901 = vunpack.c.0.s8 %v3900
    %v3902 = vlaneseq
    %v3903 = vshrl.u32 %v3902, 7
    %v3904 = vsub.s32 %v3901, %v3903
    %v3905 = vrot.slane %v1267, %v3904
    %v3906 = vcombine.high %v3905, %v3905
    %v3908 = vunpack.c.l.s4 1966171168
    %v3909 = vunpack.c.0.s8 %v3908
    %v3910 = vlaneseq
    %v3911 = vshrl.u32 %v3910, 7
    %v3912 = vsub.s32 %v3909, %v3911
    %v3913 = vrot.slane %v3905, %v3912
    %v3915 = vunpack.c.l.s4 1966171168
    %v3916 = vunpack.c.0.s8 %v3915
    %v3917 = vlaneseq
    %v3918 = vshrl.u32 %v3917, 7
    %v3919 = vsub.s32 %v3916, %v3918
    %v3920 = vrot.slane %v3906, %v3919
    %v3921 = vcombine.high %v3913, %v3913
    %v3922 = vcombine.low %v2258, %v2286
    %v3923 = vcombine.low %v2293, %v2300
    %v3925 = vunpack.c.l.s4 1966171168
    %v3926 = vunpack.c.0.s8 %v3925
    %v3927 = vlaneseq
    %v3928 = vshrl.u32 %v3927, 7
    %v3929 = vsub.s32 %v3926, %v3928
    %v3930 = vrot.slane %v3922, %v3929
    %v3932 = vunpack.c.l.s4 1966171168
    %v3933 = vunpack.c.0.s8 %v3932
    %v3934 = vlaneseq
    %v3935 = vshrl.u32 %v3934, 7
    %v3936 = vsub.s32 %v3933, %v3935
    %v3937 = vrot.slane %v3923, %v3936
    %v3938 = vcombine.low %v3930, %v3937
    %v3939 = vcombine.low %v2888, %v2895
    %v3940 = vcombine.low %v2896, %v3890
    %v3942 = vunpack.c.l.s4 1966171168
    %v3943 = vunpack.c.0.s8 %v3942
    %v3944 = vlaneseq
    %v3945 = vshrl.u32 %v3944, 7
    %v3946 = vsub.s32 %v3943, %v3945
    %v3947 = vrot.slane %v3939, %v3946
    %v3949 = vunpack.c.l.s4 1966171168
    %v3950 = vunpack.c.0.s8 %v3949
    %v3951 = vlaneseq
    %v3952 = vshrl.u32 %v3951, 7
    %v3953 = vsub.s32 %v3950, %v3952
    %v3954 = vrot.slane %v3940, %v3953
    %v3955 = vcombine.low %v2307, %v2335
    %v3956 = vcombine.low %v3947, %v3954
    %v3958 = vunpack.c.l.s4 1966171168
    %v3959 = vunpack.c.0.s8 %v3958
    %v3960 = vlaneseq
    %v3961 = vshrl.u32 %v3960, 7
    %v3962 = vsub.s32 %v3959, %v3961
    %v3963 = vrot.slane %v3955, %v3962
    %v3965 = vunpack.c.l.s4 1966171168
    %v3966 = vunpack.c.0.s8 %v3965
    %v3967 = vlaneseq
    %v3968 = vshrl.u32 %v3967, 7
    %v3969 = vsub.s32 %v3966, %v3968
    %v3970 = vrot.slane %v3956, %v3969
    %v3971 = vcombine.low %v3963, %v3970
    %v3972 = vcombine.low %v3897, %v3898
    %v3974 = vunpack.c.l.s4 1966171168
    %v3975 = vunpack.c.0.s8 %v3974
    %v3976 = vlaneseq
    %v3977 = vshrl.u32 %v3976, 7
    %v3978 = vsub.s32 %v3975, %v3977
    %v3979 = vrot.slane %v3972, %v3978
    %v3980 = vcombine.low %v3979, %v2384
    %v3981 = vcombine.low %v2391, %v2398
    %v3983 = vunpack.c.l.s4 1966171168
    %v3984 = vunpack.c.0.s8 %v3983
    %v3985 = vlaneseq
    %v3986 = vshrl.u32 %v3985, 7
    %v3987 = vsub.s32 %v3984, %v3986
    %v3988 = vrot.slane %v3980, %v3987
    %v3990 = vunpack.c.l.s4 1966171168
    %v3991 = vunpack.c.0.s8 %v3990
    %v3992 = vlaneseq
    %v3993 = vshrl.u32 %v3992, 7
    %v3994 = vsub.s32 %v3991, %v3993
    %v3995 = vrot.slane %v3981, %v3994
    %v3996 = vcombine.low %v3988, %v3995
    %v3997 = vcombine.low %v2911, %v2918
    %v3999 = vunpack.c.l.s4 1966171168
    %v4000 = vunpack.c.0.s8 %v3999
    %v4001 = vlaneseq
    %v4002 = vshrl.u32 %v4001, 7
    %v4003 = vsub.s32 %v4000, %v4002
    %v4004 = vrot.slane %v3997, %v4003
    %v4005 = vcombine.low %v2405, %v2431
    %v4006 = vcombine.low %v2438, %v4004
    %v4008 = vunpack.c.l.s4 1966171168
    %v4009 = vunpack.c.0.s8 %v4008
    %v4010 = vlaneseq
    %v4011 = vshrl.u32 %v4010, 7
    %v4012 = vsub.s32 %v4009, %v4011
    %v4013 = vrot.slane %v4005, %v4012
    %v4015 = vunpack.c.l.s4 1966171168
    %v4016 = vunpack.c.0.s8 %v4015
    %v4017 = vlaneseq
    %v4018 = vshrl.u32 %v4017, 7
    %v4019 = vsub.s32 %v4016, %v4018
    %v4020 = vrot.slane %v4006, %v4019
    %v4021 = vcombine.low %v4013, %v4020
    %v4022 = vcombine.low %v2919, %v3913
    %v4023 = vcombine.low %v3920, %v3921
    %v4025 = vunpack.c.l.s4 1966171168
    %v4026 = vunpack.c.0.s8 %v4025
    %v4027 = vlaneseq
    %v4028 = vshrl.u32 %v4027, 7
    %v4029 = vsub.s32 %v4026, %v4028
    %v4030 = vrot.slane %v4022, %v4029
    %v4032 = vunpack.c.l.s4 1966171168
    %v4033 = vunpack.c.0.s8 %v4032
    %v4034 = vlaneseq
    %v4035 = vshrl.u32 %v4034, 7
    %v4036 = vsub.s32 %v4033, %v4035
    %v4037 = vrot.slane %v4023, %v4036
    %v4038 = vcombine.low %v4030, %v4037
    %v4040 = vunpack.c.l.s4 1966171168
    %v4041 = vunpack.c.0.s8 %v4040
    %v4042 = vlaneseq
    %v4043 = vshrl.u32 %v4042, 7
    %v4044 = vsub.s32 %v4041, %v4043
    %v4045 = vrot.slane %v4038, %v4044
    %v4050 = vunpack.c.l.b16 %v1292
    %v4051 = vunpack.c.l.b16 %v1293
    %v4052 = vunpack.c.l.b16 %v1294
    %v4053 = vunpack.c.l.b16 %v1295
    %v4054 = vpack.c.b16 %v4051, %v4050
    %v4055 = vpack.c.b16 %v4053, %v4052
    %v4059 = vsel %vm2139, %v3938, 0
    %v4062 = vsel %vm2139, %v3971, 0
    %v4065 = vsel %vm2139, %v3996, 0
    %v4068 = vsel %vm2139, %v4021, 0
    %v4071 = vsel %vm2139, %v4045, 0
    %4073 = vmatprep.subr.bf16.mxu0 0
    %4074 = vmatpush1.bf16.msra.mxu0 0
    %4075 = vmatprep.subr.bf16.mxu0 0
    %4076 = vmatpush1.bf16.msra.mxu0 0
    %4077 = vmatprep.subr.bf16.mxu0 0
    %4078 = vmatpush1.bf16.msra.mxu0 0
    %4079 = vmatprep.subr.bf16.mxu0 0
    %4080 = vmatpush1.bf16.msra.mxu0 0
    %4081 = vmatprep.subr.bf16.mxu0 0
    %4082 = vmatpush1.bf16.msra.mxu0 0
    %4083 = vmatprep.subr.bf16.mxu0 0
    %4084 = vmatpush1.bf16.msra.mxu0 0
    %4085 = vmatprep.subr.bf16.mxu0 0
    %4086 = vmatpush1.bf16.msra.mxu0 %v4055
    %4087 = vmatprep.subr.bf16.mxu0 0
    %4088 = vmatpush1.bf16.msra.mxu0 %v4054
    %4089 = vmatprep.subr.bf16.mxu0 0
    %4090 = vmatpush2.bf16.msra.mxu0 0
    %4091 = vmatprep.subr.bf16.mxu0 0
    %4092 = vmatpush2.bf16.msra.mxu0 0
    %4093 = vmatprep.subr.bf16.mxu0 0
    %4094 = vmatpush2.bf16.msra.mxu0 0
    %4095 = vmatprep.subr.bf16.mxu0 0
    %4096 = vmatpush2.bf16.msra.mxu0 0
    %4097 = vmatprep.subr.bf16.mxu0 0
    %4098 = vmatpush2.bf16.msra.mxu0 0
    %4099 = vmatprep.subr.bf16.mxu0 0
    %4100 = vmatpush2.bf16.msra.mxu0 0
    %4101 = vmatprep.subr.bf16.mxu0 0
    %4102 = vmatpush2.bf16.msra.mxu0 0
    %4103 = vmatprep.subr.bf16.mxu0 0
    %4104 = vmatpush2.bf16.msra.mxu0 0
    %4105 = vmatprep.mubr.bf16.mxu0 0
    %4106 = vmatmul.mubr.bf16.gmra.mxu0 %v4059
    %v4107 = vpop.f32.mrf.mxu0
    %v4108 = vadd.f32 0.0, %v4107
    %v4109 = vpop.f32.mrf.mxu0
    %v4110 = vpop.f32.mrf.mxu0
    %v4111 = vadd.f32 0.0, %v4110
    %v4112 = vpop.f32.mrf.mxu0
    %4113 = vmatprep.mubr.bf16.mxu0 0
    %4114 = vmatmul.mubr.bf16.gmra.mxu0 %v4062
    %v4115 = vpop.f32.mrf.mxu0
    %v4116 = vadd.f32 0.0, %v4115
    %v4117 = vpop.f32.mrf.mxu0
    %v4118 = vpop.f32.mrf.mxu0
    %v4119 = vadd.f32 0.0, %v4118
    %v4120 = vpop.f32.mrf.mxu0
    %4121 = vmatprep.mubr.bf16.mxu0 0
    %4122 = vmatmul.mubr.bf16.gmra.mxu0 %v4065
    %v4123 = vpop.f32.mrf.mxu0
    %v4124 = vadd.f32 0.0, %v4123
    %v4125 = vpop.f32.mrf.mxu0
    %v4126 = vpop.f32.mrf.mxu0
    %v4127 = vadd.f32 0.0, %v4126
    %v4128 = vpop.f32.mrf.mxu0
    %4129 = vmatprep.mubr.bf16.mxu0 0
    %4130 = vmatmul.mubr.bf16.gmra.mxu0 %v4068
    %v4131 = vpop.f32.mrf.mxu0
    %v4132 = vadd.f32 0.0, %v4131
    %v4133 = vpop.f32.mrf.mxu0
    %v4134 = vpop.f32.mrf.mxu0
    %v4135 = vadd.f32 0.0, %v4134
    %v4136 = vpop.f32.mrf.mxu0
    %4137 = vmatprep.mubr.bf16.mxu0 0
    %4138 = vmatmul.mubr.bf16.gmra.mxu0 %v4071
    %v4139 = vpop.f32.mrf.mxu0
    %v4140 = vadd.f32 0.0, %v4139
    %v4141 = vpop.f32.mrf.mxu0
    %v4142 = vpop.f32.mrf.mxu0
    %v4143 = vpop.f32.mrf.mxu0
    %4144 = vdwg.mxu0
    %v4145 = vadd.f32 %v3867, %v4108
    %v4146 = vadd.f32 %v3868, %v4111
    %v4147 = vadd.f32 %v3869, %v4116
    %v4148 = vadd.f32 %v3870, %v4119
    %v4149 = vadd.f32 %v3871, %v4124
    %v4150 = vadd.f32 %v3872, %v4127
    %v4151 = vadd.f32 %v3873, %v4132
    %v4152 = vadd.f32 %v3874, %v4135
    %v4153 = vadd.f32 %v3875, %v4140
    %v4154 = vcombine.high %v3897, %v3897
    %v4155 = vcombine.high %v3920, %v3920
    %v4157 = vshrl.u32 %v3890, 16
    %v4159 = vrot.slane %v4157, 7
    %v4160 = vrot.slane %v4159, 1
    %v4162 = vshll.u32 %v3897, 16
    %v4164 = vsel %vm1606, %v4160, %v4162
    %v4165 = vshrl.u32 %v3897, 16
    %v4167 = vrot.slane %v4165, 7
    %v4168 = vrot.slane %v4167, 1
    %v4170 = vshll.u32 %v3898, 16
    %v4172 = vsel %vm1606, %v4168, %v4170
    %v4173 = vshrl.u32 %v3898, 16
    %v4175 = vrot.slane %v4173, 7
    %v4176 = vrot.slane %v4175, 1
    %v4178 = vshll.u32 %v4154, 16
    %v4180 = vsel %vm1606, %v4176, %v4178
    %v4182 = vshrl.u32 %v3913, 16
    %v4184 = vrot.slane %v4182, 7
    %v4185 = vrot.slane %v4184, 1
    %v4187 = vshll.u32 %v3920, 16
    %v4189 = vsel %vm1606, %v4185, %v4187
    %v4190 = vshrl.u32 %v3920, 16
    %v4192 = vrot.slane %v4190, 7
    %v4193 = vrot.slane %v4192, 1
    %v4195 = vshll.u32 %v3921, 16
    %v4197 = vsel %vm1606, %v4193, %v4195
    %v4198 = vshrl.u32 %v3921, 16
    %v4200 = vrot.slane %v4198, 7
    %v4201 = vrot.slane %v4200, 1
    %v4203 = vshll.u32 %v4155, 16
    %v4205 = vsel %vm1606, %v4201, %v4203
    %v4206 = vcombine.low %v1938, %v1966
    %v4207 = vcombine.low %v1973, %v1980
    %v4209 = vunpack.c.l.s4 1966171168
    %v4210 = vunpack.c.0.s8 %v4209
    %v4211 = vlaneseq
    %v4212 = vshrl.u32 %v4211, 7
    %v4213 = vsub.s32 %v4210, %v4212
    %v4214 = vrot.slane %v4206, %v4213
    %v4216 = vunpack.c.l.s4 1966171168
    %v4217 = vunpack.c.0.s8 %v4216
    %v4218 = vlaneseq
    %v4219 = vshrl.u32 %v4218, 7
    %v4220 = vsub.s32 %v4217, %v4219
    %v4221 = vrot.slane %v4207, %v4220
    %v4222 = vcombine.low %v4214, %v4221
    %v4223 = vcombine.low %v3226, %v3234
    %v4224 = vcombine.low %v3242, %v4164
    %v4226 = vunpack.c.l.s4 1966171168
    %v4227 = vunpack.c.0.s8 %v4226
    %v4228 = vlaneseq
    %v4229 = vshrl.u32 %v4228, 7
    %v4230 = vsub.s32 %v4227, %v4229
    %v4231 = vrot.slane %v4223, %v4230
    %v4233 = vunpack.c.l.s4 1966171168
    %v4234 = vunpack.c.0.s8 %v4233
    %v4235 = vlaneseq
    %v4236 = vshrl.u32 %v4235, 7
    %v4237 = vsub.s32 %v4234, %v4236
    %v4238 = vrot.slane %v4224, %v4237
    %v4239 = vcombine.low %v1987, %v2015
    %v4240 = vcombine.low %v4231, %v4238
    %v4242 = vunpack.c.l.s4 1966171168
    %v4243 = vunpack.c.0.s8 %v4242
    %v4244 = vlaneseq
    %v4245 = vshrl.u32 %v4244, 7
    %v4246 = vsub.s32 %v4243, %v4245
    %v4247 = vrot.slane %v4239, %v4246
    %v4249 = vunpack.c.l.s4 1966171168
    %v4250 = vunpack.c.0.s8 %v4249
    %v4251 = vlaneseq
    %v4252 = vshrl.u32 %v4251, 7
    %v4253 = vsub.s32 %v4250, %v4252
    %v4254 = vrot.slane %v4240, %v4253
    %v4255 = vcombine.low %v4247, %v4254
    %v4256 = vcombine.low %v4172, %v4180
    %v4258 = vunpack.c.l.s4 1966171168
    %v4259 = vunpack.c.0.s8 %v4258
    %v4260 = vlaneseq
    %v4261 = vshrl.u32 %v4260, 7
    %v4262 = vsub.s32 %v4259, %v4261
    %v4263 = vrot.slane %v4256, %v4262
    %v4264 = vcombine.low %v4263, %v2064
    %v4265 = vcombine.low %v2071, %v2078
    %v4267 = vunpack.c.l.s4 1966171168
    %v4268 = vunpack.c.0.s8 %v4267
    %v4269 = vlaneseq
    %v4270 = vshrl.u32 %v4269, 7
    %v4271 = vsub.s32 %v4268, %v4270
    %v4272 = vrot.slane %v4264, %v4271
    %v4274 = vunpack.c.l.s4 1966171168
    %v4275 = vunpack.c.0.s8 %v4274
    %v4276 = vlaneseq
    %v4277 = vshrl.u32 %v4276, 7
    %v4278 = vsub.s32 %v4275, %v4277
    %v4279 = vrot.slane %v4265, %v4278
    %v4280 = vcombine.low %v4272, %v4279
    %v4281 = vcombine.low %v3251, %v3259
    %v4283 = vunpack.c.l.s4 1966171168
    %v4284 = vunpack.c.0.s8 %v4283
    %v4285 = vlaneseq
    %v4286 = vshrl.u32 %v4285, 7
    %v4287 = vsub.s32 %v4284, %v4286
    %v4288 = vrot.slane %v4281, %v4287
    %v4289 = vcombine.low %v2085, %v2111
    %v4290 = vcombine.low %v2118, %v4288
    %v4292 = vunpack.c.l.s4 1966171168
    %v4293 = vunpack.c.0.s8 %v4292
    %v4294 = vlaneseq
    %v4295 = vshrl.u32 %v4294, 7
    %v4296 = vsub.s32 %v4293, %v4295
    %v4297 = vrot.slane %v4289, %v4296
    %v4299 = vunpack.c.l.s4 1966171168
    %v4300 = vunpack.c.0.s8 %v4299
    %v4301 = vlaneseq
    %v4302 = vshrl.u32 %v4301, 7
    %v4303 = vsub.s32 %v4300, %v4302
    %v4304 = vrot.slane %v4290, %v4303
    %v4305 = vcombine.low %v4297, %v4304
    %v4306 = vcombine.low %v3267, %v4189
    %v4307 = vcombine.low %v4197, %v4205
    %v4309 = vunpack.c.l.s4 1966171168
    %v4310 = vunpack.c.0.s8 %v4309
    %v4311 = vlaneseq
    %v4312 = vshrl.u32 %v4311, 7
    %v4313 = vsub.s32 %v4310, %v4312
    %v4314 = vrot.slane %v4306, %v4313
    %v4316 = vunpack.c.l.s4 1966171168
    %v4317 = vunpack.c.0.s8 %v4316
    %v4318 = vlaneseq
    %v4319 = vshrl.u32 %v4318, 7
    %v4320 = vsub.s32 %v4317, %v4319
    %v4321 = vrot.slane %v4307, %v4320
    %v4322 = vcombine.low %v4314, %v4321
    %v4324 = vunpack.c.l.s4 1966171168
    %v4325 = vunpack.c.0.s8 %v4324
    %v4326 = vlaneseq
    %v4327 = vshrl.u32 %v4326, 7
    %v4328 = vsub.s32 %v4325, %v4327
    %v4329 = vrot.slane %v4322, %v4328
    %v4334 = vunpack.c.l.b16 %v1296
    %v4335 = vunpack.c.l.b16 %v1297
    %v4336 = vunpack.c.l.b16 %v1298
    %v4337 = vunpack.c.l.b16 %v1299
    %v4338 = vpack.c.b16 %v4335, %v4334
    %v4339 = vpack.c.b16 %v4337, %v4336
    %v4343 = vsel %vm2139, %v4222, 0
    %v4346 = vsel %vm2139, %v4255, 0
    %v4349 = vsel %vm2139, %v4280, 0
    %v4352 = vsel %vm2139, %v4305, 0
    %v4355 = vsel %vm2139, %v4329, 0
    %4357 = vmatprep.subr.bf16.mxu0 0
    %4358 = vmatpush1.bf16.msra.mxu0 0
    %4359 = vmatprep.subr.bf16.mxu0 0
    %4360 = vmatpush1.bf16.msra.mxu0 0
    %4361 = vmatprep.subr.bf16.mxu0 0
    %4362 = vmatpush1.bf16.msra.mxu0 0
    %4363 = vmatprep.subr.bf16.mxu0 0
    %4364 = vmatpush1.bf16.msra.mxu0 0
    %4365 = vmatprep.subr.bf16.mxu0 0
    %4366 = vmatpush1.bf16.msra.mxu0 0
    %4367 = vmatprep.subr.bf16.mxu0 0
    %4368 = vmatpush1.bf16.msra.mxu0 0
    %4369 = vmatprep.subr.bf16.mxu0 0
    %4370 = vmatpush1.bf16.msra.mxu0 %v4339
    %4371 = vmatprep.subr.bf16.mxu0 0
    %4372 = vmatpush1.bf16.msra.mxu0 %v4338
    %4373 = vmatprep.subr.bf16.mxu0 0
    %4374 = vmatpush2.bf16.msra.mxu0 0
    %4375 = vmatprep.subr.bf16.mxu0 0
    %4376 = vmatpush2.bf16.msra.mxu0 0
    %4377 = vmatprep.subr.bf16.mxu0 0
    %4378 = vmatpush2.bf16.msra.mxu0 0
    %4379 = vmatprep.subr.bf16.mxu0 0
    %4380 = vmatpush2.bf16.msra.mxu0 0
    %4381 = vmatprep.subr.bf16.mxu0 0
    %4382 = vmatpush2.bf16.msra.mxu0 0
    %4383 = vmatprep.subr.bf16.mxu0 0
    %4384 = vmatpush2.bf16.msra.mxu0 0
    %4385 = vmatprep.subr.bf16.mxu0 0
    %4386 = vmatpush2.bf16.msra.mxu0 0
    %4387 = vmatprep.subr.bf16.mxu0 0
    %4388 = vmatpush2.bf16.msra.mxu0 0
    %4389 = vmatprep.mubr.bf16.mxu0 0
    %4390 = vmatmul.mubr.bf16.gmra.mxu0 %v4343
    %v4391 = vpop.f32.mrf.mxu0
    %v4392 = vadd.f32 0.0, %v4391
    %v4393 = vpop.f32.mrf.mxu0
    %v4394 = vpop.f32.mrf.mxu0
    %v4395 = vadd.f32 0.0, %v4394
    %v4396 = vpop.f32.mrf.mxu0
    %4397 = vmatprep.mubr.bf16.mxu0 0
    %4398 = vmatmul.mubr.bf16.gmra.mxu0 %v4346
    %v4399 = vpop.f32.mrf.mxu0
    %v4400 = vadd.f32 0.0, %v4399
    %v4401 = vpop.f32.mrf.mxu0
    %v4402 = vpop.f32.mrf.mxu0
    %v4403 = vadd.f32 0.0, %v4402
    %v4404 = vpop.f32.mrf.mxu0
    %4405 = vmatprep.mubr.bf16.mxu0 0
    %4406 = vmatmul.mubr.bf16.gmra.mxu0 %v4349
    %v4407 = vpop.f32.mrf.mxu0
    %v4408 = vadd.f32 0.0, %v4407
    %v4409 = vpop.f32.mrf.mxu0
    %v4410 = vpop.f32.mrf.mxu0
    %v4411 = vadd.f32 0.0, %v4410
    %v4412 = vpop.f32.mrf.mxu0
    %4413 = vmatprep.mubr.bf16.mxu0 0
    %4414 = vmatmul.mubr.bf16.gmra.mxu0 %v4352
    %v4415 = vpop.f32.mrf.mxu0
    %v4416 = vadd.f32 0.0, %v4415
    %v4417 = vpop.f32.mrf.mxu0
    %v4418 = vpop.f32.mrf.mxu0
    %v4419 = vadd.f32 0.0, %v4418
    %v4420 = vpop.f32.mrf.mxu0
    %4421 = vmatprep.mubr.bf16.mxu0 0
    %4422 = vmatmul.mubr.bf16.gmra.mxu0 %v4355
    %v4423 = vpop.f32.mrf.mxu0
    %v4424 = vadd.f32 0.0, %v4423
    %v4425 = vpop.f32.mrf.mxu0
    %v4426 = vpop.f32.mrf.mxu0
    %v4427 = vpop.f32.mrf.mxu0
    %4428 = vdwg.mxu0
    %v4429 = vadd.f32 %v4145, %v4392
    %v4430 = vadd.f32 %v4146, %v4395
    %v4431 = vadd.f32 %v4147, %v4400
    %v4432 = vadd.f32 %v4148, %v4403
    %v4433 = vadd.f32 %v4149, %v4408
    %v4434 = vadd.f32 %v4150, %v4411
    %v4435 = vadd.f32 %v4151, %v4416
    %v4436 = vadd.f32 %v4152, %v4419
    %v4437 = vadd.f32 %v4153, %v4424
    %v4438 = vcombine.low %v2577, %v2605
    %v4439 = vcombine.low %v2612, %v2619
    %v4441 = vunpack.c.l.s4 1966171168
    %v4442 = vunpack.c.0.s8 %v4441
    %v4443 = vlaneseq
    %v4444 = vshrl.u32 %v4443, 7
    %v4445 = vsub.s32 %v4442, %v4444
    %v4446 = vrot.slane %v4438, %v4445
    %v4448 = vunpack.c.l.s4 1966171168
    %v4449 = vunpack.c.0.s8 %v4448
    %v4450 = vlaneseq
    %v4451 = vshrl.u32 %v4450, 7
    %v4452 = vsub.s32 %v4449, %v4451
    %v4453 = vrot.slane %v4439, %v4452
    %v4454 = vcombine.low %v4446, %v4453
    %v4455 = vcombine.low %v3216, %v3897
    %v4457 = vunpack.c.l.s4 1966171168
    %v4458 = vunpack.c.0.s8 %v4457
    %v4459 = vlaneseq
    %v4460 = vshrl.u32 %v4459, 7
    %v4461 = vsub.s32 %v4458, %v4460
    %v4462 = vrot.slane %v4455, %v4461
    %v4463 = vcombine.low %v2626, %v2654
    %v4464 = vcombine.low %v3011, %v4462
    %v4466 = vunpack.c.l.s4 1966171168
    %v4467 = vunpack.c.0.s8 %v4466
    %v4468 = vlaneseq
    %v4469 = vshrl.u32 %v4468, 7
    %v4470 = vsub.s32 %v4467, %v4469
    %v4471 = vrot.slane %v4463, %v4470
    %v4473 = vunpack.c.l.s4 1966171168
    %v4474 = vunpack.c.0.s8 %v4473
    %v4475 = vlaneseq
    %v4476 = vshrl.u32 %v4475, 7
    %v4477 = vsub.s32 %v4474, %v4476
    %v4478 = vrot.slane %v4464, %v4477
    %v4479 = vcombine.low %v4471, %v4478
    %v4480 = vcombine.low %v3898, %v4154
    %v4482 = vunpack.c.l.s4 1966171168
    %v4483 = vunpack.c.0.s8 %v4482
    %v4484 = vlaneseq
    %v4485 = vshrl.u32 %v4484, 7
    %v4486 = vsub.s32 %v4483, %v4485
    %v4487 = vrot.slane %v4480, %v4486
    %v4488 = vcombine.low %v4487, %v2703
    %v4489 = vcombine.low %v2710, %v2717
    %v4491 = vunpack.c.l.s4 1966171168
    %v4492 = vunpack.c.0.s8 %v4491
    %v4493 = vlaneseq
    %v4494 = vshrl.u32 %v4493, 7
    %v4495 = vsub.s32 %v4492, %v4494
    %v4496 = vrot.slane %v4488, %v4495
    %v4498 = vunpack.c.l.s4 1966171168
    %v4499 = vunpack.c.0.s8 %v4498
    %v4500 = vlaneseq
    %v4501 = vshrl.u32 %v4500, 7
    %v4502 = vsub.s32 %v4499, %v4501
    %v4503 = vrot.slane %v4489, %v4502
    %v4504 = vcombine.low %v4496, %v4503
    %v4505 = vcombine.low %v2724, %v2750
    %v4506 = vcombine.low %v2757, %v3099
    %v4508 = vunpack.c.l.s4 1966171168
    %v4509 = vunpack.c.0.s8 %v4508
    %v4510 = vlaneseq
    %v4511 = vshrl.u32 %v4510, 7
    %v4512 = vsub.s32 %v4509, %v4511
    %v4513 = vrot.slane %v4505, %v4512
    %v4515 = vunpack.c.l.s4 1966171168
    %v4516 = vunpack.c.0.s8 %v4515
    %v4517 = vlaneseq
    %v4518 = vshrl.u32 %v4517, 7
    %v4519 = vsub.s32 %v4516, %v4518
    %v4520 = vrot.slane %v4506, %v4519
    %v4521 = vcombine.low %v4513, %v4520
    %v4522 = vcombine.low %v3217, %v3920
    %v4523 = vcombine.low %v3921, %v4155
    %v4525 = vunpack.c.l.s4 1966171168
    %v4526 = vunpack.c.0.s8 %v4525
    %v4527 = vlaneseq
    %v4528 = vshrl.u32 %v4527, 7
    %v4529 = vsub.s32 %v4526, %v4528
    %v4530 = vrot.slane %v4522, %v4529
    %v4532 = vunpack.c.l.s4 1966171168
    %v4533 = vunpack.c.0.s8 %v4532
    %v4534 = vlaneseq
    %v4535 = vshrl.u32 %v4534, 7
    %v4536 = vsub.s32 %v4533, %v4535
    %v4537 = vrot.slane %v4523, %v4536
    %v4538 = vcombine.low %v4530, %v4537
    %v4540 = vunpack.c.l.s4 1966171168
    %v4541 = vunpack.c.0.s8 %v4540
    %v4542 = vlaneseq
    %v4543 = vshrl.u32 %v4542, 7
    %v4544 = vsub.s32 %v4541, %v4543
    %v4545 = vrot.slane %v4538, %v4544
    %v4550 = vunpack.c.l.b16 %v1300
    %v4551 = vunpack.c.l.b16 %v1301
    %v4552 = vunpack.c.l.b16 %v1302
    %v4553 = vunpack.c.l.b16 %v1303
    %v4554 = vpack.c.b16 %v4551, %v4550
    %v4555 = vpack.c.b16 %v4553, %v4552
    %v4559 = vsel %vm2139, %v4454, 0
    %v4562 = vsel %vm2139, %v4479, 0
    %v4565 = vsel %vm2139, %v4504, 0
    %v4568 = vsel %vm2139, %v4521, 0
    %v4571 = vsel %vm2139, %v4545, 0
    %4573 = vmatprep.subr.bf16.mxu0 0
    %4574 = vmatpush1.bf16.msra.mxu0 0
    %4575 = vmatprep.subr.bf16.mxu0 0
    %4576 = vmatpush1.bf16.msra.mxu0 0
    %4577 = vmatprep.subr.bf16.mxu0 0
    %4578 = vmatpush1.bf16.msra.mxu0 0
    %4579 = vmatprep.subr.bf16.mxu0 0
    %4580 = vmatpush1.bf16.msra.mxu0 0
    %4581 = vmatprep.subr.bf16.mxu0 0
    %4582 = vmatpush1.bf16.msra.mxu0 0
    %4583 = vmatprep.subr.bf16.mxu0 0
    %4584 = vmatpush1.bf16.msra.mxu0 0
    %4585 = vmatprep.subr.bf16.mxu0 0
    %4586 = vmatpush1.bf16.msra.mxu0 %v4555
    %4587 = vmatprep.subr.bf16.mxu0 0
    %4588 = vmatpush1.bf16.msra.mxu0 %v4554
    %4589 = vmatprep.subr.bf16.mxu0 0
    %4590 = vmatpush2.bf16.msra.mxu0 0
    %4591 = vmatprep.subr.bf16.mxu0 0
    %4592 = vmatpush2.bf16.msra.mxu0 0
    %4593 = vmatprep.subr.bf16.mxu0 0
    %4594 = vmatpush2.bf16.msra.mxu0 0
    %4595 = vmatprep.subr.bf16.mxu0 0
    %4596 = vmatpush2.bf16.msra.mxu0 0
    %4597 = vmatprep.subr.bf16.mxu0 0
    %4598 = vmatpush2.bf16.msra.mxu0 0
    %4599 = vmatprep.subr.bf16.mxu0 0
    %4600 = vmatpush2.bf16.msra.mxu0 0
    %4601 = vmatprep.subr.bf16.mxu0 0
    %4602 = vmatpush2.bf16.msra.mxu0 0
    %4603 = vmatprep.subr.bf16.mxu0 0
    %4604 = vmatpush2.bf16.msra.mxu0 0
    %4605 = vmatprep.mubr.bf16.mxu0 0
    %4606 = vmatmul.mubr.bf16.gmra.mxu0 %v4559
    %v4607 = vpop.f32.mrf.mxu0
    %v4608 = vadd.f32 0.0, %v4607
    %v4609 = vpop.f32.mrf.mxu0
    %v4610 = vpop.f32.mrf.mxu0
    %v4611 = vadd.f32 0.0, %v4610
    %v4612 = vpop.f32.mrf.mxu0
    %4613 = vmatprep.mubr.bf16.mxu0 0
    %4614 = vmatmul.mubr.bf16.gmra.mxu0 %v4562
    %v4615 = vpop.f32.mrf.mxu0
    %v4616 = vadd.f32 0.0, %v4615
    %v4617 = vpop.f32.mrf.mxu0
    %v4618 = vpop.f32.mrf.mxu0
    %v4619 = vadd.f32 0.0, %v4618
    %v4620 = vpop.f32.mrf.mxu0
    %4621 = vmatprep.mubr.bf16.mxu0 0
    %4622 = vmatmul.mubr.bf16.gmra.mxu0 %v4565
    %v4623 = vpop.f32.mrf.mxu0
    %v4624 = vadd.f32 0.0, %v4623
    %v4625 = vpop.f32.mrf.mxu0
    %v4626 = vpop.f32.mrf.mxu0
    %v4627 = vadd.f32 0.0, %v4626
    %v4628 = vpop.f32.mrf.mxu0
    %4629 = vmatprep.mubr.bf16.mxu0 0
    %4630 = vmatmul.mubr.bf16.gmra.mxu0 %v4568
    %v4631 = vpop.f32.mrf.mxu0
    %v4632 = vadd.f32 0.0, %v4631
    %v4633 = vpop.f32.mrf.mxu0
    %v4634 = vpop.f32.mrf.mxu0
    %v4635 = vadd.f32 0.0, %v4634
    %v4636 = vpop.f32.mrf.mxu0
    %4637 = vmatprep.mubr.bf16.mxu0 0
    %4638 = vmatmul.mubr.bf16.gmra.mxu0 %v4571
    %v4639 = vpop.f32.mrf.mxu0
    %v4640 = vadd.f32 0.0, %v4639
    %v4641 = vpop.f32.mrf.mxu0
    %v4642 = vpop.f32.mrf.mxu0
    %v4643 = vpop.f32.mrf.mxu0
    %4644 = vdwg.mxu0
    %v4645 = vadd.f32 %v4429, %v4608
    %v4646 = vadd.f32 %v4430, %v4611
    %v4647 = vadd.f32 %v4431, %v4616
    %v4648 = vadd.f32 %v4432, %v4619
    %v4649 = vadd.f32 %v4433, %v4624
    %v4650 = vadd.f32 %v4434, %v4627
    %v4651 = vadd.f32 %v4435, %v4632
    %v4652 = vadd.f32 %v4436, %v4635
    %v4653 = vadd.f32 %v4437, %v4640
    %v4654 = vld [vmem:[%s4] sm:$0x1]
    %v4656 = vlaneseq
    %v4657 = vshrl.u32 %v4656, 7
    %v4658 = vsub.s32 0, %v4657
    %v4659 = vrot.slane %v4654, %v4658
    %v4661 = vadd.f32 %v4645, %v4659
    %v4662 = vadd.f32 %v4646, %v4659
    %v4663 = vadd.f32 %v4647, %v4659
    %v4664 = vadd.f32 %v4648, %v4659
    %v4665 = vadd.f32 %v4649, %v4659
    %v4666 = vadd.f32 %v4650, %v4659
    %v4667 = vadd.f32 %v4651, %v4659
    %v4668 = vadd.f32 %v4652, %v4659
    %v4669 = vadd.f32 %v4653, %v4659
    %v4670 = vmax.f32 %v4661, 0.0
    %v4671 = vmax.f32 %v4662, 0.0
    %v4672 = vmax.f32 %v4663, 0.0
    %v4673 = vmax.f32 %v4664, 0.0
    %v4674 = vmax.f32 %v4665, 0.0
    %v4675 = vmax.f32 %v4666, 0.0
    %v4676 = vmax.f32 %v4667, 0.0
    %v4677 = vmax.f32 %v4668, 0.0
    %v4678 = vmax.f32 %v4669, 0.0
    %v4679 = vpack.c.bf16 %v4671, %v4670
    %v4680 = vpack.c.bf16 %v4673, %v4672
    %v4681 = vpack.c.bf16 %v4675, %v4674
    %v4682 = vpack.c.bf16 %v4677, %v4676
    %v4683 = vpack.c.bf16 %v4678, %v4678
    %v4689 = vcombine.high %v4679, %v4679
    %v4691 = vunpack.c.l.s4 1966171168
    %v4692 = vunpack.c.0.s8 %v4691
    %v4693 = vlaneseq
    %v4694 = vshrl.u32 %v4693, 7
    %v4695 = vsub.s32 %v4692, %v4694
    %v4696 = vrot.slane %v4679, %v4695
    %v4698 = vunpack.c.l.s4 1966171168
    %v4699 = vunpack.c.0.s8 %v4698
    %v4700 = vlaneseq
    %v4701 = vshrl.u32 %v4700, 7
    %v4702 = vsub.s32 %v4699, %v4701
    %v4703 = vrot.slane %v4689, %v4702
    %v4704 = vcombine.high %v4696, %v4696
    %v4705 = vcombine.high %v4703, %v4703
    %v4707 = vunpack.c.l.s4 1966171168
    %v4708 = vunpack.c.0.s8 %v4707
    %v4709 = vlaneseq
    %v4710 = vshrl.u32 %v4709, 7
    %v4711 = vsub.s32 %v4708, %v4710
    %v4712 = vrot.slane %v4696, %v4711
    %v4714 = vunpack.c.l.s4 1966171168
    %v4715 = vunpack.c.0.s8 %v4714
    %v4716 = vlaneseq
    %v4717 = vshrl.u32 %v4716, 7
    %v4718 = vsub.s32 %v4715, %v4717
    %v4719 = vrot.slane %v4703, %v4718
    %v4721 = vunpack.c.l.s4 1966171168
    %v4722 = vunpack.c.0.s8 %v4721
    %v4723 = vlaneseq
    %v4724 = vshrl.u32 %v4723, 7
    %v4725 = vsub.s32 %v4722, %v4724
    %v4726 = vrot.slane %v4704, %v4725
    %v4728 = vunpack.c.l.s4 1966171168
    %v4729 = vunpack.c.0.s8 %v4728
    %v4730 = vlaneseq
    %v4731 = vshrl.u32 %v4730, 7
    %v4732 = vsub.s32 %v4729, %v4731
    %v4733 = vrot.slane %v4705, %v4732
    %v4734 = vcombine.high %v4712, %v4712
    %v4735 = vcombine.high %v4719, %v4719
    %v4736 = vcombine.high %v4726, %v4726
    %v4737 = vcombine.high %v4733, %v4733
    %v4738 = vcombine.high %v4680, %v4680
    %v4740 = vunpack.c.l.s4 1966171168
    %v4741 = vunpack.c.0.s8 %v4740
    %v4742 = vlaneseq
    %v4743 = vshrl.u32 %v4742, 7
    %v4744 = vsub.s32 %v4741, %v4743
    %v4745 = vrot.slane %v4680, %v4744
    %v4747 = vunpack.c.l.s4 1966171168
    %v4748 = vunpack.c.0.s8 %v4747
    %v4749 = vlaneseq
    %v4750 = vshrl.u32 %v4749, 7
    %v4751 = vsub.s32 %v4748, %v4750
    %v4752 = vrot.slane %v4738, %v4751
    %v4753 = vcombine.high %v4745, %v4745
    %v4754 = vcombine.high %v4752, %v4752
    %v4756 = vunpack.c.l.s4 1966171168
    %v4757 = vunpack.c.0.s8 %v4756
    %v4758 = vlaneseq
    %v4759 = vshrl.u32 %v4758, 7
    %v4760 = vsub.s32 %v4757, %v4759
    %v4761 = vrot.slane %v4745, %v4760
    %v4763 = vunpack.c.l.s4 1966171168
    %v4764 = vunpack.c.0.s8 %v4763
    %v4765 = vlaneseq
    %v4766 = vshrl.u32 %v4765, 7
    %v4767 = vsub.s32 %v4764, %v4766
    %v4768 = vrot.slane %v4752, %v4767
    %v4770 = vunpack.c.l.s4 1966171168
    %v4771 = vunpack.c.0.s8 %v4770
    %v4772 = vlaneseq
    %v4773 = vshrl.u32 %v4772, 7
    %v4774 = vsub.s32 %v4771, %v4773
    %v4775 = vrot.slane %v4753, %v4774
    %v4777 = vunpack.c.l.s4 1966171168
    %v4778 = vunpack.c.0.s8 %v4777
    %v4779 = vlaneseq
    %v4780 = vshrl.u32 %v4779, 7
    %v4781 = vsub.s32 %v4778, %v4780
    %v4782 = vrot.slane %v4754, %v4781
    %v4783 = vcombine.high %v4761, %v4761
    %v4784 = vcombine.high %v4768, %v4768
    %v4785 = vcombine.high %v4775, %v4775
    %v4786 = vcombine.high %v4782, %v4782
    %v4787 = vcombine.high %v4681, %v4681
    %v4789 = vunpack.c.l.s4 1966171168
    %v4790 = vunpack.c.0.s8 %v4789
    %v4791 = vlaneseq
    %v4792 = vshrl.u32 %v4791, 7
    %v4793 = vsub.s32 %v4790, %v4792
    %v4794 = vrot.slane %v4681, %v4793
    %v4796 = vunpack.c.l.s4 1966171168
    %v4797 = vunpack.c.0.s8 %v4796
    %v4798 = vlaneseq
    %v4799 = vshrl.u32 %v4798, 7
    %v4800 = vsub.s32 %v4797, %v4799
    %v4801 = vrot.slane %v4787, %v4800
    %v4802 = vcombine.high %v4794, %v4794
    %v4803 = vcombine.high %v4801, %v4801
    %v4805 = vunpack.c.l.s4 1966171168
    %v4806 = vunpack.c.0.s8 %v4805
    %v4807 = vlaneseq
    %v4808 = vshrl.u32 %v4807, 7
    %v4809 = vsub.s32 %v4806, %v4808
    %v4810 = vrot.slane %v4794, %v4809
    %v4812 = vunpack.c.l.s4 1966171168
    %v4813 = vunpack.c.0.s8 %v4812
    %v4814 = vlaneseq
    %v4815 = vshrl.u32 %v4814, 7
    %v4816 = vsub.s32 %v4813, %v4815
    %v4817 = vrot.slane %v4801, %v4816
    %v4819 = vunpack.c.l.s4 1966171168
    %v4820 = vunpack.c.0.s8 %v4819
    %v4821 = vlaneseq
    %v4822 = vshrl.u32 %v4821, 7
    %v4823 = vsub.s32 %v4820, %v4822
    %v4824 = vrot.slane %v4802, %v4823
    %v4826 = vunpack.c.l.s4 1966171168
    %v4827 = vunpack.c.0.s8 %v4826
    %v4828 = vlaneseq
    %v4829 = vshrl.u32 %v4828, 7
    %v4830 = vsub.s32 %v4827, %v4829
    %v4831 = vrot.slane %v4803, %v4830
    %v4832 = vcombine.high %v4810, %v4810
    %v4833 = vcombine.high %v4817, %v4817
    %v4834 = vcombine.high %v4824, %v4824
    %v4835 = vcombine.high %v4831, %v4831
    %v4836 = vcombine.high %v4682, %v4682
    %v4838 = vunpack.c.l.s4 1966171168
    %v4839 = vunpack.c.0.s8 %v4838
    %v4840 = vlaneseq
    %v4841 = vshrl.u32 %v4840, 7
    %v4842 = vsub.s32 %v4839, %v4841
    %v4843 = vrot.slane %v4682, %v4842
    %v4845 = vunpack.c.l.s4 1966171168
    %v4846 = vunpack.c.0.s8 %v4845
    %v4847 = vlaneseq
    %v4848 = vshrl.u32 %v4847, 7
    %v4849 = vsub.s32 %v4846, %v4848
    %v4850 = vrot.slane %v4836, %v4849
    %v4851 = vcombine.high %v4843, %v4843
    %v4852 = vcombine.high %v4850, %v4850
    %v4854 = vunpack.c.l.s4 1966171168
    %v4855 = vunpack.c.0.s8 %v4854
    %v4856 = vlaneseq
    %v4857 = vshrl.u32 %v4856, 7
    %v4858 = vsub.s32 %v4855, %v4857
    %v4859 = vrot.slane %v4843, %v4858
    %v4861 = vunpack.c.l.s4 1966171168
    %v4862 = vunpack.c.0.s8 %v4861
    %v4863 = vlaneseq
    %v4864 = vshrl.u32 %v4863, 7
    %v4865 = vsub.s32 %v4862, %v4864
    %v4866 = vrot.slane %v4850, %v4865
    %v4868 = vunpack.c.l.s4 1966171168
    %v4869 = vunpack.c.0.s8 %v4868
    %v4870 = vlaneseq
    %v4871 = vshrl.u32 %v4870, 7
    %v4872 = vsub.s32 %v4869, %v4871
    %v4873 = vrot.slane %v4851, %v4872
    %v4875 = vunpack.c.l.s4 1966171168
    %v4876 = vunpack.c.0.s8 %v4875
    %v4877 = vlaneseq
    %v4878 = vshrl.u32 %v4877, 7
    %v4879 = vsub.s32 %v4876, %v4878
    %v4880 = vrot.slane %v4852, %v4879
    %v4881 = vcombine.high %v4859, %v4859
    %v4882 = vcombine.high %v4866, %v4866
    %v4883 = vcombine.high %v4873, %v4873
    %v4884 = vcombine.high %v4880, %v4880
    %v4886 = vunpack.c.l.s4 1966171168
    %v4887 = vunpack.c.0.s8 %v4886
    %v4888 = vlaneseq
    %v4889 = vshrl.u32 %v4888, 7
    %v4890 = vsub.s32 %v4887, %v4889
    %v4891 = vrot.slane %v4683, %v4890
    %v4892 = vcombine.high %v4891, %v4891
    %v4894 = vunpack.c.l.s4 1966171168
    %v4895 = vunpack.c.0.s8 %v4894
    %v4896 = vlaneseq
    %v4897 = vshrl.u32 %v4896, 7
    %v4898 = vsub.s32 %v4895, %v4897
    %v4899 = vrot.slane %v4891, %v4898
    %v4901 = vunpack.c.l.s4 1966171168
    %v4902 = vunpack.c.0.s8 %v4901
    %v4903 = vlaneseq
    %v4904 = vshrl.u32 %v4903, 7
    %v4905 = vsub.s32 %v4902, %v4904
    %v4906 = vrot.slane %v4892, %v4905
    %v4907 = vcombine.high %v4899, %v4899
    %v4908 = vcombine.high %v4906, %v4906
    %v4909 = vld [vmem:[%s5] sm:$0xf]
    %v4910 = vld [vmem:[%s5 + $0x4] sm:$0xf]
    %v4911 = vld [vmem:[%s5 + $0x8] sm:$0xf]
    %v4912 = vld [vmem:[%s5 + $0xc] sm:$0xf]
    %v4913 = vld [vmem:[%s5 + $0x10] sm:$0xf]
    %v4914 = vld [vmem:[%s5 + $0x14] sm:$0xf]
    %v4915 = vld [vmem:[%s5 + $0x18] sm:$0xf]
    %v4916 = vld [vmem:[%s5 + $0x1c] sm:$0xf]
    %v4917 = vld [vmem:[%s5 + $0x20] sm:$0xf]
    %v4918 = vld [vmem:[%s5 + $0x24] sm:$0xf]
    %v4919 = vld [vmem:[%s5 + $0x28] sm:$0xf]
    %v4920 = vld [vmem:[%s5 + $0x2c] sm:$0xf]
    %v4921 = vld [vmem:[%s5 + $0x30] sm:$0xf]
    %v4922 = vld [vmem:[%s5 + $0x34] sm:$0xf]
    %v4923 = vld [vmem:[%s5 + $0x38] sm:$0xf]
    %v4924 = vld [vmem:[%s5 + $0x3c] sm:$0xf]
    %v4925 = vld [vmem:[%s5 + $0x40] sm:$0xf]
    %v4926 = vld [vmem:[%s5 + $0x44] sm:$0xf]
    %v4927 = vld [vmem:[%s5 + $0x48] sm:$0xf]
    %v4928 = vld [vmem:[%s5 + $0x4c] sm:$0xf]
    %v4929 = vld [vmem:[%s5 + $0x50] sm:$0xf]
    %v4930 = vld [vmem:[%s5 + $0x54] sm:$0xf]
    %v4931 = vld [vmem:[%s5 + $0x58] sm:$0xf]
    %v4932 = vld [vmem:[%s5 + $0x5c] sm:$0xf]
    %v4933 = vld [vmem:[%s5 + $0x60] sm:$0xf]
    %v4934 = vld [vmem:[%s5 + $0x64] sm:$0xf]
    %v4935 = vld [vmem:[%s5 + $0x68] sm:$0xf]
    %v4936 = vld [vmem:[%s5 + $0x6c] sm:$0xf]
    %v4937 = vld [vmem:[%s5 + $0x70] sm:$0xf]
    %v4938 = vld [vmem:[%s5 + $0x74] sm:$0xf]
    %v4939 = vld [vmem:[%s5 + $0x78] sm:$0xf]
    %v4940 = vld [vmem:[%s5 + $0x7c] sm:$0xf]
    %v4941 = vld [vmem:[%s5 + $0x80] sm:$0xf]
    %v4942 = vld [vmem:[%s5 + $0x84] sm:$0xf]
    %v4943 = vld [vmem:[%s5 + $0x88] sm:$0xf]
    %v4944 = vld [vmem:[%s5 + $0x8c] sm:$0xf]
    %v4945 = vld [vmem:[%s5 + $0x90] sm:$0xf]
    %v4946 = vld [vmem:[%s5 + $0x94] sm:$0xf]
    %v4947 = vld [vmem:[%s5 + $0x98] sm:$0xf]
    %v4948 = vld [vmem:[%s5 + $0x9c] sm:$0xf]
    %v4949 = vld [vmem:[%s5 + $0xa0] sm:$0xf]
    %v4950 = vld [vmem:[%s5 + $0xa4] sm:$0xf]
    %v4951 = vld [vmem:[%s5 + $0xa8] sm:$0xf]
    %v4952 = vld [vmem:[%s5 + $0xac] sm:$0xf]
    %v4953 = vld [vmem:[%s5 + $0xb0] sm:$0xf]
    %v4954 = vld [vmem:[%s5 + $0xb4] sm:$0xf]
    %v4955 = vld [vmem:[%s5 + $0xb8] sm:$0xf]
    %v4956 = vld [vmem:[%s5 + $0xbc] sm:$0xf]
    %v4957 = vld [vmem:[%s5 + $0xc0] sm:$0xf]
    %v4958 = vld [vmem:[%s5 + $0xc4] sm:$0xf]
    %v4959 = vld [vmem:[%s5 + $0xc8] sm:$0xf]
    %v4960 = vld [vmem:[%s5 + $0xcc] sm:$0xf]
    %v4961 = vld [vmem:[%s5 + $0xd0] sm:$0xf]
    %v4962 = vld [vmem:[%s5 + $0xd4] sm:$0xf]
    %v4963 = vld [vmem:[%s5 + $0xd8] sm:$0xf]
    %v4964 = vld [vmem:[%s5 + $0xdc] sm:$0xf]
    %v4965 = vld [vmem:[%s5 + $0xe0] sm:$0xf]
    %v4966 = vld [vmem:[%s5 + $0xe4] sm:$0xf]
    %v4967 = vld [vmem:[%s5 + $0xe8] sm:$0xf]
    %v4968 = vld [vmem:[%s5 + $0xec] sm:$0xf]
    %v4969 = vld [vmem:[%s5 + $0xf0] sm:$0xf]
    %v4970 = vld [vmem:[%s5 + $0xf4] sm:$0xf]
    %v4971 = vld [vmem:[%s5 + $0xf8] sm:$0xf]
    %v4972 = vld [vmem:[%s5 + $0xfc] sm:$0xf]
    %v4973 = vld [vmem:[%s5 + $0x100] sm:$0xf]
    %v4974 = vld [vmem:[%s5 + $0x104] sm:$0xf]
    %v4975 = vld [vmem:[%s5 + $0x108] sm:$0xf]
    %v4976 = vld [vmem:[%s5 + $0x10c] sm:$0xf]
    %v4977 = vld [vmem:[%s5 + $0x110] sm:$0xf]
    %v4978 = vld [vmem:[%s5 + $0x114] sm:$0xf]
    %v4979 = vld [vmem:[%s5 + $0x118] sm:$0xf]
    %v4980 = vld [vmem:[%s5 + $0x11c] sm:$0xf]
    %v4982 = vshrl.u32 %v4712, 16
    %v4984 = vrot.slane %v4982, 7
    %v4985 = vrot.slane %v4984, 1
    %v4987 = vshll.u32 %v4726, 16
    %v4989 = vsel %vm1606, %v4985, %v4987
    %v4990 = vshrl.u32 %v4726, 16
    %v4992 = vrot.slane %v4990, 7
    %v4993 = vrot.slane %v4992, 1
    %v4995 = vshll.u32 %v4734, 16
    %v4997 = vsel %vm1606, %v4993, %v4995
    %v4999 = vshrl.u32 %v4736, 16
    %v5001 = vrot.slane %v4999, 7
    %v5002 = vrot.slane %v5001, 1
    %v5004 = vshll.u32 %v4719, 16
    %v5006 = vsel %vm1606, %v5002, %v5004
    %v5007 = vshrl.u32 %v4719, 16
    %v5009 = vrot.slane %v5007, 7
    %v5010 = vrot.slane %v5009, 1
    %v5012 = vshll.u32 %v4733, 16
    %v5014 = vsel %vm1606, %v5010, %v5012
    %v5016 = vshrl.u32 %v4735, 16
    %v5018 = vrot.slane %v5016, 7
    %v5019 = vrot.slane %v5018, 1
    %v5021 = vshll.u32 %v4737, 16
    %v5023 = vsel %vm1606, %v5019, %v5021
    %v5024 = vshrl.u32 %v4737, 16
    %v5026 = vrot.slane %v5024, 7
    %v5027 = vrot.slane %v5026, 1
    %v5029 = vshll.u32 %v4761, 16
    %v5031 = vsel %vm1606, %v5027, %v5029
    %v5033 = vshrl.u32 %v4775, 16
    %v5035 = vrot.slane %v5033, 7
    %v5036 = vrot.slane %v5035, 1
    %v5038 = vshll.u32 %v4783, 16
    %v5040 = vsel %vm1606, %v5036, %v5038
    %v5041 = vshrl.u32 %v4783, 16
    %v5043 = vrot.slane %v5041, 7
    %v5044 = vrot.slane %v5043, 1
    %v5046 = vshll.u32 %v4785, 16
    %v5048 = vsel %vm1606, %v5044, %v5046
    %v5050 = vshrl.u32 %v4832, 16
    %v5052 = vrot.slane %v5050, 7
    %v5053 = vrot.slane %v5052, 1
    %v5055 = vshll.u32 %v4834, 16
    %v5057 = vsel %vm1606, %v5053, %v5055
    %v5058 = vshrl.u32 %v4834, 16
    %v5060 = vrot.slane %v5058, 7
    %v5061 = vrot.slane %v5060, 1
    %v5063 = vshll.u32 %v4817, 16
    %v5065 = vsel %vm1606, %v5061, %v5063
    %v5067 = vshrl.u32 %v4831, 16
    %v5069 = vrot.slane %v5067, 7
    %v5070 = vrot.slane %v5069, 1
    %v5072 = vshll.u32 %v4833, 16
    %v5074 = vsel %vm1606, %v5070, %v5072
    %v5075 = vshrl.u32 %v4833, 16
    %v5077 = vrot.slane %v5075, 7
    %v5078 = vrot.slane %v5077, 1
    %v5080 = vshll.u32 %v4835, 16
    %v5082 = vsel %vm1606, %v5078, %v5080
    %v5084 = vshrl.u32 %v4859, 16
    %v5086 = vrot.slane %v5084, 7
    %v5087 = vrot.slane %v5086, 1
    %v5089 = vshll.u32 %v4873, 16
    %v5091 = vsel %vm1606, %v5087, %v5089
    %v5092 = vshrl.u32 %v4873, 16
    %v5094 = vrot.slane %v5092, 7
    %v5095 = vrot.slane %v5094, 1
    %v5097 = vshll.u32 %v4881, 16
    %v5099 = vsel %vm1606, %v5095, %v5097
    %v5101 = vshrl.u32 %v4883, 16
    %v5103 = vrot.slane %v5101, 7
    %v5104 = vrot.slane %v5103, 1
    %v5106 = vshll.u32 %v4866, 16
    %v5108 = vsel %vm1606, %v5104, %v5106
    %v5109 = vshrl.u32 %v4866, 16
    %v5111 = vrot.slane %v5109, 7
    %v5112 = vrot.slane %v5111, 1
    %v5114 = vshll.u32 %v4880, 16
    %v5116 = vsel %vm1606, %v5112, %v5114
    %v5117 = vcombine.low %v4989, %v4997
    %v5118 = vcombine.low %v5006, %v5014
    %v5119 = vcombine.low %v5023, %v5031
    %v5120 = vcombine.low %v5040, %v5048
    %v5122 = vunpack.c.l.s4 1966171168
    %v5123 = vunpack.c.0.s8 %v5122
    %v5124 = vlaneseq
    %v5125 = vshrl.u32 %v5124, 7
    %v5126 = vsub.s32 %v5123, %v5125
    %v5127 = vrot.slane %v5117, %v5126
    %v5129 = vunpack.c.l.s4 1966171168
    %v5130 = vunpack.c.0.s8 %v5129
    %v5131 = vlaneseq
    %v5132 = vshrl.u32 %v5131, 7
    %v5133 = vsub.s32 %v5130, %v5132
    %v5134 = vrot.slane %v5118, %v5133
    %v5136 = vunpack.c.l.s4 1966171168
    %v5137 = vunpack.c.0.s8 %v5136
    %v5138 = vlaneseq
    %v5139 = vshrl.u32 %v5138, 7
    %v5140 = vsub.s32 %v5137, %v5139
    %v5141 = vrot.slane %v5119, %v5140
    %v5143 = vunpack.c.l.s4 1966171168
    %v5144 = vunpack.c.0.s8 %v5143
    %v5145 = vlaneseq
    %v5146 = vshrl.u32 %v5145, 7
    %v5147 = vsub.s32 %v5144, %v5146
    %v5148 = vrot.slane %v5120, %v5147
    %v5149 = vcombine.low %v5127, %v5134
    %v5150 = vcombine.low %v5141, %v5148
    %v5152 = vunpack.c.l.s4 1966171168
    %v5153 = vunpack.c.0.s8 %v5152
    %v5154 = vlaneseq
    %v5155 = vshrl.u32 %v5154, 7
    %v5156 = vsub.s32 %v5153, %v5155
    %v5157 = vrot.slane %v5149, %v5156
    %v5159 = vunpack.c.l.s4 1966171168
    %v5160 = vunpack.c.0.s8 %v5159
    %v5161 = vlaneseq
    %v5162 = vshrl.u32 %v5161, 7
    %v5163 = vsub.s32 %v5160, %v5162
    %v5164 = vrot.slane %v5150, %v5163
    %v5165 = vcombine.low %v5157, %v5164
    %v5166 = vcombine.low %v5057, %v5065
    %v5167 = vcombine.low %v5074, %v5082
    %v5168 = vcombine.low %v5091, %v5099
    %v5169 = vcombine.low %v5108, %v5116
    %v5171 = vunpack.c.l.s4 1966171168
    %v5172 = vunpack.c.0.s8 %v5171
    %v5173 = vlaneseq
    %v5174 = vshrl.u32 %v5173, 7
    %v5175 = vsub.s32 %v5172, %v5174
    %v5176 = vrot.slane %v5166, %v5175
    %v5178 = vunpack.c.l.s4 1966171168
    %v5179 = vunpack.c.0.s8 %v5178
    %v5180 = vlaneseq
    %v5181 = vshrl.u32 %v5180, 7
    %v5182 = vsub.s32 %v5179, %v5181
    %v5183 = vrot.slane %v5167, %v5182
    %v5185 = vunpack.c.l.s4 1966171168
    %v5186 = vunpack.c.0.s8 %v5185
    %v5187 = vlaneseq
    %v5188 = vshrl.u32 %v5187, 7
    %v5189 = vsub.s32 %v5186, %v5188
    %v5190 = vrot.slane %v5168, %v5189
    %v5192 = vunpack.c.l.s4 1966171168
    %v5193 = vunpack.c.0.s8 %v5192
    %v5194 = vlaneseq
    %v5195 = vshrl.u32 %v5194, 7
    %v5196 = vsub.s32 %v5193, %v5195
    %v5197 = vrot.slane %v5169, %v5196
    %v5198 = vcombine.low %v5176, %v5183
    %v5199 = vcombine.low %v5190, %v5197
    %v5201 = vunpack.c.l.s4 1966171168
    %v5202 = vunpack.c.0.s8 %v5201
    %v5203 = vlaneseq
    %v5204 = vshrl.u32 %v5203, 7
    %v5205 = vsub.s32 %v5202, %v5204
    %v5206 = vrot.slane %v5198, %v5205
    %v5208 = vunpack.c.l.s4 1966171168
    %v5209 = vunpack.c.0.s8 %v5208
    %v5210 = vlaneseq
    %v5211 = vshrl.u32 %v5210, 7
    %v5212 = vsub.s32 %v5209, %v5211
    %v5213 = vrot.slane %v5199, %v5212
    %v5214 = vcombine.low %v5206, %v5213
    %v5223 = vunpack.c.l.b16 %v4917
    %v5224 = vunpack.c.l.b16 %v4918
    %v5225 = vunpack.c.l.b16 %v4919
    %v5226 = vunpack.c.l.b16 %v4920
    %v5227 = vunpack.c.l.b16 %v4921
    %v5228 = vunpack.c.l.b16 %v4922
    %v5229 = vunpack.c.l.b16 %v4923
    %v5230 = vunpack.c.l.b16 %v4924
    %v5231 = vpack.c.b16 %v5224, %v5223
    %v5232 = vpack.c.b16 %v5226, %v5225
    %v5233 = vpack.c.b16 %v5228, %v5227
    %v5234 = vpack.c.b16 %v5230, %v5229
    %vm5239 = vcmask 523264
    %v5241 = vsel %vm5239, %v5165, 0
    %v5244 = vsel %vm5239, %v5214, 0
    %5246 = vmatprep.subr.bf16.mxu0 0
    %5247 = vmatpush1.bf16.msra.mxu0 0
    %5248 = vmatprep.subr.bf16.mxu0 0
    %5249 = vmatpush1.bf16.msra.mxu0 0
    %5250 = vmatprep.subr.bf16.mxu0 0
    %5251 = vmatpush1.bf16.msra.mxu0 0
    %5252 = vmatprep.subr.bf16.mxu0 0
    %5253 = vmatpush1.bf16.msra.mxu0 0
    %5254 = vmatprep.subr.bf16.mxu0 0
    %5255 = vmatpush1.bf16.msra.mxu0 %v5234
    %5256 = vmatprep.subr.bf16.mxu0 0
    %5257 = vmatpush1.bf16.msra.mxu0 %v5233
    %5258 = vmatprep.subr.bf16.mxu0 0
    %5259 = vmatpush1.bf16.msra.mxu0 %v5232
    %5260 = vmatprep.subr.bf16.mxu0 0
    %5261 = vmatpush1.bf16.msra.mxu0 %v5231
    %5262 = vmatprep.subr.bf16.mxu0 0
    %5263 = vmatpush2.bf16.msra.mxu0 0
    %5264 = vmatprep.subr.bf16.mxu0 0
    %5265 = vmatpush2.bf16.msra.mxu0 0
    %5266 = vmatprep.subr.bf16.mxu0 0
    %5267 = vmatpush2.bf16.msra.mxu0 0
    %5268 = vmatprep.subr.bf16.mxu0 0
    %5269 = vmatpush2.bf16.msra.mxu0 0
    %5270 = vmatprep.subr.bf16.mxu0 0
    %5271 = vmatpush2.bf16.msra.mxu0 0
    %5272 = vmatprep.subr.bf16.mxu0 0
    %5273 = vmatpush2.bf16.msra.mxu0 0
    %5274 = vmatprep.subr.bf16.mxu0 0
    %5275 = vmatpush2.bf16.msra.mxu0 0
    %5276 = vmatprep.subr.bf16.mxu0 0
    %5277 = vmatpush2.bf16.msra.mxu0 0
    %5278 = vmatprep.mubr.bf16.mxu0 0
    %5279 = vmatmul.mubr.bf16.gmra.mxu0 %v5241
    %v5280 = vpop.f32.mrf.mxu0
    %v5281 = vadd.f32 0.0, %v5280
    %v5282 = vpop.f32.mrf.mxu0
    %v5283 = vpop.f32.mrf.mxu0
    %v5284 = vadd.f32 0.0, %v5283
    %v5285 = vpop.f32.mrf.mxu0
    %5286 = vmatprep.mubr.bf16.mxu0 0
    %5287 = vmatmul.mubr.bf16.gmra.mxu0 %v5244
    %v5288 = vpop.f32.mrf.mxu0
    %v5289 = vadd.f32 0.0, %v5288
    %v5290 = vpop.f32.mrf.mxu0
    %v5291 = vpop.f32.mrf.mxu0
    %v5292 = vadd.f32 0.0, %v5291
    %v5293 = vpop.f32.mrf.mxu0
    %5294 = vdwg.mxu0
    %v5295 = vcombine.low %v4712, %v4726
    %v5296 = vcombine.low %v4736, %v4719
    %v5297 = vcombine.low %v4735, %v4737
    %v5298 = vcombine.low %v4775, %v4783
    %v5300 = vunpack.c.l.s4 1966171168
    %v5301 = vunpack.c.0.s8 %v5300
    %v5302 = vlaneseq
    %v5303 = vshrl.u32 %v5302, 7
    %v5304 = vsub.s32 %v5301, %v5303
    %v5305 = vrot.slane %v5295, %v5304
    %v5307 = vunpack.c.l.s4 1966171168
    %v5308 = vunpack.c.0.s8 %v5307
    %v5309 = vlaneseq
    %v5310 = vshrl.u32 %v5309, 7
    %v5311 = vsub.s32 %v5308, %v5310
    %v5312 = vrot.slane %v5296, %v5311
    %v5314 = vunpack.c.l.s4 1966171168
    %v5315 = vunpack.c.0.s8 %v5314
    %v5316 = vlaneseq
    %v5317 = vshrl.u32 %v5316, 7
    %v5318 = vsub.s32 %v5315, %v5317
    %v5319 = vrot.slane %v5297, %v5318
    %v5321 = vunpack.c.l.s4 1966171168
    %v5322 = vunpack.c.0.s8 %v5321
    %v5323 = vlaneseq
    %v5324 = vshrl.u32 %v5323, 7
    %v5325 = vsub.s32 %v5322, %v5324
    %v5326 = vrot.slane %v5298, %v5325
    %v5327 = vcombine.low %v5305, %v5312
    %v5328 = vcombine.low %v5319, %v5326
    %v5330 = vunpack.c.l.s4 1966171168
    %v5331 = vunpack.c.0.s8 %v5330
    %v5332 = vlaneseq
    %v5333 = vshrl.u32 %v5332, 7
    %v5334 = vsub.s32 %v5331, %v5333
    %v5335 = vrot.slane %v5327, %v5334
    %v5337 = vunpack.c.l.s4 1966171168
    %v5338 = vunpack.c.0.s8 %v5337
    %v5339 = vlaneseq
    %v5340 = vshrl.u32 %v5339, 7
    %v5341 = vsub.s32 %v5338, %v5340
    %v5342 = vrot.slane %v5328, %v5341
    %v5343 = vcombine.low %v5335, %v5342
    %v5344 = vcombine.low %v4832, %v4834
    %v5345 = vcombine.low %v4831, %v4833
    %v5346 = vcombine.low %v4859, %v4873
    %v5347 = vcombine.low %v4883, %v4866
    %v5349 = vunpack.c.l.s4 1966171168
    %v5350 = vunpack.c.0.s8 %v5349
    %v5351 = vlaneseq
    %v5352 = vshrl.u32 %v5351, 7
    %v5353 = vsub.s32 %v5350, %v5352
    %v5354 = vrot.slane %v5344, %v5353
    %v5356 = vunpack.c.l.s4 1966171168
    %v5357 = vunpack.c.0.s8 %v5356
    %v5358 = vlaneseq
    %v5359 = vshrl.u32 %v5358, 7
    %v5360 = vsub.s32 %v5357, %v5359
    %v5361 = vrot.slane %v5345, %v5360
    %v5363 = vunpack.c.l.s4 1966171168
    %v5364 = vunpack.c.0.s8 %v5363
    %v5365 = vlaneseq
    %v5366 = vshrl.u32 %v5365, 7
    %v5367 = vsub.s32 %v5364, %v5366
    %v5368 = vrot.slane %v5346, %v5367
    %v5370 = vunpack.c.l.s4 1966171168
    %v5371 = vunpack.c.0.s8 %v5370
    %v5372 = vlaneseq
    %v5373 = vshrl.u32 %v5372, 7
    %v5374 = vsub.s32 %v5371, %v5373
    %v5375 = vrot.slane %v5347, %v5374
    %v5376 = vcombine.low %v5354, %v5361
    %v5377 = vcombine.low %v5368, %v5375
    %v5379 = vunpack.c.l.s4 1966171168
    %v5380 = vunpack.c.0.s8 %v5379
    %v5381 = vlaneseq
    %v5382 = vshrl.u32 %v5381, 7
    %v5383 = vsub.s32 %v5380, %v5382
    %v5384 = vrot.slane %v5376, %v5383
    %v5386 = vunpack.c.l.s4 1966171168
    %v5387 = vunpack.c.0.s8 %v5386
    %v5388 = vlaneseq
    %v5389 = vshrl.u32 %v5388, 7
    %v5390 = vsub.s32 %v5387, %v5389
    %v5391 = vrot.slane %v5377, %v5390
    %v5392 = vcombine.low %v5384, %v5391
    %v5401 = vunpack.c.l.b16 %v4909
    %v5402 = vunpack.c.l.b16 %v4910
    %v5403 = vunpack.c.l.b16 %v4911
    %v5404 = vunpack.c.l.b16 %v4912
    %v5405 = vunpack.c.l.b16 %v4913
    %v5406 = vunpack.c.l.b16 %v4914
    %v5407 = vunpack.c.l.b16 %v4915
    %v5408 = vunpack.c.l.b16 %v4916
    %v5409 = vpack.c.b16 %v5402, %v5401
    %v5410 = vpack.c.b16 %v5404, %v5403
    %v5411 = vpack.c.b16 %v5406, %v5405
    %v5412 = vpack.c.b16 %v5408, %v5407
    %v5418 = vsel %vm5239, %v5343, 0
    %v5421 = vsel %vm5239, %v5392, 0
    %5423 = vmatprep.subr.bf16.mxu0 0
    %5424 = vmatpush1.bf16.msra.mxu0 0
    %5425 = vmatprep.subr.bf16.mxu0 0
    %5426 = vmatpush1.bf16.msra.mxu0 0
    %5427 = vmatprep.subr.bf16.mxu0 0
    %5428 = vmatpush1.bf16.msra.mxu0 0
    %5429 = vmatprep.subr.bf16.mxu0 0
    %5430 = vmatpush1.bf16.msra.mxu0 0
    %5431 = vmatprep.subr.bf16.mxu0 0
    %5432 = vmatpush1.bf16.msra.mxu0 %v5412
    %5433 = vmatprep.subr.bf16.mxu0 0
    %5434 = vmatpush1.bf16.msra.mxu0 %v5411
    %5435 = vmatprep.subr.bf16.mxu0 0
    %5436 = vmatpush1.bf16.msra.mxu0 %v5410
    %5437 = vmatprep.subr.bf16.mxu0 0
    %5438 = vmatpush1.bf16.msra.mxu0 %v5409
    %5439 = vmatprep.subr.bf16.mxu0 0
    %5440 = vmatpush2.bf16.msra.mxu0 0
    %5441 = vmatprep.subr.bf16.mxu0 0
    %5442 = vmatpush2.bf16.msra.mxu0 0
    %5443 = vmatprep.subr.bf16.mxu0 0
    %5444 = vmatpush2.bf16.msra.mxu0 0
    %5445 = vmatprep.subr.bf16.mxu0 0
    %5446 = vmatpush2.bf16.msra.mxu0 0
    %5447 = vmatprep.subr.bf16.mxu0 0
    %5448 = vmatpush2.bf16.msra.mxu0 0
    %5449 = vmatprep.subr.bf16.mxu0 0
    %5450 = vmatpush2.bf16.msra.mxu0 0
    %5451 = vmatprep.subr.bf16.mxu0 0
    %5452 = vmatpush2.bf16.msra.mxu0 0
    %5453 = vmatprep.subr.bf16.mxu0 0
    %5454 = vmatpush2.bf16.msra.mxu0 0
    %5455 = vmatprep.mubr.bf16.mxu0 0
    %5456 = vmatmul.mubr.bf16.gmra.mxu0 %v5418
    %v5457 = vpop.f32.mrf.mxu0
    %v5458 = vadd.f32 %v5281, %v5457
    %v5459 = vpop.f32.mrf.mxu0
    %v5460 = vpop.f32.mrf.mxu0
    %v5461 = vadd.f32 %v5284, %v5460
    %v5462 = vpop.f32.mrf.mxu0
    %5463 = vmatprep.mubr.bf16.mxu0 0
    %5464 = vmatmul.mubr.bf16.gmra.mxu0 %v5421
    %v5465 = vpop.f32.mrf.mxu0
    %v5466 = vadd.f32 %v5289, %v5465
    %v5467 = vpop.f32.mrf.mxu0
    %v5468 = vpop.f32.mrf.mxu0
    %v5469 = vadd.f32 %v5292, %v5468
    %v5470 = vpop.f32.mrf.mxu0
    %5471 = vdwg.mxu0
    %v5472 = vcombine.low %v4726, %v4734
    %v5473 = vcombine.low %v4719, %v4733
    %v5474 = vcombine.low %v4737, %v4761
    %v5475 = vcombine.low %v4783, %v4785
    %v5477 = vunpack.c.l.s4 1966171168
    %v5478 = vunpack.c.0.s8 %v5477
    %v5479 = vlaneseq
    %v5480 = vshrl.u32 %v5479, 7
    %v5481 = vsub.s32 %v5478, %v5480
    %v5482 = vrot.slane %v5472, %v5481
    %v5484 = vunpack.c.l.s4 1966171168
    %v5485 = vunpack.c.0.s8 %v5484
    %v5486 = vlaneseq
    %v5487 = vshrl.u32 %v5486, 7
    %v5488 = vsub.s32 %v5485, %v5487
    %v5489 = vrot.slane %v5473, %v5488
    %v5491 = vunpack.c.l.s4 1966171168
    %v5492 = vunpack.c.0.s8 %v5491
    %v5493 = vlaneseq
    %v5494 = vshrl.u32 %v5493, 7
    %v5495 = vsub.s32 %v5492, %v5494
    %v5496 = vrot.slane %v5474, %v5495
    %v5498 = vunpack.c.l.s4 1966171168
    %v5499 = vunpack.c.0.s8 %v5498
    %v5500 = vlaneseq
    %v5501 = vshrl.u32 %v5500, 7
    %v5502 = vsub.s32 %v5499, %v5501
    %v5503 = vrot.slane %v5475, %v5502
    %v5504 = vcombine.low %v5482, %v5489
    %v5505 = vcombine.low %v5496, %v5503
    %v5507 = vunpack.c.l.s4 1966171168
    %v5508 = vunpack.c.0.s8 %v5507
    %v5509 = vlaneseq
    %v5510 = vshrl.u32 %v5509, 7
    %v5511 = vsub.s32 %v5508, %v5510
    %v5512 = vrot.slane %v5504, %v5511
    %v5514 = vunpack.c.l.s4 1966171168
    %v5515 = vunpack.c.0.s8 %v5514
    %v5516 = vlaneseq
    %v5517 = vshrl.u32 %v5516, 7
    %v5518 = vsub.s32 %v5515, %v5517
    %v5519 = vrot.slane %v5505, %v5518
    %v5520 = vcombine.low %v5512, %v5519
    %v5521 = vcombine.low %v4834, %v4817
    %v5522 = vcombine.low %v4833, %v4835
    %v5523 = vcombine.low %v4873, %v4881
    %v5524 = vcombine.low %v4866, %v4880
    %v5526 = vunpack.c.l.s4 1966171168
    %v5527 = vunpack.c.0.s8 %v5526
    %v5528 = vlaneseq
    %v5529 = vshrl.u32 %v5528, 7
    %v5530 = vsub.s32 %v5527, %v5529
    %v5531 = vrot.slane %v5521, %v5530
    %v5533 = vunpack.c.l.s4 1966171168
    %v5534 = vunpack.c.0.s8 %v5533
    %v5535 = vlaneseq
    %v5536 = vshrl.u32 %v5535, 7
    %v5537 = vsub.s32 %v5534, %v5536
    %v5538 = vrot.slane %v5522, %v5537
    %v5540 = vunpack.c.l.s4 1966171168
    %v5541 = vunpack.c.0.s8 %v5540
    %v5542 = vlaneseq
    %v5543 = vshrl.u32 %v5542, 7
    %v5544 = vsub.s32 %v5541, %v5543
    %v5545 = vrot.slane %v5523, %v5544
    %v5547 = vunpack.c.l.s4 1966171168
    %v5548 = vunpack.c.0.s8 %v5547
    %v5549 = vlaneseq
    %v5550 = vshrl.u32 %v5549, 7
    %v5551 = vsub.s32 %v5548, %v5550
    %v5552 = vrot.slane %v5524, %v5551
    %v5553 = vcombine.low %v5531, %v5538
    %v5554 = vcombine.low %v5545, %v5552
    %v5556 = vunpack.c.l.s4 1966171168
    %v5557 = vunpack.c.0.s8 %v5556
    %v5558 = vlaneseq
    %v5559 = vshrl.u32 %v5558, 7
    %v5560 = vsub.s32 %v5557, %v5559
    %v5561 = vrot.slane %v5553, %v5560
    %v5563 = vunpack.c.l.s4 1966171168
    %v5564 = vunpack.c.0.s8 %v5563
    %v5565 = vlaneseq
    %v5566 = vshrl.u32 %v5565, 7
    %v5567 = vsub.s32 %v5564, %v5566
    %v5568 = vrot.slane %v5554, %v5567
    %v5569 = vcombine.low %v5561, %v5568
    %v5578 = vunpack.c.l.b16 %v4925
    %v5579 = vunpack.c.l.b16 %v4926
    %v5580 = vunpack.c.l.b16 %v4927
    %v5581 = vunpack.c.l.b16 %v4928
    %v5582 = vunpack.c.l.b16 %v4929
    %v5583 = vunpack.c.l.b16 %v4930
    %v5584 = vunpack.c.l.b16 %v4931
    %v5585 = vunpack.c.l.b16 %v4932
    %v5586 = vpack.c.b16 %v5579, %v5578
    %v5587 = vpack.c.b16 %v5581, %v5580
    %v5588 = vpack.c.b16 %v5583, %v5582
    %v5589 = vpack.c.b16 %v5585, %v5584
    %v5595 = vsel %vm5239, %v5520, 0
    %v5598 = vsel %vm5239, %v5569, 0
    %5600 = vmatprep.subr.bf16.mxu0 0
    %5601 = vmatpush1.bf16.msra.mxu0 0
    %5602 = vmatprep.subr.bf16.mxu0 0
    %5603 = vmatpush1.bf16.msra.mxu0 0
    %5604 = vmatprep.subr.bf16.mxu0 0
    %5605 = vmatpush1.bf16.msra.mxu0 0
    %5606 = vmatprep.subr.bf16.mxu0 0
    %5607 = vmatpush1.bf16.msra.mxu0 0
    %5608 = vmatprep.subr.bf16.mxu0 0
    %5609 = vmatpush1.bf16.msra.mxu0 %v5589
    %5610 = vmatprep.subr.bf16.mxu0 0
    %5611 = vmatpush1.bf16.msra.mxu0 %v5588
    %5612 = vmatprep.subr.bf16.mxu0 0
    %5613 = vmatpush1.bf16.msra.mxu0 %v5587
    %5614 = vmatprep.subr.bf16.mxu0 0
    %5615 = vmatpush1.bf16.msra.mxu0 %v5586
    %5616 = vmatprep.subr.bf16.mxu0 0
    %5617 = vmatpush2.bf16.msra.mxu0 0
    %5618 = vmatprep.subr.bf16.mxu0 0
    %5619 = vmatpush2.bf16.msra.mxu0 0
    %5620 = vmatprep.subr.bf16.mxu0 0
    %5621 = vmatpush2.bf16.msra.mxu0 0
    %5622 = vmatprep.subr.bf16.mxu0 0
    %5623 = vmatpush2.bf16.msra.mxu0 0
    %5624 = vmatprep.subr.bf16.mxu0 0
    %5625 = vmatpush2.bf16.msra.mxu0 0
    %5626 = vmatprep.subr.bf16.mxu0 0
    %5627 = vmatpush2.bf16.msra.mxu0 0
    %5628 = vmatprep.subr.bf16.mxu0 0
    %5629 = vmatpush2.bf16.msra.mxu0 0
    %5630 = vmatprep.subr.bf16.mxu0 0
    %5631 = vmatpush2.bf16.msra.mxu0 0
    %5632 = vmatprep.mubr.bf16.mxu0 0
    %5633 = vmatmul.mubr.bf16.gmra.mxu0 %v5595
    %v5634 = vpop.f32.mrf.mxu0
    %v5635 = vadd.f32 0.0, %v5634
    %v5636 = vpop.f32.mrf.mxu0
    %v5637 = vpop.f32.mrf.mxu0
    %v5638 = vadd.f32 0.0, %v5637
    %v5639 = vpop.f32.mrf.mxu0
    %5640 = vmatprep.mubr.bf16.mxu0 0
    %5641 = vmatmul.mubr.bf16.gmra.mxu0 %v5598
    %v5642 = vpop.f32.mrf.mxu0
    %v5643 = vadd.f32 0.0, %v5642
    %v5644 = vpop.f32.mrf.mxu0
    %v5645 = vpop.f32.mrf.mxu0
    %v5646 = vadd.f32 0.0, %v5645
    %v5647 = vpop.f32.mrf.mxu0
    %5648 = vdwg.mxu0
    %v5649 = vadd.f32 %v5458, %v5635
    %v5650 = vadd.f32 %v5461, %v5638
    %v5651 = vadd.f32 %v5466, %v5643
    %v5652 = vadd.f32 %v5469, %v5646
    %v5653 = vcombine.low %v4768, %v4782
    %v5655 = vunpack.c.l.s4 1966171168
    %v5656 = vunpack.c.0.s8 %v5655
    %v5657 = vlaneseq
    %v5658 = vshrl.u32 %v5657, 7
    %v5659 = vsub.s32 %v5656, %v5658
    %v5660 = vrot.slane %v5653, %v5659
    %v5661 = vcombine.low %v5312, %v5319
    %v5662 = vcombine.low %v5326, %v5660
    %v5664 = vunpack.c.l.s4 1966171168
    %v5665 = vunpack.c.0.s8 %v5664
    %v5666 = vlaneseq
    %v5667 = vshrl.u32 %v5666, 7
    %v5668 = vsub.s32 %v5665, %v5667
    %v5669 = vrot.slane %v5661, %v5668
    %v5671 = vunpack.c.l.s4 1966171168
    %v5672 = vunpack.c.0.s8 %v5671
    %v5673 = vlaneseq
    %v5674 = vshrl.u32 %v5673, 7
    %v5675 = vsub.s32 %v5672, %v5674
    %v5676 = vrot.slane %v5662, %v5675
    %v5677 = vcombine.low %v5669, %v5676
    %v5678 = vcombine.low %v4882, %v4884
    %v5680 = vunpack.c.l.s4 1966171168
    %v5681 = vunpack.c.0.s8 %v5680
    %v5682 = vlaneseq
    %v5683 = vshrl.u32 %v5682, 7
    %v5684 = vsub.s32 %v5681, %v5683
    %v5685 = vrot.slane %v5678, %v5684
    %v5686 = vcombine.low %v5361, %v5368
    %v5687 = vcombine.low %v5375, %v5685
    %v5689 = vunpack.c.l.s4 1966171168
    %v5690 = vunpack.c.0.s8 %v5689
    %v5691 = vlaneseq
    %v5692 = vshrl.u32 %v5691, 7
    %v5693 = vsub.s32 %v5690, %v5692
    %v5694 = vrot.slane %v5686, %v5693
    %v5696 = vunpack.c.l.s4 1966171168
    %v5697 = vunpack.c.0.s8 %v5696
    %v5698 = vlaneseq
    %v5699 = vshrl.u32 %v5698, 7
    %v5700 = vsub.s32 %v5697, %v5699
    %v5701 = vrot.slane %v5687, %v5700
    %v5702 = vcombine.low %v5694, %v5701
    %v5711 = vunpack.c.l.b16 %v4933
    %v5712 = vunpack.c.l.b16 %v4934
    %v5713 = vunpack.c.l.b16 %v4935
    %v5714 = vunpack.c.l.b16 %v4936
    %v5715 = vunpack.c.l.b16 %v4937
    %v5716 = vunpack.c.l.b16 %v4938
    %v5717 = vunpack.c.l.b16 %v4939
    %v5718 = vunpack.c.l.b16 %v4940
    %v5719 = vpack.c.b16 %v5712, %v5711
    %v5720 = vpack.c.b16 %v5714, %v5713
    %v5721 = vpack.c.b16 %v5716, %v5715
    %v5722 = vpack.c.b16 %v5718, %v5717
    %v5728 = vsel %vm5239, %v5677, 0
    %v5731 = vsel %vm5239, %v5702, 0
    %5733 = vmatprep.subr.bf16.mxu0 0
    %5734 = vmatpush1.bf16.msra.mxu0 0
    %5735 = vmatprep.subr.bf16.mxu0 0
    %5736 = vmatpush1.bf16.msra.mxu0 0
    %5737 = vmatprep.subr.bf16.mxu0 0
    %5738 = vmatpush1.bf16.msra.mxu0 0
    %5739 = vmatprep.subr.bf16.mxu0 0
    %5740 = vmatpush1.bf16.msra.mxu0 0
    %5741 = vmatprep.subr.bf16.mxu0 0
    %5742 = vmatpush1.bf16.msra.mxu0 %v5722
    %5743 = vmatprep.subr.bf16.mxu0 0
    %5744 = vmatpush1.bf16.msra.mxu0 %v5721
    %5745 = vmatprep.subr.bf16.mxu0 0
    %5746 = vmatpush1.bf16.msra.mxu0 %v5720
    %5747 = vmatprep.subr.bf16.mxu0 0
    %5748 = vmatpush1.bf16.msra.mxu0 %v5719
    %5749 = vmatprep.subr.bf16.mxu0 0
    %5750 = vmatpush2.bf16.msra.mxu0 0
    %5751 = vmatprep.subr.bf16.mxu0 0
    %5752 = vmatpush2.bf16.msra.mxu0 0
    %5753 = vmatprep.subr.bf16.mxu0 0
    %5754 = vmatpush2.bf16.msra.mxu0 0
    %5755 = vmatprep.subr.bf16.mxu0 0
    %5756 = vmatpush2.bf16.msra.mxu0 0
    %5757 = vmatprep.subr.bf16.mxu0 0
    %5758 = vmatpush2.bf16.msra.mxu0 0
    %5759 = vmatprep.subr.bf16.mxu0 0
    %5760 = vmatpush2.bf16.msra.mxu0 0
    %5761 = vmatprep.subr.bf16.mxu0 0
    %5762 = vmatpush2.bf16.msra.mxu0 0
    %5763 = vmatprep.subr.bf16.mxu0 0
    %5764 = vmatpush2.bf16.msra.mxu0 0
    %5765 = vmatprep.mubr.bf16.mxu0 0
    %5766 = vmatmul.mubr.bf16.gmra.mxu0 %v5728
    %v5767 = vpop.f32.mrf.mxu0
    %v5768 = vadd.f32 0.0, %v5767
    %v5769 = vpop.f32.mrf.mxu0
    %v5770 = vpop.f32.mrf.mxu0
    %v5771 = vadd.f32 0.0, %v5770
    %v5772 = vpop.f32.mrf.mxu0
    %5773 = vmatprep.mubr.bf16.mxu0 0
    %5774 = vmatmul.mubr.bf16.gmra.mxu0 %v5731
    %v5775 = vpop.f32.mrf.mxu0
    %v5776 = vadd.f32 0.0, %v5775
    %v5777 = vpop.f32.mrf.mxu0
    %v5778 = vpop.f32.mrf.mxu0
    %v5779 = vadd.f32 0.0, %v5778
    %v5780 = vpop.f32.mrf.mxu0
    %5781 = vdwg.mxu0
    %v5782 = vadd.f32 %v5649, %v5768
    %v5783 = vadd.f32 %v5650, %v5771
    %v5784 = vadd.f32 %v5651, %v5776
    %v5785 = vadd.f32 %v5652, %v5779
    %v5787 = vshrl.u32 %v4768, 16
    %v5789 = vrot.slane %v5787, 7
    %v5790 = vrot.slane %v5789, 1
    %v5792 = vshll.u32 %v4782, 16
    %v5794 = vsel %vm1606, %v5790, %v5792
    %v5795 = vshrl.u32 %v4782, 16
    %v5797 = vrot.slane %v5795, 7
    %v5798 = vrot.slane %v5797, 1
    %v5800 = vshll.u32 %v4784, 16
    %v5802 = vsel %vm1606, %v5798, %v5800
    %v5804 = vshrl.u32 %v4882, 16
    %v5806 = vrot.slane %v5804, 7
    %v5807 = vrot.slane %v5806, 1
    %v5809 = vshll.u32 %v4884, 16
    %v5811 = vsel %vm1606, %v5807, %v5809
    %v5812 = vshrl.u32 %v4884, 16
    %v5814 = vrot.slane %v5812, 7
    %v5815 = vrot.slane %v5814, 1
    %v5817 = vshll.u32 %v4899, 16
    %v5819 = vsel %vm1606, %v5815, %v5817
    %v5820 = vcombine.low %v5794, %v5802
    %v5822 = vunpack.c.l.s4 1966171168
    %v5823 = vunpack.c.0.s8 %v5822
    %v5824 = vlaneseq
    %v5825 = vshrl.u32 %v5824, 7
    %v5826 = vsub.s32 %v5823, %v5825
    %v5827 = vrot.slane %v5820, %v5826
    %v5828 = vcombine.low %v5134, %v5141
    %v5829 = vcombine.low %v5148, %v5827
    %v5831 = vunpack.c.l.s4 1966171168
    %v5832 = vunpack.c.0.s8 %v5831
    %v5833 = vlaneseq
    %v5834 = vshrl.u32 %v5833, 7
    %v5835 = vsub.s32 %v5832, %v5834
    %v5836 = vrot.slane %v5828, %v5835
    %v5838 = vunpack.c.l.s4 1966171168
    %v5839 = vunpack.c.0.s8 %v5838
    %v5840 = vlaneseq
    %v5841 = vshrl.u32 %v5840, 7
    %v5842 = vsub.s32 %v5839, %v5841
    %v5843 = vrot.slane %v5829, %v5842
    %v5844 = vcombine.low %v5836, %v5843
    %v5845 = vcombine.low %v5811, %v5819
    %v5847 = vunpack.c.l.s4 1966171168
    %v5848 = vunpack.c.0.s8 %v5847
    %v5849 = vlaneseq
    %v5850 = vshrl.u32 %v5849, 7
    %v5851 = vsub.s32 %v5848, %v5850
    %v5852 = vrot.slane %v5845, %v5851
    %v5853 = vcombine.low %v5183, %v5190
    %v5854 = vcombine.low %v5197, %v5852
    %v5856 = vunpack.c.l.s4 1966171168
    %v5857 = vunpack.c.0.s8 %v5856
    %v5858 = vlaneseq
    %v5859 = vshrl.u32 %v5858, 7
    %v5860 = vsub.s32 %v5857, %v5859
    %v5861 = vrot.slane %v5853, %v5860
    %v5863 = vunpack.c.l.s4 1966171168
    %v5864 = vunpack.c.0.s8 %v5863
    %v5865 = vlaneseq
    %v5866 = vshrl.u32 %v5865, 7
    %v5867 = vsub.s32 %v5864, %v5866
    %v5868 = vrot.slane %v5854, %v5867
    %v5869 = vcombine.low %v5861, %v5868
    %v5878 = vunpack.c.l.b16 %v4941
    %v5879 = vunpack.c.l.b16 %v4942
    %v5880 = vunpack.c.l.b16 %v4943
    %v5881 = vunpack.c.l.b16 %v4944
    %v5882 = vunpack.c.l.b16 %v4945
    %v5883 = vunpack.c.l.b16 %v4946
    %v5884 = vunpack.c.l.b16 %v4947
    %v5885 = vunpack.c.l.b16 %v4948
    %v5886 = vpack.c.b16 %v5879, %v5878
    %v5887 = vpack.c.b16 %v5881, %v5880
    %v5888 = vpack.c.b16 %v5883, %v5882
    %v5889 = vpack.c.b16 %v5885, %v5884
    %v5895 = vsel %vm5239, %v5844, 0
    %v5898 = vsel %vm5239, %v5869, 0
    %5900 = vmatprep.subr.bf16.mxu0 0
    %5901 = vmatpush1.bf16.msra.mxu0 0
    %5902 = vmatprep.subr.bf16.mxu0 0
    %5903 = vmatpush1.bf16.msra.mxu0 0
    %5904 = vmatprep.subr.bf16.mxu0 0
    %5905 = vmatpush1.bf16.msra.mxu0 0
    %5906 = vmatprep.subr.bf16.mxu0 0
    %5907 = vmatpush1.bf16.msra.mxu0 0
    %5908 = vmatprep.subr.bf16.mxu0 0
    %5909 = vmatpush1.bf16.msra.mxu0 %v5889
    %5910 = vmatprep.subr.bf16.mxu0 0
    %5911 = vmatpush1.bf16.msra.mxu0 %v5888
    %5912 = vmatprep.subr.bf16.mxu0 0
    %5913 = vmatpush1.bf16.msra.mxu0 %v5887
    %5914 = vmatprep.subr.bf16.mxu0 0
    %5915 = vmatpush1.bf16.msra.mxu0 %v5886
    %5916 = vmatprep.subr.bf16.mxu0 0
    %5917 = vmatpush2.bf16.msra.mxu0 0
    %5918 = vmatprep.subr.bf16.mxu0 0
    %5919 = vmatpush2.bf16.msra.mxu0 0
    %5920 = vmatprep.subr.bf16.mxu0 0
    %5921 = vmatpush2.bf16.msra.mxu0 0
    %5922 = vmatprep.subr.bf16.mxu0 0
    %5923 = vmatpush2.bf16.msra.mxu0 0
    %5924 = vmatprep.subr.bf16.mxu0 0
    %5925 = vmatpush2.bf16.msra.mxu0 0
    %5926 = vmatprep.subr.bf16.mxu0 0
    %5927 = vmatpush2.bf16.msra.mxu0 0
    %5928 = vmatprep.subr.bf16.mxu0 0
    %5929 = vmatpush2.bf16.msra.mxu0 0
    %5930 = vmatprep.subr.bf16.mxu0 0
    %5931 = vmatpush2.bf16.msra.mxu0 0
    %5932 = vmatprep.mubr.bf16.mxu0 0
    %5933 = vmatmul.mubr.bf16.gmra.mxu0 %v5895
    %v5934 = vpop.f32.mrf.mxu0
    %v5935 = vadd.f32 0.0, %v5934
    %v5936 = vpop.f32.mrf.mxu0
    %v5937 = vpop.f32.mrf.mxu0
    %v5938 = vadd.f32 0.0, %v5937
    %v5939 = vpop.f32.mrf.mxu0
    %5940 = vmatprep.mubr.bf16.mxu0 0
    %5941 = vmatmul.mubr.bf16.gmra.mxu0 %v5898
    %v5942 = vpop.f32.mrf.mxu0
    %v5943 = vadd.f32 0.0, %v5942
    %v5944 = vpop.f32.mrf.mxu0
    %v5945 = vpop.f32.mrf.mxu0
    %v5946 = vadd.f32 0.0, %v5945
    %v5947 = vpop.f32.mrf.mxu0
    %5948 = vdwg.mxu0
    %v5949 = vadd.f32 %v5782, %v5935
    %v5950 = vadd.f32 %v5783, %v5938
    %v5951 = vadd.f32 %v5784, %v5943
    %v5952 = vadd.f32 %v5785, %v5946
    %v5953 = vcombine.low %v4782, %v4784
    %v5955 = vunpack.c.l.s4 1966171168
    %v5956 = vunpack.c.0.s8 %v5955
    %v5957 = vlaneseq
    %v5958 = vshrl.u32 %v5957, 7
    %v5959 = vsub.s32 %v5956, %v5958
    %v5960 = vrot.slane %v5953, %v5959
    %v5961 = vcombine.low %v5489, %v5496
    %v5962 = vcombine.low %v5503, %v5960
    %v5964 = vunpack.c.l.s4 1966171168
    %v5965 = vunpack.c.0.s8 %v5964
    %v5966 = vlaneseq
    %v5967 = vshrl.u32 %v5966, 7
    %v5968 = vsub.s32 %v5965, %v5967
    %v5969 = vrot.slane %v5961, %v5968
    %v5971 = vunpack.c.l.s4 1966171168
    %v5972 = vunpack.c.0.s8 %v5971
    %v5973 = vlaneseq
    %v5974 = vshrl.u32 %v5973, 7
    %v5975 = vsub.s32 %v5972, %v5974
    %v5976 = vrot.slane %v5962, %v5975
    %v5977 = vcombine.low %v5969, %v5976
    %v5978 = vcombine.low %v4884, %v4899
    %v5980 = vunpack.c.l.s4 1966171168
    %v5981 = vunpack.c.0.s8 %v5980
    %v5982 = vlaneseq
    %v5983 = vshrl.u32 %v5982, 7
    %v5984 = vsub.s32 %v5981, %v5983
    %v5985 = vrot.slane %v5978, %v5984
    %v5986 = vcombine.low %v5538, %v5545
    %v5987 = vcombine.low %v5552, %v5985
    %v5989 = vunpack.c.l.s4 1966171168
    %v5990 = vunpack.c.0.s8 %v5989
    %v5991 = vlaneseq
    %v5992 = vshrl.u32 %v5991, 7
    %v5993 = vsub.s32 %v5990, %v5992
    %v5994 = vrot.slane %v5986, %v5993
    %v5996 = vunpack.c.l.s4 1966171168
    %v5997 = vunpack.c.0.s8 %v5996
    %v5998 = vlaneseq
    %v5999 = vshrl.u32 %v5998, 7
    %v6000 = vsub.s32 %v5997, %v5999
    %v6001 = vrot.slane %v5987, %v6000
    %v6002 = vcombine.low %v5994, %v6001
    %v6011 = vunpack.c.l.b16 %v4949
    %v6012 = vunpack.c.l.b16 %v4950
    %v6013 = vunpack.c.l.b16 %v4951
    %v6014 = vunpack.c.l.b16 %v4952
    %v6015 = vunpack.c.l.b16 %v4953
    %v6016 = vunpack.c.l.b16 %v4954
    %v6017 = vunpack.c.l.b16 %v4955
    %v6018 = vunpack.c.l.b16 %v4956
    %v6019 = vpack.c.b16 %v6012, %v6011
    %v6020 = vpack.c.b16 %v6014, %v6013
    %v6021 = vpack.c.b16 %v6016, %v6015
    %v6022 = vpack.c.b16 %v6018, %v6017
    %v6028 = vsel %vm5239, %v5977, 0
    %v6031 = vsel %vm5239, %v6002, 0
    %6033 = vmatprep.subr.bf16.mxu0 0
    %6034 = vmatpush1.bf16.msra.mxu0 0
    %6035 = vmatprep.subr.bf16.mxu0 0
    %6036 = vmatpush1.bf16.msra.mxu0 0
    %6037 = vmatprep.subr.bf16.mxu0 0
    %6038 = vmatpush1.bf16.msra.mxu0 0
    %6039 = vmatprep.subr.bf16.mxu0 0
    %6040 = vmatpush1.bf16.msra.mxu0 0
    %6041 = vmatprep.subr.bf16.mxu0 0
    %6042 = vmatpush1.bf16.msra.mxu0 %v6022
    %6043 = vmatprep.subr.bf16.mxu0 0
    %6044 = vmatpush1.bf16.msra.mxu0 %v6021
    %6045 = vmatprep.subr.bf16.mxu0 0
    %6046 = vmatpush1.bf16.msra.mxu0 %v6020
    %6047 = vmatprep.subr.bf16.mxu0 0
    %6048 = vmatpush1.bf16.msra.mxu0 %v6019
    %6049 = vmatprep.subr.bf16.mxu0 0
    %6050 = vmatpush2.bf16.msra.mxu0 0
    %6051 = vmatprep.subr.bf16.mxu0 0
    %6052 = vmatpush2.bf16.msra.mxu0 0
    %6053 = vmatprep.subr.bf16.mxu0 0
    %6054 = vmatpush2.bf16.msra.mxu0 0
    %6055 = vmatprep.subr.bf16.mxu0 0
    %6056 = vmatpush2.bf16.msra.mxu0 0
    %6057 = vmatprep.subr.bf16.mxu0 0
    %6058 = vmatpush2.bf16.msra.mxu0 0
    %6059 = vmatprep.subr.bf16.mxu0 0
    %6060 = vmatpush2.bf16.msra.mxu0 0
    %6061 = vmatprep.subr.bf16.mxu0 0
    %6062 = vmatpush2.bf16.msra.mxu0 0
    %6063 = vmatprep.subr.bf16.mxu0 0
    %6064 = vmatpush2.bf16.msra.mxu0 0
    %6065 = vmatprep.mubr.bf16.mxu0 0
    %6066 = vmatmul.mubr.bf16.gmra.mxu0 %v6028
    %v6067 = vpop.f32.mrf.mxu0
    %v6068 = vadd.f32 0.0, %v6067
    %v6069 = vpop.f32.mrf.mxu0
    %v6070 = vpop.f32.mrf.mxu0
    %v6071 = vadd.f32 0.0, %v6070
    %v6072 = vpop.f32.mrf.mxu0
    %6073 = vmatprep.mubr.bf16.mxu0 0
    %6074 = vmatmul.mubr.bf16.gmra.mxu0 %v6031
    %v6075 = vpop.f32.mrf.mxu0
    %v6076 = vadd.f32 0.0, %v6075
    %v6077 = vpop.f32.mrf.mxu0
    %v6078 = vpop.f32.mrf.mxu0
    %v6079 = vadd.f32 0.0, %v6078
    %v6080 = vpop.f32.mrf.mxu0
    %6081 = vdwg.mxu0
    %v6082 = vadd.f32 %v5949, %v6068
    %v6083 = vadd.f32 %v5950, %v6071
    %v6084 = vadd.f32 %v5951, %v6076
    %v6085 = vadd.f32 %v5952, %v6079
    %v6086 = vcombine.low %v4786, %v4810
    %v6088 = vunpack.c.l.s4 1966171168
    %v6089 = vunpack.c.0.s8 %v6088
    %v6090 = vlaneseq
    %v6091 = vshrl.u32 %v6090, 7
    %v6092 = vsub.s32 %v6089, %v6091
    %v6093 = vrot.slane %v6086, %v6092
    %v6094 = vcombine.low %v5660, %v6093
    %v6096 = vunpack.c.l.s4 1966171168
    %v6097 = vunpack.c.0.s8 %v6096
    %v6098 = vlaneseq
    %v6099 = vshrl.u32 %v6098, 7
    %v6100 = vsub.s32 %v6097, %v6099
    %v6101 = vrot.slane %v6094, %v6100
    %v6102 = vcombine.low %v5342, %v6101
    %v6103 = vcombine.low %v4906, %v4907
    %v6105 = vunpack.c.l.s4 1966171168
    %v6106 = vunpack.c.0.s8 %v6105
    %v6107 = vlaneseq
    %v6108 = vshrl.u32 %v6107, 7
    %v6109 = vsub.s32 %v6106, %v6108
    %v6110 = vrot.slane %v6103, %v6109
    %v6111 = vcombine.low %v5685, %v6110
    %v6113 = vunpack.c.l.s4 1966171168
    %v6114 = vunpack.c.0.s8 %v6113
    %v6115 = vlaneseq
    %v6116 = vshrl.u32 %v6115, 7
    %v6117 = vsub.s32 %v6114, %v6116
    %v6118 = vrot.slane %v6111, %v6117
    %v6119 = vcombine.low %v5391, %v6118
    %v6128 = vunpack.c.l.b16 %v4957
    %v6129 = vunpack.c.l.b16 %v4958
    %v6130 = vunpack.c.l.b16 %v4959
    %v6131 = vunpack.c.l.b16 %v4960
    %v6132 = vunpack.c.l.b16 %v4961
    %v6133 = vunpack.c.l.b16 %v4962
    %v6134 = vunpack.c.l.b16 %v4963
    %v6135 = vunpack.c.l.b16 %v4964
    %v6136 = vpack.c.b16 %v6129, %v6128
    %v6137 = vpack.c.b16 %v6131, %v6130
    %v6138 = vpack.c.b16 %v6133, %v6132
    %v6139 = vpack.c.b16 %v6135, %v6134
    %v6145 = vsel %vm5239, %v6102, 0
    %v6148 = vsel %vm5239, %v6119, 0
    %6150 = vmatprep.subr.bf16.mxu0 0
    %6151 = vmatpush1.bf16.msra.mxu0 0
    %6152 = vmatprep.subr.bf16.mxu0 0
    %6153 = vmatpush1.bf16.msra.mxu0 0
    %6154 = vmatprep.subr.bf16.mxu0 0
    %6155 = vmatpush1.bf16.msra.mxu0 0
    %6156 = vmatprep.subr.bf16.mxu0 0
    %6157 = vmatpush1.bf16.msra.mxu0 0
    %6158 = vmatprep.subr.bf16.mxu0 0
    %6159 = vmatpush1.bf16.msra.mxu0 %v6139
    %6160 = vmatprep.subr.bf16.mxu0 0
    %6161 = vmatpush1.bf16.msra.mxu0 %v6138
    %6162 = vmatprep.subr.bf16.mxu0 0
    %6163 = vmatpush1.bf16.msra.mxu0 %v6137
    %6164 = vmatprep.subr.bf16.mxu0 0
    %6165 = vmatpush1.bf16.msra.mxu0 %v6136
    %6166 = vmatprep.subr.bf16.mxu0 0
    %6167 = vmatpush2.bf16.msra.mxu0 0
    %6168 = vmatprep.subr.bf16.mxu0 0
    %6169 = vmatpush2.bf16.msra.mxu0 0
    %6170 = vmatprep.subr.bf16.mxu0 0
    %6171 = vmatpush2.bf16.msra.mxu0 0
    %6172 = vmatprep.subr.bf16.mxu0 0
    %6173 = vmatpush2.bf16.msra.mxu0 0
    %6174 = vmatprep.subr.bf16.mxu0 0
    %6175 = vmatpush2.bf16.msra.mxu0 0
    %6176 = vmatprep.subr.bf16.mxu0 0
    %6177 = vmatpush2.bf16.msra.mxu0 0
    %6178 = vmatprep.subr.bf16.mxu0 0
    %6179 = vmatpush2.bf16.msra.mxu0 0
    %6180 = vmatprep.subr.bf16.mxu0 0
    %6181 = vmatpush2.bf16.msra.mxu0 0
    %6182 = vmatprep.mubr.bf16.mxu0 0
    %6183 = vmatmul.mubr.bf16.gmra.mxu0 %v6145
    %v6184 = vpop.f32.mrf.mxu0
    %v6185 = vadd.f32 0.0, %v6184
    %v6186 = vpop.f32.mrf.mxu0
    %v6187 = vpop.f32.mrf.mxu0
    %v6188 = vadd.f32 0.0, %v6187
    %v6189 = vpop.f32.mrf.mxu0
    %6190 = vmatprep.mubr.bf16.mxu0 0
    %6191 = vmatmul.mubr.bf16.gmra.mxu0 %v6148
    %v6192 = vpop.f32.mrf.mxu0
    %v6193 = vadd.f32 0.0, %v6192
    %v6194 = vpop.f32.mrf.mxu0
    %v6195 = vpop.f32.mrf.mxu0
    %v6196 = vadd.f32 0.0, %v6195
    %v6197 = vpop.f32.mrf.mxu0
    %6198 = vdwg.mxu0
    %v6199 = vadd.f32 %v6082, %v6185
    %v6200 = vadd.f32 %v6083, %v6188
    %v6201 = vadd.f32 %v6084, %v6193
    %v6202 = vadd.f32 %v6085, %v6196
    %v6204 = vshrl.u32 %v4786, 16
    %v6206 = vrot.slane %v6204, 7
    %v6207 = vrot.slane %v6206, 1
    %v6209 = vshll.u32 %v4810, 16
    %v6211 = vsel %vm1606, %v6207, %v6209
    %v6212 = vshrl.u32 %v4810, 16
    %v6214 = vrot.slane %v6212, 7
    %v6215 = vrot.slane %v6214, 1
    %v6217 = vshll.u32 %v4824, 16
    %v6219 = vsel %vm1606, %v6215, %v6217
    %v6221 = vshrl.u32 %v4906, 16
    %v6223 = vrot.slane %v6221, 7
    %v6224 = vrot.slane %v6223, 1
    %v6226 = vshll.u32 %v4907, 16
    %v6228 = vsel %vm1606, %v6224, %v6226
    %v6229 = vshrl.u32 %v4907, 16
    %v6231 = vrot.slane %v6229, 7
    %v6232 = vrot.slane %v6231, 1
    %v6234 = vshll.u32 %v4908, 16
    %v6236 = vsel %vm1606, %v6232, %v6234
    %v6237 = vcombine.low %v6211, %v6219
    %v6239 = vunpack.c.l.s4 1966171168
    %v6240 = vunpack.c.0.s8 %v6239
    %v6241 = vlaneseq
    %v6242 = vshrl.u32 %v6241, 7
    %v6243 = vsub.s32 %v6240, %v6242
    %v6244 = vrot.slane %v6237, %v6243
    %v6245 = vcombine.low %v5827, %v6244
    %v6247 = vunpack.c.l.s4 1966171168
    %v6248 = vunpack.c.0.s8 %v6247
    %v6249 = vlaneseq
    %v6250 = vshrl.u32 %v6249, 7
    %v6251 = vsub.s32 %v6248, %v6250
    %v6252 = vrot.slane %v6245, %v6251
    %v6253 = vcombine.low %v5164, %v6252
    %v6254 = vcombine.low %v6228, %v6236
    %v6256 = vunpack.c.l.s4 1966171168
    %v6257 = vunpack.c.0.s8 %v6256
    %v6258 = vlaneseq
    %v6259 = vshrl.u32 %v6258, 7
    %v6260 = vsub.s32 %v6257, %v6259
    %v6261 = vrot.slane %v6254, %v6260
    %v6262 = vcombine.low %v5852, %v6261
    %v6264 = vunpack.c.l.s4 1966171168
    %v6265 = vunpack.c.0.s8 %v6264
    %v6266 = vlaneseq
    %v6267 = vshrl.u32 %v6266, 7
    %v6268 = vsub.s32 %v6265, %v6267
    %v6269 = vrot.slane %v6262, %v6268
    %v6270 = vcombine.low %v5213, %v6269
    %v6279 = vunpack.c.l.b16 %v4965
    %v6280 = vunpack.c.l.b16 %v4966
    %v6281 = vunpack.c.l.b16 %v4967
    %v6282 = vunpack.c.l.b16 %v4968
    %v6283 = vunpack.c.l.b16 %v4969
    %v6284 = vunpack.c.l.b16 %v4970
    %v6285 = vunpack.c.l.b16 %v4971
    %v6286 = vunpack.c.l.b16 %v4972
    %v6287 = vpack.c.b16 %v6280, %v6279
    %v6288 = vpack.c.b16 %v6282, %v6281
    %v6289 = vpack.c.b16 %v6284, %v6283
    %v6290 = vpack.c.b16 %v6286, %v6285
    %v6296 = vsel %vm5239, %v6253, 0
    %v6299 = vsel %vm5239, %v6270, 0
    %6301 = vmatprep.subr.bf16.mxu0 0
    %6302 = vmatpush1.bf16.msra.mxu0 0
    %6303 = vmatprep.subr.bf16.mxu0 0
    %6304 = vmatpush1.bf16.msra.mxu0 0
    %6305 = vmatprep.subr.bf16.mxu0 0
    %6306 = vmatpush1.bf16.msra.mxu0 0
    %6307 = vmatprep.subr.bf16.mxu0 0
    %6308 = vmatpush1.bf16.msra.mxu0 0
    %6309 = vmatprep.subr.bf16.mxu0 0
    %6310 = vmatpush1.bf16.msra.mxu0 %v6290
    %6311 = vmatprep.subr.bf16.mxu0 0
    %6312 = vmatpush1.bf16.msra.mxu0 %v6289
    %6313 = vmatprep.subr.bf16.mxu0 0
    %6314 = vmatpush1.bf16.msra.mxu0 %v6288
    %6315 = vmatprep.subr.bf16.mxu0 0
    %6316 = vmatpush1.bf16.msra.mxu0 %v6287
    %6317 = vmatprep.subr.bf16.mxu0 0
    %6318 = vmatpush2.bf16.msra.mxu0 0
    %6319 = vmatprep.subr.bf16.mxu0 0
    %6320 = vmatpush2.bf16.msra.mxu0 0
    %6321 = vmatprep.subr.bf16.mxu0 0
    %6322 = vmatpush2.bf16.msra.mxu0 0
    %6323 = vmatprep.subr.bf16.mxu0 0
    %6324 = vmatpush2.bf16.msra.mxu0 0
    %6325 = vmatprep.subr.bf16.mxu0 0
    %6326 = vmatpush2.bf16.msra.mxu0 0
    %6327 = vmatprep.subr.bf16.mxu0 0
    %6328 = vmatpush2.bf16.msra.mxu0 0
    %6329 = vmatprep.subr.bf16.mxu0 0
    %6330 = vmatpush2.bf16.msra.mxu0 0
    %6331 = vmatprep.subr.bf16.mxu0 0
    %6332 = vmatpush2.bf16.msra.mxu0 0
    %6333 = vmatprep.mubr.bf16.mxu0 0
    %6334 = vmatmul.mubr.bf16.gmra.mxu0 %v6296
    %v6335 = vpop.f32.mrf.mxu0
    %v6336 = vadd.f32 0.0, %v6335
    %v6337 = vpop.f32.mrf.mxu0
    %v6338 = vpop.f32.mrf.mxu0
    %v6339 = vadd.f32 0.0, %v6338
    %v6340 = vpop.f32.mrf.mxu0
    %6341 = vmatprep.mubr.bf16.mxu0 0
    %6342 = vmatmul.mubr.bf16.gmra.mxu0 %v6299
    %v6343 = vpop.f32.mrf.mxu0
    %v6344 = vadd.f32 0.0, %v6343
    %v6345 = vpop.f32.mrf.mxu0
    %v6346 = vpop.f32.mrf.mxu0
    %v6347 = vadd.f32 0.0, %v6346
    %v6348 = vpop.f32.mrf.mxu0
    %6349 = vdwg.mxu0
    %v6350 = vadd.f32 %v6199, %v6336
    %v6351 = vadd.f32 %v6200, %v6339
    %v6352 = vadd.f32 %v6201, %v6344
    %v6353 = vadd.f32 %v6202, %v6347
    %v6354 = vcombine.low %v4810, %v4824
    %v6356 = vunpack.c.l.s4 1966171168
    %v6357 = vunpack.c.0.s8 %v6356
    %v6358 = vlaneseq
    %v6359 = vshrl.u32 %v6358, 7
    %v6360 = vsub.s32 %v6357, %v6359
    %v6361 = vrot.slane %v6354, %v6360
    %v6362 = vcombine.low %v5960, %v6361
    %v6364 = vunpack.c.l.s4 1966171168
    %v6365 = vunpack.c.0.s8 %v6364
    %v6366 = vlaneseq
    %v6367 = vshrl.u32 %v6366, 7
    %v6368 = vsub.s32 %v6365, %v6367
    %v6369 = vrot.slane %v6362, %v6368
    %v6370 = vcombine.low %v5519, %v6369
    %v6371 = vcombine.low %v4907, %v4908
    %v6373 = vunpack.c.l.s4 1966171168
    %v6374 = vunpack.c.0.s8 %v6373
    %v6375 = vlaneseq
    %v6376 = vshrl.u32 %v6375, 7
    %v6377 = vsub.s32 %v6374, %v6376
    %v6378 = vrot.slane %v6371, %v6377
    %v6379 = vcombine.low %v5985, %v6378
    %v6381 = vunpack.c.l.s4 1966171168
    %v6382 = vunpack.c.0.s8 %v6381
    %v6383 = vlaneseq
    %v6384 = vshrl.u32 %v6383, 7
    %v6385 = vsub.s32 %v6382, %v6384
    %v6386 = vrot.slane %v6379, %v6385
    %v6387 = vcombine.low %v5568, %v6386
    %v6396 = vunpack.c.l.b16 %v4973
    %v6397 = vunpack.c.l.b16 %v4974
    %v6398 = vunpack.c.l.b16 %v4975
    %v6399 = vunpack.c.l.b16 %v4976
    %v6400 = vunpack.c.l.b16 %v4977
    %v6401 = vunpack.c.l.b16 %v4978
    %v6402 = vunpack.c.l.b16 %v4979
    %v6403 = vunpack.c.l.b16 %v4980
    %v6404 = vpack.c.b16 %v6397, %v6396
    %v6405 = vpack.c.b16 %v6399, %v6398
    %v6406 = vpack.c.b16 %v6401, %v6400
    %v6407 = vpack.c.b16 %v6403, %v6402
    %v6413 = vsel %vm5239, %v6370, 0
    %v6416 = vsel %vm5239, %v6387, 0
    %6418 = vmatprep.subr.bf16.mxu0 0
    %6419 = vmatpush1.bf16.msra.mxu0 0
    %6420 = vmatprep.subr.bf16.mxu0 0
    %6421 = vmatpush1.bf16.msra.mxu0 0
    %6422 = vmatprep.subr.bf16.mxu0 0
    %6423 = vmatpush1.bf16.msra.mxu0 0
    %6424 = vmatprep.subr.bf16.mxu0 0
    %6425 = vmatpush1.bf16.msra.mxu0 0
    %6426 = vmatprep.subr.bf16.mxu0 0
    %6427 = vmatpush1.bf16.msra.mxu0 %v6407
    %6428 = vmatprep.subr.bf16.mxu0 0
    %6429 = vmatpush1.bf16.msra.mxu0 %v6406
    %6430 = vmatprep.subr.bf16.mxu0 0
    %6431 = vmatpush1.bf16.msra.mxu0 %v6405
    %6432 = vmatprep.subr.bf16.mxu0 0
    %6433 = vmatpush1.bf16.msra.mxu0 %v6404
    %6434 = vmatprep.subr.bf16.mxu0 0
    %6435 = vmatpush2.bf16.msra.mxu0 0
    %6436 = vmatprep.subr.bf16.mxu0 0
    %6437 = vmatpush2.bf16.msra.mxu0 0
    %6438 = vmatprep.subr.bf16.mxu0 0
    %6439 = vmatpush2.bf16.msra.mxu0 0
    %6440 = vmatprep.subr.bf16.mxu0 0
    %6441 = vmatpush2.bf16.msra.mxu0 0
    %6442 = vmatprep.subr.bf16.mxu0 0
    %6443 = vmatpush2.bf16.msra.mxu0 0
    %6444 = vmatprep.subr.bf16.mxu0 0
    %6445 = vmatpush2.bf16.msra.mxu0 0
    %6446 = vmatprep.subr.bf16.mxu0 0
    %6447 = vmatpush2.bf16.msra.mxu0 0
    %6448 = vmatprep.subr.bf16.mxu0 0
    %6449 = vmatpush2.bf16.msra.mxu0 0
    %6450 = vmatprep.mubr.bf16.mxu0 0
    %6451 = vmatmul.mubr.bf16.gmra.mxu0 %v6413
    %v6452 = vpop.f32.mrf.mxu0
    %v6453 = vadd.f32 0.0, %v6452
    %v6454 = vpop.f32.mrf.mxu0
    %v6455 = vpop.f32.mrf.mxu0
    %v6456 = vadd.f32 0.0, %v6455
    %v6457 = vpop.f32.mrf.mxu0
    %6458 = vmatprep.mubr.bf16.mxu0 0
    %6459 = vmatmul.mubr.bf16.gmra.mxu0 %v6416
    %v6460 = vpop.f32.mrf.mxu0
    %v6461 = vadd.f32 0.0, %v6460
    %v6462 = vpop.f32.mrf.mxu0
    %v6463 = vpop.f32.mrf.mxu0
    %v6464 = vadd.f32 0.0, %v6463
    %v6465 = vpop.f32.mrf.mxu0
    %6466 = vdwg.mxu0
    %v6467 = vadd.f32 %v6350, %v6453
    %v6468 = vadd.f32 %v6351, %v6456
    %v6469 = vadd.f32 %v6352, %v6461
    %v6470 = vadd.f32 %v6353, %v6464
    %v6471 = vld [vmem:[%s6] sm:$0x1]
    %v6473 = vlaneseq
    %v6474 = vshrl.u32 %v6473, 7
    %v6475 = vsub.s32 0, %v6474
    %v6476 = vrot.slane %v6471, %v6475
    %v6478 = vadd.f32 %v6467, %v6476
    %v6479 = vadd.f32 %v6468, %v6476
    %v6480 = vadd.f32 %v6469, %v6476
    %v6481 = vadd.f32 %v6470, %v6476
    %v6482 = vmax.f32 %v6478, 0.0
    %v6483 = vmax.f32 %v6479, 0.0
    %v6484 = vmax.f32 %v6480, 0.0
    %v6485 = vmax.f32 %v6481, 0.0
    %v6486 = vpack.c.bf16 %v6483, %v6482
    %v6487 = vpack.c.bf16 %v6485, %v6484
    %v6488 = vld [vmem:[%s7] sm:$0xf]
    %v6489 = vld [vmem:[%s7 + $0x4] sm:$0xf]
    %v6490 = vld [vmem:[%s7 + $0x8] sm:$0xf]
    %v6491 = vld [vmem:[%s7 + $0xc] sm:$0xf]
    %v6492 = vld [vmem:[%s7 + $0x10] sm:$0xf]
    %v6493 = vld [vmem:[%s7 + $0x14] sm:$0xf]
    %v6494 = vld [vmem:[%s7 + $0x18] sm:$0xf]
    %v6495 = vld [vmem:[%s7 + $0x1c] sm:$0xf]
    %v6496 = vld [vmem:[%s7 + $0x20] sm:$0xf]
    %v6497 = vld [vmem:[%s7 + $0x24] sm:$0xf]
    %v6498 = vld [vmem:[%s7 + $0x28] sm:$0xf]
    %v6499 = vld [vmem:[%s7 + $0x2c] sm:$0xf]
    %v6500 = vld [vmem:[%s7 + $0x30] sm:$0xf]
    %v6501 = vld [vmem:[%s7 + $0x34] sm:$0xf]
    %v6502 = vld [vmem:[%s7 + $0x38] sm:$0xf]
    %v6503 = vld [vmem:[%s7 + $0x3c] sm:$0xf]
    %v6504 = vld [vmem:[%s7 + $0x40] sm:$0xf]
    %v6505 = vld [vmem:[%s7 + $0x44] sm:$0xf]
    %v6506 = vld [vmem:[%s7 + $0x48] sm:$0xf]
    %v6507 = vld [vmem:[%s7 + $0x4c] sm:$0xf]
    %v6508 = vld [vmem:[%s7 + $0x50] sm:$0xf]
    %v6509 = vld [vmem:[%s7 + $0x54] sm:$0xf]
    %v6510 = vld [vmem:[%s7 + $0x58] sm:$0xf]
    %v6511 = vld [vmem:[%s7 + $0x5c] sm:$0xf]
    %v6512 = vld [vmem:[%s7 + $0x60] sm:$0xf]
    %v6513 = vld [vmem:[%s7 + $0x64] sm:$0xf]
    %v6514 = vld [vmem:[%s7 + $0x68] sm:$0xf]
    %v6515 = vld [vmem:[%s7 + $0x6c] sm:$0xf]
    %v6516 = vld [vmem:[%s7 + $0x70] sm:$0xf]
    %v6517 = vld [vmem:[%s7 + $0x74] sm:$0xf]
    %v6518 = vld [vmem:[%s7 + $0x78] sm:$0xf]
    %v6519 = vld [vmem:[%s7 + $0x7c] sm:$0xf]
    %v6520 = vld [vmem:[%s7 + $0x80] sm:$0xf]
    %v6521 = vld [vmem:[%s7 + $0x84] sm:$0xf]
    %v6522 = vld [vmem:[%s7 + $0x88] sm:$0xf]
    %v6523 = vld [vmem:[%s7 + $0x8c] sm:$0xf]
    %v6524 = vld [vmem:[%s7 + $0x90] sm:$0xf]
    %v6525 = vld [vmem:[%s7 + $0x94] sm:$0xf]
    %v6526 = vld [vmem:[%s7 + $0x98] sm:$0xf]
    %v6527 = vld [vmem:[%s7 + $0x9c] sm:$0xf]
    %v6528 = vld [vmem:[%s7 + $0xa0] sm:$0xf]
    %v6529 = vld [vmem:[%s7 + $0xa4] sm:$0xf]
    %v6530 = vld [vmem:[%s7 + $0xa8] sm:$0xf]
    %v6531 = vld [vmem:[%s7 + $0xac] sm:$0xf]
    %v6532 = vld [vmem:[%s7 + $0xb0] sm:$0xf]
    %v6533 = vld [vmem:[%s7 + $0xb4] sm:$0xf]
    %v6534 = vld [vmem:[%s7 + $0xb8] sm:$0xf]
    %v6535 = vld [vmem:[%s7 + $0xbc] sm:$0xf]
    %v6536 = vld [vmem:[%s7 + $0xc0] sm:$0xf]
    %v6537 = vld [vmem:[%s7 + $0xc4] sm:$0xf]
    %v6538 = vld [vmem:[%s7 + $0xc8] sm:$0xf]
    %v6539 = vld [vmem:[%s7 + $0xcc] sm:$0xf]
    %v6540 = vld [vmem:[%s7 + $0xd0] sm:$0xf]
    %v6541 = vld [vmem:[%s7 + $0xd4] sm:$0xf]
    %v6542 = vld [vmem:[%s7 + $0xd8] sm:$0xf]
    %v6543 = vld [vmem:[%s7 + $0xdc] sm:$0xf]
    %v6544 = vld [vmem:[%s7 + $0xe0] sm:$0xf]
    %v6545 = vld [vmem:[%s7 + $0xe4] sm:$0xf]
    %v6546 = vld [vmem:[%s7 + $0xe8] sm:$0xf]
    %v6547 = vld [vmem:[%s7 + $0xec] sm:$0xf]
    %v6548 = vld [vmem:[%s7 + $0xf0] sm:$0xf]
    %v6549 = vld [vmem:[%s7 + $0xf4] sm:$0xf]
    %v6550 = vld [vmem:[%s7 + $0xf8] sm:$0xf]
    %v6551 = vld [vmem:[%s7 + $0xfc] sm:$0xf]
    %v6552 = vld [vmem:[%s7 + $0x100] sm:$0xf]
    %v6553 = vld [vmem:[%s7 + $0x104] sm:$0xf]
    %v6554 = vld [vmem:[%s7 + $0x108] sm:$0xf]
    %v6555 = vld [vmem:[%s7 + $0x10c] sm:$0xf]
    %v6556 = vld [vmem:[%s7 + $0x110] sm:$0xf]
    %v6557 = vld [vmem:[%s7 + $0x114] sm:$0xf]
    %v6558 = vld [vmem:[%s7 + $0x118] sm:$0xf]
    %v6559 = vld [vmem:[%s7 + $0x11c] sm:$0xf]
    %v6560 = vld [vmem:[%s7 + $0x120] sm:$0xf]
    %v6561 = vld [vmem:[%s7 + $0x124] sm:$0xf]
    %v6562 = vld [vmem:[%s7 + $0x128] sm:$0xf]
    %v6563 = vld [vmem:[%s7 + $0x12c] sm:$0xf]
    %v6564 = vld [vmem:[%s7 + $0x130] sm:$0xf]
    %v6565 = vld [vmem:[%s7 + $0x134] sm:$0xf]
    %v6566 = vld [vmem:[%s7 + $0x138] sm:$0xf]
    %v6567 = vld [vmem:[%s7 + $0x13c] sm:$0xf]
    %v6568 = vld [vmem:[%s7 + $0x140] sm:$0xf]
    %v6569 = vld [vmem:[%s7 + $0x144] sm:$0xf]
    %v6570 = vld [vmem:[%s7 + $0x148] sm:$0xf]
    %v6571 = vld [vmem:[%s7 + $0x14c] sm:$0xf]
    %v6572 = vld [vmem:[%s7 + $0x150] sm:$0xf]
    %v6573 = vld [vmem:[%s7 + $0x154] sm:$0xf]
    %v6574 = vld [vmem:[%s7 + $0x158] sm:$0xf]
    %v6575 = vld [vmem:[%s7 + $0x15c] sm:$0xf]
    %v6576 = vld [vmem:[%s7 + $0x160] sm:$0xf]
    %v6577 = vld [vmem:[%s7 + $0x164] sm:$0xf]
    %v6578 = vld [vmem:[%s7 + $0x168] sm:$0xf]
    %v6579 = vld [vmem:[%s7 + $0x16c] sm:$0xf]
    %v6580 = vld [vmem:[%s7 + $0x170] sm:$0xf]
    %v6581 = vld [vmem:[%s7 + $0x174] sm:$0xf]
    %v6582 = vld [vmem:[%s7 + $0x178] sm:$0xf]
    %v6583 = vld [vmem:[%s7 + $0x17c] sm:$0xf]
    %v6584 = vld [vmem:[%s7 + $0x180] sm:$0xf]
    %v6585 = vld [vmem:[%s7 + $0x184] sm:$0xf]
    %v6586 = vld [vmem:[%s7 + $0x188] sm:$0xf]
    %v6587 = vld [vmem:[%s7 + $0x18c] sm:$0xf]
    %v6588 = vld [vmem:[%s7 + $0x190] sm:$0xf]
    %v6589 = vld [vmem:[%s7 + $0x194] sm:$0xf]
    %v6590 = vld [vmem:[%s7 + $0x198] sm:$0xf]
    %v6591 = vld [vmem:[%s7 + $0x19c] sm:$0xf]
    %v6592 = vld [vmem:[%s7 + $0x1a0] sm:$0xf]
    %v6593 = vld [vmem:[%s7 + $0x1a4] sm:$0xf]
    %v6594 = vld [vmem:[%s7 + $0x1a8] sm:$0xf]
    %v6595 = vld [vmem:[%s7 + $0x1ac] sm:$0xf]
    %v6596 = vld [vmem:[%s7 + $0x1b0] sm:$0xf]
    %v6597 = vld [vmem:[%s7 + $0x1b4] sm:$0xf]
    %v6598 = vld [vmem:[%s7 + $0x1b8] sm:$0xf]
    %v6599 = vld [vmem:[%s7 + $0x1bc] sm:$0xf]
    %v6600 = vld [vmem:[%s7 + $0x1c0] sm:$0xf]
    %v6601 = vld [vmem:[%s7 + $0x1c4] sm:$0xf]
    %v6602 = vld [vmem:[%s7 + $0x1c8] sm:$0xf]
    %v6603 = vld [vmem:[%s7 + $0x1cc] sm:$0xf]
    %v6604 = vld [vmem:[%s7 + $0x1d0] sm:$0xf]
    %v6605 = vld [vmem:[%s7 + $0x1d4] sm:$0xf]
    %v6606 = vld [vmem:[%s7 + $0x1d8] sm:$0xf]
    %v6607 = vld [vmem:[%s7 + $0x1dc] sm:$0xf]
    %v6608 = vld [vmem:[%s7 + $0x1e0] sm:$0xf]
    %v6609 = vld [vmem:[%s7 + $0x1e4] sm:$0xf]
    %v6610 = vld [vmem:[%s7 + $0x1e8] sm:$0xf]
    %v6611 = vld [vmem:[%s7 + $0x1ec] sm:$0xf]
    %v6612 = vld [vmem:[%s7 + $0x1f0] sm:$0xf]
    %v6613 = vld [vmem:[%s7 + $0x1f4] sm:$0xf]
    %v6614 = vld [vmem:[%s7 + $0x1f8] sm:$0xf]
    %v6615 = vld [vmem:[%s7 + $0x1fc] sm:$0xf]
    %v6616 = vld [vmem:[%s7 + $0x200] sm:$0xf]
    %v6617 = vld [vmem:[%s7 + $0x204] sm:$0xf]
    %v6618 = vld [vmem:[%s7 + $0x208] sm:$0xf]
    %v6619 = vld [vmem:[%s7 + $0x20c] sm:$0xf]
    %v6620 = vld [vmem:[%s7 + $0x210] sm:$0xf]
    %v6621 = vld [vmem:[%s7 + $0x214] sm:$0xf]
    %v6622 = vld [vmem:[%s7 + $0x218] sm:$0xf]
    %v6623 = vld [vmem:[%s7 + $0x21c] sm:$0xf]
    %v6624 = vld [vmem:[%s7 + $0x220] sm:$0xf]
    %v6625 = vld [vmem:[%s7 + $0x224] sm:$0xf]
    %v6626 = vld [vmem:[%s7 + $0x228] sm:$0xf]
    %v6627 = vld [vmem:[%s7 + $0x22c] sm:$0xf]
    %v6628 = vld [vmem:[%s7 + $0x230] sm:$0xf]
    %v6629 = vld [vmem:[%s7 + $0x234] sm:$0xf]
    %v6630 = vld [vmem:[%s7 + $0x238] sm:$0xf]
    %v6631 = vld [vmem:[%s7 + $0x23c] sm:$0xf]
    %v6632 = vld [vmem:[%s7 + $0x240] sm:$0xf]
    %v6633 = vld [vmem:[%s7 + $0x244] sm:$0xf]
    %v6634 = vld [vmem:[%s7 + $0x248] sm:$0xf]
    %v6635 = vld [vmem:[%s7 + $0x24c] sm:$0xf]
    %v6636 = vld [vmem:[%s7 + $0x250] sm:$0xf]
    %v6637 = vld [vmem:[%s7 + $0x254] sm:$0xf]
    %v6638 = vld [vmem:[%s7 + $0x258] sm:$0xf]
    %v6639 = vld [vmem:[%s7 + $0x25c] sm:$0xf]
    %v6640 = vld [vmem:[%s7 + $0x260] sm:$0xf]
    %v6641 = vld [vmem:[%s7 + $0x264] sm:$0xf]
    %v6642 = vld [vmem:[%s7 + $0x268] sm:$0xf]
    %v6643 = vld [vmem:[%s7 + $0x26c] sm:$0xf]
    %v6644 = vld [vmem:[%s7 + $0x270] sm:$0xf]
    %v6645 = vld [vmem:[%s7 + $0x274] sm:$0xf]
    %v6646 = vld [vmem:[%s7 + $0x278] sm:$0xf]
    %v6647 = vld [vmem:[%s7 + $0x27c] sm:$0xf]
    %v6648 = vld [vmem:[%s7 + $0x280] sm:$0xf]
    %v6649 = vld [vmem:[%s7 + $0x284] sm:$0xf]
    %v6650 = vld [vmem:[%s7 + $0x288] sm:$0xf]
    %v6651 = vld [vmem:[%s7 + $0x28c] sm:$0xf]
    %v6652 = vld [vmem:[%s7 + $0x290] sm:$0xf]
    %v6653 = vld [vmem:[%s7 + $0x294] sm:$0xf]
    %v6654 = vld [vmem:[%s7 + $0x298] sm:$0xf]
    %v6655 = vld [vmem:[%s7 + $0x29c] sm:$0xf]
    %v6656 = vld [vmem:[%s7 + $0x2a0] sm:$0xf]
    %v6657 = vld [vmem:[%s7 + $0x2a4] sm:$0xf]
    %v6658 = vld [vmem:[%s7 + $0x2a8] sm:$0xf]
    %v6659 = vld [vmem:[%s7 + $0x2ac] sm:$0xf]
    %v6660 = vld [vmem:[%s7 + $0x2b0] sm:$0xf]
    %v6661 = vld [vmem:[%s7 + $0x2b4] sm:$0xf]
    %v6662 = vld [vmem:[%s7 + $0x2b8] sm:$0xf]
    %v6663 = vld [vmem:[%s7 + $0x2bc] sm:$0xf]
    %v6664 = vld [vmem:[%s7 + $0x2c0] sm:$0xf]
    %v6665 = vld [vmem:[%s7 + $0x2c4] sm:$0xf]
    %v6666 = vld [vmem:[%s7 + $0x2c8] sm:$0xf]
    %v6667 = vld [vmem:[%s7 + $0x2cc] sm:$0xf]
    %v6668 = vld [vmem:[%s7 + $0x2d0] sm:$0xf]
    %v6669 = vld [vmem:[%s7 + $0x2d4] sm:$0xf]
    %v6670 = vld [vmem:[%s7 + $0x2d8] sm:$0xf]
    %v6671 = vld [vmem:[%s7 + $0x2dc] sm:$0xf]
    %v6672 = vld [vmem:[%s7 + $0x2e0] sm:$0xf]
    %v6673 = vld [vmem:[%s7 + $0x2e4] sm:$0xf]
    %v6674 = vld [vmem:[%s7 + $0x2e8] sm:$0xf]
    %v6675 = vld [vmem:[%s7 + $0x2ec] sm:$0xf]
    %v6676 = vld [vmem:[%s7 + $0x2f0] sm:$0xf]
    %v6677 = vld [vmem:[%s7 + $0x2f4] sm:$0xf]
    %v6678 = vld [vmem:[%s7 + $0x2f8] sm:$0xf]
    %v6679 = vld [vmem:[%s7 + $0x2fc] sm:$0xf]
    %v6682 = vunpack.c.l.b16 %v6486
    %v6683 = vunpack.c.l.b16 %v6487
    %v6684 = vrot.slane %v6682, 1
    %vm6685 = vcmask 1041409
    %v6686 = vsel %vm6685, %v6683, %v6684
    %v6687 = vpack.c.b16 %v6686, %v6686
    %v6700 = vunpack.c.l.b16 %v6500
    %v6701 = vunpack.c.l.b16 %v6501
    %v6702 = vunpack.c.l.b16 %v6502
    %v6703 = vunpack.c.l.b16 %v6503
    %v6704 = vunpack.c.l.b16 %v6504
    %v6705 = vunpack.c.l.b16 %v6505
    %v6706 = vunpack.c.l.b16 %v6506
    %v6707 = vunpack.c.l.b16 %v6507
    %v6708 = vunpack.c.l.b16 %v6508
    %v6709 = vunpack.c.l.b16 %v6509
    %v6710 = vunpack.c.l.b16 %v6510
    %v6711 = vunpack.c.l.b16 %v6511
    %v6712 = vpack.c.b16 %v6701, %v6700
    %v6713 = vpack.c.b16 %v6703, %v6702
    %v6714 = vpack.c.b16 %v6705, %v6704
    %v6715 = vpack.c.b16 %v6707, %v6706
    %v6716 = vpack.c.b16 %v6709, %v6708
    %v6717 = vpack.c.b16 %v6711, %v6710
    %vm6724 = vcmask 785408
    %v6726 = vsel %vm6724, %v6687, 0
    %6728 = vmatprep.subr.bf16.mxu0 0
    %6729 = vmatpush1.bf16.msra.mxu0 0
    %6730 = vmatprep.subr.bf16.mxu0 0
    %6731 = vmatpush1.bf16.msra.mxu0 0
    %6732 = vmatprep.subr.bf16.mxu0 0
    %6733 = vmatpush1.bf16.msra.mxu0 %v6717
    %6734 = vmatprep.subr.bf16.mxu0 0
    %6735 = vmatpush1.bf16.msra.mxu0 %v6716
    %6736 = vmatprep.subr.bf16.mxu0 0
    %6737 = vmatpush1.bf16.msra.mxu0 %v6715
    %6738 = vmatprep.subr.bf16.mxu0 0
    %6739 = vmatpush1.bf16.msra.mxu0 %v6714
    %6740 = vmatprep.subr.bf16.mxu0 0
    %6741 = vmatpush1.bf16.msra.mxu0 %v6713
    %6742 = vmatprep.subr.bf16.mxu0 0
    %6743 = vmatpush1.bf16.msra.mxu0 %v6712
    %6744 = vmatprep.subr.bf16.mxu0 0
    %6745 = vmatpush2.bf16.msra.mxu0 0
    %6746 = vmatprep.subr.bf16.mxu0 0
    %6747 = vmatpush2.bf16.msra.mxu0 0
    %6748 = vmatprep.subr.bf16.mxu0 0
    %6749 = vmatpush2.bf16.msra.mxu0 0
    %6750 = vmatprep.subr.bf16.mxu0 0
    %6751 = vmatpush2.bf16.msra.mxu0 0
    %6752 = vmatprep.subr.bf16.mxu0 0
    %6753 = vmatpush2.bf16.msra.mxu0 0
    %6754 = vmatprep.subr.bf16.mxu0 0
    %6755 = vmatpush2.bf16.msra.mxu0 0
    %6756 = vmatprep.subr.bf16.mxu0 0
    %6757 = vmatpush2.bf16.msra.mxu0 0
    %6758 = vmatprep.subr.bf16.mxu0 0
    %6759 = vmatpush2.bf16.msra.mxu0 0
    %6760 = vmatprep.mubr.bf16.mxu0 0
    %6761 = vmatmul.mubr.bf16.gmra.mxu0 %v6726
    %v6762 = vpop.f32.mrf.mxu0
    %v6763 = vadd.f32 0.0, %v6762
    %v6764 = vpop.f32.mrf.mxu0
    %v6765 = vpop.f32.mrf.mxu0
    %v6766 = vpop.f32.mrf.mxu0
    %6767 = vdwg.mxu0
    %v6768 = vrot.slane %v6683, 7
    %v6769 = vsel %vm6685, %v6768, %v6682
    %v6770 = vpack.c.b16 %v6769, %v6769
    %v6783 = vunpack.c.l.b16 %v6488
    %v6784 = vunpack.c.l.b16 %v6489
    %v6785 = vunpack.c.l.b16 %v6490
    %v6786 = vunpack.c.l.b16 %v6491
    %v6787 = vunpack.c.l.b16 %v6492
    %v6788 = vunpack.c.l.b16 %v6493
    %v6789 = vunpack.c.l.b16 %v6494
    %v6790 = vunpack.c.l.b16 %v6495
    %v6791 = vunpack.c.l.b16 %v6496
    %v6792 = vunpack.c.l.b16 %v6497
    %v6793 = vunpack.c.l.b16 %v6498
    %v6794 = vunpack.c.l.b16 %v6499
    %v6795 = vpack.c.b16 %v6784, %v6783
    %v6796 = vpack.c.b16 %v6786, %v6785
    %v6797 = vpack.c.b16 %v6788, %v6787
    %v6798 = vpack.c.b16 %v6790, %v6789
    %v6799 = vpack.c.b16 %v6792, %v6791
    %v6800 = vpack.c.b16 %v6794, %v6793
    %v6808 = vsel %vm6724, %v6770, 0
    %6810 = vmatprep.subr.bf16.mxu0 0
    %6811 = vmatpush1.bf16.msra.mxu0 0
    %6812 = vmatprep.subr.bf16.mxu0 0
    %6813 = vmatpush1.bf16.msra.mxu0 0
    %6814 = vmatprep.subr.bf16.mxu0 0
    %6815 = vmatpush1.bf16.msra.mxu0 %v6800
    %6816 = vmatprep.subr.bf16.mxu0 0
    %6817 = vmatpush1.bf16.msra.mxu0 %v6799
    %6818 = vmatprep.subr.bf16.mxu0 0
    %6819 = vmatpush1.bf16.msra.mxu0 %v6798
    %6820 = vmatprep.subr.bf16.mxu0 0
    %6821 = vmatpush1.bf16.msra.mxu0 %v6797
    %6822 = vmatprep.subr.bf16.mxu0 0
    %6823 = vmatpush1.bf16.msra.mxu0 %v6796
    %6824 = vmatprep.subr.bf16.mxu0 0
    %6825 = vmatpush1.bf16.msra.mxu0 %v6795
    %6826 = vmatprep.subr.bf16.mxu0 0
    %6827 = vmatpush2.bf16.msra.mxu0 0
    %6828 = vmatprep.subr.bf16.mxu0 0
    %6829 = vmatpush2.bf16.msra.mxu0 0
    %6830 = vmatprep.subr.bf16.mxu0 0
    %6831 = vmatpush2.bf16.msra.mxu0 0
    %6832 = vmatprep.subr.bf16.mxu0 0
    %6833 = vmatpush2.bf16.msra.mxu0 0
    %6834 = vmatprep.subr.bf16.mxu0 0
    %6835 = vmatpush2.bf16.msra.mxu0 0
    %6836 = vmatprep.subr.bf16.mxu0 0
    %6837 = vmatpush2.bf16.msra.mxu0 0
    %6838 = vmatprep.subr.bf16.mxu0 0
    %6839 = vmatpush2.bf16.msra.mxu0 0
    %6840 = vmatprep.subr.bf16.mxu0 0
    %6841 = vmatpush2.bf16.msra.mxu0 0
    %6842 = vmatprep.mubr.bf16.mxu0 0
    %6843 = vmatmul.mubr.bf16.gmra.mxu0 %v6808
    %v6844 = vpop.f32.mrf.mxu0
    %v6845 = vadd.f32 %v6763, %v6844
    %v6846 = vpop.f32.mrf.mxu0
    %v6847 = vpop.f32.mrf.mxu0
    %v6848 = vpop.f32.mrf.mxu0
    %6849 = vdwg.mxu0
    %v6850 = vrot.slane %v6682, 2
    %v6851 = vrot.slane %v6683, 1
    %v6852 = vsel %vm6685, %v6851, %v6850
    %v6853 = vpack.c.b16 %v6852, %v6852
    %v6866 = vunpack.c.l.b16 %v6512
    %v6867 = vunpack.c.l.b16 %v6513
    %v6868 = vunpack.c.l.b16 %v6514
    %v6869 = vunpack.c.l.b16 %v6515
    %v6870 = vunpack.c.l.b16 %v6516
    %v6871 = vunpack.c.l.b16 %v6517
    %v6872 = vunpack.c.l.b16 %v6518
    %v6873 = vunpack.c.l.b16 %v6519
    %v6874 = vunpack.c.l.b16 %v6520
    %v6875 = vunpack.c.l.b16 %v6521
    %v6876 = vunpack.c.l.b16 %v6522
    %v6877 = vunpack.c.l.b16 %v6523
    %v6878 = vpack.c.b16 %v6867, %v6866
    %v6879 = vpack.c.b16 %v6869, %v6868
    %v6880 = vpack.c.b16 %v6871, %v6870
    %v6881 = vpack.c.b16 %v6873, %v6872
    %v6882 = vpack.c.b16 %v6875, %v6874
    %v6883 = vpack.c.b16 %v6877, %v6876
    %v6891 = vsel %vm6724, %v6853, 0
    %6893 = vmatprep.subr.bf16.mxu0 0
    %6894 = vmatpush1.bf16.msra.mxu0 0
    %6895 = vmatprep.subr.bf16.mxu0 0
    %6896 = vmatpush1.bf16.msra.mxu0 0
    %6897 = vmatprep.subr.bf16.mxu0 0
    %6898 = vmatpush1.bf16.msra.mxu0 %v6883
    %6899 = vmatprep.subr.bf16.mxu0 0
    %6900 = vmatpush1.bf16.msra.mxu0 %v6882
    %6901 = vmatprep.subr.bf16.mxu0 0
    %6902 = vmatpush1.bf16.msra.mxu0 %v6881
    %6903 = vmatprep.subr.bf16.mxu0 0
    %6904 = vmatpush1.bf16.msra.mxu0 %v6880
    %6905 = vmatprep.subr.bf16.mxu0 0
    %6906 = vmatpush1.bf16.msra.mxu0 %v6879
    %6907 = vmatprep.subr.bf16.mxu0 0
    %6908 = vmatpush1.bf16.msra.mxu0 %v6878
    %6909 = vmatprep.subr.bf16.mxu0 0
    %6910 = vmatpush2.bf16.msra.mxu0 0
    %6911 = vmatprep.subr.bf16.mxu0 0
    %6912 = vmatpush2.bf16.msra.mxu0 0
    %6913 = vmatprep.subr.bf16.mxu0 0
    %6914 = vmatpush2.bf16.msra.mxu0 0
    %6915 = vmatprep.subr.bf16.mxu0 0
    %6916 = vmatpush2.bf16.msra.mxu0 0
    %6917 = vmatprep.subr.bf16.mxu0 0
    %6918 = vmatpush2.bf16.msra.mxu0 0
    %6919 = vmatprep.subr.bf16.mxu0 0
    %6920 = vmatpush2.bf16.msra.mxu0 0
    %6921 = vmatprep.subr.bf16.mxu0 0
    %6922 = vmatpush2.bf16.msra.mxu0 0
    %6923 = vmatprep.subr.bf16.mxu0 0
    %6924 = vmatpush2.bf16.msra.mxu0 0
    %6925 = vmatprep.mubr.bf16.mxu0 0
    %6926 = vmatmul.mubr.bf16.gmra.mxu0 %v6891
    %v6927 = vpop.f32.mrf.mxu0
    %v6928 = vadd.f32 0.0, %v6927
    %v6929 = vpop.f32.mrf.mxu0
    %v6930 = vpop.f32.mrf.mxu0
    %v6931 = vpop.f32.mrf.mxu0
    %6932 = vdwg.mxu0
    %v6933 = vadd.f32 %v6845, %v6928
    %v6934 = vrot.slane %v6682, 3
    %v6935 = vrot.slane %v6683, 2
    %v6936 = vsel %vm6685, %v6935, %v6934
    %v6937 = vpack.c.b16 %v6936, %v6936
    %v6950 = vunpack.c.l.b16 %v6524
    %v6951 = vunpack.c.l.b16 %v6525
    %v6952 = vunpack.c.l.b16 %v6526
    %v6953 = vunpack.c.l.b16 %v6527
    %v6954 = vunpack.c.l.b16 %v6528
    %v6955 = vunpack.c.l.b16 %v6529
    %v6956 = vunpack.c.l.b16 %v6530
    %v6957 = vunpack.c.l.b16 %v6531
    %v6958 = vunpack.c.l.b16 %v6532
    %v6959 = vunpack.c.l.b16 %v6533
    %v6960 = vunpack.c.l.b16 %v6534
    %v6961 = vunpack.c.l.b16 %v6535
    %v6962 = vpack.c.b16 %v6951, %v6950
    %v6963 = vpack.c.b16 %v6953, %v6952
    %v6964 = vpack.c.b16 %v6955, %v6954
    %v6965 = vpack.c.b16 %v6957, %v6956
    %v6966 = vpack.c.b16 %v6959, %v6958
    %v6967 = vpack.c.b16 %v6961, %v6960
    %v6975 = vsel %vm6724, %v6937, 0
    %6977 = vmatprep.subr.bf16.mxu0 0
    %6978 = vmatpush1.bf16.msra.mxu0 0
    %6979 = vmatprep.subr.bf16.mxu0 0
    %6980 = vmatpush1.bf16.msra.mxu0 0
    %6981 = vmatprep.subr.bf16.mxu0 0
    %6982 = vmatpush1.bf16.msra.mxu0 %v6967
    %6983 = vmatprep.subr.bf16.mxu0 0
    %6984 = vmatpush1.bf16.msra.mxu0 %v6966
    %6985 = vmatprep.subr.bf16.mxu0 0
    %6986 = vmatpush1.bf16.msra.mxu0 %v6965
    %6987 = vmatprep.subr.bf16.mxu0 0
    %6988 = vmatpush1.bf16.msra.mxu0 %v6964
    %6989 = vmatprep.subr.bf16.mxu0 0
    %6990 = vmatpush1.bf16.msra.mxu0 %v6963
    %6991 = vmatprep.subr.bf16.mxu0 0
    %6992 = vmatpush1.bf16.msra.mxu0 %v6962
    %6993 = vmatprep.subr.bf16.mxu0 0
    %6994 = vmatpush2.bf16.msra.mxu0 0
    %6995 = vmatprep.subr.bf16.mxu0 0
    %6996 = vmatpush2.bf16.msra.mxu0 0
    %6997 = vmatprep.subr.bf16.mxu0 0
    %6998 = vmatpush2.bf16.msra.mxu0 0
    %6999 = vmatprep.subr.bf16.mxu0 0
    %7000 = vmatpush2.bf16.msra.mxu0 0
    %7001 = vmatprep.subr.bf16.mxu0 0
    %7002 = vmatpush2.bf16.msra.mxu0 0
    %7003 = vmatprep.subr.bf16.mxu0 0
    %7004 = vmatpush2.bf16.msra.mxu0 0
    %7005 = vmatprep.subr.bf16.mxu0 0
    %7006 = vmatpush2.bf16.msra.mxu0 0
    %7007 = vmatprep.subr.bf16.mxu0 0
    %7008 = vmatpush2.bf16.msra.mxu0 0
    %7009 = vmatprep.mubr.bf16.mxu0 0
    %7010 = vmatmul.mubr.bf16.gmra.mxu0 %v6975
    %v7011 = vpop.f32.mrf.mxu0
    %v7012 = vadd.f32 0.0, %v7011
    %v7013 = vpop.f32.mrf.mxu0
    %v7014 = vpop.f32.mrf.mxu0
    %v7015 = vpop.f32.mrf.mxu0
    %7016 = vdwg.mxu0
    %v7017 = vadd.f32 %v6933, %v7012
    %v7018 = vrot.slane %v6682, 4
    %v7019 = vrot.slane %v6683, 3
    %v7020 = vsel %vm6685, %v7019, %v7018
    %v7021 = vpack.c.b16 %v7020, %v7020
    %v7034 = vunpack.c.l.b16 %v6536
    %v7035 = vunpack.c.l.b16 %v6537
    %v7036 = vunpack.c.l.b16 %v6538
    %v7037 = vunpack.c.l.b16 %v6539
    %v7038 = vunpack.c.l.b16 %v6540
    %v7039 = vunpack.c.l.b16 %v6541
    %v7040 = vunpack.c.l.b16 %v6542
    %v7041 = vunpack.c.l.b16 %v6543
    %v7042 = vunpack.c.l.b16 %v6544
    %v7043 = vunpack.c.l.b16 %v6545
    %v7044 = vunpack.c.l.b16 %v6546
    %v7045 = vunpack.c.l.b16 %v6547
    %v7046 = vpack.c.b16 %v7035, %v7034
    %v7047 = vpack.c.b16 %v7037, %v7036
    %v7048 = vpack.c.b16 %v7039, %v7038
    %v7049 = vpack.c.b16 %v7041, %v7040
    %v7050 = vpack.c.b16 %v7043, %v7042
    %v7051 = vpack.c.b16 %v7045, %v7044
    %v7059 = vsel %vm6724, %v7021, 0
    %7061 = vmatprep.subr.bf16.mxu0 0
    %7062 = vmatpush1.bf16.msra.mxu0 0
    %7063 = vmatprep.subr.bf16.mxu0 0
    %7064 = vmatpush1.bf16.msra.mxu0 0
    %7065 = vmatprep.subr.bf16.mxu0 0
    %7066 = vmatpush1.bf16.msra.mxu0 %v7051
    %7067 = vmatprep.subr.bf16.mxu0 0
    %7068 = vmatpush1.bf16.msra.mxu0 %v7050
    %7069 = vmatprep.subr.bf16.mxu0 0
    %7070 = vmatpush1.bf16.msra.mxu0 %v7049
    %7071 = vmatprep.subr.bf16.mxu0 0
    %7072 = vmatpush1.bf16.msra.mxu0 %v7048
    %7073 = vmatprep.subr.bf16.mxu0 0
    %7074 = vmatpush1.bf16.msra.mxu0 %v7047
    %7075 = vmatprep.subr.bf16.mxu0 0
    %7076 = vmatpush1.bf16.msra.mxu0 %v7046
    %7077 = vmatprep.subr.bf16.mxu0 0
    %7078 = vmatpush2.bf16.msra.mxu0 0
    %7079 = vmatprep.subr.bf16.mxu0 0
    %7080 = vmatpush2.bf16.msra.mxu0 0
    %7081 = vmatprep.subr.bf16.mxu0 0
    %7082 = vmatpush2.bf16.msra.mxu0 0
    %7083 = vmatprep.subr.bf16.mxu0 0
    %7084 = vmatpush2.bf16.msra.mxu0 0
    %7085 = vmatprep.subr.bf16.mxu0 0
    %7086 = vmatpush2.bf16.msra.mxu0 0
    %7087 = vmatprep.subr.bf16.mxu0 0
    %7088 = vmatpush2.bf16.msra.mxu0 0
    %7089 = vmatprep.subr.bf16.mxu0 0
    %7090 = vmatpush2.bf16.msra.mxu0 0
    %7091 = vmatprep.subr.bf16.mxu0 0
    %7092 = vmatpush2.bf16.msra.mxu0 0
    %7093 = vmatprep.mubr.bf16.mxu0 0
    %7094 = vmatmul.mubr.bf16.gmra.mxu0 %v7059
    %v7095 = vpop.f32.mrf.mxu0
    %v7096 = vadd.f32 0.0, %v7095
    %v7097 = vpop.f32.mrf.mxu0
    %v7098 = vpop.f32.mrf.mxu0
    %v7099 = vpop.f32.mrf.mxu0
    %7100 = vdwg.mxu0
    %v7101 = vadd.f32 %v7017, %v7096
    %v7102 = vrot.slane %v6682, 5
    %v7103 = vrot.slane %v6683, 4
    %v7104 = vsel %vm6685, %v7103, %v7102
    %v7105 = vpack.c.b16 %v7104, %v7104
    %v7118 = vunpack.c.l.b16 %v6548
    %v7119 = vunpack.c.l.b16 %v6549
    %v7120 = vunpack.c.l.b16 %v6550
    %v7121 = vunpack.c.l.b16 %v6551
    %v7122 = vunpack.c.l.b16 %v6552
    %v7123 = vunpack.c.l.b16 %v6553
    %v7124 = vunpack.c.l.b16 %v6554
    %v7125 = vunpack.c.l.b16 %v6555
    %v7126 = vunpack.c.l.b16 %v6556
    %v7127 = vunpack.c.l.b16 %v6557
    %v7128 = vunpack.c.l.b16 %v6558
    %v7129 = vunpack.c.l.b16 %v6559
    %v7130 = vpack.c.b16 %v7119, %v7118
    %v7131 = vpack.c.b16 %v7121, %v7120
    %v7132 = vpack.c.b16 %v7123, %v7122
    %v7133 = vpack.c.b16 %v7125, %v7124
    %v7134 = vpack.c.b16 %v7127, %v7126
    %v7135 = vpack.c.b16 %v7129, %v7128
    %v7143 = vsel %vm6724, %v7105, 0
    %7145 = vmatprep.subr.bf16.mxu0 0
    %7146 = vmatpush1.bf16.msra.mxu0 0
    %7147 = vmatprep.subr.bf16.mxu0 0
    %7148 = vmatpush1.bf16.msra.mxu0 0
    %7149 = vmatprep.subr.bf16.mxu0 0
    %7150 = vmatpush1.bf16.msra.mxu0 %v7135
    %7151 = vmatprep.subr.bf16.mxu0 0
    %7152 = vmatpush1.bf16.msra.mxu0 %v7134
    %7153 = vmatprep.subr.bf16.mxu0 0
    %7154 = vmatpush1.bf16.msra.mxu0 %v7133
    %7155 = vmatprep.subr.bf16.mxu0 0
    %7156 = vmatpush1.bf16.msra.mxu0 %v7132
    %7157 = vmatprep.subr.bf16.mxu0 0
    %7158 = vmatpush1.bf16.msra.mxu0 %v7131
    %7159 = vmatprep.subr.bf16.mxu0 0
    %7160 = vmatpush1.bf16.msra.mxu0 %v7130
    %7161 = vmatprep.subr.bf16.mxu0 0
    %7162 = vmatpush2.bf16.msra.mxu0 0
    %7163 = vmatprep.subr.bf16.mxu0 0
    %7164 = vmatpush2.bf16.msra.mxu0 0
    %7165 = vmatprep.subr.bf16.mxu0 0
    %7166 = vmatpush2.bf16.msra.mxu0 0
    %7167 = vmatprep.subr.bf16.mxu0 0
    %7168 = vmatpush2.bf16.msra.mxu0 0
    %7169 = vmatprep.subr.bf16.mxu0 0
    %7170 = vmatpush2.bf16.msra.mxu0 0
    %7171 = vmatprep.subr.bf16.mxu0 0
    %7172 = vmatpush2.bf16.msra.mxu0 0
    %7173 = vmatprep.subr.bf16.mxu0 0
    %7174 = vmatpush2.bf16.msra.mxu0 0
    %7175 = vmatprep.subr.bf16.mxu0 0
    %7176 = vmatpush2.bf16.msra.mxu0 0
    %7177 = vmatprep.mubr.bf16.mxu0 0
    %7178 = vmatmul.mubr.bf16.gmra.mxu0 %v7143
    %v7179 = vpop.f32.mrf.mxu0
    %v7180 = vadd.f32 0.0, %v7179
    %v7181 = vpop.f32.mrf.mxu0
    %v7182 = vpop.f32.mrf.mxu0
    %v7183 = vpop.f32.mrf.mxu0
    %7184 = vdwg.mxu0
    %v7185 = vadd.f32 %v7101, %v7180
    %v7186 = vrot.slane %v6682, 6
    %v7187 = vrot.slane %v6683, 5
    %v7188 = vsel %vm6685, %v7187, %v7186
    %v7189 = vpack.c.b16 %v7188, %v7188
    %v7202 = vunpack.c.l.b16 %v6560
    %v7203 = vunpack.c.l.b16 %v6561
    %v7204 = vunpack.c.l.b16 %v6562
    %v7205 = vunpack.c.l.b16 %v6563
    %v7206 = vunpack.c.l.b16 %v6564
    %v7207 = vunpack.c.l.b16 %v6565
    %v7208 = vunpack.c.l.b16 %v6566
    %v7209 = vunpack.c.l.b16 %v6567
    %v7210 = vunpack.c.l.b16 %v6568
    %v7211 = vunpack.c.l.b16 %v6569
    %v7212 = vunpack.c.l.b16 %v6570
    %v7213 = vunpack.c.l.b16 %v6571
    %v7214 = vpack.c.b16 %v7203, %v7202
    %v7215 = vpack.c.b16 %v7205, %v7204
    %v7216 = vpack.c.b16 %v7207, %v7206
    %v7217 = vpack.c.b16 %v7209, %v7208
    %v7218 = vpack.c.b16 %v7211, %v7210
    %v7219 = vpack.c.b16 %v7213, %v7212
    %v7227 = vsel %vm6724, %v7189, 0
    %7229 = vmatprep.subr.bf16.mxu0 0
    %7230 = vmatpush1.bf16.msra.mxu0 0
    %7231 = vmatprep.subr.bf16.mxu0 0
    %7232 = vmatpush1.bf16.msra.mxu0 0
    %7233 = vmatprep.subr.bf16.mxu0 0
    %7234 = vmatpush1.bf16.msra.mxu0 %v7219
    %7235 = vmatprep.subr.bf16.mxu0 0
    %7236 = vmatpush1.bf16.msra.mxu0 %v7218
    %7237 = vmatprep.subr.bf16.mxu0 0
    %7238 = vmatpush1.bf16.msra.mxu0 %v7217
    %7239 = vmatprep.subr.bf16.mxu0 0
    %7240 = vmatpush1.bf16.msra.mxu0 %v7216
    %7241 = vmatprep.subr.bf16.mxu0 0
    %7242 = vmatpush1.bf16.msra.mxu0 %v7215
    %7243 = vmatprep.subr.bf16.mxu0 0
    %7244 = vmatpush1.bf16.msra.mxu0 %v7214
    %7245 = vmatprep.subr.bf16.mxu0 0
    %7246 = vmatpush2.bf16.msra.mxu0 0
    %7247 = vmatprep.subr.bf16.mxu0 0
    %7248 = vmatpush2.bf16.msra.mxu0 0
    %7249 = vmatprep.subr.bf16.mxu0 0
    %7250 = vmatpush2.bf16.msra.mxu0 0
    %7251 = vmatprep.subr.bf16.mxu0 0
    %7252 = vmatpush2.bf16.msra.mxu0 0
    %7253 = vmatprep.subr.bf16.mxu0 0
    %7254 = vmatpush2.bf16.msra.mxu0 0
    %7255 = vmatprep.subr.bf16.mxu0 0
    %7256 = vmatpush2.bf16.msra.mxu0 0
    %7257 = vmatprep.subr.bf16.mxu0 0
    %7258 = vmatpush2.bf16.msra.mxu0 0
    %7259 = vmatprep.subr.bf16.mxu0 0
    %7260 = vmatpush2.bf16.msra.mxu0 0
    %7261 = vmatprep.mubr.bf16.mxu0 0
    %7262 = vmatmul.mubr.bf16.gmra.mxu0 %v7227
    %v7263 = vpop.f32.mrf.mxu0
    %v7264 = vadd.f32 0.0, %v7263
    %v7265 = vpop.f32.mrf.mxu0
    %v7266 = vpop.f32.mrf.mxu0
    %v7267 = vpop.f32.mrf.mxu0
    %7268 = vdwg.mxu0
    %v7269 = vadd.f32 %v7185, %v7264
    %v7270 = vrot.slane %v6682, 7
    %v7271 = vrot.slane %v6683, 6
    %v7272 = vsel %vm6685, %v7271, %v7270
    %v7273 = vpack.c.b16 %v7272, %v7272
    %v7286 = vunpack.c.l.b16 %v6572
    %v7287 = vunpack.c.l.b16 %v6573
    %v7288 = vunpack.c.l.b16 %v6574
    %v7289 = vunpack.c.l.b16 %v6575
    %v7290 = vunpack.c.l.b16 %v6576
    %v7291 = vunpack.c.l.b16 %v6577
    %v7292 = vunpack.c.l.b16 %v6578
    %v7293 = vunpack.c.l.b16 %v6579
    %v7294 = vunpack.c.l.b16 %v6580
    %v7295 = vunpack.c.l.b16 %v6581
    %v7296 = vunpack.c.l.b16 %v6582
    %v7297 = vunpack.c.l.b16 %v6583
    %v7298 = vpack.c.b16 %v7287, %v7286
    %v7299 = vpack.c.b16 %v7289, %v7288
    %v7300 = vpack.c.b16 %v7291, %v7290
    %v7301 = vpack.c.b16 %v7293, %v7292
    %v7302 = vpack.c.b16 %v7295, %v7294
    %v7303 = vpack.c.b16 %v7297, %v7296
    %v7311 = vsel %vm6724, %v7273, 0
    %7313 = vmatprep.subr.bf16.mxu0 0
    %7314 = vmatpush1.bf16.msra.mxu0 0
    %7315 = vmatprep.subr.bf16.mxu0 0
    %7316 = vmatpush1.bf16.msra.mxu0 0
    %7317 = vmatprep.subr.bf16.mxu0 0
    %7318 = vmatpush1.bf16.msra.mxu0 %v7303
    %7319 = vmatprep.subr.bf16.mxu0 0
    %7320 = vmatpush1.bf16.msra.mxu0 %v7302
    %7321 = vmatprep.subr.bf16.mxu0 0
    %7322 = vmatpush1.bf16.msra.mxu0 %v7301
    %7323 = vmatprep.subr.bf16.mxu0 0
    %7324 = vmatpush1.bf16.msra.mxu0 %v7300
    %7325 = vmatprep.subr.bf16.mxu0 0
    %7326 = vmatpush1.bf16.msra.mxu0 %v7299
    %7327 = vmatprep.subr.bf16.mxu0 0
    %7328 = vmatpush1.bf16.msra.mxu0 %v7298
    %7329 = vmatprep.subr.bf16.mxu0 0
    %7330 = vmatpush2.bf16.msra.mxu0 0
    %7331 = vmatprep.subr.bf16.mxu0 0
    %7332 = vmatpush2.bf16.msra.mxu0 0
    %7333 = vmatprep.subr.bf16.mxu0 0
    %7334 = vmatpush2.bf16.msra.mxu0 0
    %7335 = vmatprep.subr.bf16.mxu0 0
    %7336 = vmatpush2.bf16.msra.mxu0 0
    %7337 = vmatprep.subr.bf16.mxu0 0
    %7338 = vmatpush2.bf16.msra.mxu0 0
    %7339 = vmatprep.subr.bf16.mxu0 0
    %7340 = vmatpush2.bf16.msra.mxu0 0
    %7341 = vmatprep.subr.bf16.mxu0 0
    %7342 = vmatpush2.bf16.msra.mxu0 0
    %7343 = vmatprep.subr.bf16.mxu0 0
    %7344 = vmatpush2.bf16.msra.mxu0 0
    %7345 = vmatprep.mubr.bf16.mxu0 0
    %7346 = vmatmul.mubr.bf16.gmra.mxu0 %v7311
    %v7347 = vpop.f32.mrf.mxu0
    %v7348 = vadd.f32 0.0, %v7347
    %v7349 = vpop.f32.mrf.mxu0
    %v7350 = vpop.f32.mrf.mxu0
    %v7351 = vpop.f32.mrf.mxu0
    %7352 = vdwg.mxu0
    %v7353 = vadd.f32 %v7269, %v7348
    %v7354 = vunpack.c.h.b16 %v6486
    %v7355 = vunpack.c.h.b16 %v6487
    %v7356 = vrot.slane %v7355, 7
    %v7357 = vsel %vm6685, %v7356, %v7354
    %v7358 = vpack.c.b16 %v7357, %v7357
    %v7371 = vunpack.c.l.b16 %v6584
    %v7372 = vunpack.c.l.b16 %v6585
    %v7373 = vunpack.c.l.b16 %v6586
    %v7374 = vunpack.c.l.b16 %v6587
    %v7375 = vunpack.c.l.b16 %v6588
    %v7376 = vunpack.c.l.b16 %v6589
    %v7377 = vunpack.c.l.b16 %v6590
    %v7378 = vunpack.c.l.b16 %v6591
    %v7379 = vunpack.c.l.b16 %v6592
    %v7380 = vunpack.c.l.b16 %v6593
    %v7381 = vunpack.c.l.b16 %v6594
    %v7382 = vunpack.c.l.b16 %v6595
    %v7383 = vpack.c.b16 %v7372, %v7371
    %v7384 = vpack.c.b16 %v7374, %v7373
    %v7385 = vpack.c.b16 %v7376, %v7375
    %v7386 = vpack.c.b16 %v7378, %v7377
    %v7387 = vpack.c.b16 %v7380, %v7379
    %v7388 = vpack.c.b16 %v7382, %v7381
    %v7396 = vsel %vm6724, %v7358, 0
    %7398 = vmatprep.subr.bf16.mxu0 0
    %7399 = vmatpush1.bf16.msra.mxu0 0
    %7400 = vmatprep.subr.bf16.mxu0 0
    %7401 = vmatpush1.bf16.msra.mxu0 0
    %7402 = vmatprep.subr.bf16.mxu0 0
    %7403 = vmatpush1.bf16.msra.mxu0 %v7388
    %7404 = vmatprep.subr.bf16.mxu0 0
    %7405 = vmatpush1.bf16.msra.mxu0 %v7387
    %7406 = vmatprep.subr.bf16.mxu0 0
    %7407 = vmatpush1.bf16.msra.mxu0 %v7386
    %7408 = vmatprep.subr.bf16.mxu0 0
    %7409 = vmatpush1.bf16.msra.mxu0 %v7385
    %7410 = vmatprep.subr.bf16.mxu0 0
    %7411 = vmatpush1.bf16.msra.mxu0 %v7384
    %7412 = vmatprep.subr.bf16.mxu0 0
    %7413 = vmatpush1.bf16.msra.mxu0 %v7383
    %7414 = vmatprep.subr.bf16.mxu0 0
    %7415 = vmatpush2.bf16.msra.mxu0 0
    %7416 = vmatprep.subr.bf16.mxu0 0
    %7417 = vmatpush2.bf16.msra.mxu0 0
    %7418 = vmatprep.subr.bf16.mxu0 0
    %7419 = vmatpush2.bf16.msra.mxu0 0
    %7420 = vmatprep.subr.bf16.mxu0 0
    %7421 = vmatpush2.bf16.msra.mxu0 0
    %7422 = vmatprep.subr.bf16.mxu0 0
    %7423 = vmatpush2.bf16.msra.mxu0 0
    %7424 = vmatprep.subr.bf16.mxu0 0
    %7425 = vmatpush2.bf16.msra.mxu0 0
    %7426 = vmatprep.subr.bf16.mxu0 0
    %7427 = vmatpush2.bf16.msra.mxu0 0
    %7428 = vmatprep.subr.bf16.mxu0 0
    %7429 = vmatpush2.bf16.msra.mxu0 0
    %7430 = vmatprep.mubr.bf16.mxu0 0
    %7431 = vmatmul.mubr.bf16.gmra.mxu0 %v7396
    %v7432 = vpop.f32.mrf.mxu0
    %v7433 = vadd.f32 0.0, %v7432
    %v7434 = vpop.f32.mrf.mxu0
    %v7435 = vpop.f32.mrf.mxu0
    %v7436 = vpop.f32.mrf.mxu0
    %7437 = vdwg.mxu0
    %v7438 = vadd.f32 %v7353, %v7433
    %v7439 = vrot.slane %v7354, 1
    %v7440 = vsel %vm6685, %v7355, %v7439
    %v7441 = vpack.c.b16 %v7440, %v7440
    %v7454 = vunpack.c.l.b16 %v6596
    %v7455 = vunpack.c.l.b16 %v6597
    %v7456 = vunpack.c.l.b16 %v6598
    %v7457 = vunpack.c.l.b16 %v6599
    %v7458 = vunpack.c.l.b16 %v6600
    %v7459 = vunpack.c.l.b16 %v6601
    %v7460 = vunpack.c.l.b16 %v6602
    %v7461 = vunpack.c.l.b16 %v6603
    %v7462 = vunpack.c.l.b16 %v6604
    %v7463 = vunpack.c.l.b16 %v6605
    %v7464 = vunpack.c.l.b16 %v6606
    %v7465 = vunpack.c.l.b16 %v6607
    %v7466 = vpack.c.b16 %v7455, %v7454
    %v7467 = vpack.c.b16 %v7457, %v7456
    %v7468 = vpack.c.b16 %v7459, %v7458
    %v7469 = vpack.c.b16 %v7461, %v7460
    %v7470 = vpack.c.b16 %v7463, %v7462
    %v7471 = vpack.c.b16 %v7465, %v7464
    %v7479 = vsel %vm6724, %v7441, 0
    %7481 = vmatprep.subr.bf16.mxu0 0
    %7482 = vmatpush1.bf16.msra.mxu0 0
    %7483 = vmatprep.subr.bf16.mxu0 0
    %7484 = vmatpush1.bf16.msra.mxu0 0
    %7485 = vmatprep.subr.bf16.mxu0 0
    %7486 = vmatpush1.bf16.msra.mxu0 %v7471
    %7487 = vmatprep.subr.bf16.mxu0 0
    %7488 = vmatpush1.bf16.msra.mxu0 %v7470
    %7489 = vmatprep.subr.bf16.mxu0 0
    %7490 = vmatpush1.bf16.msra.mxu0 %v7469
    %7491 = vmatprep.subr.bf16.mxu0 0
    %7492 = vmatpush1.bf16.msra.mxu0 %v7468
    %7493 = vmatprep.subr.bf16.mxu0 0
    %7494 = vmatpush1.bf16.msra.mxu0 %v7467
    %7495 = vmatprep.subr.bf16.mxu0 0
    %7496 = vmatpush1.bf16.msra.mxu0 %v7466
    %7497 = vmatprep.subr.bf16.mxu0 0
    %7498 = vmatpush2.bf16.msra.mxu0 0
    %7499 = vmatprep.subr.bf16.mxu0 0
    %7500 = vmatpush2.bf16.msra.mxu0 0
    %7501 = vmatprep.subr.bf16.mxu0 0
    %7502 = vmatpush2.bf16.msra.mxu0 0
    %7503 = vmatprep.subr.bf16.mxu0 0
    %7504 = vmatpush2.bf16.msra.mxu0 0
    %7505 = vmatprep.subr.bf16.mxu0 0
    %7506 = vmatpush2.bf16.msra.mxu0 0
    %7507 = vmatprep.subr.bf16.mxu0 0
    %7508 = vmatpush2.bf16.msra.mxu0 0
    %7509 = vmatprep.subr.bf16.mxu0 0
    %7510 = vmatpush2.bf16.msra.mxu0 0
    %7511 = vmatprep.subr.bf16.mxu0 0
    %7512 = vmatpush2.bf16.msra.mxu0 0
    %7513 = vmatprep.mubr.bf16.mxu0 0
    %7514 = vmatmul.mubr.bf16.gmra.mxu0 %v7479
    %v7515 = vpop.f32.mrf.mxu0
    %v7516 = vadd.f32 0.0, %v7515
    %v7517 = vpop.f32.mrf.mxu0
    %v7518 = vpop.f32.mrf.mxu0
    %v7519 = vpop.f32.mrf.mxu0
    %7520 = vdwg.mxu0
    %v7521 = vadd.f32 %v7438, %v7516
    %v7522 = vrot.slane %v7354, 2
    %v7523 = vrot.slane %v7355, 1
    %v7524 = vsel %vm6685, %v7523, %v7522
    %v7525 = vpack.c.b16 %v7524, %v7524
    %v7538 = vunpack.c.l.b16 %v6608
    %v7539 = vunpack.c.l.b16 %v6609
    %v7540 = vunpack.c.l.b16 %v6610
    %v7541 = vunpack.c.l.b16 %v6611
    %v7542 = vunpack.c.l.b16 %v6612
    %v7543 = vunpack.c.l.b16 %v6613
    %v7544 = vunpack.c.l.b16 %v6614
    %v7545 = vunpack.c.l.b16 %v6615
    %v7546 = vunpack.c.l.b16 %v6616
    %v7547 = vunpack.c.l.b16 %v6617
    %v7548 = vunpack.c.l.b16 %v6618
    %v7549 = vunpack.c.l.b16 %v6619
    %v7550 = vpack.c.b16 %v7539, %v7538
    %v7551 = vpack.c.b16 %v7541, %v7540
    %v7552 = vpack.c.b16 %v7543, %v7542
    %v7553 = vpack.c.b16 %v7545, %v7544
    %v7554 = vpack.c.b16 %v7547, %v7546
    %v7555 = vpack.c.b16 %v7549, %v7548
    %v7563 = vsel %vm6724, %v7525, 0
    %7565 = vmatprep.subr.bf16.mxu0 0
    %7566 = vmatpush1.bf16.msra.mxu0 0
    %7567 = vmatprep.subr.bf16.mxu0 0
    %7568 = vmatpush1.bf16.msra.mxu0 0
    %7569 = vmatprep.subr.bf16.mxu0 0
    %7570 = vmatpush1.bf16.msra.mxu0 %v7555
    %7571 = vmatprep.subr.bf16.mxu0 0
    %7572 = vmatpush1.bf16.msra.mxu0 %v7554
    %7573 = vmatprep.subr.bf16.mxu0 0
    %7574 = vmatpush1.bf16.msra.mxu0 %v7553
    %7575 = vmatprep.subr.bf16.mxu0 0
    %7576 = vmatpush1.bf16.msra.mxu0 %v7552
    %7577 = vmatprep.subr.bf16.mxu0 0
    %7578 = vmatpush1.bf16.msra.mxu0 %v7551
    %7579 = vmatprep.subr.bf16.mxu0 0
    %7580 = vmatpush1.bf16.msra.mxu0 %v7550
    %7581 = vmatprep.subr.bf16.mxu0 0
    %7582 = vmatpush2.bf16.msra.mxu0 0
    %7583 = vmatprep.subr.bf16.mxu0 0
    %7584 = vmatpush2.bf16.msra.mxu0 0
    %7585 = vmatprep.subr.bf16.mxu0 0
    %7586 = vmatpush2.bf16.msra.mxu0 0
    %7587 = vmatprep.subr.bf16.mxu0 0
    %7588 = vmatpush2.bf16.msra.mxu0 0
    %7589 = vmatprep.subr.bf16.mxu0 0
    %7590 = vmatpush2.bf16.msra.mxu0 0
    %7591 = vmatprep.subr.bf16.mxu0 0
    %7592 = vmatpush2.bf16.msra.mxu0 0
    %7593 = vmatprep.subr.bf16.mxu0 0
    %7594 = vmatpush2.bf16.msra.mxu0 0
    %7595 = vmatprep.subr.bf16.mxu0 0
    %7596 = vmatpush2.bf16.msra.mxu0 0
    %7597 = vmatprep.mubr.bf16.mxu0 0
    %7598 = vmatmul.mubr.bf16.gmra.mxu0 %v7563
    %v7599 = vpop.f32.mrf.mxu0
    %v7600 = vadd.f32 0.0, %v7599
    %v7601 = vpop.f32.mrf.mxu0
    %v7602 = vpop.f32.mrf.mxu0
    %v7603 = vpop.f32.mrf.mxu0
    %7604 = vdwg.mxu0
    %v7605 = vadd.f32 %v7521, %v7600
    %v7606 = vrot.slane %v7354, 3
    %v7607 = vrot.slane %v7355, 2
    %v7608 = vsel %vm6685, %v7607, %v7606
    %v7609 = vpack.c.b16 %v7608, %v7608
    %v7622 = vunpack.c.l.b16 %v6620
    %v7623 = vunpack.c.l.b16 %v6621
    %v7624 = vunpack.c.l.b16 %v6622
    %v7625 = vunpack.c.l.b16 %v6623
    %v7626 = vunpack.c.l.b16 %v6624
    %v7627 = vunpack.c.l.b16 %v6625
    %v7628 = vunpack.c.l.b16 %v6626
    %v7629 = vunpack.c.l.b16 %v6627
    %v7630 = vunpack.c.l.b16 %v6628
    %v7631 = vunpack.c.l.b16 %v6629
    %v7632 = vunpack.c.l.b16 %v6630
    %v7633 = vunpack.c.l.b16 %v6631
    %v7634 = vpack.c.b16 %v7623, %v7622
    %v7635 = vpack.c.b16 %v7625, %v7624
    %v7636 = vpack.c.b16 %v7627, %v7626
    %v7637 = vpack.c.b16 %v7629, %v7628
    %v7638 = vpack.c.b16 %v7631, %v7630
    %v7639 = vpack.c.b16 %v7633, %v7632
    %v7647 = vsel %vm6724, %v7609, 0
    %7649 = vmatprep.subr.bf16.mxu0 0
    %7650 = vmatpush1.bf16.msra.mxu0 0
    %7651 = vmatprep.subr.bf16.mxu0 0
    %7652 = vmatpush1.bf16.msra.mxu0 0
    %7653 = vmatprep.subr.bf16.mxu0 0
    %7654 = vmatpush1.bf16.msra.mxu0 %v7639
    %7655 = vmatprep.subr.bf16.mxu0 0
    %7656 = vmatpush1.bf16.msra.mxu0 %v7638
    %7657 = vmatprep.subr.bf16.mxu0 0
    %7658 = vmatpush1.bf16.msra.mxu0 %v7637
    %7659 = vmatprep.subr.bf16.mxu0 0
    %7660 = vmatpush1.bf16.msra.mxu0 %v7636
    %7661 = vmatprep.subr.bf16.mxu0 0
    %7662 = vmatpush1.bf16.msra.mxu0 %v7635
    %7663 = vmatprep.subr.bf16.mxu0 0
    %7664 = vmatpush1.bf16.msra.mxu0 %v7634
    %7665 = vmatprep.subr.bf16.mxu0 0
    %7666 = vmatpush2.bf16.msra.mxu0 0
    %7667 = vmatprep.subr.bf16.mxu0 0
    %7668 = vmatpush2.bf16.msra.mxu0 0
    %7669 = vmatprep.subr.bf16.mxu0 0
    %7670 = vmatpush2.bf16.msra.mxu0 0
    %7671 = vmatprep.subr.bf16.mxu0 0
    %7672 = vmatpush2.bf16.msra.mxu0 0
    %7673 = vmatprep.subr.bf16.mxu0 0
    %7674 = vmatpush2.bf16.msra.mxu0 0
    %7675 = vmatprep.subr.bf16.mxu0 0
    %7676 = vmatpush2.bf16.msra.mxu0 0
    %7677 = vmatprep.subr.bf16.mxu0 0
    %7678 = vmatpush2.bf16.msra.mxu0 0
    %7679 = vmatprep.subr.bf16.mxu0 0
    %7680 = vmatpush2.bf16.msra.mxu0 0
    %7681 = vmatprep.mubr.bf16.mxu0 0
    %7682 = vmatmul.mubr.bf16.gmra.mxu0 %v7647
    %v7683 = vpop.f32.mrf.mxu0
    %v7684 = vadd.f32 0.0, %v7683
    %v7685 = vpop.f32.mrf.mxu0
    %v7686 = vpop.f32.mrf.mxu0
    %v7687 = vpop.f32.mrf.mxu0
    %7688 = vdwg.mxu0
    %v7689 = vadd.f32 %v7605, %v7684
    %v7690 = vrot.slane %v7354, 4
    %v7691 = vrot.slane %v7355, 3
    %v7692 = vsel %vm6685, %v7691, %v7690
    %v7693 = vpack.c.b16 %v7692, %v7692
    %v7706 = vunpack.c.l.b16 %v6632
    %v7707 = vunpack.c.l.b16 %v6633
    %v7708 = vunpack.c.l.b16 %v6634
    %v7709 = vunpack.c.l.b16 %v6635
    %v7710 = vunpack.c.l.b16 %v6636
    %v7711 = vunpack.c.l.b16 %v6637
    %v7712 = vunpack.c.l.b16 %v6638
    %v7713 = vunpack.c.l.b16 %v6639
    %v7714 = vunpack.c.l.b16 %v6640
    %v7715 = vunpack.c.l.b16 %v6641
    %v7716 = vunpack.c.l.b16 %v6642
    %v7717 = vunpack.c.l.b16 %v6643
    %v7718 = vpack.c.b16 %v7707, %v7706
    %v7719 = vpack.c.b16 %v7709, %v7708
    %v7720 = vpack.c.b16 %v7711, %v7710
    %v7721 = vpack.c.b16 %v7713, %v7712
    %v7722 = vpack.c.b16 %v7715, %v7714
    %v7723 = vpack.c.b16 %v7717, %v7716
    %v7731 = vsel %vm6724, %v7693, 0
    %7733 = vmatprep.subr.bf16.mxu0 0
    %7734 = vmatpush1.bf16.msra.mxu0 0
    %7735 = vmatprep.subr.bf16.mxu0 0
    %7736 = vmatpush1.bf16.msra.mxu0 0
    %7737 = vmatprep.subr.bf16.mxu0 0
    %7738 = vmatpush1.bf16.msra.mxu0 %v7723
    %7739 = vmatprep.subr.bf16.mxu0 0
    %7740 = vmatpush1.bf16.msra.mxu0 %v7722
    %7741 = vmatprep.subr.bf16.mxu0 0
    %7742 = vmatpush1.bf16.msra.mxu0 %v7721
    %7743 = vmatprep.subr.bf16.mxu0 0
    %7744 = vmatpush1.bf16.msra.mxu0 %v7720
    %7745 = vmatprep.subr.bf16.mxu0 0
    %7746 = vmatpush1.bf16.msra.mxu0 %v7719
    %7747 = vmatprep.subr.bf16.mxu0 0
    %7748 = vmatpush1.bf16.msra.mxu0 %v7718
    %7749 = vmatprep.subr.bf16.mxu0 0
    %7750 = vmatpush2.bf16.msra.mxu0 0
    %7751 = vmatprep.subr.bf16.mxu0 0
    %7752 = vmatpush2.bf16.msra.mxu0 0
    %7753 = vmatprep.subr.bf16.mxu0 0
    %7754 = vmatpush2.bf16.msra.mxu0 0
    %7755 = vmatprep.subr.bf16.mxu0 0
    %7756 = vmatpush2.bf16.msra.mxu0 0
    %7757 = vmatprep.subr.bf16.mxu0 0
    %7758 = vmatpush2.bf16.msra.mxu0 0
    %7759 = vmatprep.subr.bf16.mxu0 0
    %7760 = vmatpush2.bf16.msra.mxu0 0
    %7761 = vmatprep.subr.bf16.mxu0 0
    %7762 = vmatpush2.bf16.msra.mxu0 0
    %7763 = vmatprep.subr.bf16.mxu0 0
    %7764 = vmatpush2.bf16.msra.mxu0 0
    %7765 = vmatprep.mubr.bf16.mxu0 0
    %7766 = vmatmul.mubr.bf16.gmra.mxu0 %v7731
    %v7767 = vpop.f32.mrf.mxu0
    %v7768 = vadd.f32 0.0, %v7767
    %v7769 = vpop.f32.mrf.mxu0
    %v7770 = vpop.f32.mrf.mxu0
    %v7771 = vpop.f32.mrf.mxu0
    %7772 = vdwg.mxu0
    %v7773 = vadd.f32 %v7689, %v7768
    %v7774 = vrot.slane %v7354, 5
    %v7775 = vrot.slane %v7355, 4
    %v7776 = vsel %vm6685, %v7775, %v7774
    %v7777 = vpack.c.b16 %v7776, %v7776
    %v7790 = vunpack.c.l.b16 %v6644
    %v7791 = vunpack.c.l.b16 %v6645
    %v7792 = vunpack.c.l.b16 %v6646
    %v7793 = vunpack.c.l.b16 %v6647
    %v7794 = vunpack.c.l.b16 %v6648
    %v7795 = vunpack.c.l.b16 %v6649
    %v7796 = vunpack.c.l.b16 %v6650
    %v7797 = vunpack.c.l.b16 %v6651
    %v7798 = vunpack.c.l.b16 %v6652
    %v7799 = vunpack.c.l.b16 %v6653
    %v7800 = vunpack.c.l.b16 %v6654
    %v7801 = vunpack.c.l.b16 %v6655
    %v7802 = vpack.c.b16 %v7791, %v7790
    %v7803 = vpack.c.b16 %v7793, %v7792
    %v7804 = vpack.c.b16 %v7795, %v7794
    %v7805 = vpack.c.b16 %v7797, %v7796
    %v7806 = vpack.c.b16 %v7799, %v7798
    %v7807 = vpack.c.b16 %v7801, %v7800
    %v7815 = vsel %vm6724, %v7777, 0
    %7817 = vmatprep.subr.bf16.mxu0 0
    %7818 = vmatpush1.bf16.msra.mxu0 0
    %7819 = vmatprep.subr.bf16.mxu0 0
    %7820 = vmatpush1.bf16.msra.mxu0 0
    %7821 = vmatprep.subr.bf16.mxu0 0
    %7822 = vmatpush1.bf16.msra.mxu0 %v7807
    %7823 = vmatprep.subr.bf16.mxu0 0
    %7824 = vmatpush1.bf16.msra.mxu0 %v7806
    %7825 = vmatprep.subr.bf16.mxu0 0
    %7826 = vmatpush1.bf16.msra.mxu0 %v7805
    %7827 = vmatprep.subr.bf16.mxu0 0
    %7828 = vmatpush1.bf16.msra.mxu0 %v7804
    %7829 = vmatprep.subr.bf16.mxu0 0
    %7830 = vmatpush1.bf16.msra.mxu0 %v7803
    %7831 = vmatprep.subr.bf16.mxu0 0
    %7832 = vmatpush1.bf16.msra.mxu0 %v7802
    %7833 = vmatprep.subr.bf16.mxu0 0
    %7834 = vmatpush2.bf16.msra.mxu0 0
    %7835 = vmatprep.subr.bf16.mxu0 0
    %7836 = vmatpush2.bf16.msra.mxu0 0
    %7837 = vmatprep.subr.bf16.mxu0 0
    %7838 = vmatpush2.bf16.msra.mxu0 0
    %7839 = vmatprep.subr.bf16.mxu0 0
    %7840 = vmatpush2.bf16.msra.mxu0 0
    %7841 = vmatprep.subr.bf16.mxu0 0
    %7842 = vmatpush2.bf16.msra.mxu0 0
    %7843 = vmatprep.subr.bf16.mxu0 0
    %7844 = vmatpush2.bf16.msra.mxu0 0
    %7845 = vmatprep.subr.bf16.mxu0 0
    %7846 = vmatpush2.bf16.msra.mxu0 0
    %7847 = vmatprep.subr.bf16.mxu0 0
    %7848 = vmatpush2.bf16.msra.mxu0 0
    %7849 = vmatprep.mubr.bf16.mxu0 0
    %7850 = vmatmul.mubr.bf16.gmra.mxu0 %v7815
    %v7851 = vpop.f32.mrf.mxu0
    %v7852 = vadd.f32 0.0, %v7851
    %v7853 = vpop.f32.mrf.mxu0
    %v7854 = vpop.f32.mrf.mxu0
    %v7855 = vpop.f32.mrf.mxu0
    %7856 = vdwg.mxu0
    %v7857 = vadd.f32 %v7773, %v7852
    %v7858 = vrot.slane %v7354, 6
    %v7859 = vrot.slane %v7355, 5
    %v7860 = vsel %vm6685, %v7859, %v7858
    %v7861 = vpack.c.b16 %v7860, %v7860
    %v7874 = vunpack.c.l.b16 %v6656
    %v7875 = vunpack.c.l.b16 %v6657
    %v7876 = vunpack.c.l.b16 %v6658
    %v7877 = vunpack.c.l.b16 %v6659
    %v7878 = vunpack.c.l.b16 %v6660
    %v7879 = vunpack.c.l.b16 %v6661
    %v7880 = vunpack.c.l.b16 %v6662
    %v7881 = vunpack.c.l.b16 %v6663
    %v7882 = vunpack.c.l.b16 %v6664
    %v7883 = vunpack.c.l.b16 %v6665
    %v7884 = vunpack.c.l.b16 %v6666
    %v7885 = vunpack.c.l.b16 %v6667
    %v7886 = vpack.c.b16 %v7875, %v7874
    %v7887 = vpack.c.b16 %v7877, %v7876
    %v7888 = vpack.c.b16 %v7879, %v7878
    %v7889 = vpack.c.b16 %v7881, %v7880
    %v7890 = vpack.c.b16 %v7883, %v7882
    %v7891 = vpack.c.b16 %v7885, %v7884
    %v7899 = vsel %vm6724, %v7861, 0
    %7901 = vmatprep.subr.bf16.mxu0 0
    %7902 = vmatpush1.bf16.msra.mxu0 0
    %7903 = vmatprep.subr.bf16.mxu0 0
    %7904 = vmatpush1.bf16.msra.mxu0 0
    %7905 = vmatprep.subr.bf16.mxu0 0
    %7906 = vmatpush1.bf16.msra.mxu0 %v7891
    %7907 = vmatprep.subr.bf16.mxu0 0
    %7908 = vmatpush1.bf16.msra.mxu0 %v7890
    %7909 = vmatprep.subr.bf16.mxu0 0
    %7910 = vmatpush1.bf16.msra.mxu0 %v7889
    %7911 = vmatprep.subr.bf16.mxu0 0
    %7912 = vmatpush1.bf16.msra.mxu0 %v7888
    %7913 = vmatprep.subr.bf16.mxu0 0
    %7914 = vmatpush1.bf16.msra.mxu0 %v7887
    %7915 = vmatprep.subr.bf16.mxu0 0
    %7916 = vmatpush1.bf16.msra.mxu0 %v7886
    %7917 = vmatprep.subr.bf16.mxu0 0
    %7918 = vmatpush2.bf16.msra.mxu0 0
    %7919 = vmatprep.subr.bf16.mxu0 0
    %7920 = vmatpush2.bf16.msra.mxu0 0
    %7921 = vmatprep.subr.bf16.mxu0 0
    %7922 = vmatpush2.bf16.msra.mxu0 0
    %7923 = vmatprep.subr.bf16.mxu0 0
    %7924 = vmatpush2.bf16.msra.mxu0 0
    %7925 = vmatprep.subr.bf16.mxu0 0
    %7926 = vmatpush2.bf16.msra.mxu0 0
    %7927 = vmatprep.subr.bf16.mxu0 0
    %7928 = vmatpush2.bf16.msra.mxu0 0
    %7929 = vmatprep.subr.bf16.mxu0 0
    %7930 = vmatpush2.bf16.msra.mxu0 0
    %7931 = vmatprep.subr.bf16.mxu0 0
    %7932 = vmatpush2.bf16.msra.mxu0 0
    %7933 = vmatprep.mubr.bf16.mxu0 0
    %7934 = vmatmul.mubr.bf16.gmra.mxu0 %v7899
    %v7935 = vpop.f32.mrf.mxu0
    %v7936 = vadd.f32 0.0, %v7935
    %v7937 = vpop.f32.mrf.mxu0
    %v7938 = vpop.f32.mrf.mxu0
    %v7939 = vpop.f32.mrf.mxu0
    %7940 = vdwg.mxu0
    %v7941 = vadd.f32 %v7857, %v7936
    %v7942 = vrot.slane %v7354, 7
    %v7943 = vrot.slane %v7355, 6
    %v7944 = vsel %vm6685, %v7943, %v7942
    %v7945 = vpack.c.b16 %v7944, %v7944
    %v7958 = vunpack.c.l.b16 %v6668
    %v7959 = vunpack.c.l.b16 %v6669
    %v7960 = vunpack.c.l.b16 %v6670
    %v7961 = vunpack.c.l.b16 %v6671
    %v7962 = vunpack.c.l.b16 %v6672
    %v7963 = vunpack.c.l.b16 %v6673
    %v7964 = vunpack.c.l.b16 %v6674
    %v7965 = vunpack.c.l.b16 %v6675
    %v7966 = vunpack.c.l.b16 %v6676
    %v7967 = vunpack.c.l.b16 %v6677
    %v7968 = vunpack.c.l.b16 %v6678
    %v7969 = vunpack.c.l.b16 %v6679
    %v7970 = vpack.c.b16 %v7959, %v7958
    %v7971 = vpack.c.b16 %v7961, %v7960
    %v7972 = vpack.c.b16 %v7963, %v7962
    %v7973 = vpack.c.b16 %v7965, %v7964
    %v7974 = vpack.c.b16 %v7967, %v7966
    %v7975 = vpack.c.b16 %v7969, %v7968
    %v7983 = vsel %vm6724, %v7945, 0
    %7985 = vmatprep.subr.bf16.mxu0 0
    %7986 = vmatpush1.bf16.msra.mxu0 0
    %7987 = vmatprep.subr.bf16.mxu0 0
    %7988 = vmatpush1.bf16.msra.mxu0 0
    %7989 = vmatprep.subr.bf16.mxu0 0
    %7990 = vmatpush1.bf16.msra.mxu0 %v7975
    %7991 = vmatprep.subr.bf16.mxu0 0
    %7992 = vmatpush1.bf16.msra.mxu0 %v7974
    %7993 = vmatprep.subr.bf16.mxu0 0
    %7994 = vmatpush1.bf16.msra.mxu0 %v7973
    %7995 = vmatprep.subr.bf16.mxu0 0
    %7996 = vmatpush1.bf16.msra.mxu0 %v7972
    %7997 = vmatprep.subr.bf16.mxu0 0
    %7998 = vmatpush1.bf16.msra.mxu0 %v7971
    %7999 = vmatprep.subr.bf16.mxu0 0
    %8000 = vmatpush1.bf16.msra.mxu0 %v7970
    %8001 = vmatprep.subr.bf16.mxu0 0
    %8002 = vmatpush2.bf16.msra.mxu0 0
    %8003 = vmatprep.subr.bf16.mxu0 0
    %8004 = vmatpush2.bf16.msra.mxu0 0
    %8005 = vmatprep.subr.bf16.mxu0 0
    %8006 = vmatpush2.bf16.msra.mxu0 0
    %8007 = vmatprep.subr.bf16.mxu0 0
    %8008 = vmatpush2.bf16.msra.mxu0 0
    %8009 = vmatprep.subr.bf16.mxu0 0
    %8010 = vmatpush2.bf16.msra.mxu0 0
    %8011 = vmatprep.subr.bf16.mxu0 0
    %8012 = vmatpush2.bf16.msra.mxu0 0
    %8013 = vmatprep.subr.bf16.mxu0 0
    %8014 = vmatpush2.bf16.msra.mxu0 0
    %8015 = vmatprep.subr.bf16.mxu0 0
    %8016 = vmatpush2.bf16.msra.mxu0 0
    %8017 = vmatprep.mubr.bf16.mxu0 0
    %8018 = vmatmul.mubr.bf16.gmra.mxu0 %v7983
    %v8019 = vpop.f32.mrf.mxu0
    %v8020 = vadd.f32 0.0, %v8019
    %v8021 = vpop.f32.mrf.mxu0
    %v8022 = vpop.f32.mrf.mxu0
    %v8023 = vpop.f32.mrf.mxu0
    %8024 = vdwg.mxu0
    %v8025 = vadd.f32 %v7941, %v8020
    %v8026 = vld [vmem:[%s8] sm:$0x1]
    %v8028 = vlaneseq
    %v8029 = vshrl.u32 %v8028, 7
    %v8030 = vsub.s32 0, %v8029
    %v8031 = vrot.slane %v8026, %v8030
    %v8033 = vadd.f32 %v8025, %v8031
    %v8034 = vmax.f32 %v8033, 0.0
    %v8035 = vpack.c.bf16 %v8034, %v8034
    %v8036 = vld [vmem:[%s9] sm:$0xf]
    %v8037 = vld [vmem:[%s9 + $0x4] sm:$0xf]
    %v8038 = vld [vmem:[%s9 + $0x8] sm:$0xf]
    %v8039 = vld [vmem:[%s9 + $0xc] sm:$0xf]
    %v8040 = vld [vmem:[%s9 + $0x10] sm:$0xf]
    %v8041 = vld [vmem:[%s9 + $0x14] sm:$0xf]
    %v8042 = vld [vmem:[%s9 + $0x18] sm:$0xf]
    %v8043 = vld [vmem:[%s9 + $0x1c] sm:$0xf]
    %v8044 = vld [vmem:[%s9 + $0x20] sm:$0xf]
    %v8045 = vld [vmem:[%s9 + $0x24] sm:$0xf]
    %v8046 = vld [vmem:[%s9 + $0x28] sm:$0xf]
    %v8047 = vld [vmem:[%s9 + $0x2c] sm:$0xf]
    %v8048 = vld [vmem:[%s9 + $0x30] sm:$0xf]
    %v8049 = vld [vmem:[%s9 + $0x34] sm:$0xf]
    %v8050 = vld [vmem:[%s9 + $0x38] sm:$0xf]
    %v8051 = vld [vmem:[%s9 + $0x3c] sm:$0xf]
    %v8052 = vld [vmem:[%s10] sm:$0x1]
    %v8054 = vlaneseq
    %v8055 = vshrl.u32 %v8054, 7
    %v8056 = vsub.s32 0, %v8055
    %v8057 = vrot.slane %v8052, %v8056
    %v8075 = vunpack.c.l.b16 %v8036
    %v8076 = vunpack.c.l.b16 %v8037
    %v8077 = vunpack.c.l.b16 %v8038
    %v8078 = vunpack.c.l.b16 %v8039
    %v8079 = vunpack.c.l.b16 %v8040
    %v8080 = vunpack.c.l.b16 %v8041
    %v8081 = vunpack.c.l.b16 %v8042
    %v8082 = vunpack.c.l.b16 %v8043
    %v8083 = vunpack.c.l.b16 %v8044
    %v8084 = vunpack.c.l.b16 %v8045
    %v8085 = vunpack.c.l.b16 %v8046
    %v8086 = vunpack.c.l.b16 %v8047
    %v8087 = vunpack.c.l.b16 %v8048
    %v8088 = vunpack.c.l.b16 %v8049
    %v8089 = vunpack.c.l.b16 %v8050
    %v8090 = vunpack.c.l.b16 %v8051
    %v8091 = vpack.c.b16 %v8076, %v8075
    %v8092 = vpack.c.b16 %v8078, %v8077
    %v8093 = vpack.c.b16 %v8080, %v8079
    %v8094 = vpack.c.b16 %v8082, %v8081
    %v8095 = vpack.c.b16 %v8084, %v8083
    %v8096 = vpack.c.b16 %v8086, %v8085
    %v8097 = vpack.c.b16 %v8088, %v8087
    %v8098 = vpack.c.b16 %v8090, %v8089
    %8107 = vmatprep.subr.bf16.mxu0 0
    %8108 = vmatpush1.bf16.msra.mxu0 %v8098
    %8109 = vmatprep.subr.bf16.mxu0 0
    %8110 = vmatpush1.bf16.msra.mxu0 %v8097
    %8111 = vmatprep.subr.bf16.mxu0 0
    %8112 = vmatpush1.bf16.msra.mxu0 %v8096
    %8113 = vmatprep.subr.bf16.mxu0 0
    %8114 = vmatpush1.bf16.msra.mxu0 %v8095
    %8115 = vmatprep.subr.bf16.mxu0 0
    %8116 = vmatpush1.bf16.msra.mxu0 %v8094
    %8117 = vmatprep.subr.bf16.mxu0 0
    %8118 = vmatpush1.bf16.msra.mxu0 %v8093
    %8119 = vmatprep.subr.bf16.mxu0 0
    %8120 = vmatpush1.bf16.msra.mxu0 %v8092
    %8121 = vmatprep.subr.bf16.mxu0 0
    %8122 = vmatpush1.bf16.msra.mxu0 %v8091
    %8123 = vmatprep.subr.bf16.mxu0 0
    %8124 = vmatpush2.bf16.msra.mxu0 0
    %8125 = vmatprep.subr.bf16.mxu0 0
    %8126 = vmatpush2.bf16.msra.mxu0 0
    %8127 = vmatprep.subr.bf16.mxu0 0
    %8128 = vmatpush2.bf16.msra.mxu0 0
    %8129 = vmatprep.subr.bf16.mxu0 0
    %8130 = vmatpush2.bf16.msra.mxu0 0
    %8131 = vmatprep.subr.bf16.mxu0 0
    %8132 = vmatpush2.bf16.msra.mxu0 0
    %8133 = vmatprep.subr.bf16.mxu0 0
    %8134 = vmatpush2.bf16.msra.mxu0 0
    %8135 = vmatprep.subr.bf16.mxu0 0
    %8136 = vmatpush2.bf16.msra.mxu0 0
    %8137 = vmatprep.subr.bf16.mxu0 0
    %8138 = vmatpush2.bf16.msra.mxu0 0
    %8139 = vmatprep.mubr.bf16.mxu0 0
    %8140 = vmatmul.mubr.bf16.gmra.mxu0 %v8035
    %v8141 = vpop.f32.mrf.mxu0
    %v8142 = vadd.f32 %v8057, %v8141
    %v8143 = vpop.f32.mrf.mxu0
    %v8144 = vpop.f32.mrf.mxu0
    %v8145 = vpop.f32.mrf.mxu0
    %8146 = vdwg.mxu0
    %8147 = vst [vmem:[#allocation2] sm:$0x3] %v8142
    // Predicated region
    $region46: #{widar_lenet_forward.1} parent=1 // pred_check
      _
    $region47: #{widar_lenet_forward.1} parent=1 // pred_check_branch
      %8149 = sbr.rel (0) target = $region49
    $region48: #{widar_lenet_forward.1} parent=1 // pred_region
      %s8151 = ssub.s32 32, 32
      %8152 = vsyncadd [#allocation3], %s8151
      %s8154 = sshll.u32 [#allocation2], 4
      %s8155 = int_to_ptr.vmem [resolvable:$true] %s8154
      %8157 = dma.vmem_to_hbm [thread:$0]  %s8155, 32, %s11, [#allocation3]
    $region49: #{widar_lenet_forward.1} parent=1 // pred_fallthru
      _
    // Predicated region
    $region50: #{widar_lenet_forward.1} parent=1 // pred_check
      _
    $region51: #{widar_lenet_forward.1} parent=1 // pred_check_branch
      %8159 = sbr.rel (0) target = $region53
    $region52: #{widar_lenet_forward.1} parent=1 // pred_region
      %8160 = dma.done [#allocation3], 32
    $region53: #{widar_lenet_forward.1} parent=1 // pred_fallthru
      _
    %8161 = vsyncpa [#allocation3], 1

</llo_original>
